<compile_context>
chip_gen: v7x
topology: tpu7x:2x2x1
jax: 0.10.0
libtpu: 0.0.40
codegen_flags: <defaults>
</compile_context>

<pallas_src>
import jax
import jax.numpy as jnp
import numpy as np
from jax import lax
from jax.experimental import pallas as pl
from jax.experimental.pallas import tpu as pltpu


def _make_lap_kernel(depth, n_out_y):
    """Builds the fused LapLayer kernel.

    depth   : size of the innermost spatial dim D (needed to translate (dy, dz)
              stencil shifts into shifts on the flattened W*D lane axis).
    n_out_y : number of conv_y output channels (15 in the original module).
    """
    n_out = 1 + n_out_y  # channel 0 -> conv_x / b_i, channels 1.. -> conv_y / d_i

    def kernel(w_ref, phi_ref, mask_ref, interior_ref, b_ref, d_ref):
        # w_ref        : SMEM (1 + n_out_y, 27) f32  -- tap weights * (0.02/TE)
        # phi_ref      : VMEM (1, H, W*D) f32
        # mask_ref     : VMEM (1, H, W*D) f32
        # interior_ref : VMEM (H, W*D) f32, 1.0 strictly inside the volume
        # b_ref        : VMEM (1, 1, H, W*D) f32
        # d_ref        : VMEM (1, n_out_y, H, W*D) f32
        phi = phi_ref[0]
        er = jnp.cos(phi)
        ei = jnp.sin(phi)
        m_eff = mask_ref[0] * interior_ref[...]

        # Pre-roll along H once per dx; each is reused for 9 (dy, dz) taps.
        er_dx = {dx: (er if dx == 0 else jnp.roll(er, -dx, axis=0))
                 for dx in (-1, 0, 1)}
        ei_dx = {dx: (ei if dx == 0 else jnp.roll(ei, -dx, axis=0))
                 for dx in (-1, 0, 1)}

        # For tap t:  P_t = roll_t(sin)*cos - roll_t(cos)*sin, so that
        #   conv(ei, w)*er - conv(er, w)*ei == sum_t w[t] * P_t
        # Tap order (dx, dy, dz) lexicographic over (-1,0,1)^3 matches the
        # row-major flattening of the (3,3,3) conv weights.
        taps = []
        for dx in (-1, 0, 1):
            for dy in (-1, 0, 1):
                for dz in (-1, 0, 1):
                    s = -(dy * depth + dz)
                    tr = er_dx[dx] if s == 0 else jnp.roll(er_dx[dx], s, axis=1)
                    ti = ei_dx[dx] if s == 0 else jnp.roll(ei_dx[dx], s, axis=1)
                    taps.append(ti * er - tr * ei)

        # Channel mixing: each output channel is a weighted sum of the same 27
        # tap planes (scalar-broadcast FMAs; weights already carry 0.02/TE).
        for o in range(n_out):
            acc = w_ref[o, 0] * taps[0]
            for t in range(1, 27):
                acc = acc + w_ref[o, t] * taps[t]
            res = acc * m_eff
            if o == 0:
                b_ref[0, 0] = res
            else:
                d_ref[0, o - 1] = res

    return kernel


def lap_layer_forward(phi, mask, TE, conv_x, conv_y):
    """Fused LapLayer forward.

    phi, mask : (B, 1, H, W, D) float32
    TE        : scalar echo time
    conv_x    : (1, 1, 3, 3, 3) float32
    conv_y    : (Oy, 1, 3, 3, 3) float32   (Oy = 15 in the original module)
    Returns (b_i, d_i) of shapes (B, 1, H, W, D) and (B, Oy, H, W, D).
    """
    B, cin, H, W, D = phi.shape
    assert cin == 1, "LapLayer operates on a single-channel phase volume"
    oy = conv_y.shape[0]
    WD = W * D

    # Lane-dense layout: (W, D) flattened onto the lane axis.
    phi2 = phi.reshape(B, H, WD).astype(jnp.float32)
    mask2 = mask.reshape(B, H, WD).astype(jnp.float32)

    # Hoisted scalar math: fold the  /(3*TE) * (3*0.02)  scaling into the tiny
    # tap-weight table so the hot loop is a pure FMA stream.
    scale = (3.0 * 0.02) / (3.0 * float(TE))
    w_all = (jnp.concatenate(
        [conv_x.reshape(1, 27), conv_y.reshape(oy, 27)], axis=0)
        .astype(jnp.float32) * scale)                       # (1 + Oy, 27)

    # Interior indicator: implements LG()'s boundary zeroing and makes the
    # circular-roll stencil exact (wrap-around only touches the zeroed shell).
    interior_np = np.zeros((H, W, D), np.float32)
    interior_np[1:H - 1, 1:W - 1, 1:D - 1] = 1.0
    interior = jnp.asarray(interior_np.reshape(H, WD))

    kernel = _make_lap_kernel(D, oy)

    # TODO(synk): for volumes too large for VMEM, add an H-slab grid axis with
    # +/-1 halo rows instead of one whole volume per grid step.
    b2, d2 = pl.pallas_call(
        kernel,
        out_shape=(
            jax.ShapeDtypeStruct((B, 1, H, WD), jnp.float32),
            jax.ShapeDtypeStruct((B, oy, H, WD), jnp.float32),
        ),
        grid_spec=pltpu.PrefetchScalarGridSpec(
            num_scalar_prefetch=0,
            grid=(B,),
            in_specs=[
                pl.BlockSpec(memory_space=pltpu.MemorySpace.SMEM),   # weights
                pl.BlockSpec((1, H, WD), lambda b: (b, 0, 0)),       # phi
                pl.BlockSpec((1, H, WD), lambda b: (b, 0, 0)),       # mask
                pl.BlockSpec((H, WD), lambda b: (0, 0)),             # interior
            ],
            out_specs=[
                pl.BlockSpec((1, 1, H, WD), lambda b: (b, 0, 0, 0)),   # b_i
                pl.BlockSpec((1, oy, H, WD), lambda b: (b, 0, 0, 0)),  # d_i
            ],
        ),
        compiler_params=pltpu.CompilerParams(
            dimension_semantics=("parallel",),   # batch elements independent
            vmem_limit_bytes=32 * 1024 * 1024,
        ),
    )(w_all, phi2, mask2, interior)

    return b2.reshape(B, 1, H, W, D), d2.reshape(B, oy, H, W, D)


def reference(phi, mask, TE, conv_x, conv_y):
    """Pure-JAX/XLA replica of the PyTorch LapLayer.forward for verification."""
    def LG(img, w):
        out = lax.conv_general_dilated(
            img, w, window_strides=(1, 1, 1),
            padding=((1, 1), (1, 1), (1, 1)),
            dimension_numbers=("NCDHW", "OIDHW", "NCDHW"),
            precision=lax.Precision.HIGHEST)
        h, ww, d = out.shape[2], out.shape[3], out.shape[4]
        out = out.at[:, :, 0, :, :].set(0.0).at[:, :, h - 1, :, :].set(0.0)
        out = out.at[:, :, :, 0, :].set(0.0).at[:, :, :, ww - 1, :].set(0.0)
        out = out.at[:, :, :, :, 0].set(0.0).at[:, :, :, :, d - 1].set(0.0)
        return out

    er = jnp.cos(phi)
    ei = jnp.sin(phi)
    a_r = LG(er, conv_x)
    a_i = LG(ei, conv_x)
    b_i = (a_i * er - a_r * ei) * mask / (3.0 * TE) * (3.0 * 0.02)
    a_r = LG(er, conv_y)
    a_i = LG(ei, conv_y)
    d_i = (a_i * er - a_r * ei) * mask / (3.0 * TE) * (3.0 * 0.02)
    return b_i, d_i


if __name__ == "__main__":
    key = jax.random.PRNGKey(0)
    B, H, W, D = 2, 16, 16, 16
    OY = 15
    TE = 0.02
    k = jax.random.split(key, 3)

    phi = jax.random.normal(k[0], (B, 1, H, W, D), dtype=jnp.float32)
    mask = (jax.random.uniform(k[1], (B, 1, H, W, D)) > 0.3).astype(jnp.float32)

    # conv_x is a learned 3x3x3 stencil; conv_y is its 15-channel repeat,
    # exactly as in LapLayer.__init__ (the kernel handles arbitrary conv_y).
    conv_x = jax.random.normal(k[2], (1, 1, 3, 3, 3), dtype=jnp.float32)
    conv_y = jnp.tile(conv_x, (OY, 1, 1, 1, 1))

    b_i, d_i = lap_layer_forward(phi, mask, TE, conv_x, conv_y)
    b_i, d_i = jax.block_until_ready((b_i, d_i))

    b_ref, d_ref = reference(phi, mask, TE, conv_x, conv_y)
    assert b_i.shape == (B, 1, H, W, D) and b_i.dtype == jnp.float32
    assert d_i.shape == (B, OY, H, W, D) and d_i.dtype == jnp.float32
    np.testing.assert_allclose(np.asarray(b_i), np.asarray(b_ref),
                               rtol=1e-4, atol=1e-4)
    np.testing.assert_allclose(np.asarray(d_i), np.asarray(d_ref),
                               rtol=1e-4, atol=1e-4)
    print("KERNEL_OK")
</pallas_src>

<mosaic_0001>
module attributes {stable_mosaic.version = 11 : i64} {
  func.func @kernel(%arg0: i32, %arg1: memref<16x27xf32, #tpu.memory_space<smem>>, %arg2: memref<1x16x256xf32, #tpu.memory_space<vmem>>, %arg3: memref<1x16x256xf32, #tpu.memory_space<vmem>>, %arg4: memref<16x256xf32, #tpu.memory_space<vmem>>, %arg5: memref<1x1x16x256xf32, #tpu.memory_space<vmem>>, %arg6: memref<1x15x16x256xf32, #tpu.memory_space<vmem>>) attributes {dimension_semantics = [#tpu.dimension_semantics<parallel>], iteration_bounds = array<i64: 2>, scalar_prefetch = 0 : i64, scratch_operands = 0 : i64, tpu.core_type = #tpu.core_type<tc>, window_params = [{transform_indices = @transform_0, window_bounds = array<i64: 16, 27>}, {transform_indices = @transform_1, window_bounds = array<i64: 1, 16, 256>}, {transform_indices = @transform_2, window_bounds = array<i64: 1, 16, 256>}, {pipeline_mode = #tpu.pipeline_mode<synchronous>, transform_indices = @transform_3, window_bounds = array<i64: 16, 256>}, {transform_indices = @transform_4, window_bounds = array<i64: 1, 1, 16, 256>}, {transform_indices = @transform_5, window_bounds = array<i64: 1, 15, 16, 256>}]} {
    %c0 = arith.constant 0 : index
    %c0_0 = arith.constant 0 : index
    %c0_1 = arith.constant 0 : index
    %0 = vector.load %arg2[%c0, %c0_0, %c0_1] : memref<1x16x256xf32, #tpu.memory_space<vmem>>, vector<1x16x256xf32>
    %1 = vector.shape_cast %0 : vector<1x16x256xf32> to vector<16x256xf32>
    %2 = math.cos %1 : vector<16x256xf32>
    %3 = math.sin %1 : vector<16x256xf32>
    %c0_2 = arith.constant 0 : index
    %c0_3 = arith.constant 0 : index
    %c0_4 = arith.constant 0 : index
    %4 = vector.load %arg3[%c0_2, %c0_3, %c0_4] : memref<1x16x256xf32, #tpu.memory_space<vmem>>, vector<1x16x256xf32>
    %5 = vector.shape_cast %4 : vector<1x16x256xf32> to vector<16x256xf32>
    %c0_5 = arith.constant 0 : index
    %c0_6 = arith.constant 0 : index
    %6 = vector.load %arg4[%c0_5, %c0_6] : memref<16x256xf32, #tpu.memory_space<vmem>>, vector<16x256xf32>
    %7 = arith.mulf %5, %6 : vector<16x256xf32>
    %8 = vector.extract_strided_slice %2 {offsets = [15, 0], sizes = [1, 256], strides = [1, 1]} : vector<16x256xf32> to vector<1x256xf32>
    %9 = vector.extract_strided_slice %2 {offsets = [0, 0], sizes = [15, 256], strides = [1, 1]} : vector<16x256xf32> to vector<15x256xf32>
    %10 = tpu.concatenate %8, %9 in 0 : vector<1x256xf32>, vector<15x256xf32> -> vector<16x256xf32>
    %11 = vector.extract_strided_slice %2 {offsets = [1, 0], sizes = [15, 256], strides = [1, 1]} : vector<16x256xf32> to vector<15x256xf32>
    %12 = vector.extract_strided_slice %2 {offsets = [0, 0], sizes = [1, 256], strides = [1, 1]} : vector<16x256xf32> to vector<1x256xf32>
    %13 = tpu.concatenate %11, %12 in 0 : vector<15x256xf32>, vector<1x256xf32> -> vector<16x256xf32>
    %14 = vector.extract_strided_slice %3 {offsets = [15, 0], sizes = [1, 256], strides = [1, 1]} : vector<16x256xf32> to vector<1x256xf32>
    %15 = vector.extract_strided_slice %3 {offsets = [0, 0], sizes = [15, 256], strides = [1, 1]} : vector<16x256xf32> to vector<15x256xf32>
    %16 = tpu.concatenate %14, %15 in 0 : vector<1x256xf32>, vector<15x256xf32> -> vector<16x256xf32>
    %17 = vector.extract_strided_slice %3 {offsets = [1, 0], sizes = [15, 256], strides = [1, 1]} : vector<16x256xf32> to vector<15x256xf32>
    %18 = vector.extract_strided_slice %3 {offsets = [0, 0], sizes = [1, 256], strides = [1, 1]} : vector<16x256xf32> to vector<1x256xf32>
    %19 = tpu.concatenate %17, %18 in 0 : vector<15x256xf32>, vector<1x256xf32> -> vector<16x256xf32>
    %20 = vector.extract_strided_slice %10 {offsets = [0, 239], sizes = [16, 17], strides = [1, 1]} : vector<16x256xf32> to vector<16x17xf32>
    %21 = vector.extract_strided_slice %10 {offsets = [0, 0], sizes = [16, 239], strides = [1, 1]} : vector<16x256xf32> to vector<16x239xf32>
    %22 = tpu.concatenate %20, %21 in 1 : vector<16x17xf32>, vector<16x239xf32> -> vector<16x256xf32>
    %23 = vector.extract_strided_slice %16 {offsets = [0, 239], sizes = [16, 17], strides = [1, 1]} : vector<16x256xf32> to vector<16x17xf32>
    %24 = vector.extract_strided_slice %16 {offsets = [0, 0], sizes = [16, 239], strides = [1, 1]} : vector<16x256xf32> to vector<16x239xf32>
    %25 = tpu.concatenate %23, %24 in 1 : vector<16x17xf32>, vector<16x239xf32> -> vector<16x256xf32>
    %26 = arith.mulf %25, %2 : vector<16x256xf32>
    %27 = arith.mulf %22, %3 : vector<16x256xf32>
    %28 = arith.subf %26, %27 : vector<16x256xf32>
    %29 = vector.extract_strided_slice %10 {offsets = [0, 240], sizes = [16, 16], strides = [1, 1]} : vector<16x256xf32> to vector<16x16xf32>
    %30 = vector.extract_strided_slice %10 {offsets = [0, 0], sizes = [16, 240], strides = [1, 1]} : vector<16x256xf32> to vector<16x240xf32>
    %31 = tpu.concatenate %29, %30 in 1 : vector<16x16xf32>, vector<16x240xf32> -> vector<16x256xf32>
    %32 = vector.extract_strided_slice %16 {offsets = [0, 240], sizes = [16, 16], strides = [1, 1]} : vector<16x256xf32> to vector<16x16xf32>
    %33 = vector.extract_strided_slice %16 {offsets = [0, 0], sizes = [16, 240], strides = [1, 1]} : vector<16x256xf32> to vector<16x240xf32>
    %34 = tpu.concatenate %32, %33 in 1 : vector<16x16xf32>, vector<16x240xf32> -> vector<16x256xf32>
    %35 = arith.mulf %34, %2 : vector<16x256xf32>
    %36 = arith.mulf %31, %3 : vector<16x256xf32>
    %37 = arith.subf %35, %36 : vector<16x256xf32>
    %38 = vector.extract_strided_slice %10 {offsets = [0, 241], sizes = [16, 15], strides = [1, 1]} : vector<16x256xf32> to vector<16x15xf32>
    %39 = vector.extract_strided_slice %10 {offsets = [0, 0], sizes = [16, 241], strides = [1, 1]} : vector<16x256xf32> to vector<16x241xf32>
    %40 = tpu.concatenate %38, %39 in 1 : vector<16x15xf32>, vector<16x241xf32> -> vector<16x256xf32>
    %41 = vector.extract_strided_slice %16 {offsets = [0, 241], sizes = [16, 15], strides = [1, 1]} : vector<16x256xf32> to vector<16x15xf32>
    %42 = vector.extract_strided_slice %16 {offsets = [0, 0], sizes = [16, 241], strides = [1, 1]} : vector<16x256xf32> to vector<16x241xf32>
    %43 = tpu.concatenate %41, %42 in 1 : vector<16x15xf32>, vector<16x241xf32> -> vector<16x256xf32>
    %44 = arith.mulf %43, %2 : vector<16x256xf32>
    %45 = arith.mulf %40, %3 : vector<16x256xf32>
    %46 = arith.subf %44, %45 : vector<16x256xf32>
    %47 = vector.extract_strided_slice %10 {offsets = [0, 255], sizes = [16, 1], strides = [1, 1]} : vector<16x256xf32> to vector<16x1xf32>
    %48 = vector.extract_strided_slice %10 {offsets = [0, 0], sizes = [16, 255], strides = [1, 1]} : vector<16x256xf32> to vector<16x255xf32>
    %49 = tpu.concatenate %47, %48 in 1 : vector<16x1xf32>, vector<16x255xf32> -> vector<16x256xf32>
    %50 = vector.extract_strided_slice %16 {offsets = [0, 255], sizes = [16, 1], strides = [1, 1]} : vector<16x256xf32> to vector<16x1xf32>
    %51 = vector.extract_strided_slice %16 {offsets = [0, 0], sizes = [16, 255], strides = [1, 1]} : vector<16x256xf32> to vector<16x255xf32>
    %52 = tpu.concatenate %50, %51 in 1 : vector<16x1xf32>, vector<16x255xf32> -> vector<16x256xf32>
    %53 = arith.mulf %52, %2 : vector<16x256xf32>
    %54 = arith.mulf %49, %3 : vector<16x256xf32>
    %55 = arith.subf %53, %54 : vector<16x256xf32>
    %56 = arith.mulf %16, %2 : vector<16x256xf32>
    %57 = arith.mulf %10, %3 : vector<16x256xf32>
    %58 = arith.subf %56, %57 : vector<16x256xf32>
    %59 = vector.extract_strided_slice %10 {offsets = [0, 1], sizes = [16, 255], strides = [1, 1]} : vector<16x256xf32> to vector<16x255xf32>
    %60 = vector.extract_strided_slice %10 {offsets = [0, 0], sizes = [16, 1], strides = [1, 1]} : vector<16x256xf32> to vector<16x1xf32>
    %61 = tpu.concatenate %59, %60 in 1 : vector<16x255xf32>, vector<16x1xf32> -> vector<16x256xf32>
    %62 = vector.extract_strided_slice %16 {offsets = [0, 1], sizes = [16, 255], strides = [1, 1]} : vector<16x256xf32> to vector<16x255xf32>
    %63 = vector.extract_strided_slice %16 {offsets = [0, 0], sizes = [16, 1], strides = [1, 1]} : vector<16x256xf32> to vector<16x1xf32>
    %64 = tpu.concatenate %62, %63 in 1 : vector<16x255xf32>, vector<16x1xf32> -> vector<16x256xf32>
    %65 = arith.mulf %64, %2 : vector<16x256xf32>
    %66 = arith.mulf %61, %3 : vector<16x256xf32>
    %67 = arith.subf %65, %66 : vector<16x256xf32>
    %68 = vector.extract_strided_slice %10 {offsets = [0, 15], sizes = [16, 241], strides = [1, 1]} : vector<16x256xf32> to vector<16x241xf32>
    %69 = vector.extract_strided_slice %10 {offsets = [0, 0], sizes = [16, 15], strides = [1, 1]} : vector<16x256xf32> to vector<16x15xf32>
    %70 = tpu.concatenate %68, %69 in 1 : vector<16x241xf32>, vector<16x15xf32> -> vector<16x256xf32>
    %71 = vector.extract_strided_slice %16 {offsets = [0, 15], sizes = [16, 241], strides = [1, 1]} : vector<16x256xf32> to vector<16x241xf32>
    %72 = vector.extract_strided_slice %16 {offsets = [0, 0], sizes = [16, 15], strides = [1, 1]} : vector<16x256xf32> to vector<16x15xf32>
    %73 = tpu.concatenate %71, %72 in 1 : vector<16x241xf32>, vector<16x15xf32> -> vector<16x256xf32>
    %74 = arith.mulf %73, %2 : vector<16x256xf32>
    %75 = arith.mulf %70, %3 : vector<16x256xf32>
    %76 = arith.subf %74, %75 : vector<16x256xf32>
    %77 = vector.extract_strided_slice %10 {offsets = [0, 16], sizes = [16, 240], strides = [1, 1]} : vector<16x256xf32> to vector<16x240xf32>
    %78 = vector.extract_strided_slice %10 {offsets = [0, 0], sizes = [16, 16], strides = [1, 1]} : vector<16x256xf32> to vector<16x16xf32>
    %79 = tpu.concatenate %77, %78 in 1 : vector<16x240xf32>, vector<16x16xf32> -> vector<16x256xf32>
    %80 = vector.extract_strided_slice %16 {offsets = [0, 16], sizes = [16, 240], strides = [1, 1]} : vector<16x256xf32> to vector<16x240xf32>
    %81 = vector.extract_strided_slice %16 {offsets = [0, 0], sizes = [16, 16], strides = [1, 1]} : vector<16x256xf32> to vector<16x16xf32>
    %82 = tpu.concatenate %80, %81 in 1 : vector<16x240xf32>, vector<16x16xf32> -> vector<16x256xf32>
    %83 = arith.mulf %82, %2 : vector<16x256xf32>
    %84 = arith.mulf %79, %3 : vector<16x256xf32>
    %85 = arith.subf %83, %84 : vector<16x256xf32>
    %86 = vector.extract_strided_slice %10 {offsets = [0, 17], sizes = [16, 239], strides = [1, 1]} : vector<16x256xf32> to vector<16x239xf32>
    %87 = vector.extract_strided_slice %10 {offsets = [0, 0], sizes = [16, 17], strides = [1, 1]} : vector<16x256xf32> to vector<16x17xf32>
    %88 = tpu.concatenate %86, %87 in 1 : vector<16x239xf32>, vector<16x17xf32> -> vector<16x256xf32>
    %89 = vector.extract_strided_slice %16 {offsets = [0, 17], sizes = [16, 239], strides = [1, 1]} : vector<16x256xf32> to vector<16x239xf32>
    %90 = vector.extract_strided_slice %16 {offsets = [0, 0], sizes = [16, 17], strides = [1, 1]} : vector<16x256xf32> to vector<16x17xf32>
    %91 = tpu.concatenate %89, %90 in 1 : vector<16x239xf32>, vector<16x17xf32> -> vector<16x256xf32>
    %92 = arith.mulf %91, %2 : vector<16x256xf32>
    %93 = arith.mulf %88, %3 : vector<16x256xf32>
    %94 = arith.subf %92, %93 : vector<16x256xf32>
    %95 = vector.extract_strided_slice %2 {offsets = [0, 239], sizes = [16, 17], strides = [1, 1]} : vector<16x256xf32> to vector<16x17xf32>
    %96 = vector.extract_strided_slice %2 {offsets = [0, 0], sizes = [16, 239], strides = [1, 1]} : vector<16x256xf32> to vector<16x239xf32>
    %97 = tpu.concatenate %95, %96 in 1 : vector<16x17xf32>, vector<16x239xf32> -> vector<16x256xf32>
    %98 = vector.extract_strided_slice %3 {offsets = [0, 239], sizes = [16, 17], strides = [1, 1]} : vector<16x256xf32> to vector<16x17xf32>
    %99 = vector.extract_strided_slice %3 {offsets = [0, 0], sizes = [16, 239], strides = [1, 1]} : vector<16x256xf32> to vector<16x239xf32>
    %100 = tpu.concatenate %98, %99 in 1 : vector<16x17xf32>, vector<16x239xf32> -> vector<16x256xf32>
    %101 = arith.mulf %100, %2 : vector<16x256xf32>
    %102 = arith.mulf %97, %3 : vector<16x256xf32>
    %103 = arith.subf %101, %102 : vector<16x256xf32>
    %104 = vector.extract_strided_slice %2 {offsets = [0, 240], sizes = [16, 16], strides = [1, 1]} : vector<16x256xf32> to vector<16x16xf32>
    %105 = vector.extract_strided_slice %2 {offsets = [0, 0], sizes = [16, 240], strides = [1, 1]} : vector<16x256xf32> to vector<16x240xf32>
    %106 = tpu.concatenate %104, %105 in 1 : vector<16x16xf32>, vector<16x240xf32> -> vector<16x256xf32>
    %107 = vector.extract_strided_slice %3 {offsets = [0, 240], sizes = [16, 16], strides = [1, 1]} : vector<16x256xf32> to vector<16x16xf32>
    %108 = vector.extract_strided_slice %3 {offsets = [0, 0], sizes = [16, 240], strides = [1, 1]} : vector<16x256xf32> to vector<16x240xf32>
    %109 = tpu.concatenate %107, %108 in 1 : vector<16x16xf32>, vector<16x240xf32> -> vector<16x256xf32>
    %110 = arith.mulf %109, %2 : vector<16x256xf32>
    %111 = arith.mulf %106, %3 : vector<16x256xf32>
    %112 = arith.subf %110, %111 : vector<16x256xf32>
    %113 = vector.extract_strided_slice %2 {offsets = [0, 241], sizes = [16, 15], strides = [1, 1]} : vector<16x256xf32> to vector<16x15xf32>
    %114 = vector.extract_strided_slice %2 {offsets = [0, 0], sizes = [16, 241], strides = [1, 1]} : vector<16x256xf32> to vector<16x241xf32>
    %115 = tpu.concatenate %113, %114 in 1 : vector<16x15xf32>, vector<16x241xf32> -> vector<16x256xf32>
    %116 = vector.extract_strided_slice %3 {offsets = [0, 241], sizes = [16, 15], strides = [1, 1]} : vector<16x256xf32> to vector<16x15xf32>
    %117 = vector.extract_strided_slice %3 {offsets = [0, 0], sizes = [16, 241], strides = [1, 1]} : vector<16x256xf32> to vector<16x241xf32>
    %118 = tpu.concatenate %116, %117 in 1 : vector<16x15xf32>, vector<16x241xf32> -> vector<16x256xf32>
    %119 = arith.mulf %118, %2 : vector<16x256xf32>
    %120 = arith.mulf %115, %3 : vector<16x256xf32>
    %121 = arith.subf %119, %120 : vector<16x256xf32>
    %122 = vector.extract_strided_slice %2 {offsets = [0, 255], sizes = [16, 1], strides = [1, 1]} : vector<16x256xf32> to vector<16x1xf32>
    %123 = vector.extract_strided_slice %2 {offsets = [0, 0], sizes = [16, 255], strides = [1, 1]} : vector<16x256xf32> to vector<16x255xf32>
    %124 = tpu.concatenate %122, %123 in 1 : vector<16x1xf32>, vector<16x255xf32> -> vector<16x256xf32>
    %125 = vector.extract_strided_slice %3 {offsets = [0, 255], sizes = [16, 1], strides = [1, 1]} : vector<16x256xf32> to vector<16x1xf32>
    %126 = vector.extract_strided_slice %3 {offsets = [0, 0], sizes = [16, 255], strides = [1, 1]} : vector<16x256xf32> to vector<16x255xf32>
    %127 = tpu.concatenate %125, %126 in 1 : vector<16x1xf32>, vector<16x255xf32> -> vector<16x256xf32>
    %128 = arith.mulf %127, %2 : vector<16x256xf32>
    %129 = arith.mulf %124, %3 : vector<16x256xf32>
    %130 = arith.subf %128, %129 : vector<16x256xf32>
    %131 = arith.mulf %3, %2 : vector<16x256xf32>
    %132 = arith.mulf %2, %3 : vector<16x256xf32>
    %133 = arith.subf %131, %132 : vector<16x256xf32>
    %134 = vector.extract_strided_slice %2 {offsets = [0, 1], sizes = [16, 255], strides = [1, 1]} : vector<16x256xf32> to vector<16x255xf32>
    %135 = vector.extract_strided_slice %2 {offsets = [0, 0], sizes = [16, 1], strides = [1, 1]} : vector<16x256xf32> to vector<16x1xf32>
    %136 = tpu.concatenate %134, %135 in 1 : vector<16x255xf32>, vector<16x1xf32> -> vector<16x256xf32>
    %137 = vector.extract_strided_slice %3 {offsets = [0, 1], sizes = [16, 255], strides = [1, 1]} : vector<16x256xf32> to vector<16x255xf32>
    %138 = vector.extract_strided_slice %3 {offsets = [0, 0], sizes = [16, 1], strides = [1, 1]} : vector<16x256xf32> to vector<16x1xf32>
    %139 = tpu.concatenate %137, %138 in 1 : vector<16x255xf32>, vector<16x1xf32> -> vector<16x256xf32>
    %140 = arith.mulf %139, %2 : vector<16x256xf32>
    %141 = arith.mulf %136, %3 : vector<16x256xf32>
    %142 = arith.subf %140, %141 : vector<16x256xf32>
    %143 = vector.extract_strided_slice %2 {offsets = [0, 15], sizes = [16, 241], strides = [1, 1]} : vector<16x256xf32> to vector<16x241xf32>
    %144 = vector.extract_strided_slice %2 {offsets = [0, 0], sizes = [16, 15], strides = [1, 1]} : vector<16x256xf32> to vector<16x15xf32>
    %145 = tpu.concatenate %143, %144 in 1 : vector<16x241xf32>, vector<16x15xf32> -> vector<16x256xf32>
    %146 = vector.extract_strided_slice %3 {offsets = [0, 15], sizes = [16, 241], strides = [1, 1]} : vector<16x256xf32> to vector<16x241xf32>
    %147 = vector.extract_strided_slice %3 {offsets = [0, 0], sizes = [16, 15], strides = [1, 1]} : vector<16x256xf32> to vector<16x15xf32>
    %148 = tpu.concatenate %146, %147 in 1 : vector<16x241xf32>, vector<16x15xf32> -> vector<16x256xf32>
    %149 = arith.mulf %148, %2 : vector<16x256xf32>
    %150 = arith.mulf %145, %3 : vector<16x256xf32>
    %151 = arith.subf %149, %150 : vector<16x256xf32>
    %152 = vector.extract_strided_slice %2 {offsets = [0, 16], sizes = [16, 240], strides = [1, 1]} : vector<16x256xf32> to vector<16x240xf32>
    %153 = vector.extract_strided_slice %2 {offsets = [0, 0], sizes = [16, 16], strides = [1, 1]} : vector<16x256xf32> to vector<16x16xf32>
    %154 = tpu.concatenate %152, %153 in 1 : vector<16x240xf32>, vector<16x16xf32> -> vector<16x256xf32>
    %155 = vector.extract_strided_slice %3 {offsets = [0, 16], sizes = [16, 240], strides = [1, 1]} : vector<16x256xf32> to vector<16x240xf32>
    %156 = vector.extract_strided_slice %3 {offsets = [0, 0], sizes = [16, 16], strides = [1, 1]} : vector<16x256xf32> to vector<16x16xf32>
    %157 = tpu.concatenate %155, %156 in 1 : vector<16x240xf32>, vector<16x16xf32> -> vector<16x256xf32>
    %158 = arith.mulf %157, %2 : vector<16x256xf32>
    %159 = arith.mulf %154, %3 : vector<16x256xf32>
    %160 = arith.subf %158, %159 : vector<16x256xf32>
    %161 = vector.extract_strided_slice %2 {offsets = [0, 17], sizes = [16, 239], strides = [1, 1]} : vector<16x256xf32> to vector<16x239xf32>
    %162 = vector.extract_strided_slice %2 {offsets = [0, 0], sizes = [16, 17], strides = [1, 1]} : vector<16x256xf32> to vector<16x17xf32>
    %163 = tpu.concatenate %161, %162 in 1 : vector<16x239xf32>, vector<16x17xf32> -> vector<16x256xf32>
    %164 = vector.extract_strided_slice %3 {offsets = [0, 17], sizes = [16, 239], strides = [1, 1]} : vector<16x256xf32> to vector<16x239xf32>
    %165 = vector.extract_strided_slice %3 {offsets = [0, 0], sizes = [16, 17], strides = [1, 1]} : vector<16x256xf32> to vector<16x17xf32>
    %166 = tpu.concatenate %164, %165 in 1 : vector<16x239xf32>, vector<16x17xf32> -> vector<16x256xf32>
    %167 = arith.mulf %166, %2 : vector<16x256xf32>
    %168 = arith.mulf %163, %3 : vector<16x256xf32>
    %169 = arith.subf %167, %168 : vector<16x256xf32>
    %170 = vector.extract_strided_slice %13 {offsets = [0, 239], sizes = [16, 17], strides = [1, 1]} : vector<16x256xf32> to vector<16x17xf32>
    %171 = vector.extract_strided_slice %13 {offsets = [0, 0], sizes = [16, 239], strides = [1, 1]} : vector<16x256xf32> to vector<16x239xf32>
    %172 = tpu.concatenate %170, %171 in 1 : vector<16x17xf32>, vector<16x239xf32> -> vector<16x256xf32>
    %173 = vector.extract_strided_slice %19 {offsets = [0, 239], sizes = [16, 17], strides = [1, 1]} : vector<16x256xf32> to vector<16x17xf32>
    %174 = vector.extract_strided_slice %19 {offsets = [0, 0], sizes = [16, 239], strides = [1, 1]} : vector<16x256xf32> to vector<16x239xf32>
    %175 = tpu.concatenate %173, %174 in 1 : vector<16x17xf32>, vector<16x239xf32> -> vector<16x256xf32>
    %176 = arith.mulf %175, %2 : vector<16x256xf32>
    %177 = arith.mulf %172, %3 : vector<16x256xf32>
    %178 = arith.subf %176, %177 : vector<16x256xf32>
    %179 = vector.extract_strided_slice %13 {offsets = [0, 240], sizes = [16, 16], strides = [1, 1]} : vector<16x256xf32> to vector<16x16xf32>
    %180 = vector.extract_strided_slice %13 {offsets = [0, 0], sizes = [16, 240], strides = [1, 1]} : vector<16x256xf32> to vector<16x240xf32>
    %181 = tpu.concatenate %179, %180 in 1 : vector<16x16xf32>, vector<16x240xf32> -> vector<16x256xf32>
    %182 = vector.extract_strided_slice %19 {offsets = [0, 240], sizes = [16, 16], strides = [1, 1]} : vector<16x256xf32> to vector<16x16xf32>
    %183 = vector.extract_strided_slice %19 {offsets = [0, 0], sizes = [16, 240], strides = [1, 1]} : vector<16x256xf32> to vector<16x240xf32>
    %184 = tpu.concatenate %182, %183 in 1 : vector<16x16xf32>, vector<16x240xf32> -> vector<16x256xf32>
    %185 = arith.mulf %184, %2 : vector<16x256xf32>
    %186 = arith.mulf %181, %3 : vector<16x256xf32>
    %187 = arith.subf %185, %186 : vector<16x256xf32>
    %188 = vector.extract_strided_slice %13 {offsets = [0, 241], sizes = [16, 15], strides = [1, 1]} : vector<16x256xf32> to vector<16x15xf32>
    %189 = vector.extract_strided_slice %13 {offsets = [0, 0], sizes = [16, 241], strides = [1, 1]} : vector<16x256xf32> to vector<16x241xf32>
    %190 = tpu.concatenate %188, %189 in 1 : vector<16x15xf32>, vector<16x241xf32> -> vector<16x256xf32>
    %191 = vector.extract_strided_slice %19 {offsets = [0, 241], sizes = [16, 15], strides = [1, 1]} : vector<16x256xf32> to vector<16x15xf32>
    %192 = vector.extract_strided_slice %19 {offsets = [0, 0], sizes = [16, 241], strides = [1, 1]} : vector<16x256xf32> to vector<16x241xf32>
    %193 = tpu.concatenate %191, %192 in 1 : vector<16x15xf32>, vector<16x241xf32> -> vector<16x256xf32>
    %194 = arith.mulf %193, %2 : vector<16x256xf32>
    %195 = arith.mulf %190, %3 : vector<16x256xf32>
    %196 = arith.subf %194, %195 : vector<16x256xf32>
    %197 = vector.extract_strided_slice %13 {offsets = [0, 255], sizes = [16, 1], strides = [1, 1]} : vector<16x256xf32> to vector<16x1xf32>
    %198 = vector.extract_strided_slice %13 {offsets = [0, 0], sizes = [16, 255], strides = [1, 1]} : vector<16x256xf32> to vector<16x255xf32>
    %199 = tpu.concatenate %197, %198 in 1 : vector<16x1xf32>, vector<16x255xf32> -> vector<16x256xf32>
    %200 = vector.extract_strided_slice %19 {offsets = [0, 255], sizes = [16, 1], strides = [1, 1]} : vector<16x256xf32> to vector<16x1xf32>
    %201 = vector.extract_strided_slice %19 {offsets = [0, 0], sizes = [16, 255], strides = [1, 1]} : vector<16x256xf32> to vector<16x255xf32>
    %202 = tpu.concatenate %200, %201 in 1 : vector<16x1xf32>, vector<16x255xf32> -> vector<16x256xf32>
    %203 = arith.mulf %202, %2 : vector<16x256xf32>
    %204 = arith.mulf %199, %3 : vector<16x256xf32>
    %205 = arith.subf %203, %204 : vector<16x256xf32>
    %206 = arith.mulf %19, %2 : vector<16x256xf32>
    %207 = arith.mulf %13, %3 : vector<16x256xf32>
    %208 = arith.subf %206, %207 : vector<16x256xf32>
    %209 = vector.extract_strided_slice %13 {offsets = [0, 1], sizes = [16, 255], strides = [1, 1]} : vector<16x256xf32> to vector<16x255xf32>
    %210 = vector.extract_strided_slice %13 {offsets = [0, 0], sizes = [16, 1], strides = [1, 1]} : vector<16x256xf32> to vector<16x1xf32>
    %211 = tpu.concatenate %209, %210 in 1 : vector<16x255xf32>, vector<16x1xf32> -> vector<16x256xf32>
    %212 = vector.extract_strided_slice %19 {offsets = [0, 1], sizes = [16, 255], strides = [1, 1]} : vector<16x256xf32> to vector<16x255xf32>
    %213 = vector.extract_strided_slice %19 {offsets = [0, 0], sizes = [16, 1], strides = [1, 1]} : vector<16x256xf32> to vector<16x1xf32>
    %214 = tpu.concatenate %212, %213 in 1 : vector<16x255xf32>, vector<16x1xf32> -> vector<16x256xf32>
    %215 = arith.mulf %214, %2 : vector<16x256xf32>
    %216 = arith.mulf %211, %3 : vector<16x256xf32>
    %217 = arith.subf %215, %216 : vector<16x256xf32>
    %218 = vector.extract_strided_slice %13 {offsets = [0, 15], sizes = [16, 241], strides = [1, 1]} : vector<16x256xf32> to vector<16x241xf32>
    %219 = vector.extract_strided_slice %13 {offsets = [0, 0], sizes = [16, 15], strides = [1, 1]} : vector<16x256xf32> to vector<16x15xf32>
    %220 = tpu.concatenate %218, %219 in 1 : vector<16x241xf32>, vector<16x15xf32> -> vector<16x256xf32>
    %221 = vector.extract_strided_slice %19 {offsets = [0, 15], sizes = [16, 241], strides = [1, 1]} : vector<16x256xf32> to vector<16x241xf32>
    %222 = vector.extract_strided_slice %19 {offsets = [0, 0], sizes = [16, 15], strides = [1, 1]} : vector<16x256xf32> to vector<16x15xf32>
    %223 = tpu.concatenate %221, %222 in 1 : vector<16x241xf32>, vector<16x15xf32> -> vector<16x256xf32>
    %224 = arith.mulf %223, %2 : vector<16x256xf32>
    %225 = arith.mulf %220, %3 : vector<16x256xf32>
    %226 = arith.subf %224, %225 : vector<16x256xf32>
    %227 = vector.extract_strided_slice %13 {offsets = [0, 16], sizes = [16, 240], strides = [1, 1]} : vector<16x256xf32> to vector<16x240xf32>
    %228 = vector.extract_strided_slice %13 {offsets = [0, 0], sizes = [16, 16], strides = [1, 1]} : vector<16x256xf32> to vector<16x16xf32>
    %229 = tpu.concatenate %227, %228 in 1 : vector<16x240xf32>, vector<16x16xf32> -> vector<16x256xf32>
    %230 = vector.extract_strided_slice %19 {offsets = [0, 16], sizes = [16, 240], strides = [1, 1]} : vector<16x256xf32> to vector<16x240xf32>
    %231 = vector.extract_strided_slice %19 {offsets = [0, 0], sizes = [16, 16], strides = [1, 1]} : vector<16x256xf32> to vector<16x16xf32>
    %232 = tpu.concatenate %230, %231 in 1 : vector<16x240xf32>, vector<16x16xf32> -> vector<16x256xf32>
    %233 = arith.mulf %232, %2 : vector<16x256xf32>
    %234 = arith.mulf %229, %3 : vector<16x256xf32>
    %235 = arith.subf %233, %234 : vector<16x256xf32>
    %236 = vector.extract_strided_slice %13 {offsets = [0, 17], sizes = [16, 239], strides = [1, 1]} : vector<16x256xf32> to vector<16x239xf32>
    %237 = vector.extract_strided_slice %13 {offsets = [0, 0], sizes = [16, 17], strides = [1, 1]} : vector<16x256xf32> to vector<16x17xf32>
    %238 = tpu.concatenate %236, %237 in 1 : vector<16x239xf32>, vector<16x17xf32> -> vector<16x256xf32>
    %239 = vector.extract_strided_slice %19 {offsets = [0, 17], sizes = [16, 239], strides = [1, 1]} : vector<16x256xf32> to vector<16x239xf32>
    %240 = vector.extract_strided_slice %19 {offsets = [0, 0], sizes = [16, 17], strides = [1, 1]} : vector<16x256xf32> to vector<16x17xf32>
    %241 = tpu.concatenate %239, %240 in 1 : vector<16x239xf32>, vector<16x17xf32> -> vector<16x256xf32>
    %242 = arith.mulf %241, %2 : vector<16x256xf32>
    %243 = arith.mulf %238, %3 : vector<16x256xf32>
    %244 = arith.subf %242, %243 : vector<16x256xf32>
    %c0_7 = arith.constant 0 : index
    %c0_8 = arith.constant 0 : index
    %245 = memref.load %arg1[%c0_7, %c0_8] : memref<16x27xf32, #tpu.memory_space<smem>>
    %246 = vector.broadcast %245 : f32 to vector<16x256xf32>
    %247 = arith.mulf %246, %28 : vector<16x256xf32>
    %c0_9 = arith.constant 0 : index
    %c1 = arith.constant 1 : index
    %248 = memref.load %arg1[%c0_9, %c1] : memref<16x27xf32, #tpu.memory_space<smem>>
    %249 = vector.broadcast %248 : f32 to vector<16x256xf32>
    %250 = arith.mulf %249, %37 : vector<16x256xf32>
    %251 = arith.addf %247, %250 : vector<16x256xf32>
    %c0_10 = arith.constant 0 : index
    %c2 = arith.constant 2 : index
    %252 = memref.load %arg1[%c0_10, %c2] : memref<16x27xf32, #tpu.memory_space<smem>>
    %253 = vector.broadcast %252 : f32 to vector<16x256xf32>
    %254 = arith.mulf %253, %46 : vector<16x256xf32>
    %255 = arith.addf %251, %254 : vector<16x256xf32>
    %c0_11 = arith.constant 0 : index
    %c3 = arith.constant 3 : index
    %256 = memref.load %arg1[%c0_11, %c3] : memref<16x27xf32, #tpu.memory_space<smem>>
    %257 = vector.broadcast %256 : f32 to vector<16x256xf32>
    %258 = arith.mulf %257, %55 : vector<16x256xf32>
    %259 = arith.addf %255, %258 : vector<16x256xf32>
    %c0_12 = arith.constant 0 : index
    %c4 = arith.constant 4 : index
    %260 = memref.load %arg1[%c0_12, %c4] : memref<16x27xf32, #tpu.memory_space<smem>>
    %261 = vector.broadcast %260 : f32 to vector<16x256xf32>
    %262 = arith.mulf %261, %58 : vector<16x256xf32>
    %263 = arith.addf %259, %262 : vector<16x256xf32>
    %c0_13 = arith.constant 0 : index
    %c5 = arith.constant 5 : index
    %264 = memref.load %arg1[%c0_13, %c5] : memref<16x27xf32, #tpu.memory_space<smem>>
    %265 = vector.broadcast %264 : f32 to vector<16x256xf32>
    %266 = arith.mulf %265, %67 : vector<16x256xf32>
    %267 = arith.addf %263, %266 : vector<16x256xf32>
    %c0_14 = arith.constant 0 : index
    %c6 = arith.constant 6 : index
    %268 = memref.load %arg1[%c0_14, %c6] : memref<16x27xf32, #tpu.memory_space<smem>>
    %269 = vector.broadcast %268 : f32 to vector<16x256xf32>
    %270 = arith.mulf %269, %76 : vector<16x256xf32>
    %271 = arith.addf %267, %270 : vector<16x256xf32>
    %c0_15 = arith.constant 0 : index
    %c7 = arith.constant 7 : index
    %272 = memref.load %arg1[%c0_15, %c7] : memref<16x27xf32, #tpu.memory_space<smem>>
    %273 = vector.broadcast %272 : f32 to vector<16x256xf32>
    %274 = arith.mulf %273, %85 : vector<16x256xf32>
    %275 = arith.addf %271, %274 : vector<16x256xf32>
    %c0_16 = arith.constant 0 : index
    %c8 = arith.constant 8 : index
    %276 = memref.load %arg1[%c0_16, %c8] : memref<16x27xf32, #tpu.memory_space<smem>>
    %277 = vector.broadcast %276 : f32 to vector<16x256xf32>
    %278 = arith.mulf %277, %94 : vector<16x256xf32>
    %279 = arith.addf %275, %278 : vector<16x256xf32>
    %c0_17 = arith.constant 0 : index
    %c9 = arith.constant 9 : index
    %280 = memref.load %arg1[%c0_17, %c9] : memref<16x27xf32, #tpu.memory_space<smem>>
    %281 = vector.broadcast %280 : f32 to vector<16x256xf32>
    %282 = arith.mulf %281, %103 : vector<16x256xf32>
    %283 = arith.addf %279, %282 : vector<16x256xf32>
    %c0_18 = arith.constant 0 : index
    %c10 = arith.constant 10 : index
    %284 = memref.load %arg1[%c0_18, %c10] : memref<16x27xf32, #tpu.memory_space<smem>>
    %285 = vector.broadcast %284 : f32 to vector<16x256xf32>
    %286 = arith.mulf %285, %112 : vector<16x256xf32>
    %287 = arith.addf %283, %286 : vector<16x256xf32>
    %c0_19 = arith.constant 0 : index
    %c11 = arith.constant 11 : index
    %288 = memref.load %arg1[%c0_19, %c11] : memref<16x27xf32, #tpu.memory_space<smem>>
    %289 = vector.broadcast %288 : f32 to vector<16x256xf32>
    %290 = arith.mulf %289, %121 : vector<16x256xf32>
    %291 = arith.addf %287, %290 : vector<16x256xf32>
    %c0_20 = arith.constant 0 : index
    %c12 = arith.constant 12 : index
    %292 = memref.load %arg1[%c0_20, %c12] : memref<16x27xf32, #tpu.memory_space<smem>>
    %293 = vector.broadcast %292 : f32 to vector<16x256xf32>
    %294 = arith.mulf %293, %130 : vector<16x256xf32>
    %295 = arith.addf %291, %294 : vector<16x256xf32>
    %c0_21 = arith.constant 0 : index
    %c13 = arith.constant 13 : index
    %296 = memref.load %arg1[%c0_21, %c13] : memref<16x27xf32, #tpu.memory_space<smem>>
    %297 = vector.broadcast %296 : f32 to vector<16x256xf32>
    %298 = arith.mulf %297, %133 : vector<16x256xf32>
    %299 = arith.addf %295, %298 : vector<16x256xf32>
    %c0_22 = arith.constant 0 : index
    %c14 = arith.constant 14 : index
    %300 = memref.load %arg1[%c0_22, %c14] : memref<16x27xf32, #tpu.memory_space<smem>>
    %301 = vector.broadcast %300 : f32 to vector<16x256xf32>
    %302 = arith.mulf %301, %142 : vector<16x256xf32>
    %303 = arith.addf %299, %302 : vector<16x256xf32>
    %c0_23 = arith.constant 0 : index
    %c15 = arith.constant 15 : index
    %304 = memref.load %arg1[%c0_23, %c15] : memref<16x27xf32, #tpu.memory_space<smem>>
    %305 = vector.broadcast %304 : f32 to vector<16x256xf32>
    %306 = arith.mulf %305, %151 : vector<16x256xf32>
    %307 = arith.addf %303, %306 : vector<16x256xf32>
    %c0_24 = arith.constant 0 : index
    %c16 = arith.constant 16 : index
    %308 = memref.load %arg1[%c0_24, %c16] : memref<16x27xf32, #tpu.memory_space<smem>>
    %309 = vector.broadcast %308 : f32 to vector<16x256xf32>
    %310 = arith.mulf %309, %160 : vector<16x256xf32>
    %311 = arith.addf %307, %310 : vector<16x256xf32>
    %c0_25 = arith.constant 0 : index
    %c17 = arith.constant 17 : index
    %312 = memref.load %arg1[%c0_25, %c17] : memref<16x27xf32, #tpu.memory_space<smem>>
    %313 = vector.broadcast %312 : f32 to vector<16x256xf32>
    %314 = arith.mulf %313, %169 : vector<16x256xf32>
    %315 = arith.addf %311, %314 : vector<16x256xf32>
    %c0_26 = arith.constant 0 : index
    %c18 = arith.constant 18 : index
    %316 = memref.load %arg1[%c0_26, %c18] : memref<16x27xf32, #tpu.memory_space<smem>>
    %317 = vector.broadcast %316 : f32 to vector<16x256xf32>
    %318 = arith.mulf %317, %178 : vector<16x256xf32>
    %319 = arith.addf %315, %318 : vector<16x256xf32>
    %c0_27 = arith.constant 0 : index
    %c19 = arith.constant 19 : index
    %320 = memref.load %arg1[%c0_27, %c19] : memref<16x27xf32, #tpu.memory_space<smem>>
    %321 = vector.broadcast %320 : f32 to vector<16x256xf32>
    %322 = arith.mulf %321, %187 : vector<16x256xf32>
    %323 = arith.addf %319, %322 : vector<16x256xf32>
    %c0_28 = arith.constant 0 : index
    %c20 = arith.constant 20 : index
    %324 = memref.load %arg1[%c0_28, %c20] : memref<16x27xf32, #tpu.memory_space<smem>>
    %325 = vector.broadcast %324 : f32 to vector<16x256xf32>
    %326 = arith.mulf %325, %196 : vector<16x256xf32>
    %327 = arith.addf %323, %326 : vector<16x256xf32>
    %c0_29 = arith.constant 0 : index
    %c21 = arith.constant 21 : index
    %328 = memref.load %arg1[%c0_29, %c21] : memref<16x27xf32, #tpu.memory_space<smem>>
    %329 = vector.broadcast %328 : f32 to vector<16x256xf32>
    %330 = arith.mulf %329, %205 : vector<16x256xf32>
    %331 = arith.addf %327, %330 : vector<16x256xf32>
    %c0_30 = arith.constant 0 : index
    %c22 = arith.constant 22 : index
    %332 = memref.load %arg1[%c0_30, %c22] : memref<16x27xf32, #tpu.memory_space<smem>>
    %333 = vector.broadcast %332 : f32 to vector<16x256xf32>
    %334 = arith.mulf %333, %208 : vector<16x256xf32>
    %335 = arith.addf %331, %334 : vector<16x256xf32>
    %c0_31 = arith.constant 0 : index
    %c23 = arith.constant 23 : index
    %336 = memref.load %arg1[%c0_31, %c23] : memref<16x27xf32, #tpu.memory_space<smem>>
    %337 = vector.broadcast %336 : f32 to vector<16x256xf32>
    %338 = arith.mulf %337, %217 : vector<16x256xf32>
    %339 = arith.addf %335, %338 : vector<16x256xf32>
    %c0_32 = arith.constant 0 : index
    %c24 = arith.constant 24 : index
    %340 = memref.load %arg1[%c0_32, %c24] : memref<16x27xf32, #tpu.memory_space<smem>>
    %341 = vector.broadcast %340 : f32 to vector<16x256xf32>
    %342 = arith.mulf %341, %226 : vector<16x256xf32>
    %343 = arith.addf %339, %342 : vector<16x256xf32>
    %c0_33 = arith.constant 0 : index
    %c25 = arith.constant 25 : index
    %344 = memref.load %arg1[%c0_33, %c25] : memref<16x27xf32, #tpu.memory_space<smem>>
    %345 = vector.broadcast %344 : f32 to vector<16x256xf32>
    %346 = arith.mulf %345, %235 : vector<16x256xf32>
    %347 = arith.addf %343, %346 : vector<16x256xf32>
    %c0_34 = arith.constant 0 : index
    %c26 = arith.constant 26 : index
    %348 = memref.load %arg1[%c0_34, %c26] : memref<16x27xf32, #tpu.memory_space<smem>>
    %349 = vector.broadcast %348 : f32 to vector<16x256xf32>
    %350 = arith.mulf %349, %244 : vector<16x256xf32>
    %351 = arith.addf %347, %350 : vector<16x256xf32>
    %352 = arith.mulf %351, %7 : vector<16x256xf32>
    %c0_35 = arith.constant 0 : index
    %c0_36 = arith.constant 0 : index
    %c0_37 = arith.constant 0 : index
    %c0_38 = arith.constant 0 : index
    %353 = vector.load %arg5[%c0_35, %c0_36, %c0_37, %c0_38] : memref<1x1x16x256xf32, #tpu.memory_space<vmem>>, vector<1x1x16x256xf32>
    %354 = vector.shape_cast %353 : vector<1x1x16x256xf32> to vector<16x256xf32>
    %355 = vector.shape_cast %352 : vector<16x256xf32> to vector<1x1x16x256xf32>
    tpu.vector_store %arg5[%c0_35, %c0_36, %c0_37, %c0_38], %355 {strides = array<i32>} : memref<1x1x16x256xf32, #tpu.memory_space<vmem>>, vector<1x1x16x256xf32>,
    %c1_39 = arith.constant 1 : index
    %c0_40 = arith.constant 0 : index
    %356 = memref.load %arg1[%c1_39, %c0_40] : memref<16x27xf32, #tpu.memory_space<smem>>
    %357 = vector.broadcast %356 : f32 to vector<16x256xf32>
    %358 = arith.mulf %357, %28 : vector<16x256xf32>
    %c1_41 = arith.constant 1 : index
    %c1_42 = arith.constant 1 : index
    %359 = memref.load %arg1[%c1_41, %c1_42] : memref<16x27xf32, #tpu.memory_space<smem>>
    %360 = vector.broadcast %359 : f32 to vector<16x256xf32>
    %361 = arith.mulf %360, %37 : vector<16x256xf32>
    %362 = arith.addf %358, %361 : vector<16x256xf32>
    %c1_43 = arith.constant 1 : index
    %c2_44 = arith.constant 2 : index
    %363 = memref.load %arg1[%c1_43, %c2_44] : memref<16x27xf32, #tpu.memory_space<smem>>
    %364 = vector.broadcast %363 : f32 to vector<16x256xf32>
    %365 = arith.mulf %364, %46 : vector<16x256xf32>
    %366 = arith.addf %362, %365 : vector<16x256xf32>
    %c1_45 = arith.constant 1 : index
    %c3_46 = arith.constant 3 : index
    %367 = memref.load %arg1[%c1_45, %c3_46] : memref<16x27xf32, #tpu.memory_space<smem>>
    %368 = vector.broadcast %367 : f32 to vector<16x256xf32>
    %369 = arith.mulf %368, %55 : vector<16x256xf32>
    %370 = arith.addf %366, %369 : vector<16x256xf32>
    %c1_47 = arith.constant 1 : index
    %c4_48 = arith.constant 4 : index
    %371 = memref.load %arg1[%c1_47, %c4_48] : memref<16x27xf32, #tpu.memory_space<smem>>
    %372 = vector.broadcast %371 : f32 to vector<16x256xf32>
    %373 = arith.mulf %372, %58 : vector<16x256xf32>
    %374 = arith.addf %370, %373 : vector<16x256xf32>
    %c1_49 = arith.constant 1 : index
    %c5_50 = arith.constant 5 : index
    %375 = memref.load %arg1[%c1_49, %c5_50] : memref<16x27xf32, #tpu.memory_space<smem>>
    %376 = vector.broadcast %375 : f32 to vector<16x256xf32>
    %377 = arith.mulf %376, %67 : vector<16x256xf32>
    %378 = arith.addf %374, %377 : vector<16x256xf32>
    %c1_51 = arith.constant 1 : index
    %c6_52 = arith.constant 6 : index
    %379 = memref.load %arg1[%c1_51, %c6_52] : memref<16x27xf32, #tpu.memory_space<smem>>
    %380 = vector.broadcast %379 : f32 to vector<16x256xf32>
    %381 = arith.mulf %380, %76 : vector<16x256xf32>
    %382 = arith.addf %378, %381 : vector<16x256xf32>
    %c1_53 = arith.constant 1 : index
    %c7_54 = arith.constant 7 : index
    %383 = memref.load %arg1[%c1_53, %c7_54] : memref<16x27xf32, #tpu.memory_space<smem>>
    %384 = vector.broadcast %383 : f32 to vector<16x256xf32>
    %385 = arith.mulf %384, %85 : vector<16x256xf32>
    %386 = arith.addf %382, %385 : vector<16x256xf32>
    %c1_55 = arith.constant 1 : index
    %c8_56 = arith.constant 8 : index
    %387 = memref.load %arg1[%c1_55, %c8_56] : memref<16x27xf32, #tpu.memory_space<smem>>
    %388 = vector.broadcast %387 : f32 to vector<16x256xf32>
    %389 = arith.mulf %388, %94 : vector<16x256xf32>
    %390 = arith.addf %386, %389 : vector<16x256xf32>
    %c1_57 = arith.constant 1 : index
    %c9_58 = arith.constant 9 : index
    %391 = memref.load %arg1[%c1_57, %c9_58] : memref<16x27xf32, #tpu.memory_space<smem>>
    %392 = vector.broadcast %391 : f32 to vector<16x256xf32>
    %393 = arith.mulf %392, %103 : vector<16x256xf32>
    %394 = arith.addf %390, %393 : vector<16x256xf32>
    %c1_59 = arith.constant 1 : index
    %c10_60 = arith.constant 10 : index
    %395 = memref.load %arg1[%c1_59, %c10_60] : memref<16x27xf32, #tpu.memory_space<smem>>
    %396 = vector.broadcast %395 : f32 to vector<16x256xf32>
    %397 = arith.mulf %396, %112 : vector<16x256xf32>
    %398 = arith.addf %394, %397 : vector<16x256xf32>
    %c1_61 = arith.constant 1 : index
    %c11_62 = arith.constant 11 : index
    %399 = memref.load %arg1[%c1_61, %c11_62] : memref<16x27xf32, #tpu.memory_space<smem>>
    %400 = vector.broadcast %399 : f32 to vector<16x256xf32>
    %401 = arith.mulf %400, %121 : vector<16x256xf32>
    %402 = arith.addf %398, %401 : vector<16x256xf32>
    %c1_63 = arith.constant 1 : index
    %c12_64 = arith.constant 12 : index
    %403 = memref.load %arg1[%c1_63, %c12_64] : memref<16x27xf32, #tpu.memory_space<smem>>
    %404 = vector.broadcast %403 : f32 to vector<16x256xf32>
    %405 = arith.mulf %404, %130 : vector<16x256xf32>
    %406 = arith.addf %402, %405 : vector<16x256xf32>
    %c1_65 = arith.constant 1 : index
    %c13_66 = arith.constant 13 : index
    %407 = memref.load %arg1[%c1_65, %c13_66] : memref<16x27xf32, #tpu.memory_space<smem>>
    %408 = vector.broadcast %407 : f32 to vector<16x256xf32>
    %409 = arith.mulf %408, %133 : vector<16x256xf32>
    %410 = arith.addf %406, %409 : vector<16x256xf32>
    %c1_67 = arith.constant 1 : index
    %c14_68 = arith.constant 14 : index
    %411 = memref.load %arg1[%c1_67, %c14_68] : memref<16x27xf32, #tpu.memory_space<smem>>
    %412 = vector.broadcast %411 : f32 to vector<16x256xf32>
    %413 = arith.mulf %412, %142 : vector<16x256xf32>
    %414 = arith.addf %410, %413 : vector<16x256xf32>
    %c1_69 = arith.constant 1 : index
    %c15_70 = arith.constant 15 : index
    %415 = memref.load %arg1[%c1_69, %c15_70] : memref<16x27xf32, #tpu.memory_space<smem>>
    %416 = vector.broadcast %415 : f32 to vector<16x256xf32>
    %417 = arith.mulf %416, %151 : vector<16x256xf32>
    %418 = arith.addf %414, %417 : vector<16x256xf32>
    %c1_71 = arith.constant 1 : index
    %c16_72 = arith.constant 16 : index
    %419 = memref.load %arg1[%c1_71, %c16_72] : memref<16x27xf32, #tpu.memory_space<smem>>
    %420 = vector.broadcast %419 : f32 to vector<16x256xf32>
    %421 = arith.mulf %420, %160 : vector<16x256xf32>
    %422 = arith.addf %418, %421 : vector<16x256xf32>
    %c1_73 = arith.constant 1 : index
    %c17_74 = arith.constant 17 : index
    %423 = memref.load %arg1[%c1_73, %c17_74] : memref<16x27xf32, #tpu.memory_space<smem>>
    %424 = vector.broadcast %423 : f32 to vector<16x256xf32>
    %425 = arith.mulf %424, %169 : vector<16x256xf32>
    %426 = arith.addf %422, %425 : vector<16x256xf32>
    %c1_75 = arith.constant 1 : index
    %c18_76 = arith.constant 18 : index
    %427 = memref.load %arg1[%c1_75, %c18_76] : memref<16x27xf32, #tpu.memory_space<smem>>
    %428 = vector.broadcast %427 : f32 to vector<16x256xf32>
    %429 = arith.mulf %428, %178 : vector<16x256xf32>
    %430 = arith.addf %426, %429 : vector<16x256xf32>
    %c1_77 = arith.constant 1 : index
    %c19_78 = arith.constant 19 : index
    %431 = memref.load %arg1[%c1_77, %c19_78] : memref<16x27xf32, #tpu.memory_space<smem>>
    %432 = vector.broadcast %431 : f32 to vector<16x256xf32>
    %433 = arith.mulf %432, %187 : vector<16x256xf32>
    %434 = arith.addf %430, %433 : vector<16x256xf32>
    %c1_79 = arith.constant 1 : index
    %c20_80 = arith.constant 20 : index
    %435 = memref.load %arg1[%c1_79, %c20_80] : memref<16x27xf32, #tpu.memory_space<smem>>
    %436 = vector.broadcast %435 : f32 to vector<16x256xf32>
    %437 = arith.mulf %436, %196 : vector<16x256xf32>
    %438 = arith.addf %434, %437 : vector<16x256xf32>
    %c1_81 = arith.constant 1 : index
    %c21_82 = arith.constant 21 : index
    %439 = memref.load %arg1[%c1_81, %c21_82] : memref<16x27xf32, #tpu.memory_space<smem>>
    %440 = vector.broadcast %439 : f32 to vector<16x256xf32>
    %441 = arith.mulf %440, %205 : vector<16x256xf32>
    %442 = arith.addf %438, %441 : vector<16x256xf32>
    %c1_83 = arith.constant 1 : index
    %c22_84 = arith.constant 22 : index
    %443 = memref.load %arg1[%c1_83, %c22_84] : memref<16x27xf32, #tpu.memory_space<smem>>
    %444 = vector.broadcast %443 : f32 to vector<16x256xf32>
    %445 = arith.mulf %444, %208 : vector<16x256xf32>
    %446 = arith.addf %442, %445 : vector<16x256xf32>
    %c1_85 = arith.constant 1 : index
    %c23_86 = arith.constant 23 : index
    %447 = memref.load %arg1[%c1_85, %c23_86] : memref<16x27xf32, #tpu.memory_space<smem>>
    %448 = vector.broadcast %447 : f32 to vector<16x256xf32>
    %449 = arith.mulf %448, %217 : vector<16x256xf32>
    %450 = arith.addf %446, %449 : vector<16x256xf32>
    %c1_87 = arith.constant 1 : index
    %c24_88 = arith.constant 24 : index
    %451 = memref.load %arg1[%c1_87, %c24_88] : memref<16x27xf32, #tpu.memory_space<smem>>
    %452 = vector.broadcast %451 : f32 to vector<16x256xf32>
    %453 = arith.mulf %452, %226 : vector<16x256xf32>
    %454 = arith.addf %450, %453 : vector<16x256xf32>
    %c1_89 = arith.constant 1 : index
    %c25_90 = arith.constant 25 : index
    %455 = memref.load %arg1[%c1_89, %c25_90] : memref<16x27xf32, #tpu.memory_space<smem>>
    %456 = vector.broadcast %455 : f32 to vector<16x256xf32>
    %457 = arith.mulf %456, %235 : vector<16x256xf32>
    %458 = arith.addf %454, %457 : vector<16x256xf32>
    %c1_91 = arith.constant 1 : index
    %c26_92 = arith.constant 26 : index
    %459 = memref.load %arg1[%c1_91, %c26_92] : memref<16x27xf32, #tpu.memory_space<smem>>
    %460 = vector.broadcast %459 : f32 to vector<16x256xf32>
    %461 = arith.mulf %460, %244 : vector<16x256xf32>
    %462 = arith.addf %458, %461 : vector<16x256xf32>
    %463 = arith.mulf %462, %7 : vector<16x256xf32>
    %c0_93 = arith.constant 0 : index
    %c0_94 = arith.constant 0 : index
    %c0_95 = arith.constant 0 : index
    %c0_96 = arith.constant 0 : index
    %464 = vector.load %arg6[%c0_93, %c0_94, %c0_95, %c0_96] : memref<1x15x16x256xf32, #tpu.memory_space<vmem>>, vector<1x1x16x256xf32>
    %465 = vector.shape_cast %464 : vector<1x1x16x256xf32> to vector<16x256xf32>
    %466 = vector.shape_cast %463 : vector<16x256xf32> to vector<1x1x16x256xf32>
    tpu.vector_store %arg6[%c0_93, %c0_94, %c0_95, %c0_96], %466 {strides = array<i32>} : memref<1x15x16x256xf32, #tpu.memory_space<vmem>>, vector<1x1x16x256xf32>,
    %c2_97 = arith.constant 2 : index
    %c0_98 = arith.constant 0 : index
    %467 = memref.load %arg1[%c2_97, %c0_98] : memref<16x27xf32, #tpu.memory_space<smem>>
    %468 = vector.broadcast %467 : f32 to vector<16x256xf32>
    %469 = arith.mulf %468, %28 : vector<16x256xf32>
    %c2_99 = arith.constant 2 : index
    %c1_100 = arith.constant 1 : index
    %470 = memref.load %arg1[%c2_99, %c1_100] : memref<16x27xf32, #tpu.memory_space<smem>>
    %471 = vector.broadcast %470 : f32 to vector<16x256xf32>
    %472 = arith.mulf %471, %37 : vector<16x256xf32>
    %473 = arith.addf %469, %472 : vector<16x256xf32>
    %c2_101 = arith.constant 2 : index
    %c2_102 = arith.constant 2 : index
    %474 = memref.load %arg1[%c2_101, %c2_102] : memref<16x27xf32, #tpu.memory_space<smem>>
    %475 = vector.broadcast %474 : f32 to vector<16x256xf32>
    %476 = arith.mulf %475, %46 : vector<16x256xf32>
    %477 = arith.addf %473, %476 : vector<16x256xf32>
    %c2_103 = arith.constant 2 : index
    %c3_104 = arith.constant 3 : index
    %478 = memref.load %arg1[%c2_103, %c3_104] : memref<16x27xf32, #tpu.memory_space<smem>>
    %479 = vector.broadcast %478 : f32 to vector<16x256xf32>
    %480 = arith.mulf %479, %55 : vector<16x256xf32>
    %481 = arith.addf %477, %480 : vector<16x256xf32>
    %c2_105 = arith.constant 2 : index
    %c4_106 = arith.constant 4 : index
    %482 = memref.load %arg1[%c2_105, %c4_106] : memref<16x27xf32, #tpu.memory_space<smem>>
    %483 = vector.broadcast %482 : f32 to vector<16x256xf32>
    %484 = arith.mulf %483, %58 : vector<16x256xf32>
    %485 = arith.addf %481, %484 : vector<16x256xf32>
    %c2_107 = arith.constant 2 : index
    %c5_108 = arith.constant 5 : index
    %486 = memref.load %arg1[%c2_107, %c5_108] : memref<16x27xf32, #tpu.memory_space<smem>>
    %487 = vector.broadcast %486 : f32 to vector<16x256xf32>
    %488 = arith.mulf %487, %67 : vector<16x256xf32>
    %489 = arith.addf %485, %488 : vector<16x256xf32>
    %c2_109 = arith.constant 2 : index
    %c6_110 = arith.constant 6 : index
    %490 = memref.load %arg1[%c2_109, %c6_110] : memref<16x27xf32, #tpu.memory_space<smem>>
    %491 = vector.broadcast %490 : f32 to vector<16x256xf32>
    %492 = arith.mulf %491, %76 : vector<16x256xf32>
    %493 = arith.addf %489, %492 : vector<16x256xf32>
    %c2_111 = arith.constant 2 : index
    %c7_112 = arith.constant 7 : index
    %494 = memref.load %arg1[%c2_111, %c7_112] : memref<16x27xf32, #tpu.memory_space<smem>>
    %495 = vector.broadcast %494 : f32 to vector<16x256xf32>
    %496 = arith.mulf %495, %85 : vector<16x256xf32>
    %497 = arith.addf %493, %496 : vector<16x256xf32>
    %c2_113 = arith.constant 2 : index
    %c8_114 = arith.constant 8 : index
    %498 = memref.load %arg1[%c2_113, %c8_114] : memref<16x27xf32, #tpu.memory_space<smem>>
    %499 = vector.broadcast %498 : f32 to vector<16x256xf32>
    %500 = arith.mulf %499, %94 : vector<16x256xf32>
    %501 = arith.addf %497, %500 : vector<16x256xf32>
    %c2_115 = arith.constant 2 : index
    %c9_116 = arith.constant 9 : index
    %502 = memref.load %arg1[%c2_115, %c9_116] : memref<16x27xf32, #tpu.memory_space<smem>>
    %503 = vector.broadcast %502 : f32 to vector<16x256xf32>
    %504 = arith.mulf %503, %103 : vector<16x256xf32>
    %505 = arith.addf %501, %504 : vector<16x256xf32>
    %c2_117 = arith.constant 2 : index
    %c10_118 = arith.constant 10 : index
    %506 = memref.load %arg1[%c2_117, %c10_118] : memref<16x27xf32, #tpu.memory_space<smem>>
    %507 = vector.broadcast %506 : f32 to vector<16x256xf32>
    %508 = arith.mulf %507, %112 : vector<16x256xf32>
    %509 = arith.addf %505, %508 : vector<16x256xf32>
    %c2_119 = arith.constant 2 : index
    %c11_120 = arith.constant 11 : index
    %510 = memref.load %arg1[%c2_119, %c11_120] : memref<16x27xf32, #tpu.memory_space<smem>>
    %511 = vector.broadcast %510 : f32 to vector<16x256xf32>
    %512 = arith.mulf %511, %121 : vector<16x256xf32>
    %513 = arith.addf %509, %512 : vector<16x256xf32>
    %c2_121 = arith.constant 2 : index
    %c12_122 = arith.constant 12 : index
    %514 = memref.load %arg1[%c2_121, %c12_122] : memref<16x27xf32, #tpu.memory_space<smem>>
    %515 = vector.broadcast %514 : f32 to vector<16x256xf32>
    %516 = arith.mulf %515, %130 : vector<16x256xf32>
    %517 = arith.addf %513, %516 : vector<16x256xf32>
    %c2_123 = arith.constant 2 : index
    %c13_124 = arith.constant 13 : index
    %518 = memref.load %arg1[%c2_123, %c13_124] : memref<16x27xf32, #tpu.memory_space<smem>>
    %519 = vector.broadcast %518 : f32 to vector<16x256xf32>
    %520 = arith.mulf %519, %133 : vector<16x256xf32>
    %521 = arith.addf %517, %520 : vector<16x256xf32>
    %c2_125 = arith.constant 2 : index
    %c14_126 = arith.constant 14 : index
    %522 = memref.load %arg1[%c2_125, %c14_126] : memref<16x27xf32, #tpu.memory_space<smem>>
    %523 = vector.broadcast %522 : f32 to vector<16x256xf32>
    %524 = arith.mulf %523, %142 : vector<16x256xf32>
    %525 = arith.addf %521, %524 : vector<16x256xf32>
    %c2_127 = arith.constant 2 : index
    %c15_128 = arith.constant 15 : index
    %526 = memref.load %arg1[%c2_127, %c15_128] : memref<16x27xf32, #tpu.memory_space<smem>>
    %527 = vector.broadcast %526 : f32 to vector<16x256xf32>
    %528 = arith.mulf %527, %151 : vector<16x256xf32>
    %529 = arith.addf %525, %528 : vector<16x256xf32>
    %c2_129 = arith.constant 2 : index
    %c16_130 = arith.constant 16 : index
    %530 = memref.load %arg1[%c2_129, %c16_130] : memref<16x27xf32, #tpu.memory_space<smem>>
    %531 = vector.broadcast %530 : f32 to vector<16x256xf32>
    %532 = arith.mulf %531, %160 : vector<16x256xf32>
    %533 = arith.addf %529, %532 : vector<16x256xf32>
    %c2_131 = arith.constant 2 : index
    %c17_132 = arith.constant 17 : index
    %534 = memref.load %arg1[%c2_131, %c17_132] : memref<16x27xf32, #tpu.memory_space<smem>>
    %535 = vector.broadcast %534 : f32 to vector<16x256xf32>
    %536 = arith.mulf %535, %169 : vector<16x256xf32>
    %537 = arith.addf %533, %536 : vector<16x256xf32>
    %c2_133 = arith.constant 2 : index
    %c18_134 = arith.constant 18 : index
    %538 = memref.load %arg1[%c2_133, %c18_134] : memref<16x27xf32, #tpu.memory_space<smem>>
    %539 = vector.broadcast %538 : f32 to vector<16x256xf32>
    %540 = arith.mulf %539, %178 : vector<16x256xf32>
    %541 = arith.addf %537, %540 : vector<16x256xf32>
    %c2_135 = arith.constant 2 : index
    %c19_136 = arith.constant 19 : index
    %542 = memref.load %arg1[%c2_135, %c19_136] : memref<16x27xf32, #tpu.memory_space<smem>>
    %543 = vector.broadcast %542 : f32 to vector<16x256xf32>
    %544 = arith.mulf %543, %187 : vector<16x256xf32>
    %545 = arith.addf %541, %544 : vector<16x256xf32>
    %c2_137 = arith.constant 2 : index
    %c20_138 = arith.constant 20 : index
    %546 = memref.load %arg1[%c2_137, %c20_138] : memref<16x27xf32, #tpu.memory_space<smem>>
    %547 = vector.broadcast %546 : f32 to vector<16x256xf32>
    %548 = arith.mulf %547, %196 : vector<16x256xf32>
    %549 = arith.addf %545, %548 : vector<16x256xf32>
    %c2_139 = arith.constant 2 : index
    %c21_140 = arith.constant 21 : index
    %550 = memref.load %arg1[%c2_139, %c21_140] : memref<16x27xf32, #tpu.memory_space<smem>>
    %551 = vector.broadcast %550 : f32 to vector<16x256xf32>
    %552 = arith.mulf %551, %205 : vector<16x256xf32>
    %553 = arith.addf %549, %552 : vector<16x256xf32>
    %c2_141 = arith.constant 2 : index
    %c22_142 = arith.constant 22 : index
    %554 = memref.load %arg1[%c2_141, %c22_142] : memref<16x27xf32, #tpu.memory_space<smem>>
    %555 = vector.broadcast %554 : f32 to vector<16x256xf32>
    %556 = arith.mulf %555, %208 : vector<16x256xf32>
    %557 = arith.addf %553, %556 : vector<16x256xf32>
    %c2_143 = arith.constant 2 : index
    %c23_144 = arith.constant 23 : index
    %558 = memref.load %arg1[%c2_143, %c23_144] : memref<16x27xf32, #tpu.memory_space<smem>>
    %559 = vector.broadcast %558 : f32 to vector<16x256xf32>
    %560 = arith.mulf %559, %217 : vector<16x256xf32>
    %561 = arith.addf %557, %560 : vector<16x256xf32>
    %c2_145 = arith.constant 2 : index
    %c24_146 = arith.constant 24 : index
    %562 = memref.load %arg1[%c2_145, %c24_146] : memref<16x27xf32, #tpu.memory_space<smem>>
    %563 = vector.broadcast %562 : f32 to vector<16x256xf32>
    %564 = arith.mulf %563, %226 : vector<16x256xf32>
    %565 = arith.addf %561, %564 : vector<16x256xf32>
    %c2_147 = arith.constant 2 : index
    %c25_148 = arith.constant 25 : index
    %566 = memref.load %arg1[%c2_147, %c25_148] : memref<16x27xf32, #tpu.memory_space<smem>>
    %567 = vector.broadcast %566 : f32 to vector<16x256xf32>
    %568 = arith.mulf %567, %235 : vector<16x256xf32>
    %569 = arith.addf %565, %568 : vector<16x256xf32>
    %c2_149 = arith.constant 2 : index
    %c26_150 = arith.constant 26 : index
    %570 = memref.load %arg1[%c2_149, %c26_150] : memref<16x27xf32, #tpu.memory_space<smem>>
    %571 = vector.broadcast %570 : f32 to vector<16x256xf32>
    %572 = arith.mulf %571, %244 : vector<16x256xf32>
    %573 = arith.addf %569, %572 : vector<16x256xf32>
    %574 = arith.mulf %573, %7 : vector<16x256xf32>
    %c0_151 = arith.constant 0 : index
    %c1_152 = arith.constant 1 : index
    %c0_153 = arith.constant 0 : index
    %c0_154 = arith.constant 0 : index
    %575 = vector.load %arg6[%c0_151, %c1_152, %c0_153, %c0_154] : memref<1x15x16x256xf32, #tpu.memory_space<vmem>>, vector<1x1x16x256xf32>
    %576 = vector.shape_cast %575 : vector<1x1x16x256xf32> to vector<16x256xf32>
    %577 = vector.shape_cast %574 : vector<16x256xf32> to vector<1x1x16x256xf32>
    tpu.vector_store %arg6[%c0_151, %c1_152, %c0_153, %c0_154], %577 {strides = array<i32>} : memref<1x15x16x256xf32, #tpu.memory_space<vmem>>, vector<1x1x16x256xf32>,
    %c3_155 = arith.constant 3 : index
    %c0_156 = arith.constant 0 : index
    %578 = memref.load %arg1[%c3_155, %c0_156] : memref<16x27xf32, #tpu.memory_space<smem>>
    %579 = vector.broadcast %578 : f32 to vector<16x256xf32>
    %580 = arith.mulf %579, %28 : vector<16x256xf32>
    %c3_157 = arith.constant 3 : index
    %c1_158 = arith.constant 1 : index
    %581 = memref.load %arg1[%c3_157, %c1_158] : memref<16x27xf32, #tpu.memory_space<smem>>
    %582 = vector.broadcast %581 : f32 to vector<16x256xf32>
    %583 = arith.mulf %582, %37 : vector<16x256xf32>
    %584 = arith.addf %580, %583 : vector<16x256xf32>
    %c3_159 = arith.constant 3 : index
    %c2_160 = arith.constant 2 : index
    %585 = memref.load %arg1[%c3_159, %c2_160] : memref<16x27xf32, #tpu.memory_space<smem>>
    %586 = vector.broadcast %585 : f32 to vector<16x256xf32>
    %587 = arith.mulf %586, %46 : vector<16x256xf32>
    %588 = arith.addf %584, %587 : vector<16x256xf32>
    %c3_161 = arith.constant 3 : index
    %c3_162 = arith.constant 3 : index
    %589 = memref.load %arg1[%c3_161, %c3_162] : memref<16x27xf32, #tpu.memory_space<smem>>
    %590 = vector.broadcast %589 : f32 to vector<16x256xf32>
    %591 = arith.mulf %590, %55 : vector<16x256xf32>
    %592 = arith.addf %588, %591 : vector<16x256xf32>
    %c3_163 = arith.constant 3 : index
    %c4_164 = arith.constant 4 : index
    %593 = memref.load %arg1[%c3_163, %c4_164] : memref<16x27xf32, #tpu.memory_space<smem>>
    %594 = vector.broadcast %593 : f32 to vector<16x256xf32>
    %595 = arith.mulf %594, %58 : vector<16x256xf32>
    %596 = arith.addf %592, %595 : vector<16x256xf32>
    %c3_165 = arith.constant 3 : index
    %c5_166 = arith.constant 5 : index
    %597 = memref.load %arg1[%c3_165, %c5_166] : memref<16x27xf32, #tpu.memory_space<smem>>
    %598 = vector.broadcast %597 : f32 to vector<16x256xf32>
    %599 = arith.mulf %598, %67 : vector<16x256xf32>
    %600 = arith.addf %596, %599 : vector<16x256xf32>
    %c3_167 = arith.constant 3 : index
    %c6_168 = arith.constant 6 : index
    %601 = memref.load %arg1[%c3_167, %c6_168] : memref<16x27xf32, #tpu.memory_space<smem>>
    %602 = vector.broadcast %601 : f32 to vector<16x256xf32>
    %603 = arith.mulf %602, %76 : vector<16x256xf32>
    %604 = arith.addf %600, %603 : vector<16x256xf32>
    %c3_169 = arith.constant 3 : index
    %c7_170 = arith.constant 7 : index
    %605 = memref.load %arg1[%c3_169, %c7_170] : memref<16x27xf32, #tpu.memory_space<smem>>
    %606 = vector.broadcast %605 : f32 to vector<16x256xf32>
    %607 = arith.mulf %606, %85 : vector<16x256xf32>
    %608 = arith.addf %604, %607 : vector<16x256xf32>
    %c3_171 = arith.constant 3 : index
    %c8_172 = arith.constant 8 : index
    %609 = memref.load %arg1[%c3_171, %c8_172] : memref<16x27xf32, #tpu.memory_space<smem>>
    %610 = vector.broadcast %609 : f32 to vector<16x256xf32>
    %611 = arith.mulf %610, %94 : vector<16x256xf32>
    %612 = arith.addf %608, %611 : vector<16x256xf32>
    %c3_173 = arith.constant 3 : index
    %c9_174 = arith.constant 9 : index
    %613 = memref.load %arg1[%c3_173, %c9_174] : memref<16x27xf32, #tpu.memory_space<smem>>
    %614 = vector.broadcast %613 : f32 to vector<16x256xf32>
    %615 = arith.mulf %614, %103 : vector<16x256xf32>
    %616 = arith.addf %612, %615 : vector<16x256xf32>
    %c3_175 = arith.constant 3 : index
    %c10_176 = arith.constant 10 : index
    %617 = memref.load %arg1[%c3_175, %c10_176] : memref<16x27xf32, #tpu.memory_space<smem>>
    %618 = vector.broadcast %617 : f32 to vector<16x256xf32>
    %619 = arith.mulf %618, %112 : vector<16x256xf32>
    %620 = arith.addf %616, %619 : vector<16x256xf32>
    %c3_177 = arith.constant 3 : index
    %c11_178 = arith.constant 11 : index
    %621 = memref.load %arg1[%c3_177, %c11_178] : memref<16x27xf32, #tpu.memory_space<smem>>
    %622 = vector.broadcast %621 : f32 to vector<16x256xf32>
    %623 = arith.mulf %622, %121 : vector<16x256xf32>
    %624 = arith.addf %620, %623 : vector<16x256xf32>
    %c3_179 = arith.constant 3 : index
    %c12_180 = arith.constant 12 : index
    %625 = memref.load %arg1[%c3_179, %c12_180] : memref<16x27xf32, #tpu.memory_space<smem>>
    %626 = vector.broadcast %625 : f32 to vector<16x256xf32>
    %627 = arith.mulf %626, %130 : vector<16x256xf32>
    %628 = arith.addf %624, %627 : vector<16x256xf32>
    %c3_181 = arith.constant 3 : index
    %c13_182 = arith.constant 13 : index
    %629 = memref.load %arg1[%c3_181, %c13_182] : memref<16x27xf32, #tpu.memory_space<smem>>
    %630 = vector.broadcast %629 : f32 to vector<16x256xf32>
    %631 = arith.mulf %630, %133 : vector<16x256xf32>
    %632 = arith.addf %628, %631 : vector<16x256xf32>
    %c3_183 = arith.constant 3 : index
    %c14_184 = arith.constant 14 : index
    %633 = memref.load %arg1[%c3_183, %c14_184] : memref<16x27xf32, #tpu.memory_space<smem>>
    %634 = vector.broadcast %633 : f32 to vector<16x256xf32>
    %635 = arith.mulf %634, %142 : vector<16x256xf32>
    %636 = arith.addf %632, %635 : vector<16x256xf32>
    %c3_185 = arith.constant 3 : index
    %c15_186 = arith.constant 15 : index
    %637 = memref.load %arg1[%c3_185, %c15_186] : memref<16x27xf32, #tpu.memory_space<smem>>
    %638 = vector.broadcast %637 : f32 to vector<16x256xf32>
    %639 = arith.mulf %638, %151 : vector<16x256xf32>
    %640 = arith.addf %636, %639 : vector<16x256xf32>
    %c3_187 = arith.constant 3 : index
    %c16_188 = arith.constant 16 : index
    %641 = memref.load %arg1[%c3_187, %c16_188] : memref<16x27xf32, #tpu.memory_space<smem>>
    %642 = vector.broadcast %641 : f32 to vector<16x256xf32>
    %643 = arith.mulf %642, %160 : vector<16x256xf32>
    %644 = arith.addf %640, %643 : vector<16x256xf32>
    %c3_189 = arith.constant 3 : index
    %c17_190 = arith.constant 17 : index
    %645 = memref.load %arg1[%c3_189, %c17_190] : memref<16x27xf32, #tpu.memory_space<smem>>
    %646 = vector.broadcast %645 : f32 to vector<16x256xf32>
    %647 = arith.mulf %646, %169 : vector<16x256xf32>
    %648 = arith.addf %644, %647 : vector<16x256xf32>
    %c3_191 = arith.constant 3 : index
    %c18_192 = arith.constant 18 : index
    %649 = memref.load %arg1[%c3_191, %c18_192] : memref<16x27xf32, #tpu.memory_space<smem>>
    %650 = vector.broadcast %649 : f32 to vector<16x256xf32>
    %651 = arith.mulf %650, %178 : vector<16x256xf32>
    %652 = arith.addf %648, %651 : vector<16x256xf32>
    %c3_193 = arith.constant 3 : index
    %c19_194 = arith.constant 19 : index
    %653 = memref.load %arg1[%c3_193, %c19_194] : memref<16x27xf32, #tpu.memory_space<smem>>
    %654 = vector.broadcast %653 : f32 to vector<16x256xf32>
    %655 = arith.mulf %654, %187 : vector<16x256xf32>
    %656 = arith.addf %652, %655 : vector<16x256xf32>
    %c3_195 = arith.constant 3 : index
    %c20_196 = arith.constant 20 : index
    %657 = memref.load %arg1[%c3_195, %c20_196] : memref<16x27xf32, #tpu.memory_space<smem>>
    %658 = vector.broadcast %657 : f32 to vector<16x256xf32>
    %659 = arith.mulf %658, %196 : vector<16x256xf32>
    %660 = arith.addf %656, %659 : vector<16x256xf32>
    %c3_197 = arith.constant 3 : index
    %c21_198 = arith.constant 21 : index
    %661 = memref.load %arg1[%c3_197, %c21_198] : memref<16x27xf32, #tpu.memory_space<smem>>
    %662 = vector.broadcast %661 : f32 to vector<16x256xf32>
    %663 = arith.mulf %662, %205 : vector<16x256xf32>
    %664 = arith.addf %660, %663 : vector<16x256xf32>
    %c3_199 = arith.constant 3 : index
    %c22_200 = arith.constant 22 : index
    %665 = memref.load %arg1[%c3_199, %c22_200] : memref<16x27xf32, #tpu.memory_space<smem>>
    %666 = vector.broadcast %665 : f32 to vector<16x256xf32>
    %667 = arith.mulf %666, %208 : vector<16x256xf32>
    %668 = arith.addf %664, %667 : vector<16x256xf32>
    %c3_201 = arith.constant 3 : index
    %c23_202 = arith.constant 23 : index
    %669 = memref.load %arg1[%c3_201, %c23_202] : memref<16x27xf32, #tpu.memory_space<smem>>
    %670 = vector.broadcast %669 : f32 to vector<16x256xf32>
    %671 = arith.mulf %670, %217 : vector<16x256xf32>
    %672 = arith.addf %668, %671 : vector<16x256xf32>
    %c3_203 = arith.constant 3 : index
    %c24_204 = arith.constant 24 : index
    %673 = memref.load %arg1[%c3_203, %c24_204] : memref<16x27xf32, #tpu.memory_space<smem>>
    %674 = vector.broadcast %673 : f32 to vector<16x256xf32>
    %675 = arith.mulf %674, %226 : vector<16x256xf32>
    %676 = arith.addf %672, %675 : vector<16x256xf32>
    %c3_205 = arith.constant 3 : index
    %c25_206 = arith.constant 25 : index
    %677 = memref.load %arg1[%c3_205, %c25_206] : memref<16x27xf32, #tpu.memory_space<smem>>
    %678 = vector.broadcast %677 : f32 to vector<16x256xf32>
    %679 = arith.mulf %678, %235 : vector<16x256xf32>
    %680 = arith.addf %676, %679 : vector<16x256xf32>
    %c3_207 = arith.constant 3 : index
    %c26_208 = arith.constant 26 : index
    %681 = memref.load %arg1[%c3_207, %c26_208] : memref<16x27xf32, #tpu.memory_space<smem>>
    %682 = vector.broadcast %681 : f32 to vector<16x256xf32>
    %683 = arith.mulf %682, %244 : vector<16x256xf32>
    %684 = arith.addf %680, %683 : vector<16x256xf32>
    %685 = arith.mulf %684, %7 : vector<16x256xf32>
    %c0_209 = arith.constant 0 : index
    %c2_210 = arith.constant 2 : index
    %c0_211 = arith.constant 0 : index
    %c0_212 = arith.constant 0 : index
    %686 = vector.load %arg6[%c0_209, %c2_210, %c0_211, %c0_212] : memref<1x15x16x256xf32, #tpu.memory_space<vmem>>, vector<1x1x16x256xf32>
    %687 = vector.shape_cast %686 : vector<1x1x16x256xf32> to vector<16x256xf32>
    %688 = vector.shape_cast %685 : vector<16x256xf32> to vector<1x1x16x256xf32>
    tpu.vector_store %arg6[%c0_209, %c2_210, %c0_211, %c0_212], %688 {strides = array<i32>} : memref<1x15x16x256xf32, #tpu.memory_space<vmem>>, vector<1x1x16x256xf32>,
    %c4_213 = arith.constant 4 : index
    %c0_214 = arith.constant 0 : index
    %689 = memref.load %arg1[%c4_213, %c0_214] : memref<16x27xf32, #tpu.memory_space<smem>>
    %690 = vector.broadcast %689 : f32 to vector<16x256xf32>
    %691 = arith.mulf %690, %28 : vector<16x256xf32>
    %c4_215 = arith.constant 4 : index
    %c1_216 = arith.constant 1 : index
    %692 = memref.load %arg1[%c4_215, %c1_216] : memref<16x27xf32, #tpu.memory_space<smem>>
    %693 = vector.broadcast %692 : f32 to vector<16x256xf32>
    %694 = arith.mulf %693, %37 : vector<16x256xf32>
    %695 = arith.addf %691, %694 : vector<16x256xf32>
    %c4_217 = arith.constant 4 : index
    %c2_218 = arith.constant 2 : index
    %696 = memref.load %arg1[%c4_217, %c2_218] : memref<16x27xf32, #tpu.memory_space<smem>>
    %697 = vector.broadcast %696 : f32 to vector<16x256xf32>
    %698 = arith.mulf %697, %46 : vector<16x256xf32>
    %699 = arith.addf %695, %698 : vector<16x256xf32>
    %c4_219 = arith.constant 4 : index
    %c3_220 = arith.constant 3 : index
    %700 = memref.load %arg1[%c4_219, %c3_220] : memref<16x27xf32, #tpu.memory_space<smem>>
    %701 = vector.broadcast %700 : f32 to vector<16x256xf32>
    %702 = arith.mulf %701, %55 : vector<16x256xf32>
    %703 = arith.addf %699, %702 : vector<16x256xf32>
    %c4_221 = arith.constant 4 : index
    %c4_222 = arith.constant 4 : index
    %704 = memref.load %arg1[%c4_221, %c4_222] : memref<16x27xf32, #tpu.memory_space<smem>>
    %705 = vector.broadcast %704 : f32 to vector<16x256xf32>
    %706 = arith.mulf %705, %58 : vector<16x256xf32>
    %707 = arith.addf %703, %706 : vector<16x256xf32>
    %c4_223 = arith.constant 4 : index
    %c5_224 = arith.constant 5 : index
    %708 = memref.load %arg1[%c4_223, %c5_224] : memref<16x27xf32, #tpu.memory_space<smem>>
    %709 = vector.broadcast %708 : f32 to vector<16x256xf32>
    %710 = arith.mulf %709, %67 : vector<16x256xf32>
    %711 = arith.addf %707, %710 : vector<16x256xf32>
    %c4_225 = arith.constant 4 : index
    %c6_226 = arith.constant 6 : index
    %712 = memref.load %arg1[%c4_225, %c6_226] : memref<16x27xf32, #tpu.memory_space<smem>>
    %713 = vector.broadcast %712 : f32 to vector<16x256xf32>
    %714 = arith.mulf %713, %76 : vector<16x256xf32>
    %715 = arith.addf %711, %714 : vector<16x256xf32>
    %c4_227 = arith.constant 4 : index
    %c7_228 = arith.constant 7 : index
    %716 = memref.load %arg1[%c4_227, %c7_228] : memref<16x27xf32, #tpu.memory_space<smem>>
    %717 = vector.broadcast %716 : f32 to vector<16x256xf32>
    %718 = arith.mulf %717, %85 : vector<16x256xf32>
    %719 = arith.addf %715, %718 : vector<16x256xf32>
    %c4_229 = arith.constant 4 : index
    %c8_230 = arith.constant 8 : index
    %720 = memref.load %arg1[%c4_229, %c8_230] : memref<16x27xf32, #tpu.memory_space<smem>>
    %721 = vector.broadcast %720 : f32 to vector<16x256xf32>
    %722 = arith.mulf %721, %94 : vector<16x256xf32>
    %723 = arith.addf %719, %722 : vector<16x256xf32>
    %c4_231 = arith.constant 4 : index
    %c9_232 = arith.constant 9 : index
    %724 = memref.load %arg1[%c4_231, %c9_232] : memref<16x27xf32, #tpu.memory_space<smem>>
    %725 = vector.broadcast %724 : f32 to vector<16x256xf32>
    %726 = arith.mulf %725, %103 : vector<16x256xf32>
    %727 = arith.addf %723, %726 : vector<16x256xf32>
    %c4_233 = arith.constant 4 : index
    %c10_234 = arith.constant 10 : index
    %728 = memref.load %arg1[%c4_233, %c10_234] : memref<16x27xf32, #tpu.memory_space<smem>>
    %729 = vector.broadcast %728 : f32 to vector<16x256xf32>
    %730 = arith.mulf %729, %112 : vector<16x256xf32>
    %731 = arith.addf %727, %730 : vector<16x256xf32>
    %c4_235 = arith.constant 4 : index
    %c11_236 = arith.constant 11 : index
    %732 = memref.load %arg1[%c4_235, %c11_236] : memref<16x27xf32, #tpu.memory_space<smem>>
    %733 = vector.broadcast %732 : f32 to vector<16x256xf32>
    %734 = arith.mulf %733, %121 : vector<16x256xf32>
    %735 = arith.addf %731, %734 : vector<16x256xf32>
    %c4_237 = arith.constant 4 : index
    %c12_238 = arith.constant 12 : index
    %736 = memref.load %arg1[%c4_237, %c12_238] : memref<16x27xf32, #tpu.memory_space<smem>>
    %737 = vector.broadcast %736 : f32 to vector<16x256xf32>
    %738 = arith.mulf %737, %130 : vector<16x256xf32>
    %739 = arith.addf %735, %738 : vector<16x256xf32>
    %c4_239 = arith.constant 4 : index
    %c13_240 = arith.constant 13 : index
    %740 = memref.load %arg1[%c4_239, %c13_240] : memref<16x27xf32, #tpu.memory_space<smem>>
    %741 = vector.broadcast %740 : f32 to vector<16x256xf32>
    %742 = arith.mulf %741, %133 : vector<16x256xf32>
    %743 = arith.addf %739, %742 : vector<16x256xf32>
    %c4_241 = arith.constant 4 : index
    %c14_242 = arith.constant 14 : index
    %744 = memref.load %arg1[%c4_241, %c14_242] : memref<16x27xf32, #tpu.memory_space<smem>>
    %745 = vector.broadcast %744 : f32 to vector<16x256xf32>
    %746 = arith.mulf %745, %142 : vector<16x256xf32>
    %747 = arith.addf %743, %746 : vector<16x256xf32>
    %c4_243 = arith.constant 4 : index
    %c15_244 = arith.constant 15 : index
    %748 = memref.load %arg1[%c4_243, %c15_244] : memref<16x27xf32, #tpu.memory_space<smem>>
    %749 = vector.broadcast %748 : f32 to vector<16x256xf32>
    %750 = arith.mulf %749, %151 : vector<16x256xf32>
    %751 = arith.addf %747, %750 : vector<16x256xf32>
    %c4_245 = arith.constant 4 : index
    %c16_246 = arith.constant 16 : index
    %752 = memref.load %arg1[%c4_245, %c16_246] : memref<16x27xf32, #tpu.memory_space<smem>>
    %753 = vector.broadcast %752 : f32 to vector<16x256xf32>
    %754 = arith.mulf %753, %160 : vector<16x256xf32>
    %755 = arith.addf %751, %754 : vector<16x256xf32>
    %c4_247 = arith.constant 4 : index
    %c17_248 = arith.constant 17 : index
    %756 = memref.load %arg1[%c4_247, %c17_248] : memref<16x27xf32, #tpu.memory_space<smem>>
    %757 = vector.broadcast %756 : f32 to vector<16x256xf32>
    %758 = arith.mulf %757, %169 : vector<16x256xf32>
    %759 = arith.addf %755, %758 : vector<16x256xf32>
    %c4_249 = arith.constant 4 : index
    %c18_250 = arith.constant 18 : index
    %760 = memref.load %arg1[%c4_249, %c18_250] : memref<16x27xf32, #tpu.memory_space<smem>>
    %761 = vector.broadcast %760 : f32 to vector<16x256xf32>
    %762 = arith.mulf %761, %178 : vector<16x256xf32>
    %763 = arith.addf %759, %762 : vector<16x256xf32>
    %c4_251 = arith.constant 4 : index
    %c19_252 = arith.constant 19 : index
    %764 = memref.load %arg1[%c4_251, %c19_252] : memref<16x27xf32, #tpu.memory_space<smem>>
    %765 = vector.broadcast %764 : f32 to vector<16x256xf32>
    %766 = arith.mulf %765, %187 : vector<16x256xf32>
    %767 = arith.addf %763, %766 : vector<16x256xf32>
    %c4_253 = arith.constant 4 : index
    %c20_254 = arith.constant 20 : index
    %768 = memref.load %arg1[%c4_253, %c20_254] : memref<16x27xf32, #tpu.memory_space<smem>>
    %769 = vector.broadcast %768 : f32 to vector<16x256xf32>
    %770 = arith.mulf %769, %196 : vector<16x256xf32>
    %771 = arith.addf %767, %770 : vector<16x256xf32>
    %c4_255 = arith.constant 4 : index
    %c21_256 = arith.constant 21 : index
    %772 = memref.load %arg1[%c4_255, %c21_256] : memref<16x27xf32, #tpu.memory_space<smem>>
    %773 = vector.broadcast %772 : f32 to vector<16x256xf32>
    %774 = arith.mulf %773, %205 : vector<16x256xf32>
    %775 = arith.addf %771, %774 : vector<16x256xf32>
    %c4_257 = arith.constant 4 : index
    %c22_258 = arith.constant 22 : index
    %776 = memref.load %arg1[%c4_257, %c22_258] : memref<16x27xf32, #tpu.memory_space<smem>>
    %777 = vector.broadcast %776 : f32 to vector<16x256xf32>
    %778 = arith.mulf %777, %208 : vector<16x256xf32>
    %779 = arith.addf %775, %778 : vector<16x256xf32>
    %c4_259 = arith.constant 4 : index
    %c23_260 = arith.constant 23 : index
    %780 = memref.load %arg1[%c4_259, %c23_260] : memref<16x27xf32, #tpu.memory_space<smem>>
    %781 = vector.broadcast %780 : f32 to vector<16x256xf32>
    %782 = arith.mulf %781, %217 : vector<16x256xf32>
    %783 = arith.addf %779, %782 : vector<16x256xf32>
    %c4_261 = arith.constant 4 : index
    %c24_262 = arith.constant 24 : index
    %784 = memref.load %arg1[%c4_261, %c24_262] : memref<16x27xf32, #tpu.memory_space<smem>>
    %785 = vector.broadcast %784 : f32 to vector<16x256xf32>
    %786 = arith.mulf %785, %226 : vector<16x256xf32>
    %787 = arith.addf %783, %786 : vector<16x256xf32>
    %c4_263 = arith.constant 4 : index
    %c25_264 = arith.constant 25 : index
    %788 = memref.load %arg1[%c4_263, %c25_264] : memref<16x27xf32, #tpu.memory_space<smem>>
    %789 = vector.broadcast %788 : f32 to vector<16x256xf32>
    %790 = arith.mulf %789, %235 : vector<16x256xf32>
    %791 = arith.addf %787, %790 : vector<16x256xf32>
    %c4_265 = arith.constant 4 : index
    %c26_266 = arith.constant 26 : index
    %792 = memref.load %arg1[%c4_265, %c26_266] : memref<16x27xf32, #tpu.memory_space<smem>>
    %793 = vector.broadcast %792 : f32 to vector<16x256xf32>
    %794 = arith.mulf %793, %244 : vector<16x256xf32>
    %795 = arith.addf %791, %794 : vector<16x256xf32>
    %796 = arith.mulf %795, %7 : vector<16x256xf32>
    %c0_267 = arith.constant 0 : index
    %c3_268 = arith.constant 3 : index
    %c0_269 = arith.constant 0 : index
    %c0_270 = arith.constant 0 : index
    %797 = vector.load %arg6[%c0_267, %c3_268, %c0_269, %c0_270] : memref<1x15x16x256xf32, #tpu.memory_space<vmem>>, vector<1x1x16x256xf32>
    %798 = vector.shape_cast %797 : vector<1x1x16x256xf32> to vector<16x256xf32>
    %799 = vector.shape_cast %796 : vector<16x256xf32> to vector<1x1x16x256xf32>
    tpu.vector_store %arg6[%c0_267, %c3_268, %c0_269, %c0_270], %799 {strides = array<i32>} : memref<1x15x16x256xf32, #tpu.memory_space<vmem>>, vector<1x1x16x256xf32>,
    %c5_271 = arith.constant 5 : index
    %c0_272 = arith.constant 0 : index
    %800 = memref.load %arg1[%c5_271, %c0_272] : memref<16x27xf32, #tpu.memory_space<smem>>
    %801 = vector.broadcast %800 : f32 to vector<16x256xf32>
    %802 = arith.mulf %801, %28 : vector<16x256xf32>
    %c5_273 = arith.constant 5 : index
    %c1_274 = arith.constant 1 : index
    %803 = memref.load %arg1[%c5_273, %c1_274] : memref<16x27xf32, #tpu.memory_space<smem>>
    %804 = vector.broadcast %803 : f32 to vector<16x256xf32>
    %805 = arith.mulf %804, %37 : vector<16x256xf32>
    %806 = arith.addf %802, %805 : vector<16x256xf32>
    %c5_275 = arith.constant 5 : index
    %c2_276 = arith.constant 2 : index
    %807 = memref.load %arg1[%c5_275, %c2_276] : memref<16x27xf32, #tpu.memory_space<smem>>
    %808 = vector.broadcast %807 : f32 to vector<16x256xf32>
    %809 = arith.mulf %808, %46 : vector<16x256xf32>
    %810 = arith.addf %806, %809 : vector<16x256xf32>
    %c5_277 = arith.constant 5 : index
    %c3_278 = arith.constant 3 : index
    %811 = memref.load %arg1[%c5_277, %c3_278] : memref<16x27xf32, #tpu.memory_space<smem>>
    %812 = vector.broadcast %811 : f32 to vector<16x256xf32>
    %813 = arith.mulf %812, %55 : vector<16x256xf32>
    %814 = arith.addf %810, %813 : vector<16x256xf32>
    %c5_279 = arith.constant 5 : index
    %c4_280 = arith.constant 4 : index
    %815 = memref.load %arg1[%c5_279, %c4_280] : memref<16x27xf32, #tpu.memory_space<smem>>
    %816 = vector.broadcast %815 : f32 to vector<16x256xf32>
    %817 = arith.mulf %816, %58 : vector<16x256xf32>
    %818 = arith.addf %814, %817 : vector<16x256xf32>
    %c5_281 = arith.constant 5 : index
    %c5_282 = arith.constant 5 : index
    %819 = memref.load %arg1[%c5_281, %c5_282] : memref<16x27xf32, #tpu.memory_space<smem>>
    %820 = vector.broadcast %819 : f32 to vector<16x256xf32>
    %821 = arith.mulf %820, %67 : vector<16x256xf32>
    %822 = arith.addf %818, %821 : vector<16x256xf32>
    %c5_283 = arith.constant 5 : index
    %c6_284 = arith.constant 6 : index
    %823 = memref.load %arg1[%c5_283, %c6_284] : memref<16x27xf32, #tpu.memory_space<smem>>
    %824 = vector.broadcast %823 : f32 to vector<16x256xf32>
    %825 = arith.mulf %824, %76 : vector<16x256xf32>
    %826 = arith.addf %822, %825 : vector<16x256xf32>
    %c5_285 = arith.constant 5 : index
    %c7_286 = arith.constant 7 : index
    %827 = memref.load %arg1[%c5_285, %c7_286] : memref<16x27xf32, #tpu.memory_space<smem>>
    %828 = vector.broadcast %827 : f32 to vector<16x256xf32>
    %829 = arith.mulf %828, %85 : vector<16x256xf32>
    %830 = arith.addf %826, %829 : vector<16x256xf32>
    %c5_287 = arith.constant 5 : index
    %c8_288 = arith.constant 8 : index
    %831 = memref.load %arg1[%c5_287, %c8_288] : memref<16x27xf32, #tpu.memory_space<smem>>
    %832 = vector.broadcast %831 : f32 to vector<16x256xf32>
    %833 = arith.mulf %832, %94 : vector<16x256xf32>
    %834 = arith.addf %830, %833 : vector<16x256xf32>
    %c5_289 = arith.constant 5 : index
    %c9_290 = arith.constant 9 : index
    %835 = memref.load %arg1[%c5_289, %c9_290] : memref<16x27xf32, #tpu.memory_space<smem>>
    %836 = vector.broadcast %835 : f32 to vector<16x256xf32>
    %837 = arith.mulf %836, %103 : vector<16x256xf32>
    %838 = arith.addf %834, %837 : vector<16x256xf32>
    %c5_291 = arith.constant 5 : index
    %c10_292 = arith.constant 10 : index
    %839 = memref.load %arg1[%c5_291, %c10_292] : memref<16x27xf32, #tpu.memory_space<smem>>
    %840 = vector.broadcast %839 : f32 to vector<16x256xf32>
    %841 = arith.mulf %840, %112 : vector<16x256xf32>
    %842 = arith.addf %838, %841 : vector<16x256xf32>
    %c5_293 = arith.constant 5 : index
    %c11_294 = arith.constant 11 : index
    %843 = memref.load %arg1[%c5_293, %c11_294] : memref<16x27xf32, #tpu.memory_space<smem>>
    %844 = vector.broadcast %843 : f32 to vector<16x256xf32>
    %845 = arith.mulf %844, %121 : vector<16x256xf32>
    %846 = arith.addf %842, %845 : vector<16x256xf32>
    %c5_295 = arith.constant 5 : index
    %c12_296 = arith.constant 12 : index
    %847 = memref.load %arg1[%c5_295, %c12_296] : memref<16x27xf32, #tpu.memory_space<smem>>
    %848 = vector.broadcast %847 : f32 to vector<16x256xf32>
    %849 = arith.mulf %848, %130 : vector<16x256xf32>
    %850 = arith.addf %846, %849 : vector<16x256xf32>
    %c5_297 = arith.constant 5 : index
    %c13_298 = arith.constant 13 : index
    %851 = memref.load %arg1[%c5_297, %c13_298] : memref<16x27xf32, #tpu.memory_space<smem>>
    %852 = vector.broadcast %851 : f32 to vector<16x256xf32>
    %853 = arith.mulf %852, %133 : vector<16x256xf32>
    %854 = arith.addf %850, %853 : vector<16x256xf32>
    %c5_299 = arith.constant 5 : index
    %c14_300 = arith.constant 14 : index
    %855 = memref.load %arg1[%c5_299, %c14_300] : memref<16x27xf32, #tpu.memory_space<smem>>
    %856 = vector.broadcast %855 : f32 to vector<16x256xf32>
    %857 = arith.mulf %856, %142 : vector<16x256xf32>
    %858 = arith.addf %854, %857 : vector<16x256xf32>
    %c5_301 = arith.constant 5 : index
    %c15_302 = arith.constant 15 : index
    %859 = memref.load %arg1[%c5_301, %c15_302] : memref<16x27xf32, #tpu.memory_space<smem>>
    %860 = vector.broadcast %859 : f32 to vector<16x256xf32>
    %861 = arith.mulf %860, %151 : vector<16x256xf32>
    %862 = arith.addf %858, %861 : vector<16x256xf32>
    %c5_303 = arith.constant 5 : index
    %c16_304 = arith.constant 16 : index
    %863 = memref.load %arg1[%c5_303, %c16_304] : memref<16x27xf32, #tpu.memory_space<smem>>
    %864 = vector.broadcast %863 : f32 to vector<16x256xf32>
    %865 = arith.mulf %864, %160 : vector<16x256xf32>
    %866 = arith.addf %862, %865 : vector<16x256xf32>
    %c5_305 = arith.constant 5 : index
    %c17_306 = arith.constant 17 : index
    %867 = memref.load %arg1[%c5_305, %c17_306] : memref<16x27xf32, #tpu.memory_space<smem>>
    %868 = vector.broadcast %867 : f32 to vector<16x256xf32>
    %869 = arith.mulf %868, %169 : vector<16x256xf32>
    %870 = arith.addf %866, %869 : vector<16x256xf32>
    %c5_307 = arith.constant 5 : index
    %c18_308 = arith.constant 18 : index
    %871 = memref.load %arg1[%c5_307, %c18_308] : memref<16x27xf32, #tpu.memory_space<smem>>
    %872 = vector.broadcast %871 : f32 to vector<16x256xf32>
    %873 = arith.mulf %872, %178 : vector<16x256xf32>
    %874 = arith.addf %870, %873 : vector<16x256xf32>
    %c5_309 = arith.constant 5 : index
    %c19_310 = arith.constant 19 : index
    %875 = memref.load %arg1[%c5_309, %c19_310] : memref<16x27xf32, #tpu.memory_space<smem>>
    %876 = vector.broadcast %875 : f32 to vector<16x256xf32>
    %877 = arith.mulf %876, %187 : vector<16x256xf32>
    %878 = arith.addf %874, %877 : vector<16x256xf32>
    %c5_311 = arith.constant 5 : index
    %c20_312 = arith.constant 20 : index
    %879 = memref.load %arg1[%c5_311, %c20_312] : memref<16x27xf32, #tpu.memory_space<smem>>
    %880 = vector.broadcast %879 : f32 to vector<16x256xf32>
    %881 = arith.mulf %880, %196 : vector<16x256xf32>
    %882 = arith.addf %878, %881 : vector<16x256xf32>
    %c5_313 = arith.constant 5 : index
    %c21_314 = arith.constant 21 : index
    %883 = memref.load %arg1[%c5_313, %c21_314] : memref<16x27xf32, #tpu.memory_space<smem>>
    %884 = vector.broadcast %883 : f32 to vector<16x256xf32>
    %885 = arith.mulf %884, %205 : vector<16x256xf32>
    %886 = arith.addf %882, %885 : vector<16x256xf32>
    %c5_315 = arith.constant 5 : index
    %c22_316 = arith.constant 22 : index
    %887 = memref.load %arg1[%c5_315, %c22_316] : memref<16x27xf32, #tpu.memory_space<smem>>
    %888 = vector.broadcast %887 : f32 to vector<16x256xf32>
    %889 = arith.mulf %888, %208 : vector<16x256xf32>
    %890 = arith.addf %886, %889 : vector<16x256xf32>
    %c5_317 = arith.constant 5 : index
    %c23_318 = arith.constant 23 : index
    %891 = memref.load %arg1[%c5_317, %c23_318] : memref<16x27xf32, #tpu.memory_space<smem>>
    %892 = vector.broadcast %891 : f32 to vector<16x256xf32>
    %893 = arith.mulf %892, %217 : vector<16x256xf32>
    %894 = arith.addf %890, %893 : vector<16x256xf32>
    %c5_319 = arith.constant 5 : index
    %c24_320 = arith.constant 24 : index
    %895 = memref.load %arg1[%c5_319, %c24_320] : memref<16x27xf32, #tpu.memory_space<smem>>
    %896 = vector.broadcast %895 : f32 to vector<16x256xf32>
    %897 = arith.mulf %896, %226 : vector<16x256xf32>
    %898 = arith.addf %894, %897 : vector<16x256xf32>
    %c5_321 = arith.constant 5 : index
    %c25_322 = arith.constant 25 : index
    %899 = memref.load %arg1[%c5_321, %c25_322] : memref<16x27xf32, #tpu.memory_space<smem>>
    %900 = vector.broadcast %899 : f32 to vector<16x256xf32>
    %901 = arith.mulf %900, %235 : vector<16x256xf32>
    %902 = arith.addf %898, %901 : vector<16x256xf32>
    %c5_323 = arith.constant 5 : index
    %c26_324 = arith.constant 26 : index
    %903 = memref.load %arg1[%c5_323, %c26_324] : memref<16x27xf32, #tpu.memory_space<smem>>
    %904 = vector.broadcast %903 : f32 to vector<16x256xf32>
    %905 = arith.mulf %904, %244 : vector<16x256xf32>
    %906 = arith.addf %902, %905 : vector<16x256xf32>
    %907 = arith.mulf %906, %7 : vector<16x256xf32>
    %c0_325 = arith.constant 0 : index
    %c4_326 = arith.constant 4 : index
    %c0_327 = arith.constant 0 : index
    %c0_328 = arith.constant 0 : index
    %908 = vector.load %arg6[%c0_325, %c4_326, %c0_327, %c0_328] : memref<1x15x16x256xf32, #tpu.memory_space<vmem>>, vector<1x1x16x256xf32>
    %909 = vector.shape_cast %908 : vector<1x1x16x256xf32> to vector<16x256xf32>
    %910 = vector.shape_cast %907 : vector<16x256xf32> to vector<1x1x16x256xf32>
    tpu.vector_store %arg6[%c0_325, %c4_326, %c0_327, %c0_328], %910 {strides = array<i32>} : memref<1x15x16x256xf32, #tpu.memory_space<vmem>>, vector<1x1x16x256xf32>,
    %c6_329 = arith.constant 6 : index
    %c0_330 = arith.constant 0 : index
    %911 = memref.load %arg1[%c6_329, %c0_330] : memref<16x27xf32, #tpu.memory_space<smem>>
    %912 = vector.broadcast %911 : f32 to vector<16x256xf32>
    %913 = arith.mulf %912, %28 : vector<16x256xf32>
    %c6_331 = arith.constant 6 : index
    %c1_332 = arith.constant 1 : index
    %914 = memref.load %arg1[%c6_331, %c1_332] : memref<16x27xf32, #tpu.memory_space<smem>>
    %915 = vector.broadcast %914 : f32 to vector<16x256xf32>
    %916 = arith.mulf %915, %37 : vector<16x256xf32>
    %917 = arith.addf %913, %916 : vector<16x256xf32>
    %c6_333 = arith.constant 6 : index
    %c2_334 = arith.constant 2 : index
    %918 = memref.load %arg1[%c6_333, %c2_334] : memref<16x27xf32, #tpu.memory_space<smem>>
    %919 = vector.broadcast %918 : f32 to vector<16x256xf32>
    %920 = arith.mulf %919, %46 : vector<16x256xf32>
    %921 = arith.addf %917, %920 : vector<16x256xf32>
    %c6_335 = arith.constant 6 : index
    %c3_336 = arith.constant 3 : index
    %922 = memref.load %arg1[%c6_335, %c3_336] : memref<16x27xf32, #tpu.memory_space<smem>>
    %923 = vector.broadcast %922 : f32 to vector<16x256xf32>
    %924 = arith.mulf %923, %55 : vector<16x256xf32>
    %925 = arith.addf %921, %924 : vector<16x256xf32>
    %c6_337 = arith.constant 6 : index
    %c4_338 = arith.constant 4 : index
    %926 = memref.load %arg1[%c6_337, %c4_338] : memref<16x27xf32, #tpu.memory_space<smem>>
    %927 = vector.broadcast %926 : f32 to vector<16x256xf32>
    %928 = arith.mulf %927, %58 : vector<16x256xf32>
    %929 = arith.addf %925, %928 : vector<16x256xf32>
    %c6_339 = arith.constant 6 : index
    %c5_340 = arith.constant 5 : index
    %930 = memref.load %arg1[%c6_339, %c5_340] : memref<16x27xf32, #tpu.memory_space<smem>>
    %931 = vector.broadcast %930 : f32 to vector<16x256xf32>
    %932 = arith.mulf %931, %67 : vector<16x256xf32>
    %933 = arith.addf %929, %932 : vector<16x256xf32>
    %c6_341 = arith.constant 6 : index
    %c6_342 = arith.constant 6 : index
    %934 = memref.load %arg1[%c6_341, %c6_342] : memref<16x27xf32, #tpu.memory_space<smem>>
    %935 = vector.broadcast %934 : f32 to vector<16x256xf32>
    %936 = arith.mulf %935, %76 : vector<16x256xf32>
    %937 = arith.addf %933, %936 : vector<16x256xf32>
    %c6_343 = arith.constant 6 : index
    %c7_344 = arith.constant 7 : index
    %938 = memref.load %arg1[%c6_343, %c7_344] : memref<16x27xf32, #tpu.memory_space<smem>>
    %939 = vector.broadcast %938 : f32 to vector<16x256xf32>
    %940 = arith.mulf %939, %85 : vector<16x256xf32>
    %941 = arith.addf %937, %940 : vector<16x256xf32>
    %c6_345 = arith.constant 6 : index
    %c8_346 = arith.constant 8 : index
    %942 = memref.load %arg1[%c6_345, %c8_346] : memref<16x27xf32, #tpu.memory_space<smem>>
    %943 = vector.broadcast %942 : f32 to vector<16x256xf32>
    %944 = arith.mulf %943, %94 : vector<16x256xf32>
    %945 = arith.addf %941, %944 : vector<16x256xf32>
    %c6_347 = arith.constant 6 : index
    %c9_348 = arith.constant 9 : index
    %946 = memref.load %arg1[%c6_347, %c9_348] : memref<16x27xf32, #tpu.memory_space<smem>>
    %947 = vector.broadcast %946 : f32 to vector<16x256xf32>
    %948 = arith.mulf %947, %103 : vector<16x256xf32>
    %949 = arith.addf %945, %948 : vector<16x256xf32>
    %c6_349 = arith.constant 6 : index
    %c10_350 = arith.constant 10 : index
    %950 = memref.load %arg1[%c6_349, %c10_350] : memref<16x27xf32, #tpu.memory_space<smem>>
    %951 = vector.broadcast %950 : f32 to vector<16x256xf32>
    %952 = arith.mulf %951, %112 : vector<16x256xf32>
    %953 = arith.addf %949, %952 : vector<16x256xf32>
    %c6_351 = arith.constant 6 : index
    %c11_352 = arith.constant 11 : index
    %954 = memref.load %arg1[%c6_351, %c11_352] : memref<16x27xf32, #tpu.memory_space<smem>>
    %955 = vector.broadcast %954 : f32 to vector<16x256xf32>
    %956 = arith.mulf %955, %121 : vector<16x256xf32>
    %957 = arith.addf %953, %956 : vector<16x256xf32>
    %c6_353 = arith.constant 6 : index
    %c12_354 = arith.constant 12 : index
    %958 = memref.load %arg1[%c6_353, %c12_354] : memref<16x27xf32, #tpu.memory_space<smem>>
    %959 = vector.broadcast %958 : f32 to vector<16x256xf32>
    %960 = arith.mulf %959, %130 : vector<16x256xf32>
    %961 = arith.addf %957, %960 : vector<16x256xf32>
    %c6_355 = arith.constant 6 : index
    %c13_356 = arith.constant 13 : index
    %962 = memref.load %arg1[%c6_355, %c13_356] : memref<16x27xf32, #tpu.memory_space<smem>>
    %963 = vector.broadcast %962 : f32 to vector<16x256xf32>
    %964 = arith.mulf %963, %133 : vector<16x256xf32>
    %965 = arith.addf %961, %964 : vector<16x256xf32>
    %c6_357 = arith.constant 6 : index
    %c14_358 = arith.constant 14 : index
    %966 = memref.load %arg1[%c6_357, %c14_358] : memref<16x27xf32, #tpu.memory_space<smem>>
    %967 = vector.broadcast %966 : f32 to vector<16x256xf32>
    %968 = arith.mulf %967, %142 : vector<16x256xf32>
    %969 = arith.addf %965, %968 : vector<16x256xf32>
    %c6_359 = arith.constant 6 : index
    %c15_360 = arith.constant 15 : index
    %970 = memref.load %arg1[%c6_359, %c15_360] : memref<16x27xf32, #tpu.memory_space<smem>>
    %971 = vector.broadcast %970 : f32 to vector<16x256xf32>
    %972 = arith.mulf %971, %151 : vector<16x256xf32>
    %973 = arith.addf %969, %972 : vector<16x256xf32>
    %c6_361 = arith.constant 6 : index
    %c16_362 = arith.constant 16 : index
    %974 = memref.load %arg1[%c6_361, %c16_362] : memref<16x27xf32, #tpu.memory_space<smem>>
    %975 = vector.broadcast %974 : f32 to vector<16x256xf32>
    %976 = arith.mulf %975, %160 : vector<16x256xf32>
    %977 = arith.addf %973, %976 : vector<16x256xf32>
    %c6_363 = arith.constant 6 : index
    %c17_364 = arith.constant 17 : index
    %978 = memref.load %arg1[%c6_363, %c17_364] : memref<16x27xf32, #tpu.memory_space<smem>>
    %979 = vector.broadcast %978 : f32 to vector<16x256xf32>
    %980 = arith.mulf %979, %169 : vector<16x256xf32>
    %981 = arith.addf %977, %980 : vector<16x256xf32>
    %c6_365 = arith.constant 6 : index
    %c18_366 = arith.constant 18 : index
    %982 = memref.load %arg1[%c6_365, %c18_366] : memref<16x27xf32, #tpu.memory_space<smem>>
    %983 = vector.broadcast %982 : f32 to vector<16x256xf32>
    %984 = arith.mulf %983, %178 : vector<16x256xf32>
    %985 = arith.addf %981, %984 : vector<16x256xf32>
    %c6_367 = arith.constant 6 : index
    %c19_368 = arith.constant 19 : index
    %986 = memref.load %arg1[%c6_367, %c19_368] : memref<16x27xf32, #tpu.memory_space<smem>>
    %987 = vector.broadcast %986 : f32 to vector<16x256xf32>
    %988 = arith.mulf %987, %187 : vector<16x256xf32>
    %989 = arith.addf %985, %988 : vector<16x256xf32>
    %c6_369 = arith.constant 6 : index
    %c20_370 = arith.constant 20 : index
    %990 = memref.load %arg1[%c6_369, %c20_370] : memref<16x27xf32, #tpu.memory_space<smem>>
    %991 = vector.broadcast %990 : f32 to vector<16x256xf32>
    %992 = arith.mulf %991, %196 : vector<16x256xf32>
    %993 = arith.addf %989, %992 : vector<16x256xf32>
    %c6_371 = arith.constant 6 : index
    %c21_372 = arith.constant 21 : index
    %994 = memref.load %arg1[%c6_371, %c21_372] : memref<16x27xf32, #tpu.memory_space<smem>>
    %995 = vector.broadcast %994 : f32 to vector<16x256xf32>
    %996 = arith.mulf %995, %205 : vector<16x256xf32>
    %997 = arith.addf %993, %996 : vector<16x256xf32>
    %c6_373 = arith.constant 6 : index
    %c22_374 = arith.constant 22 : index
    %998 = memref.load %arg1[%c6_373, %c22_374] : memref<16x27xf32, #tpu.memory_space<smem>>
    %999 = vector.broadcast %998 : f32 to vector<16x256xf32>
    %1000 = arith.mulf %999, %208 : vector<16x256xf32>
    %1001 = arith.addf %997, %1000 : vector<16x256xf32>
    %c6_375 = arith.constant 6 : index
    %c23_376 = arith.constant 23 : index
    %1002 = memref.load %arg1[%c6_375, %c23_376] : memref<16x27xf32, #tpu.memory_space<smem>>
    %1003 = vector.broadcast %1002 : f32 to vector<16x256xf32>
    %1004 = arith.mulf %1003, %217 : vector<16x256xf32>
    %1005 = arith.addf %1001, %1004 : vector<16x256xf32>
    %c6_377 = arith.constant 6 : index
    %c24_378 = arith.constant 24 : index
    %1006 = memref.load %arg1[%c6_377, %c24_378] : memref<16x27xf32, #tpu.memory_space<smem>>
    %1007 = vector.broadcast %1006 : f32 to vector<16x256xf32>
    %1008 = arith.mulf %1007, %226 : vector<16x256xf32>
    %1009 = arith.addf %1005, %1008 : vector<16x256xf32>
    %c6_379 = arith.constant 6 : index
    %c25_380 = arith.constant 25 : index
    %1010 = memref.load %arg1[%c6_379, %c25_380] : memref<16x27xf32, #tpu.memory_space<smem>>
    %1011 = vector.broadcast %1010 : f32 to vector<16x256xf32>
    %1012 = arith.mulf %1011, %235 : vector<16x256xf32>
    %1013 = arith.addf %1009, %1012 : vector<16x256xf32>
    %c6_381 = arith.constant 6 : index
    %c26_382 = arith.constant 26 : index
    %1014 = memref.load %arg1[%c6_381, %c26_382] : memref<16x27xf32, #tpu.memory_space<smem>>
    %1015 = vector.broadcast %1014 : f32 to vector<16x256xf32>
    %1016 = arith.mulf %1015, %244 : vector<16x256xf32>
    %1017 = arith.addf %1013, %1016 : vector<16x256xf32>
    %1018 = arith.mulf %1017, %7 : vector<16x256xf32>
    %c0_383 = arith.constant 0 : index
    %c5_384 = arith.constant 5 : index
    %c0_385 = arith.constant 0 : index
    %c0_386 = arith.constant 0 : index
    %1019 = vector.load %arg6[%c0_383, %c5_384, %c0_385, %c0_386] : memref<1x15x16x256xf32, #tpu.memory_space<vmem>>, vector<1x1x16x256xf32>
    %1020 = vector.shape_cast %1019 : vector<1x1x16x256xf32> to vector<16x256xf32>
    %1021 = vector.shape_cast %1018 : vector<16x256xf32> to vector<1x1x16x256xf32>
    tpu.vector_store %arg6[%c0_383, %c5_384, %c0_385, %c0_386], %1021 {strides = array<i32>} : memref<1x15x16x256xf32, #tpu.memory_space<vmem>>, vector<1x1x16x256xf32>,
    %c7_387 = arith.constant 7 : index
    %c0_388 = arith.constant 0 : index
    %1022 = memref.load %arg1[%c7_387, %c0_388] : memref<16x27xf32, #tpu.memory_space<smem>>
    %1023 = vector.broadcast %1022 : f32 to vector<16x256xf32>
    %1024 = arith.mulf %1023, %28 : vector<16x256xf32>
    %c7_389 = arith.constant 7 : index
    %c1_390 = arith.constant 1 : index
    %1025 = memref.load %arg1[%c7_389, %c1_390] : memref<16x27xf32, #tpu.memory_space<smem>>
    %1026 = vector.broadcast %1025 : f32 to vector<16x256xf32>
    %1027 = arith.mulf %1026, %37 : vector<16x256xf32>
    %1028 = arith.addf %1024, %1027 : vector<16x256xf32>
    %c7_391 = arith.constant 7 : index
    %c2_392 = arith.constant 2 : index
    %1029 = memref.load %arg1[%c7_391, %c2_392] : memref<16x27xf32, #tpu.memory_space<smem>>
    %1030 = vector.broadcast %1029 : f32 to vector<16x256xf32>
    %1031 = arith.mulf %1030, %46 : vector<16x256xf32>
    %1032 = arith.addf %1028, %1031 : vector<16x256xf32>
    %c7_393 = arith.constant 7 : index
    %c3_394 = arith.constant 3 : index
    %1033 = memref.load %arg1[%c7_393, %c3_394] : memref<16x27xf32, #tpu.memory_space<smem>>
    %1034 = vector.broadcast %1033 : f32 to vector<16x256xf32>
    %1035 = arith.mulf %1034, %55 : vector<16x256xf32>
    %1036 = arith.addf %1032, %1035 : vector<16x256xf32>
    %c7_395 = arith.constant 7 : index
    %c4_396 = arith.constant 4 : index
    %1037 = memref.load %arg1[%c7_395, %c4_396] : memref<16x27xf32, #tpu.memory_space<smem>>
    %1038 = vector.broadcast %1037 : f32 to vector<16x256xf32>
    %1039 = arith.mulf %1038, %58 : vector<16x256xf32>
    %1040 = arith.addf %1036, %1039 : vector<16x256xf32>
    %c7_397 = arith.constant 7 : index
    %c5_398 = arith.constant 5 : index
    %1041 = memref.load %arg1[%c7_397, %c5_398] : memref<16x27xf32, #tpu.memory_space<smem>>
    %1042 = vector.broadcast %1041 : f32 to vector<16x256xf32>
    %1043 = arith.mulf %1042, %67 : vector<16x256xf32>
    %1044 = arith.addf %1040, %1043 : vector<16x256xf32>
    %c7_399 = arith.constant 7 : index
    %c6_400 = arith.constant 6 : index
    %1045 = memref.load %arg1[%c7_399, %c6_400] : memref<16x27xf32, #tpu.memory_space<smem>>
    %1046 = vector.broadcast %1045 : f32 to vector<16x256xf32>
    %1047 = arith.mulf %1046, %76 : vector<16x256xf32>
    %1048 = arith.addf %1044, %1047 : vector<16x256xf32>
    %c7_401 = arith.constant 7 : index
    %c7_402 = arith.constant 7 : index
    %1049 = memref.load %arg1[%c7_401, %c7_402] : memref<16x27xf32, #tpu.memory_space<smem>>
    %1050 = vector.broadcast %1049 : f32 to vector<16x256xf32>
    %1051 = arith.mulf %1050, %85 : vector<16x256xf32>
    %1052 = arith.addf %1048, %1051 : vector<16x256xf32>
    %c7_403 = arith.constant 7 : index
    %c8_404 = arith.constant 8 : index
    %1053 = memref.load %arg1[%c7_403, %c8_404] : memref<16x27xf32, #tpu.memory_space<smem>>
    %1054 = vector.broadcast %1053 : f32 to vector<16x256xf32>
    %1055 = arith.mulf %1054, %94 : vector<16x256xf32>
    %1056 = arith.addf %1052, %1055 : vector<16x256xf32>
    %c7_405 = arith.constant 7 : index
    %c9_406 = arith.constant 9 : index
    %1057 = memref.load %arg1[%c7_405, %c9_406] : memref<16x27xf32, #tpu.memory_space<smem>>
    %1058 = vector.broadcast %1057 : f32 to vector<16x256xf32>
    %1059 = arith.mulf %1058, %103 : vector<16x256xf32>
    %1060 = arith.addf %1056, %1059 : vector<16x256xf32>
    %c7_407 = arith.constant 7 : index
    %c10_408 = arith.constant 10 : index
    %1061 = memref.load %arg1[%c7_407, %c10_408] : memref<16x27xf32, #tpu.memory_space<smem>>
    %1062 = vector.broadcast %1061 : f32 to vector<16x256xf32>
    %1063 = arith.mulf %1062, %112 : vector<16x256xf32>
    %1064 = arith.addf %1060, %1063 : vector<16x256xf32>
    %c7_409 = arith.constant 7 : index
    %c11_410 = arith.constant 11 : index
    %1065 = memref.load %arg1[%c7_409, %c11_410] : memref<16x27xf32, #tpu.memory_space<smem>>
    %1066 = vector.broadcast %1065 : f32 to vector<16x256xf32>
    %1067 = arith.mulf %1066, %121 : vector<16x256xf32>
    %1068 = arith.addf %1064, %1067 : vector<16x256xf32>
    %c7_411 = arith.constant 7 : index
    %c12_412 = arith.constant 12 : index
    %1069 = memref.load %arg1[%c7_411, %c12_412] : memref<16x27xf32, #tpu.memory_space<smem>>
    %1070 = vector.broadcast %1069 : f32 to vector<16x256xf32>
    %1071 = arith.mulf %1070, %130 : vector<16x256xf32>
    %1072 = arith.addf %1068, %1071 : vector<16x256xf32>
    %c7_413 = arith.constant 7 : index
    %c13_414 = arith.constant 13 : index
    %1073 = memref.load %arg1[%c7_413, %c13_414] : memref<16x27xf32, #tpu.memory_space<smem>>
    %1074 = vector.broadcast %1073 : f32 to vector<16x256xf32>
    %1075 = arith.mulf %1074, %133 : vector<16x256xf32>
    %1076 = arith.addf %1072, %1075 : vector<16x256xf32>
    %c7_415 = arith.constant 7 : index
    %c14_416 = arith.constant 14 : index
    %1077 = memref.load %arg1[%c7_415, %c14_416] : memref<16x27xf32, #tpu.memory_space<smem>>
    %1078 = vector.broadcast %1077 : f32 to vector<16x256xf32>
    %1079 = arith.mulf %1078, %142 : vector<16x256xf32>
    %1080 = arith.addf %1076, %1079 : vector<16x256xf32>
    %c7_417 = arith.constant 7 : index
    %c15_418 = arith.constant 15 : index
    %1081 = memref.load %arg1[%c7_417, %c15_418] : memref<16x27xf32, #tpu.memory_space<smem>>
    %1082 = vector.broadcast %1081 : f32 to vector<16x256xf32>
    %1083 = arith.mulf %1082, %151 : vector<16x256xf32>
    %1084 = arith.addf %1080, %1083 : vector<16x256xf32>
    %c7_419 = arith.constant 7 : index
    %c16_420 = arith.constant 16 : index
    %1085 = memref.load %arg1[%c7_419, %c16_420] : memref<16x27xf32, #tpu.memory_space<smem>>
    %1086 = vector.broadcast %1085 : f32 to vector<16x256xf32>
    %1087 = arith.mulf %1086, %160 : vector<16x256xf32>
    %1088 = arith.addf %1084, %1087 : vector<16x256xf32>
    %c7_421 = arith.constant 7 : index
    %c17_422 = arith.constant 17 : index
    %1089 = memref.load %arg1[%c7_421, %c17_422] : memref<16x27xf32, #tpu.memory_space<smem>>
    %1090 = vector.broadcast %1089 : f32 to vector<16x256xf32>
    %1091 = arith.mulf %1090, %169 : vector<16x256xf32>
    %1092 = arith.addf %1088, %1091 : vector<16x256xf32>
    %c7_423 = arith.constant 7 : index
    %c18_424 = arith.constant 18 : index
    %1093 = memref.load %arg1[%c7_423, %c18_424] : memref<16x27xf32, #tpu.memory_space<smem>>
    %1094 = vector.broadcast %1093 : f32 to vector<16x256xf32>
    %1095 = arith.mulf %1094, %178 : vector<16x256xf32>
    %1096 = arith.addf %1092, %1095 : vector<16x256xf32>
    %c7_425 = arith.constant 7 : index
    %c19_426 = arith.constant 19 : index
    %1097 = memref.load %arg1[%c7_425, %c19_426] : memref<16x27xf32, #tpu.memory_space<smem>>
    %1098 = vector.broadcast %1097 : f32 to vector<16x256xf32>
    %1099 = arith.mulf %1098, %187 : vector<16x256xf32>
    %1100 = arith.addf %1096, %1099 : vector<16x256xf32>
    %c7_427 = arith.constant 7 : index
    %c20_428 = arith.constant 20 : index
    %1101 = memref.load %arg1[%c7_427, %c20_428] : memref<16x27xf32, #tpu.memory_space<smem>>
    %1102 = vector.broadcast %1101 : f32 to vector<16x256xf32>
    %1103 = arith.mulf %1102, %196 : vector<16x256xf32>
    %1104 = arith.addf %1100, %1103 : vector<16x256xf32>
    %c7_429 = arith.constant 7 : index
    %c21_430 = arith.constant 21 : index
    %1105 = memref.load %arg1[%c7_429, %c21_430] : memref<16x27xf32, #tpu.memory_space<smem>>
    %1106 = vector.broadcast %1105 : f32 to vector<16x256xf32>
    %1107 = arith.mulf %1106, %205 : vector<16x256xf32>
    %1108 = arith.addf %1104, %1107 : vector<16x256xf32>
    %c7_431 = arith.constant 7 : index
    %c22_432 = arith.constant 22 : index
    %1109 = memref.load %arg1[%c7_431, %c22_432] : memref<16x27xf32, #tpu.memory_space<smem>>
    %1110 = vector.broadcast %1109 : f32 to vector<16x256xf32>
    %1111 = arith.mulf %1110, %208 : vector<16x256xf32>
    %1112 = arith.addf %1108, %1111 : vector<16x256xf32>
    %c7_433 = arith.constant 7 : index
    %c23_434 = arith.constant 23 : index
    %1113 = memref.load %arg1[%c7_433, %c23_434] : memref<16x27xf32, #tpu.memory_space<smem>>
    %1114 = vector.broadcast %1113 : f32 to vector<16x256xf32>
    %1115 = arith.mulf %1114, %217 : vector<16x256xf32>
    %1116 = arith.addf %1112, %1115 : vector<16x256xf32>
    %c7_435 = arith.constant 7 : index
    %c24_436 = arith.constant 24 : index
    %1117 = memref.load %arg1[%c7_435, %c24_436] : memref<16x27xf32, #tpu.memory_space<smem>>
    %1118 = vector.broadcast %1117 : f32 to vector<16x256xf32>
    %1119 = arith.mulf %1118, %226 : vector<16x256xf32>
    %1120 = arith.addf %1116, %1119 : vector<16x256xf32>
    %c7_437 = arith.constant 7 : index
    %c25_438 = arith.constant 25 : index
    %1121 = memref.load %arg1[%c7_437, %c25_438] : memref<16x27xf32, #tpu.memory_space<smem>>
    %1122 = vector.broadcast %1121 : f32 to vector<16x256xf32>
    %1123 = arith.mulf %1122, %235 : vector<16x256xf32>
    %1124 = arith.addf %1120, %1123 : vector<16x256xf32>
    %c7_439 = arith.constant 7 : index
    %c26_440 = arith.constant 26 : index
    %1125 = memref.load %arg1[%c7_439, %c26_440] : memref<16x27xf32, #tpu.memory_space<smem>>
    %1126 = vector.broadcast %1125 : f32 to vector<16x256xf32>
    %1127 = arith.mulf %1126, %244 : vector<16x256xf32>
    %1128 = arith.addf %1124, %1127 : vector<16x256xf32>
    %1129 = arith.mulf %1128, %7 : vector<16x256xf32>
    %c0_441 = arith.constant 0 : index
    %c6_442 = arith.constant 6 : index
    %c0_443 = arith.constant 0 : index
    %c0_444 = arith.constant 0 : index
    %1130 = vector.load %arg6[%c0_441, %c6_442, %c0_443, %c0_444] : memref<1x15x16x256xf32, #tpu.memory_space<vmem>>, vector<1x1x16x256xf32>
    %1131 = vector.shape_cast %1130 : vector<1x1x16x256xf32> to vector<16x256xf32>
    %1132 = vector.shape_cast %1129 : vector<16x256xf32> to vector<1x1x16x256xf32>
    tpu.vector_store %arg6[%c0_441, %c6_442, %c0_443, %c0_444], %1132 {strides = array<i32>} : memref<1x15x16x256xf32, #tpu.memory_space<vmem>>, vector<1x1x16x256xf32>,
    %c8_445 = arith.constant 8 : index
    %c0_446 = arith.constant 0 : index
    %1133 = memref.load %arg1[%c8_445, %c0_446] : memref<16x27xf32, #tpu.memory_space<smem>>
    %1134 = vector.broadcast %1133 : f32 to vector<16x256xf32>
    %1135 = arith.mulf %1134, %28 : vector<16x256xf32>
    %c8_447 = arith.constant 8 : index
    %c1_448 = arith.constant 1 : index
    %1136 = memref.load %arg1[%c8_447, %c1_448] : memref<16x27xf32, #tpu.memory_space<smem>>
    %1137 = vector.broadcast %1136 : f32 to vector<16x256xf32>
    %1138 = arith.mulf %1137, %37 : vector<16x256xf32>
    %1139 = arith.addf %1135, %1138 : vector<16x256xf32>
    %c8_449 = arith.constant 8 : index
    %c2_450 = arith.constant 2 : index
    %1140 = memref.load %arg1[%c8_449, %c2_450] : memref<16x27xf32, #tpu.memory_space<smem>>
    %1141 = vector.broadcast %1140 : f32 to vector<16x256xf32>
    %1142 = arith.mulf %1141, %46 : vector<16x256xf32>
    %1143 = arith.addf %1139, %1142 : vector<16x256xf32>
    %c8_451 = arith.constant 8 : index
    %c3_452 = arith.constant 3 : index
    %1144 = memref.load %arg1[%c8_451, %c3_452] : memref<16x27xf32, #tpu.memory_space<smem>>
    %1145 = vector.broadcast %1144 : f32 to vector<16x256xf32>
    %1146 = arith.mulf %1145, %55 : vector<16x256xf32>
    %1147 = arith.addf %1143, %1146 : vector<16x256xf32>
    %c8_453 = arith.constant 8 : index
    %c4_454 = arith.constant 4 : index
    %1148 = memref.load %arg1[%c8_453, %c4_454] : memref<16x27xf32, #tpu.memory_space<smem>>
    %1149 = vector.broadcast %1148 : f32 to vector<16x256xf32>
    %1150 = arith.mulf %1149, %58 : vector<16x256xf32>
    %1151 = arith.addf %1147, %1150 : vector<16x256xf32>
    %c8_455 = arith.constant 8 : index
    %c5_456 = arith.constant 5 : index
    %1152 = memref.load %arg1[%c8_455, %c5_456] : memref<16x27xf32, #tpu.memory_space<smem>>
    %1153 = vector.broadcast %1152 : f32 to vector<16x256xf32>
    %1154 = arith.mulf %1153, %67 : vector<16x256xf32>
    %1155 = arith.addf %1151, %1154 : vector<16x256xf32>
    %c8_457 = arith.constant 8 : index
    %c6_458 = arith.constant 6 : index
    %1156 = memref.load %arg1[%c8_457, %c6_458] : memref<16x27xf32, #tpu.memory_space<smem>>
    %1157 = vector.broadcast %1156 : f32 to vector<16x256xf32>
    %1158 = arith.mulf %1157, %76 : vector<16x256xf32>
    %1159 = arith.addf %1155, %1158 : vector<16x256xf32>
    %c8_459 = arith.constant 8 : index
    %c7_460 = arith.constant 7 : index
    %1160 = memref.load %arg1[%c8_459, %c7_460] : memref<16x27xf32, #tpu.memory_space<smem>>
    %1161 = vector.broadcast %1160 : f32 to vector<16x256xf32>
    %1162 = arith.mulf %1161, %85 : vector<16x256xf32>
    %1163 = arith.addf %1159, %1162 : vector<16x256xf32>
    %c8_461 = arith.constant 8 : index
    %c8_462 = arith.constant 8 : index
    %1164 = memref.load %arg1[%c8_461, %c8_462] : memref<16x27xf32, #tpu.memory_space<smem>>
    %1165 = vector.broadcast %1164 : f32 to vector<16x256xf32>
    %1166 = arith.mulf %1165, %94 : vector<16x256xf32>
    %1167 = arith.addf %1163, %1166 : vector<16x256xf32>
    %c8_463 = arith.constant 8 : index
    %c9_464 = arith.constant 9 : index
    %1168 = memref.load %arg1[%c8_463, %c9_464] : memref<16x27xf32, #tpu.memory_space<smem>>
    %1169 = vector.broadcast %1168 : f32 to vector<16x256xf32>
    %1170 = arith.mulf %1169, %103 : vector<16x256xf32>
    %1171 = arith.addf %1167, %1170 : vector<16x256xf32>
    %c8_465 = arith.constant 8 : index
    %c10_466 = arith.constant 10 : index
    %1172 = memref.load %arg1[%c8_465, %c10_466] : memref<16x27xf32, #tpu.memory_space<smem>>
    %1173 = vector.broadcast %1172 : f32 to vector<16x256xf32>
    %1174 = arith.mulf %1173, %112 : vector<16x256xf32>
    %1175 = arith.addf %1171, %1174 : vector<16x256xf32>
    %c8_467 = arith.constant 8 : index
    %c11_468 = arith.constant 11 : index
    %1176 = memref.load %arg1[%c8_467, %c11_468] : memref<16x27xf32, #tpu.memory_space<smem>>
    %1177 = vector.broadcast %1176 : f32 to vector<16x256xf32>
    %1178 = arith.mulf %1177, %121 : vector<16x256xf32>
    %1179 = arith.addf %1175, %1178 : vector<16x256xf32>
    %c8_469 = arith.constant 8 : index
    %c12_470 = arith.constant 12 : index
    %1180 = memref.load %arg1[%c8_469, %c12_470] : memref<16x27xf32, #tpu.memory_space<smem>>
    %1181 = vector.broadcast %1180 : f32 to vector<16x256xf32>
    %1182 = arith.mulf %1181, %130 : vector<16x256xf32>
    %1183 = arith.addf %1179, %1182 : vector<16x256xf32>
    %c8_471 = arith.constant 8 : index
    %c13_472 = arith.constant 13 : index
    %1184 = memref.load %arg1[%c8_471, %c13_472] : memref<16x27xf32, #tpu.memory_space<smem>>
    %1185 = vector.broadcast %1184 : f32 to vector<16x256xf32>
    %1186 = arith.mulf %1185, %133 : vector<16x256xf32>
    %1187 = arith.addf %1183, %1186 : vector<16x256xf32>
    %c8_473 = arith.constant 8 : index
    %c14_474 = arith.constant 14 : index
    %1188 = memref.load %arg1[%c8_473, %c14_474] : memref<16x27xf32, #tpu.memory_space<smem>>
    %1189 = vector.broadcast %1188 : f32 to vector<16x256xf32>
    %1190 = arith.mulf %1189, %142 : vector<16x256xf32>
    %1191 = arith.addf %1187, %1190 : vector<16x256xf32>
    %c8_475 = arith.constant 8 : index
    %c15_476 = arith.constant 15 : index
    %1192 = memref.load %arg1[%c8_475, %c15_476] : memref<16x27xf32, #tpu.memory_space<smem>>
    %1193 = vector.broadcast %1192 : f32 to vector<16x256xf32>
    %1194 = arith.mulf %1193, %151 : vector<16x256xf32>
    %1195 = arith.addf %1191, %1194 : vector<16x256xf32>
    %c8_477 = arith.constant 8 : index
    %c16_478 = arith.constant 16 : index
    %1196 = memref.load %arg1[%c8_477, %c16_478] : memref<16x27xf32, #tpu.memory_space<smem>>
    %1197 = vector.broadcast %1196 : f32 to vector<16x256xf32>
    %1198 = arith.mulf %1197, %160 : vector<16x256xf32>
    %1199 = arith.addf %1195, %1198 : vector<16x256xf32>
    %c8_479 = arith.constant 8 : index
    %c17_480 = arith.constant 17 : index
    %1200 = memref.load %arg1[%c8_479, %c17_480] : memref<16x27xf32, #tpu.memory_space<smem>>
    %1201 = vector.broadcast %1200 : f32 to vector<16x256xf32>
    %1202 = arith.mulf %1201, %169 : vector<16x256xf32>
    %1203 = arith.addf %1199, %1202 : vector<16x256xf32>
    %c8_481 = arith.constant 8 : index
    %c18_482 = arith.constant 18 : index
    %1204 = memref.load %arg1[%c8_481, %c18_482] : memref<16x27xf32, #tpu.memory_space<smem>>
    %1205 = vector.broadcast %1204 : f32 to vector<16x256xf32>
    %1206 = arith.mulf %1205, %178 : vector<16x256xf32>
    %1207 = arith.addf %1203, %1206 : vector<16x256xf32>
    %c8_483 = arith.constant 8 : index
    %c19_484 = arith.constant 19 : index
    %1208 = memref.load %arg1[%c8_483, %c19_484] : memref<16x27xf32, #tpu.memory_space<smem>>
    %1209 = vector.broadcast %1208 : f32 to vector<16x256xf32>
    %1210 = arith.mulf %1209, %187 : vector<16x256xf32>
    %1211 = arith.addf %1207, %1210 : vector<16x256xf32>
    %c8_485 = arith.constant 8 : index
    %c20_486 = arith.constant 20 : index
    %1212 = memref.load %arg1[%c8_485, %c20_486] : memref<16x27xf32, #tpu.memory_space<smem>>
    %1213 = vector.broadcast %1212 : f32 to vector<16x256xf32>
    %1214 = arith.mulf %1213, %196 : vector<16x256xf32>
    %1215 = arith.addf %1211, %1214 : vector<16x256xf32>
    %c8_487 = arith.constant 8 : index
    %c21_488 = arith.constant 21 : index
    %1216 = memref.load %arg1[%c8_487, %c21_488] : memref<16x27xf32, #tpu.memory_space<smem>>
    %1217 = vector.broadcast %1216 : f32 to vector<16x256xf32>
    %1218 = arith.mulf %1217, %205 : vector<16x256xf32>
    %1219 = arith.addf %1215, %1218 : vector<16x256xf32>
    %c8_489 = arith.constant 8 : index
    %c22_490 = arith.constant 22 : index
    %1220 = memref.load %arg1[%c8_489, %c22_490] : memref<16x27xf32, #tpu.memory_space<smem>>
    %1221 = vector.broadcast %1220 : f32 to vector<16x256xf32>
    %1222 = arith.mulf %1221, %208 : vector<16x256xf32>
    %1223 = arith.addf %1219, %1222 : vector<16x256xf32>
    %c8_491 = arith.constant 8 : index
    %c23_492 = arith.constant 23 : index
    %1224 = memref.load %arg1[%c8_491, %c23_492] : memref<16x27xf32, #tpu.memory_space<smem>>
    %1225 = vector.broadcast %1224 : f32 to vector<16x256xf32>
    %1226 = arith.mulf %1225, %217 : vector<16x256xf32>
    %1227 = arith.addf %1223, %1226 : vector<16x256xf32>
    %c8_493 = arith.constant 8 : index
    %c24_494 = arith.constant 24 : index
    %1228 = memref.load %arg1[%c8_493, %c24_494] : memref<16x27xf32, #tpu.memory_space<smem>>
    %1229 = vector.broadcast %1228 : f32 to vector<16x256xf32>
    %1230 = arith.mulf %1229, %226 : vector<16x256xf32>
    %1231 = arith.addf %1227, %1230 : vector<16x256xf32>
    %c8_495 = arith.constant 8 : index
    %c25_496 = arith.constant 25 : index
    %1232 = memref.load %arg1[%c8_495, %c25_496] : memref<16x27xf32, #tpu.memory_space<smem>>
    %1233 = vector.broadcast %1232 : f32 to vector<16x256xf32>
    %1234 = arith.mulf %1233, %235 : vector<16x256xf32>
    %1235 = arith.addf %1231, %1234 : vector<16x256xf32>
    %c8_497 = arith.constant 8 : index
    %c26_498 = arith.constant 26 : index
    %1236 = memref.load %arg1[%c8_497, %c26_498] : memref<16x27xf32, #tpu.memory_space<smem>>
    %1237 = vector.broadcast %1236 : f32 to vector<16x256xf32>
    %1238 = arith.mulf %1237, %244 : vector<16x256xf32>
    %1239 = arith.addf %1235, %1238 : vector<16x256xf32>
    %1240 = arith.mulf %1239, %7 : vector<16x256xf32>
    %c0_499 = arith.constant 0 : index
    %c7_500 = arith.constant 7 : index
    %c0_501 = arith.constant 0 : index
    %c0_502 = arith.constant 0 : index
    %1241 = vector.load %arg6[%c0_499, %c7_500, %c0_501, %c0_502] : memref<1x15x16x256xf32, #tpu.memory_space<vmem>>, vector<1x1x16x256xf32>
    %1242 = vector.shape_cast %1241 : vector<1x1x16x256xf32> to vector<16x256xf32>
    %1243 = vector.shape_cast %1240 : vector<16x256xf32> to vector<1x1x16x256xf32>
    tpu.vector_store %arg6[%c0_499, %c7_500, %c0_501, %c0_502], %1243 {strides = array<i32>} : memref<1x15x16x256xf32, #tpu.memory_space<vmem>>, vector<1x1x16x256xf32>,
    %c9_503 = arith.constant 9 : index
    %c0_504 = arith.constant 0 : index
    %1244 = memref.load %arg1[%c9_503, %c0_504] : memref<16x27xf32, #tpu.memory_space<smem>>
    %1245 = vector.broadcast %1244 : f32 to vector<16x256xf32>
    %1246 = arith.mulf %1245, %28 : vector<16x256xf32>
    %c9_505 = arith.constant 9 : index
    %c1_506 = arith.constant 1 : index
    %1247 = memref.load %arg1[%c9_505, %c1_506] : memref<16x27xf32, #tpu.memory_space<smem>>
    %1248 = vector.broadcast %1247 : f32 to vector<16x256xf32>
    %1249 = arith.mulf %1248, %37 : vector<16x256xf32>
    %1250 = arith.addf %1246, %1249 : vector<16x256xf32>
    %c9_507 = arith.constant 9 : index
    %c2_508 = arith.constant 2 : index
    %1251 = memref.load %arg1[%c9_507, %c2_508] : memref<16x27xf32, #tpu.memory_space<smem>>
    %1252 = vector.broadcast %1251 : f32 to vector<16x256xf32>
    %1253 = arith.mulf %1252, %46 : vector<16x256xf32>
    %1254 = arith.addf %1250, %1253 : vector<16x256xf32>
    %c9_509 = arith.constant 9 : index
    %c3_510 = arith.constant 3 : index
    %1255 = memref.load %arg1[%c9_509, %c3_510] : memref<16x27xf32, #tpu.memory_space<smem>>
    %1256 = vector.broadcast %1255 : f32 to vector<16x256xf32>
    %1257 = arith.mulf %1256, %55 : vector<16x256xf32>
    %1258 = arith.addf %1254, %1257 : vector<16x256xf32>
    %c9_511 = arith.constant 9 : index
    %c4_512 = arith.constant 4 : index
    %1259 = memref.load %arg1[%c9_511, %c4_512] : memref<16x27xf32, #tpu.memory_space<smem>>
    %1260 = vector.broadcast %1259 : f32 to vector<16x256xf32>
    %1261 = arith.mulf %1260, %58 : vector<16x256xf32>
    %1262 = arith.addf %1258, %1261 : vector<16x256xf32>
    %c9_513 = arith.constant 9 : index
    %c5_514 = arith.constant 5 : index
    %1263 = memref.load %arg1[%c9_513, %c5_514] : memref<16x27xf32, #tpu.memory_space<smem>>
    %1264 = vector.broadcast %1263 : f32 to vector<16x256xf32>
    %1265 = arith.mulf %1264, %67 : vector<16x256xf32>
    %1266 = arith.addf %1262, %1265 : vector<16x256xf32>
    %c9_515 = arith.constant 9 : index
    %c6_516 = arith.constant 6 : index
    %1267 = memref.load %arg1[%c9_515, %c6_516] : memref<16x27xf32, #tpu.memory_space<smem>>
    %1268 = vector.broadcast %1267 : f32 to vector<16x256xf32>
    %1269 = arith.mulf %1268, %76 : vector<16x256xf32>
    %1270 = arith.addf %1266, %1269 : vector<16x256xf32>
    %c9_517 = arith.constant 9 : index
    %c7_518 = arith.constant 7 : index
    %1271 = memref.load %arg1[%c9_517, %c7_518] : memref<16x27xf32, #tpu.memory_space<smem>>
    %1272 = vector.broadcast %1271 : f32 to vector<16x256xf32>
    %1273 = arith.mulf %1272, %85 : vector<16x256xf32>
    %1274 = arith.addf %1270, %1273 : vector<16x256xf32>
    %c9_519 = arith.constant 9 : index
    %c8_520 = arith.constant 8 : index
    %1275 = memref.load %arg1[%c9_519, %c8_520] : memref<16x27xf32, #tpu.memory_space<smem>>
    %1276 = vector.broadcast %1275 : f32 to vector<16x256xf32>
    %1277 = arith.mulf %1276, %94 : vector<16x256xf32>
    %1278 = arith.addf %1274, %1277 : vector<16x256xf32>
    %c9_521 = arith.constant 9 : index
    %c9_522 = arith.constant 9 : index
    %1279 = memref.load %arg1[%c9_521, %c9_522] : memref<16x27xf32, #tpu.memory_space<smem>>
    %1280 = vector.broadcast %1279 : f32 to vector<16x256xf32>
    %1281 = arith.mulf %1280, %103 : vector<16x256xf32>
    %1282 = arith.addf %1278, %1281 : vector<16x256xf32>
    %c9_523 = arith.constant 9 : index
    %c10_524 = arith.constant 10 : index
    %1283 = memref.load %arg1[%c9_523, %c10_524] : memref<16x27xf32, #tpu.memory_space<smem>>
    %1284 = vector.broadcast %1283 : f32 to vector<16x256xf32>
    %1285 = arith.mulf %1284, %112 : vector<16x256xf32>
    %1286 = arith.addf %1282, %1285 : vector<16x256xf32>
    %c9_525 = arith.constant 9 : index
    %c11_526 = arith.constant 11 : index
    %1287 = memref.load %arg1[%c9_525, %c11_526] : memref<16x27xf32, #tpu.memory_space<smem>>
    %1288 = vector.broadcast %1287 : f32 to vector<16x256xf32>
    %1289 = arith.mulf %1288, %121 : vector<16x256xf32>
    %1290 = arith.addf %1286, %1289 : vector<16x256xf32>
    %c9_527 = arith.constant 9 : index
    %c12_528 = arith.constant 12 : index
    %1291 = memref.load %arg1[%c9_527, %c12_528] : memref<16x27xf32, #tpu.memory_space<smem>>
    %1292 = vector.broadcast %1291 : f32 to vector<16x256xf32>
    %1293 = arith.mulf %1292, %130 : vector<16x256xf32>
    %1294 = arith.addf %1290, %1293 : vector<16x256xf32>
    %c9_529 = arith.constant 9 : index
    %c13_530 = arith.constant 13 : index
    %1295 = memref.load %arg1[%c9_529, %c13_530] : memref<16x27xf32, #tpu.memory_space<smem>>
    %1296 = vector.broadcast %1295 : f32 to vector<16x256xf32>
    %1297 = arith.mulf %1296, %133 : vector<16x256xf32>
    %1298 = arith.addf %1294, %1297 : vector<16x256xf32>
    %c9_531 = arith.constant 9 : index
    %c14_532 = arith.constant 14 : index
    %1299 = memref.load %arg1[%c9_531, %c14_532] : memref<16x27xf32, #tpu.memory_space<smem>>
    %1300 = vector.broadcast %1299 : f32 to vector<16x256xf32>
    %1301 = arith.mulf %1300, %142 : vector<16x256xf32>
    %1302 = arith.addf %1298, %1301 : vector<16x256xf32>
    %c9_533 = arith.constant 9 : index
    %c15_534 = arith.constant 15 : index
    %1303 = memref.load %arg1[%c9_533, %c15_534] : memref<16x27xf32, #tpu.memory_space<smem>>
    %1304 = vector.broadcast %1303 : f32 to vector<16x256xf32>
    %1305 = arith.mulf %1304, %151 : vector<16x256xf32>
    %1306 = arith.addf %1302, %1305 : vector<16x256xf32>
    %c9_535 = arith.constant 9 : index
    %c16_536 = arith.constant 16 : index
    %1307 = memref.load %arg1[%c9_535, %c16_536] : memref<16x27xf32, #tpu.memory_space<smem>>
    %1308 = vector.broadcast %1307 : f32 to vector<16x256xf32>
    %1309 = arith.mulf %1308, %160 : vector<16x256xf32>
    %1310 = arith.addf %1306, %1309 : vector<16x256xf32>
    %c9_537 = arith.constant 9 : index
    %c17_538 = arith.constant 17 : index
    %1311 = memref.load %arg1[%c9_537, %c17_538] : memref<16x27xf32, #tpu.memory_space<smem>>
    %1312 = vector.broadcast %1311 : f32 to vector<16x256xf32>
    %1313 = arith.mulf %1312, %169 : vector<16x256xf32>
    %1314 = arith.addf %1310, %1313 : vector<16x256xf32>
    %c9_539 = arith.constant 9 : index
    %c18_540 = arith.constant 18 : index
    %1315 = memref.load %arg1[%c9_539, %c18_540] : memref<16x27xf32, #tpu.memory_space<smem>>
    %1316 = vector.broadcast %1315 : f32 to vector<16x256xf32>
    %1317 = arith.mulf %1316, %178 : vector<16x256xf32>
    %1318 = arith.addf %1314, %1317 : vector<16x256xf32>
    %c9_541 = arith.constant 9 : index
    %c19_542 = arith.constant 19 : index
    %1319 = memref.load %arg1[%c9_541, %c19_542] : memref<16x27xf32, #tpu.memory_space<smem>>
    %1320 = vector.broadcast %1319 : f32 to vector<16x256xf32>
    %1321 = arith.mulf %1320, %187 : vector<16x256xf32>
    %1322 = arith.addf %1318, %1321 : vector<16x256xf32>
    %c9_543 = arith.constant 9 : index
    %c20_544 = arith.constant 20 : index
    %1323 = memref.load %arg1[%c9_543, %c20_544] : memref<16x27xf32, #tpu.memory_space<smem>>
    %1324 = vector.broadcast %1323 : f32 to vector<16x256xf32>
    %1325 = arith.mulf %1324, %196 : vector<16x256xf32>
    %1326 = arith.addf %1322, %1325 : vector<16x256xf32>
    %c9_545 = arith.constant 9 : index
    %c21_546 = arith.constant 21 : index
    %1327 = memref.load %arg1[%c9_545, %c21_546] : memref<16x27xf32, #tpu.memory_space<smem>>
    %1328 = vector.broadcast %1327 : f32 to vector<16x256xf32>
    %1329 = arith.mulf %1328, %205 : vector<16x256xf32>
    %1330 = arith.addf %1326, %1329 : vector<16x256xf32>
    %c9_547 = arith.constant 9 : index
    %c22_548 = arith.constant 22 : index
    %1331 = memref.load %arg1[%c9_547, %c22_548] : memref<16x27xf32, #tpu.memory_space<smem>>
    %1332 = vector.broadcast %1331 : f32 to vector<16x256xf32>
    %1333 = arith.mulf %1332, %208 : vector<16x256xf32>
    %1334 = arith.addf %1330, %1333 : vector<16x256xf32>
    %c9_549 = arith.constant 9 : index
    %c23_550 = arith.constant 23 : index
    %1335 = memref.load %arg1[%c9_549, %c23_550] : memref<16x27xf32, #tpu.memory_space<smem>>
    %1336 = vector.broadcast %1335 : f32 to vector<16x256xf32>
    %1337 = arith.mulf %1336, %217 : vector<16x256xf32>
    %1338 = arith.addf %1334, %1337 : vector<16x256xf32>
    %c9_551 = arith.constant 9 : index
    %c24_552 = arith.constant 24 : index
    %1339 = memref.load %arg1[%c9_551, %c24_552] : memref<16x27xf32, #tpu.memory_space<smem>>
    %1340 = vector.broadcast %1339 : f32 to vector<16x256xf32>
    %1341 = arith.mulf %1340, %226 : vector<16x256xf32>
    %1342 = arith.addf %1338, %1341 : vector<16x256xf32>
    %c9_553 = arith.constant 9 : index
    %c25_554 = arith.constant 25 : index
    %1343 = memref.load %arg1[%c9_553, %c25_554] : memref<16x27xf32, #tpu.memory_space<smem>>
    %1344 = vector.broadcast %1343 : f32 to vector<16x256xf32>
    %1345 = arith.mulf %1344, %235 : vector<16x256xf32>
    %1346 = arith.addf %1342, %1345 : vector<16x256xf32>
    %c9_555 = arith.constant 9 : index
    %c26_556 = arith.constant 26 : index
    %1347 = memref.load %arg1[%c9_555, %c26_556] : memref<16x27xf32, #tpu.memory_space<smem>>
    %1348 = vector.broadcast %1347 : f32 to vector<16x256xf32>
    %1349 = arith.mulf %1348, %244 : vector<16x256xf32>
    %1350 = arith.addf %1346, %1349 : vector<16x256xf32>
    %1351 = arith.mulf %1350, %7 : vector<16x256xf32>
    %c0_557 = arith.constant 0 : index
    %c8_558 = arith.constant 8 : index
    %c0_559 = arith.constant 0 : index
    %c0_560 = arith.constant 0 : index
    %1352 = vector.load %arg6[%c0_557, %c8_558, %c0_559, %c0_560] : memref<1x15x16x256xf32, #tpu.memory_space<vmem>>, vector<1x1x16x256xf32>
    %1353 = vector.shape_cast %1352 : vector<1x1x16x256xf32> to vector<16x256xf32>
    %1354 = vector.shape_cast %1351 : vector<16x256xf32> to vector<1x1x16x256xf32>
    tpu.vector_store %arg6[%c0_557, %c8_558, %c0_559, %c0_560], %1354 {strides = array<i32>} : memref<1x15x16x256xf32, #tpu.memory_space<vmem>>, vector<1x1x16x256xf32>,
    %c10_561 = arith.constant 10 : index
    %c0_562 = arith.constant 0 : index
    %1355 = memref.load %arg1[%c10_561, %c0_562] : memref<16x27xf32, #tpu.memory_space<smem>>
    %1356 = vector.broadcast %1355 : f32 to vector<16x256xf32>
    %1357 = arith.mulf %1356, %28 : vector<16x256xf32>
    %c10_563 = arith.constant 10 : index
    %c1_564 = arith.constant 1 : index
    %1358 = memref.load %arg1[%c10_563, %c1_564] : memref<16x27xf32, #tpu.memory_space<smem>>
    %1359 = vector.broadcast %1358 : f32 to vector<16x256xf32>
    %1360 = arith.mulf %1359, %37 : vector<16x256xf32>
    %1361 = arith.addf %1357, %1360 : vector<16x256xf32>
    %c10_565 = arith.constant 10 : index
    %c2_566 = arith.constant 2 : index
    %1362 = memref.load %arg1[%c10_565, %c2_566] : memref<16x27xf32, #tpu.memory_space<smem>>
    %1363 = vector.broadcast %1362 : f32 to vector<16x256xf32>
    %1364 = arith.mulf %1363, %46 : vector<16x256xf32>
    %1365 = arith.addf %1361, %1364 : vector<16x256xf32>
    %c10_567 = arith.constant 10 : index
    %c3_568 = arith.constant 3 : index
    %1366 = memref.load %arg1[%c10_567, %c3_568] : memref<16x27xf32, #tpu.memory_space<smem>>
    %1367 = vector.broadcast %1366 : f32 to vector<16x256xf32>
    %1368 = arith.mulf %1367, %55 : vector<16x256xf32>
    %1369 = arith.addf %1365, %1368 : vector<16x256xf32>
    %c10_569 = arith.constant 10 : index
    %c4_570 = arith.constant 4 : index
    %1370 = memref.load %arg1[%c10_569, %c4_570] : memref<16x27xf32, #tpu.memory_space<smem>>
    %1371 = vector.broadcast %1370 : f32 to vector<16x256xf32>
    %1372 = arith.mulf %1371, %58 : vector<16x256xf32>
    %1373 = arith.addf %1369, %1372 : vector<16x256xf32>
    %c10_571 = arith.constant 10 : index
    %c5_572 = arith.constant 5 : index
    %1374 = memref.load %arg1[%c10_571, %c5_572] : memref<16x27xf32, #tpu.memory_space<smem>>
    %1375 = vector.broadcast %1374 : f32 to vector<16x256xf32>
    %1376 = arith.mulf %1375, %67 : vector<16x256xf32>
    %1377 = arith.addf %1373, %1376 : vector<16x256xf32>
    %c10_573 = arith.constant 10 : index
    %c6_574 = arith.constant 6 : index
    %1378 = memref.load %arg1[%c10_573, %c6_574] : memref<16x27xf32, #tpu.memory_space<smem>>
    %1379 = vector.broadcast %1378 : f32 to vector<16x256xf32>
    %1380 = arith.mulf %1379, %76 : vector<16x256xf32>
    %1381 = arith.addf %1377, %1380 : vector<16x256xf32>
    %c10_575 = arith.constant 10 : index
    %c7_576 = arith.constant 7 : index
    %1382 = memref.load %arg1[%c10_575, %c7_576] : memref<16x27xf32, #tpu.memory_space<smem>>
    %1383 = vector.broadcast %1382 : f32 to vector<16x256xf32>
    %1384 = arith.mulf %1383, %85 : vector<16x256xf32>
    %1385 = arith.addf %1381, %1384 : vector<16x256xf32>
    %c10_577 = arith.constant 10 : index
    %c8_578 = arith.constant 8 : index
    %1386 = memref.load %arg1[%c10_577, %c8_578] : memref<16x27xf32, #tpu.memory_space<smem>>
    %1387 = vector.broadcast %1386 : f32 to vector<16x256xf32>
    %1388 = arith.mulf %1387, %94 : vector<16x256xf32>
    %1389 = arith.addf %1385, %1388 : vector<16x256xf32>
    %c10_579 = arith.constant 10 : index
    %c9_580 = arith.constant 9 : index
    %1390 = memref.load %arg1[%c10_579, %c9_580] : memref<16x27xf32, #tpu.memory_space<smem>>
    %1391 = vector.broadcast %1390 : f32 to vector<16x256xf32>
    %1392 = arith.mulf %1391, %103 : vector<16x256xf32>
    %1393 = arith.addf %1389, %1392 : vector<16x256xf32>
    %c10_581 = arith.constant 10 : index
    %c10_582 = arith.constant 10 : index
    %1394 = memref.load %arg1[%c10_581, %c10_582] : memref<16x27xf32, #tpu.memory_space<smem>>
    %1395 = vector.broadcast %1394 : f32 to vector<16x256xf32>
    %1396 = arith.mulf %1395, %112 : vector<16x256xf32>
    %1397 = arith.addf %1393, %1396 : vector<16x256xf32>
    %c10_583 = arith.constant 10 : index
    %c11_584 = arith.constant 11 : index
    %1398 = memref.load %arg1[%c10_583, %c11_584] : memref<16x27xf32, #tpu.memory_space<smem>>
    %1399 = vector.broadcast %1398 : f32 to vector<16x256xf32>
    %1400 = arith.mulf %1399, %121 : vector<16x256xf32>
    %1401 = arith.addf %1397, %1400 : vector<16x256xf32>
    %c10_585 = arith.constant 10 : index
    %c12_586 = arith.constant 12 : index
    %1402 = memref.load %arg1[%c10_585, %c12_586] : memref<16x27xf32, #tpu.memory_space<smem>>
    %1403 = vector.broadcast %1402 : f32 to vector<16x256xf32>
    %1404 = arith.mulf %1403, %130 : vector<16x256xf32>
    %1405 = arith.addf %1401, %1404 : vector<16x256xf32>
    %c10_587 = arith.constant 10 : index
    %c13_588 = arith.constant 13 : index
    %1406 = memref.load %arg1[%c10_587, %c13_588] : memref<16x27xf32, #tpu.memory_space<smem>>
    %1407 = vector.broadcast %1406 : f32 to vector<16x256xf32>
    %1408 = arith.mulf %1407, %133 : vector<16x256xf32>
    %1409 = arith.addf %1405, %1408 : vector<16x256xf32>
    %c10_589 = arith.constant 10 : index
    %c14_590 = arith.constant 14 : index
    %1410 = memref.load %arg1[%c10_589, %c14_590] : memref<16x27xf32, #tpu.memory_space<smem>>
    %1411 = vector.broadcast %1410 : f32 to vector<16x256xf32>
    %1412 = arith.mulf %1411, %142 : vector<16x256xf32>
    %1413 = arith.addf %1409, %1412 : vector<16x256xf32>
    %c10_591 = arith.constant 10 : index
    %c15_592 = arith.constant 15 : index
    %1414 = memref.load %arg1[%c10_591, %c15_592] : memref<16x27xf32, #tpu.memory_space<smem>>
    %1415 = vector.broadcast %1414 : f32 to vector<16x256xf32>
    %1416 = arith.mulf %1415, %151 : vector<16x256xf32>
    %1417 = arith.addf %1413, %1416 : vector<16x256xf32>
    %c10_593 = arith.constant 10 : index
    %c16_594 = arith.constant 16 : index
    %1418 = memref.load %arg1[%c10_593, %c16_594] : memref<16x27xf32, #tpu.memory_space<smem>>
    %1419 = vector.broadcast %1418 : f32 to vector<16x256xf32>
    %1420 = arith.mulf %1419, %160 : vector<16x256xf32>
    %1421 = arith.addf %1417, %1420 : vector<16x256xf32>
    %c10_595 = arith.constant 10 : index
    %c17_596 = arith.constant 17 : index
    %1422 = memref.load %arg1[%c10_595, %c17_596] : memref<16x27xf32, #tpu.memory_space<smem>>
    %1423 = vector.broadcast %1422 : f32 to vector<16x256xf32>
    %1424 = arith.mulf %1423, %169 : vector<16x256xf32>
    %1425 = arith.addf %1421, %1424 : vector<16x256xf32>
    %c10_597 = arith.constant 10 : index
    %c18_598 = arith.constant 18 : index
    %1426 = memref.load %arg1[%c10_597, %c18_598] : memref<16x27xf32, #tpu.memory_space<smem>>
    %1427 = vector.broadcast %1426 : f32 to vector<16x256xf32>
    %1428 = arith.mulf %1427, %178 : vector<16x256xf32>
    %1429 = arith.addf %1425, %1428 : vector<16x256xf32>
    %c10_599 = arith.constant 10 : index
    %c19_600 = arith.constant 19 : index
    %1430 = memref.load %arg1[%c10_599, %c19_600] : memref<16x27xf32, #tpu.memory_space<smem>>
    %1431 = vector.broadcast %1430 : f32 to vector<16x256xf32>
    %1432 = arith.mulf %1431, %187 : vector<16x256xf32>
    %1433 = arith.addf %1429, %1432 : vector<16x256xf32>
    %c10_601 = arith.constant 10 : index
    %c20_602 = arith.constant 20 : index
    %1434 = memref.load %arg1[%c10_601, %c20_602] : memref<16x27xf32, #tpu.memory_space<smem>>
    %1435 = vector.broadcast %1434 : f32 to vector<16x256xf32>
    %1436 = arith.mulf %1435, %196 : vector<16x256xf32>
    %1437 = arith.addf %1433, %1436 : vector<16x256xf32>
    %c10_603 = arith.constant 10 : index
    %c21_604 = arith.constant 21 : index
    %1438 = memref.load %arg1[%c10_603, %c21_604] : memref<16x27xf32, #tpu.memory_space<smem>>
    %1439 = vector.broadcast %1438 : f32 to vector<16x256xf32>
    %1440 = arith.mulf %1439, %205 : vector<16x256xf32>
    %1441 = arith.addf %1437, %1440 : vector<16x256xf32>
    %c10_605 = arith.constant 10 : index
    %c22_606 = arith.constant 22 : index
    %1442 = memref.load %arg1[%c10_605, %c22_606] : memref<16x27xf32, #tpu.memory_space<smem>>
    %1443 = vector.broadcast %1442 : f32 to vector<16x256xf32>
    %1444 = arith.mulf %1443, %208 : vector<16x256xf32>
    %1445 = arith.addf %1441, %1444 : vector<16x256xf32>
    %c10_607 = arith.constant 10 : index
    %c23_608 = arith.constant 23 : index
    %1446 = memref.load %arg1[%c10_607, %c23_608] : memref<16x27xf32, #tpu.memory_space<smem>>
    %1447 = vector.broadcast %1446 : f32 to vector<16x256xf32>
    %1448 = arith.mulf %1447, %217 : vector<16x256xf32>
    %1449 = arith.addf %1445, %1448 : vector<16x256xf32>
    %c10_609 = arith.constant 10 : index
    %c24_610 = arith.constant 24 : index
    %1450 = memref.load %arg1[%c10_609, %c24_610] : memref<16x27xf32, #tpu.memory_space<smem>>
    %1451 = vector.broadcast %1450 : f32 to vector<16x256xf32>
    %1452 = arith.mulf %1451, %226 : vector<16x256xf32>
    %1453 = arith.addf %1449, %1452 : vector<16x256xf32>
    %c10_611 = arith.constant 10 : index
    %c25_612 = arith.constant 25 : index
    %1454 = memref.load %arg1[%c10_611, %c25_612] : memref<16x27xf32, #tpu.memory_space<smem>>
    %1455 = vector.broadcast %1454 : f32 to vector<16x256xf32>
    %1456 = arith.mulf %1455, %235 : vector<16x256xf32>
    %1457 = arith.addf %1453, %1456 : vector<16x256xf32>
    %c10_613 = arith.constant 10 : index
    %c26_614 = arith.constant 26 : index
    %1458 = memref.load %arg1[%c10_613, %c26_614] : memref<16x27xf32, #tpu.memory_space<smem>>
    %1459 = vector.broadcast %1458 : f32 to vector<16x256xf32>
    %1460 = arith.mulf %1459, %244 : vector<16x256xf32>
    %1461 = arith.addf %1457, %1460 : vector<16x256xf32>
    %1462 = arith.mulf %1461, %7 : vector<16x256xf32>
    %c0_615 = arith.constant 0 : index
    %c9_616 = arith.constant 9 : index
    %c0_617 = arith.constant 0 : index
    %c0_618 = arith.constant 0 : index
    %1463 = vector.load %arg6[%c0_615, %c9_616, %c0_617, %c0_618] : memref<1x15x16x256xf32, #tpu.memory_space<vmem>>, vector<1x1x16x256xf32>
    %1464 = vector.shape_cast %1463 : vector<1x1x16x256xf32> to vector<16x256xf32>
    %1465 = vector.shape_cast %1462 : vector<16x256xf32> to vector<1x1x16x256xf32>
    tpu.vector_store %arg6[%c0_615, %c9_616, %c0_617, %c0_618], %1465 {strides = array<i32>} : memref<1x15x16x256xf32, #tpu.memory_space<vmem>>, vector<1x1x16x256xf32>,
    %c11_619 = arith.constant 11 : index
    %c0_620 = arith.constant 0 : index
    %1466 = memref.load %arg1[%c11_619, %c0_620] : memref<16x27xf32, #tpu.memory_space<smem>>
    %1467 = vector.broadcast %1466 : f32 to vector<16x256xf32>
    %1468 = arith.mulf %1467, %28 : vector<16x256xf32>
    %c11_621 = arith.constant 11 : index
    %c1_622 = arith.constant 1 : index
    %1469 = memref.load %arg1[%c11_621, %c1_622] : memref<16x27xf32, #tpu.memory_space<smem>>
    %1470 = vector.broadcast %1469 : f32 to vector<16x256xf32>
    %1471 = arith.mulf %1470, %37 : vector<16x256xf32>
    %1472 = arith.addf %1468, %1471 : vector<16x256xf32>
    %c11_623 = arith.constant 11 : index
    %c2_624 = arith.constant 2 : index
    %1473 = memref.load %arg1[%c11_623, %c2_624] : memref<16x27xf32, #tpu.memory_space<smem>>
    %1474 = vector.broadcast %1473 : f32 to vector<16x256xf32>
    %1475 = arith.mulf %1474, %46 : vector<16x256xf32>
    %1476 = arith.addf %1472, %1475 : vector<16x256xf32>
    %c11_625 = arith.constant 11 : index
    %c3_626 = arith.constant 3 : index
    %1477 = memref.load %arg1[%c11_625, %c3_626] : memref<16x27xf32, #tpu.memory_space<smem>>
    %1478 = vector.broadcast %1477 : f32 to vector<16x256xf32>
    %1479 = arith.mulf %1478, %55 : vector<16x256xf32>
    %1480 = arith.addf %1476, %1479 : vector<16x256xf32>
    %c11_627 = arith.constant 11 : index
    %c4_628 = arith.constant 4 : index
    %1481 = memref.load %arg1[%c11_627, %c4_628] : memref<16x27xf32, #tpu.memory_space<smem>>
    %1482 = vector.broadcast %1481 : f32 to vector<16x256xf32>
    %1483 = arith.mulf %1482, %58 : vector<16x256xf32>
    %1484 = arith.addf %1480, %1483 : vector<16x256xf32>
    %c11_629 = arith.constant 11 : index
    %c5_630 = arith.constant 5 : index
    %1485 = memref.load %arg1[%c11_629, %c5_630] : memref<16x27xf32, #tpu.memory_space<smem>>
    %1486 = vector.broadcast %1485 : f32 to vector<16x256xf32>
    %1487 = arith.mulf %1486, %67 : vector<16x256xf32>
    %1488 = arith.addf %1484, %1487 : vector<16x256xf32>
    %c11_631 = arith.constant 11 : index
    %c6_632 = arith.constant 6 : index
    %1489 = memref.load %arg1[%c11_631, %c6_632] : memref<16x27xf32, #tpu.memory_space<smem>>
    %1490 = vector.broadcast %1489 : f32 to vector<16x256xf32>
    %1491 = arith.mulf %1490, %76 : vector<16x256xf32>
    %1492 = arith.addf %1488, %1491 : vector<16x256xf32>
    %c11_633 = arith.constant 11 : index
    %c7_634 = arith.constant 7 : index
    %1493 = memref.load %arg1[%c11_633, %c7_634] : memref<16x27xf32, #tpu.memory_space<smem>>
    %1494 = vector.broadcast %1493 : f32 to vector<16x256xf32>
    %1495 = arith.mulf %1494, %85 : vector<16x256xf32>
    %1496 = arith.addf %1492, %1495 : vector<16x256xf32>
    %c11_635 = arith.constant 11 : index
    %c8_636 = arith.constant 8 : index
    %1497 = memref.load %arg1[%c11_635, %c8_636] : memref<16x27xf32, #tpu.memory_space<smem>>
    %1498 = vector.broadcast %1497 : f32 to vector<16x256xf32>
    %1499 = arith.mulf %1498, %94 : vector<16x256xf32>
    %1500 = arith.addf %1496, %1499 : vector<16x256xf32>
    %c11_637 = arith.constant 11 : index
    %c9_638 = arith.constant 9 : index
    %1501 = memref.load %arg1[%c11_637, %c9_638] : memref<16x27xf32, #tpu.memory_space<smem>>
    %1502 = vector.broadcast %1501 : f32 to vector<16x256xf32>
    %1503 = arith.mulf %1502, %103 : vector<16x256xf32>
    %1504 = arith.addf %1500, %1503 : vector<16x256xf32>
    %c11_639 = arith.constant 11 : index
    %c10_640 = arith.constant 10 : index
    %1505 = memref.load %arg1[%c11_639, %c10_640] : memref<16x27xf32, #tpu.memory_space<smem>>
    %1506 = vector.broadcast %1505 : f32 to vector<16x256xf32>
    %1507 = arith.mulf %1506, %112 : vector<16x256xf32>
    %1508 = arith.addf %1504, %1507 : vector<16x256xf32>
    %c11_641 = arith.constant 11 : index
    %c11_642 = arith.constant 11 : index
    %1509 = memref.load %arg1[%c11_641, %c11_642] : memref<16x27xf32, #tpu.memory_space<smem>>
    %1510 = vector.broadcast %1509 : f32 to vector<16x256xf32>
    %1511 = arith.mulf %1510, %121 : vector<16x256xf32>
    %1512 = arith.addf %1508, %1511 : vector<16x256xf32>
    %c11_643 = arith.constant 11 : index
    %c12_644 = arith.constant 12 : index
    %1513 = memref.load %arg1[%c11_643, %c12_644] : memref<16x27xf32, #tpu.memory_space<smem>>
    %1514 = vector.broadcast %1513 : f32 to vector<16x256xf32>
    %1515 = arith.mulf %1514, %130 : vector<16x256xf32>
    %1516 = arith.addf %1512, %1515 : vector<16x256xf32>
    %c11_645 = arith.constant 11 : index
    %c13_646 = arith.constant 13 : index
    %1517 = memref.load %arg1[%c11_645, %c13_646] : memref<16x27xf32, #tpu.memory_space<smem>>
    %1518 = vector.broadcast %1517 : f32 to vector<16x256xf32>
    %1519 = arith.mulf %1518, %133 : vector<16x256xf32>
    %1520 = arith.addf %1516, %1519 : vector<16x256xf32>
    %c11_647 = arith.constant 11 : index
    %c14_648 = arith.constant 14 : index
    %1521 = memref.load %arg1[%c11_647, %c14_648] : memref<16x27xf32, #tpu.memory_space<smem>>
    %1522 = vector.broadcast %1521 : f32 to vector<16x256xf32>
    %1523 = arith.mulf %1522, %142 : vector<16x256xf32>
    %1524 = arith.addf %1520, %1523 : vector<16x256xf32>
    %c11_649 = arith.constant 11 : index
    %c15_650 = arith.constant 15 : index
    %1525 = memref.load %arg1[%c11_649, %c15_650] : memref<16x27xf32, #tpu.memory_space<smem>>
    %1526 = vector.broadcast %1525 : f32 to vector<16x256xf32>
    %1527 = arith.mulf %1526, %151 : vector<16x256xf32>
    %1528 = arith.addf %1524, %1527 : vector<16x256xf32>
    %c11_651 = arith.constant 11 : index
    %c16_652 = arith.constant 16 : index
    %1529 = memref.load %arg1[%c11_651, %c16_652] : memref<16x27xf32, #tpu.memory_space<smem>>
    %1530 = vector.broadcast %1529 : f32 to vector<16x256xf32>
    %1531 = arith.mulf %1530, %160 : vector<16x256xf32>
    %1532 = arith.addf %1528, %1531 : vector<16x256xf32>
    %c11_653 = arith.constant 11 : index
    %c17_654 = arith.constant 17 : index
    %1533 = memref.load %arg1[%c11_653, %c17_654] : memref<16x27xf32, #tpu.memory_space<smem>>
    %1534 = vector.broadcast %1533 : f32 to vector<16x256xf32>
    %1535 = arith.mulf %1534, %169 : vector<16x256xf32>
    %1536 = arith.addf %1532, %1535 : vector<16x256xf32>
    %c11_655 = arith.constant 11 : index
    %c18_656 = arith.constant 18 : index
    %1537 = memref.load %arg1[%c11_655, %c18_656] : memref<16x27xf32, #tpu.memory_space<smem>>
    %1538 = vector.broadcast %1537 : f32 to vector<16x256xf32>
    %1539 = arith.mulf %1538, %178 : vector<16x256xf32>
    %1540 = arith.addf %1536, %1539 : vector<16x256xf32>
    %c11_657 = arith.constant 11 : index
    %c19_658 = arith.constant 19 : index
    %1541 = memref.load %arg1[%c11_657, %c19_658] : memref<16x27xf32, #tpu.memory_space<smem>>
    %1542 = vector.broadcast %1541 : f32 to vector<16x256xf32>
    %1543 = arith.mulf %1542, %187 : vector<16x256xf32>
    %1544 = arith.addf %1540, %1543 : vector<16x256xf32>
    %c11_659 = arith.constant 11 : index
    %c20_660 = arith.constant 20 : index
    %1545 = memref.load %arg1[%c11_659, %c20_660] : memref<16x27xf32, #tpu.memory_space<smem>>
    %1546 = vector.broadcast %1545 : f32 to vector<16x256xf32>
    %1547 = arith.mulf %1546, %196 : vector<16x256xf32>
    %1548 = arith.addf %1544, %1547 : vector<16x256xf32>
    %c11_661 = arith.constant 11 : index
    %c21_662 = arith.constant 21 : index
    %1549 = memref.load %arg1[%c11_661, %c21_662] : memref<16x27xf32, #tpu.memory_space<smem>>
    %1550 = vector.broadcast %1549 : f32 to vector<16x256xf32>
    %1551 = arith.mulf %1550, %205 : vector<16x256xf32>
    %1552 = arith.addf %1548, %1551 : vector<16x256xf32>
    %c11_663 = arith.constant 11 : index
    %c22_664 = arith.constant 22 : index
    %1553 = memref.load %arg1[%c11_663, %c22_664] : memref<16x27xf32, #tpu.memory_space<smem>>
    %1554 = vector.broadcast %1553 : f32 to vector<16x256xf32>
    %1555 = arith.mulf %1554, %208 : vector<16x256xf32>
    %1556 = arith.addf %1552, %1555 : vector<16x256xf32>
    %c11_665 = arith.constant 11 : index
    %c23_666 = arith.constant 23 : index
    %1557 = memref.load %arg1[%c11_665, %c23_666] : memref<16x27xf32, #tpu.memory_space<smem>>
    %1558 = vector.broadcast %1557 : f32 to vector<16x256xf32>
    %1559 = arith.mulf %1558, %217 : vector<16x256xf32>
    %1560 = arith.addf %1556, %1559 : vector<16x256xf32>
    %c11_667 = arith.constant 11 : index
    %c24_668 = arith.constant 24 : index
    %1561 = memref.load %arg1[%c11_667, %c24_668] : memref<16x27xf32, #tpu.memory_space<smem>>
    %1562 = vector.broadcast %1561 : f32 to vector<16x256xf32>
    %1563 = arith.mulf %1562, %226 : vector<16x256xf32>
    %1564 = arith.addf %1560, %1563 : vector<16x256xf32>
    %c11_669 = arith.constant 11 : index
    %c25_670 = arith.constant 25 : index
    %1565 = memref.load %arg1[%c11_669, %c25_670] : memref<16x27xf32, #tpu.memory_space<smem>>
    %1566 = vector.broadcast %1565 : f32 to vector<16x256xf32>
    %1567 = arith.mulf %1566, %235 : vector<16x256xf32>
    %1568 = arith.addf %1564, %1567 : vector<16x256xf32>
    %c11_671 = arith.constant 11 : index
    %c26_672 = arith.constant 26 : index
    %1569 = memref.load %arg1[%c11_671, %c26_672] : memref<16x27xf32, #tpu.memory_space<smem>>
    %1570 = vector.broadcast %1569 : f32 to vector<16x256xf32>
    %1571 = arith.mulf %1570, %244 : vector<16x256xf32>
    %1572 = arith.addf %1568, %1571 : vector<16x256xf32>
    %1573 = arith.mulf %1572, %7 : vector<16x256xf32>
    %c0_673 = arith.constant 0 : index
    %c10_674 = arith.constant 10 : index
    %c0_675 = arith.constant 0 : index
    %c0_676 = arith.constant 0 : index
    %1574 = vector.load %arg6[%c0_673, %c10_674, %c0_675, %c0_676] : memref<1x15x16x256xf32, #tpu.memory_space<vmem>>, vector<1x1x16x256xf32>
    %1575 = vector.shape_cast %1574 : vector<1x1x16x256xf32> to vector<16x256xf32>
    %1576 = vector.shape_cast %1573 : vector<16x256xf32> to vector<1x1x16x256xf32>
    tpu.vector_store %arg6[%c0_673, %c10_674, %c0_675, %c0_676], %1576 {strides = array<i32>} : memref<1x15x16x256xf32, #tpu.memory_space<vmem>>, vector<1x1x16x256xf32>,
    %c12_677 = arith.constant 12 : index
    %c0_678 = arith.constant 0 : index
    %1577 = memref.load %arg1[%c12_677, %c0_678] : memref<16x27xf32, #tpu.memory_space<smem>>
    %1578 = vector.broadcast %1577 : f32 to vector<16x256xf32>
    %1579 = arith.mulf %1578, %28 : vector<16x256xf32>
    %c12_679 = arith.constant 12 : index
    %c1_680 = arith.constant 1 : index
    %1580 = memref.load %arg1[%c12_679, %c1_680] : memref<16x27xf32, #tpu.memory_space<smem>>
    %1581 = vector.broadcast %1580 : f32 to vector<16x256xf32>
    %1582 = arith.mulf %1581, %37 : vector<16x256xf32>
    %1583 = arith.addf %1579, %1582 : vector<16x256xf32>
    %c12_681 = arith.constant 12 : index
    %c2_682 = arith.constant 2 : index
    %1584 = memref.load %arg1[%c12_681, %c2_682] : memref<16x27xf32, #tpu.memory_space<smem>>
    %1585 = vector.broadcast %1584 : f32 to vector<16x256xf32>
    %1586 = arith.mulf %1585, %46 : vector<16x256xf32>
    %1587 = arith.addf %1583, %1586 : vector<16x256xf32>
    %c12_683 = arith.constant 12 : index
    %c3_684 = arith.constant 3 : index
    %1588 = memref.load %arg1[%c12_683, %c3_684] : memref<16x27xf32, #tpu.memory_space<smem>>
    %1589 = vector.broadcast %1588 : f32 to vector<16x256xf32>
    %1590 = arith.mulf %1589, %55 : vector<16x256xf32>
    %1591 = arith.addf %1587, %1590 : vector<16x256xf32>
    %c12_685 = arith.constant 12 : index
    %c4_686 = arith.constant 4 : index
    %1592 = memref.load %arg1[%c12_685, %c4_686] : memref<16x27xf32, #tpu.memory_space<smem>>
    %1593 = vector.broadcast %1592 : f32 to vector<16x256xf32>
    %1594 = arith.mulf %1593, %58 : vector<16x256xf32>
    %1595 = arith.addf %1591, %1594 : vector<16x256xf32>
    %c12_687 = arith.constant 12 : index
    %c5_688 = arith.constant 5 : index
    %1596 = memref.load %arg1[%c12_687, %c5_688] : memref<16x27xf32, #tpu.memory_space<smem>>
    %1597 = vector.broadcast %1596 : f32 to vector<16x256xf32>
    %1598 = arith.mulf %1597, %67 : vector<16x256xf32>
    %1599 = arith.addf %1595, %1598 : vector<16x256xf32>
    %c12_689 = arith.constant 12 : index
    %c6_690 = arith.constant 6 : index
    %1600 = memref.load %arg1[%c12_689, %c6_690] : memref<16x27xf32, #tpu.memory_space<smem>>
    %1601 = vector.broadcast %1600 : f32 to vector<16x256xf32>
    %1602 = arith.mulf %1601, %76 : vector<16x256xf32>
    %1603 = arith.addf %1599, %1602 : vector<16x256xf32>
    %c12_691 = arith.constant 12 : index
    %c7_692 = arith.constant 7 : index
    %1604 = memref.load %arg1[%c12_691, %c7_692] : memref<16x27xf32, #tpu.memory_space<smem>>
    %1605 = vector.broadcast %1604 : f32 to vector<16x256xf32>
    %1606 = arith.mulf %1605, %85 : vector<16x256xf32>
    %1607 = arith.addf %1603, %1606 : vector<16x256xf32>
    %c12_693 = arith.constant 12 : index
    %c8_694 = arith.constant 8 : index
    %1608 = memref.load %arg1[%c12_693, %c8_694] : memref<16x27xf32, #tpu.memory_space<smem>>
    %1609 = vector.broadcast %1608 : f32 to vector<16x256xf32>
    %1610 = arith.mulf %1609, %94 : vector<16x256xf32>
    %1611 = arith.addf %1607, %1610 : vector<16x256xf32>
    %c12_695 = arith.constant 12 : index
    %c9_696 = arith.constant 9 : index
    %1612 = memref.load %arg1[%c12_695, %c9_696] : memref<16x27xf32, #tpu.memory_space<smem>>
    %1613 = vector.broadcast %1612 : f32 to vector<16x256xf32>
    %1614 = arith.mulf %1613, %103 : vector<16x256xf32>
    %1615 = arith.addf %1611, %1614 : vector<16x256xf32>
    %c12_697 = arith.constant 12 : index
    %c10_698 = arith.constant 10 : index
    %1616 = memref.load %arg1[%c12_697, %c10_698] : memref<16x27xf32, #tpu.memory_space<smem>>
    %1617 = vector.broadcast %1616 : f32 to vector<16x256xf32>
    %1618 = arith.mulf %1617, %112 : vector<16x256xf32>
    %1619 = arith.addf %1615, %1618 : vector<16x256xf32>
    %c12_699 = arith.constant 12 : index
    %c11_700 = arith.constant 11 : index
    %1620 = memref.load %arg1[%c12_699, %c11_700] : memref<16x27xf32, #tpu.memory_space<smem>>
    %1621 = vector.broadcast %1620 : f32 to vector<16x256xf32>
    %1622 = arith.mulf %1621, %121 : vector<16x256xf32>
    %1623 = arith.addf %1619, %1622 : vector<16x256xf32>
    %c12_701 = arith.constant 12 : index
    %c12_702 = arith.constant 12 : index
    %1624 = memref.load %arg1[%c12_701, %c12_702] : memref<16x27xf32, #tpu.memory_space<smem>>
    %1625 = vector.broadcast %1624 : f32 to vector<16x256xf32>
    %1626 = arith.mulf %1625, %130 : vector<16x256xf32>
    %1627 = arith.addf %1623, %1626 : vector<16x256xf32>
    %c12_703 = arith.constant 12 : index
    %c13_704 = arith.constant 13 : index
    %1628 = memref.load %arg1[%c12_703, %c13_704] : memref<16x27xf32, #tpu.memory_space<smem>>
    %1629 = vector.broadcast %1628 : f32 to vector<16x256xf32>
    %1630 = arith.mulf %1629, %133 : vector<16x256xf32>
    %1631 = arith.addf %1627, %1630 : vector<16x256xf32>
    %c12_705 = arith.constant 12 : index
    %c14_706 = arith.constant 14 : index
    %1632 = memref.load %arg1[%c12_705, %c14_706] : memref<16x27xf32, #tpu.memory_space<smem>>
    %1633 = vector.broadcast %1632 : f32 to vector<16x256xf32>
    %1634 = arith.mulf %1633, %142 : vector<16x256xf32>
    %1635 = arith.addf %1631, %1634 : vector<16x256xf32>
    %c12_707 = arith.constant 12 : index
    %c15_708 = arith.constant 15 : index
    %1636 = memref.load %arg1[%c12_707, %c15_708] : memref<16x27xf32, #tpu.memory_space<smem>>
    %1637 = vector.broadcast %1636 : f32 to vector<16x256xf32>
    %1638 = arith.mulf %1637, %151 : vector<16x256xf32>
    %1639 = arith.addf %1635, %1638 : vector<16x256xf32>
    %c12_709 = arith.constant 12 : index
    %c16_710 = arith.constant 16 : index
    %1640 = memref.load %arg1[%c12_709, %c16_710] : memref<16x27xf32, #tpu.memory_space<smem>>
    %1641 = vector.broadcast %1640 : f32 to vector<16x256xf32>
    %1642 = arith.mulf %1641, %160 : vector<16x256xf32>
    %1643 = arith.addf %1639, %1642 : vector<16x256xf32>
    %c12_711 = arith.constant 12 : index
    %c17_712 = arith.constant 17 : index
    %1644 = memref.load %arg1[%c12_711, %c17_712] : memref<16x27xf32, #tpu.memory_space<smem>>
    %1645 = vector.broadcast %1644 : f32 to vector<16x256xf32>
    %1646 = arith.mulf %1645, %169 : vector<16x256xf32>
    %1647 = arith.addf %1643, %1646 : vector<16x256xf32>
    %c12_713 = arith.constant 12 : index
    %c18_714 = arith.constant 18 : index
    %1648 = memref.load %arg1[%c12_713, %c18_714] : memref<16x27xf32, #tpu.memory_space<smem>>
    %1649 = vector.broadcast %1648 : f32 to vector<16x256xf32>
    %1650 = arith.mulf %1649, %178 : vector<16x256xf32>
    %1651 = arith.addf %1647, %1650 : vector<16x256xf32>
    %c12_715 = arith.constant 12 : index
    %c19_716 = arith.constant 19 : index
    %1652 = memref.load %arg1[%c12_715, %c19_716] : memref<16x27xf32, #tpu.memory_space<smem>>
    %1653 = vector.broadcast %1652 : f32 to vector<16x256xf32>
    %1654 = arith.mulf %1653, %187 : vector<16x256xf32>
    %1655 = arith.addf %1651, %1654 : vector<16x256xf32>
    %c12_717 = arith.constant 12 : index
    %c20_718 = arith.constant 20 : index
    %1656 = memref.load %arg1[%c12_717, %c20_718] : memref<16x27xf32, #tpu.memory_space<smem>>
    %1657 = vector.broadcast %1656 : f32 to vector<16x256xf32>
    %1658 = arith.mulf %1657, %196 : vector<16x256xf32>
    %1659 = arith.addf %1655, %1658 : vector<16x256xf32>
    %c12_719 = arith.constant 12 : index
    %c21_720 = arith.constant 21 : index
    %1660 = memref.load %arg1[%c12_719, %c21_720] : memref<16x27xf32, #tpu.memory_space<smem>>
    %1661 = vector.broadcast %1660 : f32 to vector<16x256xf32>
    %1662 = arith.mulf %1661, %205 : vector<16x256xf32>
    %1663 = arith.addf %1659, %1662 : vector<16x256xf32>
    %c12_721 = arith.constant 12 : index
    %c22_722 = arith.constant 22 : index
    %1664 = memref.load %arg1[%c12_721, %c22_722] : memref<16x27xf32, #tpu.memory_space<smem>>
    %1665 = vector.broadcast %1664 : f32 to vector<16x256xf32>
    %1666 = arith.mulf %1665, %208 : vector<16x256xf32>
    %1667 = arith.addf %1663, %1666 : vector<16x256xf32>
    %c12_723 = arith.constant 12 : index
    %c23_724 = arith.constant 23 : index
    %1668 = memref.load %arg1[%c12_723, %c23_724] : memref<16x27xf32, #tpu.memory_space<smem>>
    %1669 = vector.broadcast %1668 : f32 to vector<16x256xf32>
    %1670 = arith.mulf %1669, %217 : vector<16x256xf32>
    %1671 = arith.addf %1667, %1670 : vector<16x256xf32>
    %c12_725 = arith.constant 12 : index
    %c24_726 = arith.constant 24 : index
    %1672 = memref.load %arg1[%c12_725, %c24_726] : memref<16x27xf32, #tpu.memory_space<smem>>
    %1673 = vector.broadcast %1672 : f32 to vector<16x256xf32>
    %1674 = arith.mulf %1673, %226 : vector<16x256xf32>
    %1675 = arith.addf %1671, %1674 : vector<16x256xf32>
    %c12_727 = arith.constant 12 : index
    %c25_728 = arith.constant 25 : index
    %1676 = memref.load %arg1[%c12_727, %c25_728] : memref<16x27xf32, #tpu.memory_space<smem>>
    %1677 = vector.broadcast %1676 : f32 to vector<16x256xf32>
    %1678 = arith.mulf %1677, %235 : vector<16x256xf32>
    %1679 = arith.addf %1675, %1678 : vector<16x256xf32>
    %c12_729 = arith.constant 12 : index
    %c26_730 = arith.constant 26 : index
    %1680 = memref.load %arg1[%c12_729, %c26_730] : memref<16x27xf32, #tpu.memory_space<smem>>
    %1681 = vector.broadcast %1680 : f32 to vector<16x256xf32>
    %1682 = arith.mulf %1681, %244 : vector<16x256xf32>
    %1683 = arith.addf %1679, %1682 : vector<16x256xf32>
    %1684 = arith.mulf %1683, %7 : vector<16x256xf32>
    %c0_731 = arith.constant 0 : index
    %c11_732 = arith.constant 11 : index
    %c0_733 = arith.constant 0 : index
    %c0_734 = arith.constant 0 : index
    %1685 = vector.load %arg6[%c0_731, %c11_732, %c0_733, %c0_734] : memref<1x15x16x256xf32, #tpu.memory_space<vmem>>, vector<1x1x16x256xf32>
    %1686 = vector.shape_cast %1685 : vector<1x1x16x256xf32> to vector<16x256xf32>
    %1687 = vector.shape_cast %1684 : vector<16x256xf32> to vector<1x1x16x256xf32>
    tpu.vector_store %arg6[%c0_731, %c11_732, %c0_733, %c0_734], %1687 {strides = array<i32>} : memref<1x15x16x256xf32, #tpu.memory_space<vmem>>, vector<1x1x16x256xf32>,
    %c13_735 = arith.constant 13 : index
    %c0_736 = arith.constant 0 : index
    %1688 = memref.load %arg1[%c13_735, %c0_736] : memref<16x27xf32, #tpu.memory_space<smem>>
    %1689 = vector.broadcast %1688 : f32 to vector<16x256xf32>
    %1690 = arith.mulf %1689, %28 : vector<16x256xf32>
    %c13_737 = arith.constant 13 : index
    %c1_738 = arith.constant 1 : index
    %1691 = memref.load %arg1[%c13_737, %c1_738] : memref<16x27xf32, #tpu.memory_space<smem>>
    %1692 = vector.broadcast %1691 : f32 to vector<16x256xf32>
    %1693 = arith.mulf %1692, %37 : vector<16x256xf32>
    %1694 = arith.addf %1690, %1693 : vector<16x256xf32>
    %c13_739 = arith.constant 13 : index
    %c2_740 = arith.constant 2 : index
    %1695 = memref.load %arg1[%c13_739, %c2_740] : memref<16x27xf32, #tpu.memory_space<smem>>
    %1696 = vector.broadcast %1695 : f32 to vector<16x256xf32>
    %1697 = arith.mulf %1696, %46 : vector<16x256xf32>
    %1698 = arith.addf %1694, %1697 : vector<16x256xf32>
    %c13_741 = arith.constant 13 : index
    %c3_742 = arith.constant 3 : index
    %1699 = memref.load %arg1[%c13_741, %c3_742] : memref<16x27xf32, #tpu.memory_space<smem>>
    %1700 = vector.broadcast %1699 : f32 to vector<16x256xf32>
    %1701 = arith.mulf %1700, %55 : vector<16x256xf32>
    %1702 = arith.addf %1698, %1701 : vector<16x256xf32>
    %c13_743 = arith.constant 13 : index
    %c4_744 = arith.constant 4 : index
    %1703 = memref.load %arg1[%c13_743, %c4_744] : memref<16x27xf32, #tpu.memory_space<smem>>
    %1704 = vector.broadcast %1703 : f32 to vector<16x256xf32>
    %1705 = arith.mulf %1704, %58 : vector<16x256xf32>
    %1706 = arith.addf %1702, %1705 : vector<16x256xf32>
    %c13_745 = arith.constant 13 : index
    %c5_746 = arith.constant 5 : index
    %1707 = memref.load %arg1[%c13_745, %c5_746] : memref<16x27xf32, #tpu.memory_space<smem>>
    %1708 = vector.broadcast %1707 : f32 to vector<16x256xf32>
    %1709 = arith.mulf %1708, %67 : vector<16x256xf32>
    %1710 = arith.addf %1706, %1709 : vector<16x256xf32>
    %c13_747 = arith.constant 13 : index
    %c6_748 = arith.constant 6 : index
    %1711 = memref.load %arg1[%c13_747, %c6_748] : memref<16x27xf32, #tpu.memory_space<smem>>
    %1712 = vector.broadcast %1711 : f32 to vector<16x256xf32>
    %1713 = arith.mulf %1712, %76 : vector<16x256xf32>
    %1714 = arith.addf %1710, %1713 : vector<16x256xf32>
    %c13_749 = arith.constant 13 : index
    %c7_750 = arith.constant 7 : index
    %1715 = memref.load %arg1[%c13_749, %c7_750] : memref<16x27xf32, #tpu.memory_space<smem>>
    %1716 = vector.broadcast %1715 : f32 to vector<16x256xf32>
    %1717 = arith.mulf %1716, %85 : vector<16x256xf32>
    %1718 = arith.addf %1714, %1717 : vector<16x256xf32>
    %c13_751 = arith.constant 13 : index
    %c8_752 = arith.constant 8 : index
    %1719 = memref.load %arg1[%c13_751, %c8_752] : memref<16x27xf32, #tpu.memory_space<smem>>
    %1720 = vector.broadcast %1719 : f32 to vector<16x256xf32>
    %1721 = arith.mulf %1720, %94 : vector<16x256xf32>
    %1722 = arith.addf %1718, %1721 : vector<16x256xf32>
    %c13_753 = arith.constant 13 : index
    %c9_754 = arith.constant 9 : index
    %1723 = memref.load %arg1[%c13_753, %c9_754] : memref<16x27xf32, #tpu.memory_space<smem>>
    %1724 = vector.broadcast %1723 : f32 to vector<16x256xf32>
    %1725 = arith.mulf %1724, %103 : vector<16x256xf32>
    %1726 = arith.addf %1722, %1725 : vector<16x256xf32>
    %c13_755 = arith.constant 13 : index
    %c10_756 = arith.constant 10 : index
    %1727 = memref.load %arg1[%c13_755, %c10_756] : memref<16x27xf32, #tpu.memory_space<smem>>
    %1728 = vector.broadcast %1727 : f32 to vector<16x256xf32>
    %1729 = arith.mulf %1728, %112 : vector<16x256xf32>
    %1730 = arith.addf %1726, %1729 : vector<16x256xf32>
    %c13_757 = arith.constant 13 : index
    %c11_758 = arith.constant 11 : index
    %1731 = memref.load %arg1[%c13_757, %c11_758] : memref<16x27xf32, #tpu.memory_space<smem>>
    %1732 = vector.broadcast %1731 : f32 to vector<16x256xf32>
    %1733 = arith.mulf %1732, %121 : vector<16x256xf32>
    %1734 = arith.addf %1730, %1733 : vector<16x256xf32>
    %c13_759 = arith.constant 13 : index
    %c12_760 = arith.constant 12 : index
    %1735 = memref.load %arg1[%c13_759, %c12_760] : memref<16x27xf32, #tpu.memory_space<smem>>
    %1736 = vector.broadcast %1735 : f32 to vector<16x256xf32>
    %1737 = arith.mulf %1736, %130 : vector<16x256xf32>
    %1738 = arith.addf %1734, %1737 : vector<16x256xf32>
    %c13_761 = arith.constant 13 : index
    %c13_762 = arith.constant 13 : index
    %1739 = memref.load %arg1[%c13_761, %c13_762] : memref<16x27xf32, #tpu.memory_space<smem>>
    %1740 = vector.broadcast %1739 : f32 to vector<16x256xf32>
    %1741 = arith.mulf %1740, %133 : vector<16x256xf32>
    %1742 = arith.addf %1738, %1741 : vector<16x256xf32>
    %c13_763 = arith.constant 13 : index
    %c14_764 = arith.constant 14 : index
    %1743 = memref.load %arg1[%c13_763, %c14_764] : memref<16x27xf32, #tpu.memory_space<smem>>
    %1744 = vector.broadcast %1743 : f32 to vector<16x256xf32>
    %1745 = arith.mulf %1744, %142 : vector<16x256xf32>
    %1746 = arith.addf %1742, %1745 : vector<16x256xf32>
    %c13_765 = arith.constant 13 : index
    %c15_766 = arith.constant 15 : index
    %1747 = memref.load %arg1[%c13_765, %c15_766] : memref<16x27xf32, #tpu.memory_space<smem>>
    %1748 = vector.broadcast %1747 : f32 to vector<16x256xf32>
    %1749 = arith.mulf %1748, %151 : vector<16x256xf32>
    %1750 = arith.addf %1746, %1749 : vector<16x256xf32>
    %c13_767 = arith.constant 13 : index
    %c16_768 = arith.constant 16 : index
    %1751 = memref.load %arg1[%c13_767, %c16_768] : memref<16x27xf32, #tpu.memory_space<smem>>
    %1752 = vector.broadcast %1751 : f32 to vector<16x256xf32>
    %1753 = arith.mulf %1752, %160 : vector<16x256xf32>
    %1754 = arith.addf %1750, %1753 : vector<16x256xf32>
    %c13_769 = arith.constant 13 : index
    %c17_770 = arith.constant 17 : index
    %1755 = memref.load %arg1[%c13_769, %c17_770] : memref<16x27xf32, #tpu.memory_space<smem>>
    %1756 = vector.broadcast %1755 : f32 to vector<16x256xf32>
    %1757 = arith.mulf %1756, %169 : vector<16x256xf32>
    %1758 = arith.addf %1754, %1757 : vector<16x256xf32>
    %c13_771 = arith.constant 13 : index
    %c18_772 = arith.constant 18 : index
    %1759 = memref.load %arg1[%c13_771, %c18_772] : memref<16x27xf32, #tpu.memory_space<smem>>
    %1760 = vector.broadcast %1759 : f32 to vector<16x256xf32>
    %1761 = arith.mulf %1760, %178 : vector<16x256xf32>
    %1762 = arith.addf %1758, %1761 : vector<16x256xf32>
    %c13_773 = arith.constant 13 : index
    %c19_774 = arith.constant 19 : index
    %1763 = memref.load %arg1[%c13_773, %c19_774] : memref<16x27xf32, #tpu.memory_space<smem>>
    %1764 = vector.broadcast %1763 : f32 to vector<16x256xf32>
    %1765 = arith.mulf %1764, %187 : vector<16x256xf32>
    %1766 = arith.addf %1762, %1765 : vector<16x256xf32>
    %c13_775 = arith.constant 13 : index
    %c20_776 = arith.constant 20 : index
    %1767 = memref.load %arg1[%c13_775, %c20_776] : memref<16x27xf32, #tpu.memory_space<smem>>
    %1768 = vector.broadcast %1767 : f32 to vector<16x256xf32>
    %1769 = arith.mulf %1768, %196 : vector<16x256xf32>
    %1770 = arith.addf %1766, %1769 : vector<16x256xf32>
    %c13_777 = arith.constant 13 : index
    %c21_778 = arith.constant 21 : index
    %1771 = memref.load %arg1[%c13_777, %c21_778] : memref<16x27xf32, #tpu.memory_space<smem>>
    %1772 = vector.broadcast %1771 : f32 to vector<16x256xf32>
    %1773 = arith.mulf %1772, %205 : vector<16x256xf32>
    %1774 = arith.addf %1770, %1773 : vector<16x256xf32>
    %c13_779 = arith.constant 13 : index
    %c22_780 = arith.constant 22 : index
    %1775 = memref.load %arg1[%c13_779, %c22_780] : memref<16x27xf32, #tpu.memory_space<smem>>
    %1776 = vector.broadcast %1775 : f32 to vector<16x256xf32>
    %1777 = arith.mulf %1776, %208 : vector<16x256xf32>
    %1778 = arith.addf %1774, %1777 : vector<16x256xf32>
    %c13_781 = arith.constant 13 : index
    %c23_782 = arith.constant 23 : index
    %1779 = memref.load %arg1[%c13_781, %c23_782] : memref<16x27xf32, #tpu.memory_space<smem>>
    %1780 = vector.broadcast %1779 : f32 to vector<16x256xf32>
    %1781 = arith.mulf %1780, %217 : vector<16x256xf32>
    %1782 = arith.addf %1778, %1781 : vector<16x256xf32>
    %c13_783 = arith.constant 13 : index
    %c24_784 = arith.constant 24 : index
    %1783 = memref.load %arg1[%c13_783, %c24_784] : memref<16x27xf32, #tpu.memory_space<smem>>
    %1784 = vector.broadcast %1783 : f32 to vector<16x256xf32>
    %1785 = arith.mulf %1784, %226 : vector<16x256xf32>
    %1786 = arith.addf %1782, %1785 : vector<16x256xf32>
    %c13_785 = arith.constant 13 : index
    %c25_786 = arith.constant 25 : index
    %1787 = memref.load %arg1[%c13_785, %c25_786] : memref<16x27xf32, #tpu.memory_space<smem>>
    %1788 = vector.broadcast %1787 : f32 to vector<16x256xf32>
    %1789 = arith.mulf %1788, %235 : vector<16x256xf32>
    %1790 = arith.addf %1786, %1789 : vector<16x256xf32>
    %c13_787 = arith.constant 13 : index
    %c26_788 = arith.constant 26 : index
    %1791 = memref.load %arg1[%c13_787, %c26_788] : memref<16x27xf32, #tpu.memory_space<smem>>
    %1792 = vector.broadcast %1791 : f32 to vector<16x256xf32>
    %1793 = arith.mulf %1792, %244 : vector<16x256xf32>
    %1794 = arith.addf %1790, %1793 : vector<16x256xf32>
    %1795 = arith.mulf %1794, %7 : vector<16x256xf32>
    %c0_789 = arith.constant 0 : index
    %c12_790 = arith.constant 12 : index
    %c0_791 = arith.constant 0 : index
    %c0_792 = arith.constant 0 : index
    %1796 = vector.load %arg6[%c0_789, %c12_790, %c0_791, %c0_792] : memref<1x15x16x256xf32, #tpu.memory_space<vmem>>, vector<1x1x16x256xf32>
    %1797 = vector.shape_cast %1796 : vector<1x1x16x256xf32> to vector<16x256xf32>
    %1798 = vector.shape_cast %1795 : vector<16x256xf32> to vector<1x1x16x256xf32>
    tpu.vector_store %arg6[%c0_789, %c12_790, %c0_791, %c0_792], %1798 {strides = array<i32>} : memref<1x15x16x256xf32, #tpu.memory_space<vmem>>, vector<1x1x16x256xf32>,
    %c14_793 = arith.constant 14 : index
    %c0_794 = arith.constant 0 : index
    %1799 = memref.load %arg1[%c14_793, %c0_794] : memref<16x27xf32, #tpu.memory_space<smem>>
    %1800 = vector.broadcast %1799 : f32 to vector<16x256xf32>
    %1801 = arith.mulf %1800, %28 : vector<16x256xf32>
    %c14_795 = arith.constant 14 : index
    %c1_796 = arith.constant 1 : index
    %1802 = memref.load %arg1[%c14_795, %c1_796] : memref<16x27xf32, #tpu.memory_space<smem>>
    %1803 = vector.broadcast %1802 : f32 to vector<16x256xf32>
    %1804 = arith.mulf %1803, %37 : vector<16x256xf32>
    %1805 = arith.addf %1801, %1804 : vector<16x256xf32>
    %c14_797 = arith.constant 14 : index
    %c2_798 = arith.constant 2 : index
    %1806 = memref.load %arg1[%c14_797, %c2_798] : memref<16x27xf32, #tpu.memory_space<smem>>
    %1807 = vector.broadcast %1806 : f32 to vector<16x256xf32>
    %1808 = arith.mulf %1807, %46 : vector<16x256xf32>
    %1809 = arith.addf %1805, %1808 : vector<16x256xf32>
    %c14_799 = arith.constant 14 : index
    %c3_800 = arith.constant 3 : index
    %1810 = memref.load %arg1[%c14_799, %c3_800] : memref<16x27xf32, #tpu.memory_space<smem>>
    %1811 = vector.broadcast %1810 : f32 to vector<16x256xf32>
    %1812 = arith.mulf %1811, %55 : vector<16x256xf32>
    %1813 = arith.addf %1809, %1812 : vector<16x256xf32>
    %c14_801 = arith.constant 14 : index
    %c4_802 = arith.constant 4 : index
    %1814 = memref.load %arg1[%c14_801, %c4_802] : memref<16x27xf32, #tpu.memory_space<smem>>
    %1815 = vector.broadcast %1814 : f32 to vector<16x256xf32>
    %1816 = arith.mulf %1815, %58 : vector<16x256xf32>
    %1817 = arith.addf %1813, %1816 : vector<16x256xf32>
    %c14_803 = arith.constant 14 : index
    %c5_804 = arith.constant 5 : index
    %1818 = memref.load %arg1[%c14_803, %c5_804] : memref<16x27xf32, #tpu.memory_space<smem>>
    %1819 = vector.broadcast %1818 : f32 to vector<16x256xf32>
    %1820 = arith.mulf %1819, %67 : vector<16x256xf32>
    %1821 = arith.addf %1817, %1820 : vector<16x256xf32>
    %c14_805 = arith.constant 14 : index
    %c6_806 = arith.constant 6 : index
    %1822 = memref.load %arg1[%c14_805, %c6_806] : memref<16x27xf32, #tpu.memory_space<smem>>
    %1823 = vector.broadcast %1822 : f32 to vector<16x256xf32>
    %1824 = arith.mulf %1823, %76 : vector<16x256xf32>
    %1825 = arith.addf %1821, %1824 : vector<16x256xf32>
    %c14_807 = arith.constant 14 : index
    %c7_808 = arith.constant 7 : index
    %1826 = memref.load %arg1[%c14_807, %c7_808] : memref<16x27xf32, #tpu.memory_space<smem>>
    %1827 = vector.broadcast %1826 : f32 to vector<16x256xf32>
    %1828 = arith.mulf %1827, %85 : vector<16x256xf32>
    %1829 = arith.addf %1825, %1828 : vector<16x256xf32>
    %c14_809 = arith.constant 14 : index
    %c8_810 = arith.constant 8 : index
    %1830 = memref.load %arg1[%c14_809, %c8_810] : memref<16x27xf32, #tpu.memory_space<smem>>
    %1831 = vector.broadcast %1830 : f32 to vector<16x256xf32>
    %1832 = arith.mulf %1831, %94 : vector<16x256xf32>
    %1833 = arith.addf %1829, %1832 : vector<16x256xf32>
    %c14_811 = arith.constant 14 : index
    %c9_812 = arith.constant 9 : index
    %1834 = memref.load %arg1[%c14_811, %c9_812] : memref<16x27xf32, #tpu.memory_space<smem>>
    %1835 = vector.broadcast %1834 : f32 to vector<16x256xf32>
    %1836 = arith.mulf %1835, %103 : vector<16x256xf32>
    %1837 = arith.addf %1833, %1836 : vector<16x256xf32>
    %c14_813 = arith.constant 14 : index
    %c10_814 = arith.constant 10 : index
    %1838 = memref.load %arg1[%c14_813, %c10_814] : memref<16x27xf32, #tpu.memory_space<smem>>
    %1839 = vector.broadcast %1838 : f32 to vector<16x256xf32>
    %1840 = arith.mulf %1839, %112 : vector<16x256xf32>
    %1841 = arith.addf %1837, %1840 : vector<16x256xf32>
    %c14_815 = arith.constant 14 : index
    %c11_816 = arith.constant 11 : index
    %1842 = memref.load %arg1[%c14_815, %c11_816] : memref<16x27xf32, #tpu.memory_space<smem>>
    %1843 = vector.broadcast %1842 : f32 to vector<16x256xf32>
    %1844 = arith.mulf %1843, %121 : vector<16x256xf32>
    %1845 = arith.addf %1841, %1844 : vector<16x256xf32>
    %c14_817 = arith.constant 14 : index
    %c12_818 = arith.constant 12 : index
    %1846 = memref.load %arg1[%c14_817, %c12_818] : memref<16x27xf32, #tpu.memory_space<smem>>
    %1847 = vector.broadcast %1846 : f32 to vector<16x256xf32>
    %1848 = arith.mulf %1847, %130 : vector<16x256xf32>
    %1849 = arith.addf %1845, %1848 : vector<16x256xf32>
    %c14_819 = arith.constant 14 : index
    %c13_820 = arith.constant 13 : index
    %1850 = memref.load %arg1[%c14_819, %c13_820] : memref<16x27xf32, #tpu.memory_space<smem>>
    %1851 = vector.broadcast %1850 : f32 to vector<16x256xf32>
    %1852 = arith.mulf %1851, %133 : vector<16x256xf32>
    %1853 = arith.addf %1849, %1852 : vector<16x256xf32>
    %c14_821 = arith.constant 14 : index
    %c14_822 = arith.constant 14 : index
    %1854 = memref.load %arg1[%c14_821, %c14_822] : memref<16x27xf32, #tpu.memory_space<smem>>
    %1855 = vector.broadcast %1854 : f32 to vector<16x256xf32>
    %1856 = arith.mulf %1855, %142 : vector<16x256xf32>
    %1857 = arith.addf %1853, %1856 : vector<16x256xf32>
    %c14_823 = arith.constant 14 : index
    %c15_824 = arith.constant 15 : index
    %1858 = memref.load %arg1[%c14_823, %c15_824] : memref<16x27xf32, #tpu.memory_space<smem>>
    %1859 = vector.broadcast %1858 : f32 to vector<16x256xf32>
    %1860 = arith.mulf %1859, %151 : vector<16x256xf32>
    %1861 = arith.addf %1857, %1860 : vector<16x256xf32>
    %c14_825 = arith.constant 14 : index
    %c16_826 = arith.constant 16 : index
    %1862 = memref.load %arg1[%c14_825, %c16_826] : memref<16x27xf32, #tpu.memory_space<smem>>
    %1863 = vector.broadcast %1862 : f32 to vector<16x256xf32>
    %1864 = arith.mulf %1863, %160 : vector<16x256xf32>
    %1865 = arith.addf %1861, %1864 : vector<16x256xf32>
    %c14_827 = arith.constant 14 : index
    %c17_828 = arith.constant 17 : index
    %1866 = memref.load %arg1[%c14_827, %c17_828] : memref<16x27xf32, #tpu.memory_space<smem>>
    %1867 = vector.broadcast %1866 : f32 to vector<16x256xf32>
    %1868 = arith.mulf %1867, %169 : vector<16x256xf32>
    %1869 = arith.addf %1865, %1868 : vector<16x256xf32>
    %c14_829 = arith.constant 14 : index
    %c18_830 = arith.constant 18 : index
    %1870 = memref.load %arg1[%c14_829, %c18_830] : memref<16x27xf32, #tpu.memory_space<smem>>
    %1871 = vector.broadcast %1870 : f32 to vector<16x256xf32>
    %1872 = arith.mulf %1871, %178 : vector<16x256xf32>
    %1873 = arith.addf %1869, %1872 : vector<16x256xf32>
    %c14_831 = arith.constant 14 : index
    %c19_832 = arith.constant 19 : index
    %1874 = memref.load %arg1[%c14_831, %c19_832] : memref<16x27xf32, #tpu.memory_space<smem>>
    %1875 = vector.broadcast %1874 : f32 to vector<16x256xf32>
    %1876 = arith.mulf %1875, %187 : vector<16x256xf32>
    %1877 = arith.addf %1873, %1876 : vector<16x256xf32>
    %c14_833 = arith.constant 14 : index
    %c20_834 = arith.constant 20 : index
    %1878 = memref.load %arg1[%c14_833, %c20_834] : memref<16x27xf32, #tpu.memory_space<smem>>
    %1879 = vector.broadcast %1878 : f32 to vector<16x256xf32>
    %1880 = arith.mulf %1879, %196 : vector<16x256xf32>
    %1881 = arith.addf %1877, %1880 : vector<16x256xf32>
    %c14_835 = arith.constant 14 : index
    %c21_836 = arith.constant 21 : index
    %1882 = memref.load %arg1[%c14_835, %c21_836] : memref<16x27xf32, #tpu.memory_space<smem>>
    %1883 = vector.broadcast %1882 : f32 to vector<16x256xf32>
    %1884 = arith.mulf %1883, %205 : vector<16x256xf32>
    %1885 = arith.addf %1881, %1884 : vector<16x256xf32>
    %c14_837 = arith.constant 14 : index
    %c22_838 = arith.constant 22 : index
    %1886 = memref.load %arg1[%c14_837, %c22_838] : memref<16x27xf32, #tpu.memory_space<smem>>
    %1887 = vector.broadcast %1886 : f32 to vector<16x256xf32>
    %1888 = arith.mulf %1887, %208 : vector<16x256xf32>
    %1889 = arith.addf %1885, %1888 : vector<16x256xf32>
    %c14_839 = arith.constant 14 : index
    %c23_840 = arith.constant 23 : index
    %1890 = memref.load %arg1[%c14_839, %c23_840] : memref<16x27xf32, #tpu.memory_space<smem>>
    %1891 = vector.broadcast %1890 : f32 to vector<16x256xf32>
    %1892 = arith.mulf %1891, %217 : vector<16x256xf32>
    %1893 = arith.addf %1889, %1892 : vector<16x256xf32>
    %c14_841 = arith.constant 14 : index
    %c24_842 = arith.constant 24 : index
    %1894 = memref.load %arg1[%c14_841, %c24_842] : memref<16x27xf32, #tpu.memory_space<smem>>
    %1895 = vector.broadcast %1894 : f32 to vector<16x256xf32>
    %1896 = arith.mulf %1895, %226 : vector<16x256xf32>
    %1897 = arith.addf %1893, %1896 : vector<16x256xf32>
    %c14_843 = arith.constant 14 : index
    %c25_844 = arith.constant 25 : index
    %1898 = memref.load %arg1[%c14_843, %c25_844] : memref<16x27xf32, #tpu.memory_space<smem>>
    %1899 = vector.broadcast %1898 : f32 to vector<16x256xf32>
    %1900 = arith.mulf %1899, %235 : vector<16x256xf32>
    %1901 = arith.addf %1897, %1900 : vector<16x256xf32>
    %c14_845 = arith.constant 14 : index
    %c26_846 = arith.constant 26 : index
    %1902 = memref.load %arg1[%c14_845, %c26_846] : memref<16x27xf32, #tpu.memory_space<smem>>
    %1903 = vector.broadcast %1902 : f32 to vector<16x256xf32>
    %1904 = arith.mulf %1903, %244 : vector<16x256xf32>
    %1905 = arith.addf %1901, %1904 : vector<16x256xf32>
    %1906 = arith.mulf %1905, %7 : vector<16x256xf32>
    %c0_847 = arith.constant 0 : index
    %c13_848 = arith.constant 13 : index
    %c0_849 = arith.constant 0 : index
    %c0_850 = arith.constant 0 : index
    %1907 = vector.load %arg6[%c0_847, %c13_848, %c0_849, %c0_850] : memref<1x15x16x256xf32, #tpu.memory_space<vmem>>, vector<1x1x16x256xf32>
    %1908 = vector.shape_cast %1907 : vector<1x1x16x256xf32> to vector<16x256xf32>
    %1909 = vector.shape_cast %1906 : vector<16x256xf32> to vector<1x1x16x256xf32>
    tpu.vector_store %arg6[%c0_847, %c13_848, %c0_849, %c0_850], %1909 {strides = array<i32>} : memref<1x15x16x256xf32, #tpu.memory_space<vmem>>, vector<1x1x16x256xf32>,
    %c15_851 = arith.constant 15 : index
    %c0_852 = arith.constant 0 : index
    %1910 = memref.load %arg1[%c15_851, %c0_852] : memref<16x27xf32, #tpu.memory_space<smem>>
    %1911 = vector.broadcast %1910 : f32 to vector<16x256xf32>
    %1912 = arith.mulf %1911, %28 : vector<16x256xf32>
    %c15_853 = arith.constant 15 : index
    %c1_854 = arith.constant 1 : index
    %1913 = memref.load %arg1[%c15_853, %c1_854] : memref<16x27xf32, #tpu.memory_space<smem>>
    %1914 = vector.broadcast %1913 : f32 to vector<16x256xf32>
    %1915 = arith.mulf %1914, %37 : vector<16x256xf32>
    %1916 = arith.addf %1912, %1915 : vector<16x256xf32>
    %c15_855 = arith.constant 15 : index
    %c2_856 = arith.constant 2 : index
    %1917 = memref.load %arg1[%c15_855, %c2_856] : memref<16x27xf32, #tpu.memory_space<smem>>
    %1918 = vector.broadcast %1917 : f32 to vector<16x256xf32>
    %1919 = arith.mulf %1918, %46 : vector<16x256xf32>
    %1920 = arith.addf %1916, %1919 : vector<16x256xf32>
    %c15_857 = arith.constant 15 : index
    %c3_858 = arith.constant 3 : index
    %1921 = memref.load %arg1[%c15_857, %c3_858] : memref<16x27xf32, #tpu.memory_space<smem>>
    %1922 = vector.broadcast %1921 : f32 to vector<16x256xf32>
    %1923 = arith.mulf %1922, %55 : vector<16x256xf32>
    %1924 = arith.addf %1920, %1923 : vector<16x256xf32>
    %c15_859 = arith.constant 15 : index
    %c4_860 = arith.constant 4 : index
    %1925 = memref.load %arg1[%c15_859, %c4_860] : memref<16x27xf32, #tpu.memory_space<smem>>
    %1926 = vector.broadcast %1925 : f32 to vector<16x256xf32>
    %1927 = arith.mulf %1926, %58 : vector<16x256xf32>
    %1928 = arith.addf %1924, %1927 : vector<16x256xf32>
    %c15_861 = arith.constant 15 : index
    %c5_862 = arith.constant 5 : index
    %1929 = memref.load %arg1[%c15_861, %c5_862] : memref<16x27xf32, #tpu.memory_space<smem>>
    %1930 = vector.broadcast %1929 : f32 to vector<16x256xf32>
    %1931 = arith.mulf %1930, %67 : vector<16x256xf32>
    %1932 = arith.addf %1928, %1931 : vector<16x256xf32>
    %c15_863 = arith.constant 15 : index
    %c6_864 = arith.constant 6 : index
    %1933 = memref.load %arg1[%c15_863, %c6_864] : memref<16x27xf32, #tpu.memory_space<smem>>
    %1934 = vector.broadcast %1933 : f32 to vector<16x256xf32>
    %1935 = arith.mulf %1934, %76 : vector<16x256xf32>
    %1936 = arith.addf %1932, %1935 : vector<16x256xf32>
    %c15_865 = arith.constant 15 : index
    %c7_866 = arith.constant 7 : index
    %1937 = memref.load %arg1[%c15_865, %c7_866] : memref<16x27xf32, #tpu.memory_space<smem>>
    %1938 = vector.broadcast %1937 : f32 to vector<16x256xf32>
    %1939 = arith.mulf %1938, %85 : vector<16x256xf32>
    %1940 = arith.addf %1936, %1939 : vector<16x256xf32>
    %c15_867 = arith.constant 15 : index
    %c8_868 = arith.constant 8 : index
    %1941 = memref.load %arg1[%c15_867, %c8_868] : memref<16x27xf32, #tpu.memory_space<smem>>
    %1942 = vector.broadcast %1941 : f32 to vector<16x256xf32>
    %1943 = arith.mulf %1942, %94 : vector<16x256xf32>
    %1944 = arith.addf %1940, %1943 : vector<16x256xf32>
    %c15_869 = arith.constant 15 : index
    %c9_870 = arith.constant 9 : index
    %1945 = memref.load %arg1[%c15_869, %c9_870] : memref<16x27xf32, #tpu.memory_space<smem>>
    %1946 = vector.broadcast %1945 : f32 to vector<16x256xf32>
    %1947 = arith.mulf %1946, %103 : vector<16x256xf32>
    %1948 = arith.addf %1944, %1947 : vector<16x256xf32>
    %c15_871 = arith.constant 15 : index
    %c10_872 = arith.constant 10 : index
    %1949 = memref.load %arg1[%c15_871, %c10_872] : memref<16x27xf32, #tpu.memory_space<smem>>
    %1950 = vector.broadcast %1949 : f32 to vector<16x256xf32>
    %1951 = arith.mulf %1950, %112 : vector<16x256xf32>
    %1952 = arith.addf %1948, %1951 : vector<16x256xf32>
    %c15_873 = arith.constant 15 : index
    %c11_874 = arith.constant 11 : index
    %1953 = memref.load %arg1[%c15_873, %c11_874] : memref<16x27xf32, #tpu.memory_space<smem>>
    %1954 = vector.broadcast %1953 : f32 to vector<16x256xf32>
    %1955 = arith.mulf %1954, %121 : vector<16x256xf32>
    %1956 = arith.addf %1952, %1955 : vector<16x256xf32>
    %c15_875 = arith.constant 15 : index
    %c12_876 = arith.constant 12 : index
    %1957 = memref.load %arg1[%c15_875, %c12_876] : memref<16x27xf32, #tpu.memory_space<smem>>
    %1958 = vector.broadcast %1957 : f32 to vector<16x256xf32>
    %1959 = arith.mulf %1958, %130 : vector<16x256xf32>
    %1960 = arith.addf %1956, %1959 : vector<16x256xf32>
    %c15_877 = arith.constant 15 : index
    %c13_878 = arith.constant 13 : index
    %1961 = memref.load %arg1[%c15_877, %c13_878] : memref<16x27xf32, #tpu.memory_space<smem>>
    %1962 = vector.broadcast %1961 : f32 to vector<16x256xf32>
    %1963 = arith.mulf %1962, %133 : vector<16x256xf32>
    %1964 = arith.addf %1960, %1963 : vector<16x256xf32>
    %c15_879 = arith.constant 15 : index
    %c14_880 = arith.constant 14 : index
    %1965 = memref.load %arg1[%c15_879, %c14_880] : memref<16x27xf32, #tpu.memory_space<smem>>
    %1966 = vector.broadcast %1965 : f32 to vector<16x256xf32>
    %1967 = arith.mulf %1966, %142 : vector<16x256xf32>
    %1968 = arith.addf %1964, %1967 : vector<16x256xf32>
    %c15_881 = arith.constant 15 : index
    %c15_882 = arith.constant 15 : index
    %1969 = memref.load %arg1[%c15_881, %c15_882] : memref<16x27xf32, #tpu.memory_space<smem>>
    %1970 = vector.broadcast %1969 : f32 to vector<16x256xf32>
    %1971 = arith.mulf %1970, %151 : vector<16x256xf32>
    %1972 = arith.addf %1968, %1971 : vector<16x256xf32>
    %c15_883 = arith.constant 15 : index
    %c16_884 = arith.constant 16 : index
    %1973 = memref.load %arg1[%c15_883, %c16_884] : memref<16x27xf32, #tpu.memory_space<smem>>
    %1974 = vector.broadcast %1973 : f32 to vector<16x256xf32>
    %1975 = arith.mulf %1974, %160 : vector<16x256xf32>
    %1976 = arith.addf %1972, %1975 : vector<16x256xf32>
    %c15_885 = arith.constant 15 : index
    %c17_886 = arith.constant 17 : index
    %1977 = memref.load %arg1[%c15_885, %c17_886] : memref<16x27xf32, #tpu.memory_space<smem>>
    %1978 = vector.broadcast %1977 : f32 to vector<16x256xf32>
    %1979 = arith.mulf %1978, %169 : vector<16x256xf32>
    %1980 = arith.addf %1976, %1979 : vector<16x256xf32>
    %c15_887 = arith.constant 15 : index
    %c18_888 = arith.constant 18 : index
    %1981 = memref.load %arg1[%c15_887, %c18_888] : memref<16x27xf32, #tpu.memory_space<smem>>
    %1982 = vector.broadcast %1981 : f32 to vector<16x256xf32>
    %1983 = arith.mulf %1982, %178 : vector<16x256xf32>
    %1984 = arith.addf %1980, %1983 : vector<16x256xf32>
    %c15_889 = arith.constant 15 : index
    %c19_890 = arith.constant 19 : index
    %1985 = memref.load %arg1[%c15_889, %c19_890] : memref<16x27xf32, #tpu.memory_space<smem>>
    %1986 = vector.broadcast %1985 : f32 to vector<16x256xf32>
    %1987 = arith.mulf %1986, %187 : vector<16x256xf32>
    %1988 = arith.addf %1984, %1987 : vector<16x256xf32>
    %c15_891 = arith.constant 15 : index
    %c20_892 = arith.constant 20 : index
    %1989 = memref.load %arg1[%c15_891, %c20_892] : memref<16x27xf32, #tpu.memory_space<smem>>
    %1990 = vector.broadcast %1989 : f32 to vector<16x256xf32>
    %1991 = arith.mulf %1990, %196 : vector<16x256xf32>
    %1992 = arith.addf %1988, %1991 : vector<16x256xf32>
    %c15_893 = arith.constant 15 : index
    %c21_894 = arith.constant 21 : index
    %1993 = memref.load %arg1[%c15_893, %c21_894] : memref<16x27xf32, #tpu.memory_space<smem>>
    %1994 = vector.broadcast %1993 : f32 to vector<16x256xf32>
    %1995 = arith.mulf %1994, %205 : vector<16x256xf32>
    %1996 = arith.addf %1992, %1995 : vector<16x256xf32>
    %c15_895 = arith.constant 15 : index
    %c22_896 = arith.constant 22 : index
    %1997 = memref.load %arg1[%c15_895, %c22_896] : memref<16x27xf32, #tpu.memory_space<smem>>
    %1998 = vector.broadcast %1997 : f32 to vector<16x256xf32>
    %1999 = arith.mulf %1998, %208 : vector<16x256xf32>
    %2000 = arith.addf %1996, %1999 : vector<16x256xf32>
    %c15_897 = arith.constant 15 : index
    %c23_898 = arith.constant 23 : index
    %2001 = memref.load %arg1[%c15_897, %c23_898] : memref<16x27xf32, #tpu.memory_space<smem>>
    %2002 = vector.broadcast %2001 : f32 to vector<16x256xf32>
    %2003 = arith.mulf %2002, %217 : vector<16x256xf32>
    %2004 = arith.addf %2000, %2003 : vector<16x256xf32>
    %c15_899 = arith.constant 15 : index
    %c24_900 = arith.constant 24 : index
    %2005 = memref.load %arg1[%c15_899, %c24_900] : memref<16x27xf32, #tpu.memory_space<smem>>
    %2006 = vector.broadcast %2005 : f32 to vector<16x256xf32>
    %2007 = arith.mulf %2006, %226 : vector<16x256xf32>
    %2008 = arith.addf %2004, %2007 : vector<16x256xf32>
    %c15_901 = arith.constant 15 : index
    %c25_902 = arith.constant 25 : index
    %2009 = memref.load %arg1[%c15_901, %c25_902] : memref<16x27xf32, #tpu.memory_space<smem>>
    %2010 = vector.broadcast %2009 : f32 to vector<16x256xf32>
    %2011 = arith.mulf %2010, %235 : vector<16x256xf32>
    %2012 = arith.addf %2008, %2011 : vector<16x256xf32>
    %c15_903 = arith.constant 15 : index
    %c26_904 = arith.constant 26 : index
    %2013 = memref.load %arg1[%c15_903, %c26_904] : memref<16x27xf32, #tpu.memory_space<smem>>
    %2014 = vector.broadcast %2013 : f32 to vector<16x256xf32>
    %2015 = arith.mulf %2014, %244 : vector<16x256xf32>
    %2016 = arith.addf %2012, %2015 : vector<16x256xf32>
    %2017 = arith.mulf %2016, %7 : vector<16x256xf32>
    %c0_905 = arith.constant 0 : index
    %c14_906 = arith.constant 14 : index
    %c0_907 = arith.constant 0 : index
    %c0_908 = arith.constant 0 : index
    %2018 = vector.load %arg6[%c0_905, %c14_906, %c0_907, %c0_908] : memref<1x15x16x256xf32, #tpu.memory_space<vmem>>, vector<1x1x16x256xf32>
    %2019 = vector.shape_cast %2018 : vector<1x1x16x256xf32> to vector<16x256xf32>
    %2020 = vector.shape_cast %2017 : vector<16x256xf32> to vector<1x1x16x256xf32>
    tpu.vector_store %arg6[%c0_905, %c14_906, %c0_907, %c0_908], %2020 {strides = array<i32>} : memref<1x15x16x256xf32, #tpu.memory_space<vmem>>, vector<1x1x16x256xf32>,
    return
  }
  func.func @transform_0(%arg0: i32) -> (i32, i32) {
    %c0_i32 = arith.constant 0 : i32
    %c0_i32_0 = arith.constant 0 : i32
    %c0_i32_1 = arith.constant 0 : i32
    return %c0_i32, %c0_i32_0 : i32, i32
  }
  func.func @transform_1(%arg0: i32) -> (i32, i32, i32) {
    %c0_i32 = arith.constant 0 : i32
    %c0_i32_0 = arith.constant 0 : i32
    %c0_i32_1 = arith.constant 0 : i32
    return %arg0, %c0_i32, %c0_i32_0 : i32, i32, i32
  }
  func.func @transform_2(%arg0: i32) -> (i32, i32, i32) {
    %c0_i32 = arith.constant 0 : i32
    %c0_i32_0 = arith.constant 0 : i32
    %c0_i32_1 = arith.constant 0 : i32
    return %arg0, %c0_i32, %c0_i32_0 : i32, i32, i32
  }
  func.func @transform_3(%arg0: i32) -> (i32, i32) {
    %c0_i32 = arith.constant 0 : i32
    %c0_i32_0 = arith.constant 0 : i32
    %c0_i32_1 = arith.constant 0 : i32
    return %c0_i32, %c0_i32_0 : i32, i32
  }
  func.func @transform_4(%arg0: i32) -> (i32, i32, i32, i32) {
    %c0_i32 = arith.constant 0 : i32
    %c0_i32_0 = arith.constant 0 : i32
    %c0_i32_1 = arith.constant 0 : i32
    %c0_i32_2 = arith.constant 0 : i32
    return %arg0, %c0_i32, %c0_i32_0, %c0_i32_1 : i32, i32, i32, i32
  }
  func.func @transform_5(%arg0: i32) -> (i32, i32, i32, i32) {
    %c0_i32 = arith.constant 0 : i32
    %c0_i32_0 = arith.constant 0 : i32
    %c0_i32_1 = arith.constant 0 : i32
    %c0_i32_2 = arith.constant 0 : i32
    return %arg0, %c0_i32, %c0_i32_0, %c0_i32_1 : i32, i32, i32, i32
  }
}

</mosaic_0001>

<llo_original>
// kernel: tpu_custom_call.1
$region0: #{tpu_custom_call.1}
  #allocation0 [shape = 'u32[]', space=smem, size = 0x4, offset = 0x4, fixed_abs, tag = 'smem constant byte address 0x4 - core index']
  #allocation1 [shape = 'u32[144,128]{1,0:T(1,128)}', space=vmem, size = 0x12000, scoped, tag = 'internal scratch']
  %s0 = inlined_call_operand.hbm [shape: f32[16,27], index: 0, kind: input, shape index: {}]
  %s1 = inlined_call_operand.hbm [shape: f32[2,16,256], index: 1, kind: input, shape index: {}]
  %s2 = inlined_call_operand.hbm [shape: f32[2,16,256], index: 2, kind: input, shape index: {}]
  %s3 = inlined_call_operand.hbm [shape: f32[16,256], index: 3, kind: input, shape index: {}]
  %s4 = inlined_call_operand.hbm [shape: f32[2,1,16,256], index: 4, kind: output, shape index: {0}]
  %s5 = inlined_call_operand.hbm [shape: f32[2,15,16,256], index: 5, kind: output, shape index: {1}]
  %6 = xla_tuple %s4, %s5
  %s7 = sld [smem:[#allocation0]]
  $region73: #{tpu_custom_call.1} parent=0
    _
  %s9 = ssub.s32 1, %s7
  %s10 = scalar_select 0, %s9, %s7
  $region1: #{tpu_custom_call.1} parent=0
    #allocation2 [shape = 'u8[8192]{0}', space=smem, size = 0x2000, scoped, tag = 'input window, operand 0, single buffered']
    #allocation3 [shape = 's32[2]{0}', space=sflag, size = 0x8, scoped, tag = 'scoped memory for tpu_custom_call.1']
    #allocation4 [shape = 's32[2]{0}', space=sflag, size = 0x8, scoped, tag = 'scoped memory for tpu_custom_call.1']
    #allocation5 [shape = 's32[2]{0}', space=sflag, size = 0x8, scoped, tag = 'scoped memory for tpu_custom_call.1']
    #allocation6 [shape = 'u8[32768]{0}', space=vmem, size = 0x8000, scoped, tag = 'input window, operand 1']
    #allocation7 [shape = 'u8[32768]{0}', space=vmem, size = 0x8000, scoped, tag = 'input window, operand 2']
    #allocation8 [shape = 's32[2]{0}', space=sflag, size = 0x8, scoped, tag = 'scoped memory for tpu_custom_call.1']
    #allocation9 [shape = 'u8[16384]{0}', space=vmem, size = 0x4000, scoped, tag = 'input window, operand 3, single buffered']
    #allocation10 [shape = 'u8[32768]{0}', space=vmem, size = 0x8000, scoped, tag = 'output window, operand 0']
    #allocation11 [shape = 'u8[491520]{0}', space=vmem, size = 0x78000, scoped, tag = 'output window, operand 1']
    #allocation12 [shape = 's32[2]{0}', space=sflag, size = 0x8, scoped, tag = 'scoped memory for tpu_custom_call.1']
    %11 = vsyncpa [#allocation5], 0
    %12 = vsyncpa [#allocation3], 0
    %s13 = scalar_lea.sflag [#allocation3], 1
    %14 = vsyncpa %s13, 0
    %15 = vsyncpa [#allocation8], 0
    %s16 = scalar_lea.sflag [#allocation8], 1
    %17 = vsyncpa %s16, 0
    %18 = vsyncpa [#allocation4], 0
    %s19 = scalar_lea.sflag [#allocation4], 1
    %20 = vsyncpa %s19, 0
    %21 = vsyncpa [#allocation12], 0
    %s22 = scalar_lea.sflag [#allocation12], 1
    %23 = vsyncpa %s22, 0
    loop: start=0, step=1, limit=4
    $region2: #{tpu_custom_call.1} parent=1 // loop_pre_header
      _
    $region3: #{tpu_custom_call.1} parent=1 // loop_header
      %s25 = sphi 0, %s29
      %p26 = scmp.ge.s32.totalorder %s25, 4
      %s33 = sphi 0, %s33
      %s35 = sphi 0, %s33
      %s36 = sphi 0, %s35
      %s50 = sphi 0, %s36
      %s56 = sphi 0, %s58
      %s59 = sphi 0, %s56
      %s60 = sphi 0, %s59
      %s76 = sphi 0, %s60
      %s82 = sphi 0, %s84
      %s85 = sphi 0, %s82
      %s86 = sphi 0, %s85
      %s102 = sphi 0, %s86
      %s106 = sphi 0, %s106
      %s108 = sphi 0, %s106
      %s109 = sphi 0, %s108
      %s123 = sphi 0, %s109
      %s129 = sphi 0, %s131
      %s132 = sphi 0, %s129
      %s133 = sphi 0, %s132
      %s149 = sphi 0, %s133
      %s155 = sphi 0, %s157
      %s158 = sphi 0, %s155
      %s159 = sphi 0, %s158
      %s175 = sphi 0, %s159
    $region4: #{tpu_custom_call.1} parent=1 // loop_header_branch
      %28 = sbr.rel (%p26) target = $region8
    $region5: #{tpu_custom_call.1} parent=1 // loop_body
      %s30 = ssub.s32 %s25, 1
      %s31 = ssub.s32 %s25, 2
      %s32 = sadd.s32 %s25, 1
      %s34 = sadd.s32 %s33, 1
      %p37 = scmp.eq.s32.totalorder %s25, 1
      %p38 = scmp.ne.s32.totalorder %s33, %s35
      %p39 = scmp.eq.s32.totalorder %s25, 0
      %p40 = por %p38, %p39
      %p41 = scmp.ne.s32.totalorder %s33, %s35
      %p42 = scmp.eq.s32.totalorder %s30, 1
      %p43 = por %p41, %p42
      %p44 = scmp.ne.s32.totalorder %s35, %s36
      %p45 = scmp.eq.s32.totalorder %s30, 0
      %p46 = por %p44, %p45
      %p47 = scmp.ne.s32.totalorder %s35, %s36
      %p48 = scmp.eq.s32.totalorder %s31, 1
      %p49 = por %p47, %p48
      %p51 = scmp.ne.s32.totalorder %s36, %s50
      %p52 = scmp.eq.s32.totalorder %s31, 0
      %p53 = por %p51, %p52
      %s54 = ssub.s32 %s25, %s32
      %p55 = scmp.eq.s32.totalorder %s54, 0
      %s57 = sadd.s32 %s56, 1
      %s58 = scalar_select %p55, %s56, %s57
      %p61 = pneg %p55
      %p62 = scmp.eq.s32.totalorder %s25, 1
      %p63 = por %p61, %p62
      %p64 = scmp.ne.s32.totalorder %s56, %s59
      %p65 = scmp.eq.s32.totalorder %s25, 0
      %p66 = por %p64, %p65
      %p67 = scmp.ne.s32.totalorder %s56, %s59
      %p68 = scmp.eq.s32.totalorder %s30, 1
      %p69 = por %p67, %p68
      %p70 = scmp.ne.s32.totalorder %s59, %s60
      %p71 = scmp.eq.s32.totalorder %s30, 0
      %p72 = por %p70, %p71
      %p73 = scmp.ne.s32.totalorder %s59, %s60
      %p74 = scmp.eq.s32.totalorder %s31, 1
      %p75 = por %p73, %p74
      %p77 = scmp.ne.s32.totalorder %s60, %s76
      %p78 = scmp.eq.s32.totalorder %s31, 0
      %p79 = por %p77, %p78
      %s80 = ssub.s32 %s25, %s32
      %p81 = scmp.eq.s32.totalorder %s80, 0
      %s83 = sadd.s32 %s82, 1
      %s84 = scalar_select %p81, %s82, %s83
      %p87 = pneg %p81
      %p88 = scmp.eq.s32.totalorder %s25, 1
      %p89 = por %p87, %p88
      %p90 = scmp.ne.s32.totalorder %s82, %s85
      %p91 = scmp.eq.s32.totalorder %s25, 0
      %p92 = por %p90, %p91
      %p93 = scmp.ne.s32.totalorder %s82, %s85
      %p94 = scmp.eq.s32.totalorder %s30, 1
      %p95 = por %p93, %p94
      %p96 = scmp.ne.s32.totalorder %s85, %s86
      %p97 = scmp.eq.s32.totalorder %s30, 0
      %p98 = por %p96, %p97
      %p99 = scmp.ne.s32.totalorder %s85, %s86
      %p100 = scmp.eq.s32.totalorder %s31, 1
      %p101 = por %p99, %p100
      %p103 = scmp.ne.s32.totalorder %s86, %s102
      %p104 = scmp.eq.s32.totalorder %s31, 0
      %p105 = por %p103, %p104
      %s107 = sadd.s32 %s106, 1
      %p110 = scmp.eq.s32.totalorder %s25, 1
      %p111 = scmp.ne.s32.totalorder %s106, %s108
      %p112 = scmp.eq.s32.totalorder %s25, 0
      %p113 = por %p111, %p112
      %p114 = scmp.ne.s32.totalorder %s106, %s108
      %p115 = scmp.eq.s32.totalorder %s30, 1
      %p116 = por %p114, %p115
      %p117 = scmp.ne.s32.totalorder %s108, %s109
      %p118 = scmp.eq.s32.totalorder %s30, 0
      %p119 = por %p117, %p118
      %p120 = scmp.ne.s32.totalorder %s108, %s109
      %p121 = scmp.eq.s32.totalorder %s31, 1
      %p122 = por %p120, %p121
      %p124 = scmp.ne.s32.totalorder %s109, %s123
      %p125 = scmp.eq.s32.totalorder %s31, 0
      %p126 = por %p124, %p125
      %s127 = ssub.s32 %s25, %s32
      %p128 = scmp.eq.s32.totalorder %s127, 0
      %s130 = sadd.s32 %s129, 1
      %s131 = scalar_select %p128, %s129, %s130
      %p134 = pneg %p128
      %p135 = scmp.eq.s32.totalorder %s25, 1
      %p136 = por %p134, %p135
      %p137 = scmp.ne.s32.totalorder %s129, %s132
      %p138 = scmp.eq.s32.totalorder %s25, 0
      %p139 = por %p137, %p138
      %p140 = scmp.ne.s32.totalorder %s129, %s132
      %p141 = scmp.eq.s32.totalorder %s30, 1
      %p142 = por %p140, %p141
      %p143 = scmp.ne.s32.totalorder %s132, %s133
      %p144 = scmp.eq.s32.totalorder %s30, 0
      %p145 = por %p143, %p144
      %p146 = scmp.ne.s32.totalorder %s132, %s133
      %p147 = scmp.eq.s32.totalorder %s31, 1
      %p148 = por %p146, %p147
      %p150 = scmp.ne.s32.totalorder %s133, %s149
      %p151 = scmp.eq.s32.totalorder %s31, 0
      %p152 = por %p150, %p151
      %s153 = ssub.s32 %s25, %s32
      %p154 = scmp.eq.s32.totalorder %s153, 0
      %s156 = sadd.s32 %s155, 1
      %s157 = scalar_select %p154, %s155, %s156
      %p160 = pneg %p154
      %p161 = scmp.eq.s32.totalorder %s25, 1
      %p162 = por %p160, %p161
      %p163 = scmp.ne.s32.totalorder %s155, %s158
      %p164 = scmp.eq.s32.totalorder %s25, 0
      %p165 = por %p163, %p164
      %p166 = scmp.ne.s32.totalorder %s155, %s158
      %p167 = scmp.eq.s32.totalorder %s30, 1
      %p168 = por %p166, %p167
      %p169 = scmp.ne.s32.totalorder %s158, %s159
      %p170 = scmp.eq.s32.totalorder %s30, 0
      %p171 = por %p169, %p170
      %p172 = scmp.ne.s32.totalorder %s158, %s159
      %p173 = scmp.eq.s32.totalorder %s31, 1
      %p174 = por %p172, %p173
      %p176 = scmp.ne.s32.totalorder %s159, %s175
      %p177 = scmp.eq.s32.totalorder %s31, 0
      %p178 = por %p176, %p177
      %p179 = scmp.le.s32.totalorder 1, %s25
      %p180 = scmp.lt.s32.totalorder %s25, 3
      %p181 = pnand %p179, %p180
      %p182 = pneg %p181
      // Predicated region
      $region9: #{tpu_custom_call.1} parent=5 // pred_check
        _
      $region10: #{tpu_custom_call.1} parent=5 // pred_check_branch
        %184 = sbr.rel (%p181) target = $region12
      $region11: #{tpu_custom_call.1} parent=5 // pred_region
        %s185 = ssub.s32 %s25, 1
        // Predicated region
        $region13: #{tpu_custom_call.1} parent=11 // pred_check
          %p186 = pneg %p46
        $region14: #{tpu_custom_call.1} parent=11 // pred_check_branch
          %188 = sbr.rel (%p186) target = $region16
        $region15: #{tpu_custom_call.1} parent=11 // pred_region
          %s190 = ssub.s32 256, 256
          %191 = vsyncadd [#allocation5], %s190
          %196 = dma.hbm_to_smem %s0, 256, [#allocation2], [#allocation5], 128, 128, 8
        $region16: #{tpu_custom_call.1} parent=11 // pred_fallthru
          _
        // Predicated region
        $region17: #{tpu_custom_call.1} parent=11 // pred_check
          %p197 = pneg %p119
        $region18: #{tpu_custom_call.1} parent=11 // pred_check_branch
          %199 = sbr.rel (%p197) target = $region20
        $region19: #{tpu_custom_call.1} parent=11 // pred_region
          %s201 = ssub.s32 512, 512
          %202 = vsyncadd [#allocation8], %s201
          %s203 = sshll.u32 [#allocation9], 4
          %s204 = int_to_ptr.vmem [resolvable:$true] %s203
          %209 = dma.hbm_to_vmem [thread:$0]  %s3, 512, %s204, [#allocation8], 256, 256, 16
        $region20: #{tpu_custom_call.1} parent=11 // pred_fallthru
          _
      $region12: #{tpu_custom_call.1} parent=5 // pred_fallthru
        _
      %p210 = scmp.lt.s32.totalorder %s25, 2
      // Predicated region
      $region21: #{tpu_custom_call.1} parent=5 // pred_check
        %p211 = pneg %p210
      $region22: #{tpu_custom_call.1} parent=5 // pred_check_branch
        %213 = sbr.rel (%p211) target = $region24
      $region23: #{tpu_custom_call.1} parent=5 // pred_region
        // Predicated region
        $region25: #{tpu_custom_call.1} parent=23 // pred_check
          %p214 = pneg %p66
        $region26: #{tpu_custom_call.1} parent=23 // pred_check_branch
          %216 = sbr.rel (%p214) target = $region28
        $region27: #{tpu_custom_call.1} parent=23 // pred_region
          %s217 = sand.u32 %s56, 1
          %s218 = scalar_lea.sflag [#allocation3], %s217
          %s219 = sand.u32 %s56, 1
          %s220 = smul.addr %s219, 32
          %s221 = scalar_lea.vmem [#allocation6], %s220
          %s223 = ssub.s32 512, 512
          %224 = vsyncadd %s218, %s223
          %s225 = smul.addr %s25, 4
          %s226 = smul.addr %s225, 128
          %s227 = scalar_lea.hbm %s1, %s226
          %s228 = sshll.u32 %s221, 4
          %s229 = int_to_ptr.vmem [resolvable:$true] %s228
          %234 = dma.hbm_to_vmem [thread:$0]  %s227, 512, %s229, %s218, 256, 256, 16
        $region28: #{tpu_custom_call.1} parent=23 // pred_fallthru
          _
        // Predicated region
        $region29: #{tpu_custom_call.1} parent=23 // pred_check
          %p235 = pneg %p92
        $region30: #{tpu_custom_call.1} parent=23 // pred_check_branch
          %237 = sbr.rel (%p235) target = $region32
        $region31: #{tpu_custom_call.1} parent=23 // pred_region
          %s238 = sand.u32 %s25, 1
          %s239 = scalar_lea.sflag [#allocation8], %s238
          %s240 = sand.u32 %s82, 1
          %s241 = smul.addr %s240, 32
          %s242 = scalar_lea.vmem [#allocation7], %s241
          %s244 = ssub.s32 512, 512
          %245 = vsyncadd %s239, %s244
          %s246 = smul.addr %s25, 4
          %s247 = smul.addr %s246, 128
          %s248 = scalar_lea.hbm %s2, %s247
          %s249 = sshll.u32 %s242, 4
          %s250 = int_to_ptr.vmem [resolvable:$true] %s249
          %255 = dma.hbm_to_vmem [thread:$0]  %s248, 512, %s250, %s239, 256, 256, 16
        $region32: #{tpu_custom_call.1} parent=23 // pred_fallthru
          _
      $region24: #{tpu_custom_call.1} parent=5 // pred_fallthru
        _
      %p256 = scmp.le.s32.totalorder 1, %s25
      %p257 = scmp.lt.s32.totalorder %s25, 3
      %p258 = pnand %p256, %p257
      %p259 = pneg %p258
      // Predicated region
      $region33: #{tpu_custom_call.1} parent=5 // pred_check
        _
      $region34: #{tpu_custom_call.1} parent=5 // pred_check_branch
        %261 = sbr.rel (%p258) target = $region36
      $region35: #{tpu_custom_call.1} parent=5 // pred_region
        %s262 = ssub.s32 %s25, 1
        // Predicated region
        $region37: #{tpu_custom_call.1} parent=35 // pred_check
          %p263 = pneg %p46
        $region38: #{tpu_custom_call.1} parent=35 // pred_check_branch
          %265 = sbr.rel (%p263) target = $region40
        $region39: #{tpu_custom_call.1} parent=35 // pred_region
          %266 = dma.done [#allocation5], 256
        $region40: #{tpu_custom_call.1} parent=35 // pred_fallthru
          _
        %s267 = sand.u32 %s59, 1
        %s268 = scalar_lea.sflag [#allocation3], %s267
        %s269 = sand.u32 %s59, 1
        %s270 = smul.addr %s269, 32
        %s271 = scalar_lea.vmem [#allocation6], %s270
        // Predicated region
        $region41: #{tpu_custom_call.1} parent=35 // pred_check
          %p272 = pneg %p72
        $region42: #{tpu_custom_call.1} parent=35 // pred_check_branch
          %274 = sbr.rel (%p272) target = $region44
        $region43: #{tpu_custom_call.1} parent=35 // pred_region
          %275 = dma.done %s268, 512
        $region44: #{tpu_custom_call.1} parent=35 // pred_fallthru
          _
        %s276 = sand.u32 %s30, 1
        %s277 = scalar_lea.sflag [#allocation8], %s276
        %s278 = sand.u32 %s85, 1
        %s279 = smul.addr %s278, 32
        %s280 = scalar_lea.vmem [#allocation7], %s279
        // Predicated region
        $region45: #{tpu_custom_call.1} parent=35 // pred_check
          %p281 = pneg %p98
        $region46: #{tpu_custom_call.1} parent=35 // pred_check_branch
          %283 = sbr.rel (%p281) target = $region48
        $region47: #{tpu_custom_call.1} parent=35 // pred_region
          %284 = dma.done %s277, 512
        $region48: #{tpu_custom_call.1} parent=35 // pred_fallthru
          _
        // Predicated region
        $region49: #{tpu_custom_call.1} parent=35 // pred_check
          %p285 = pneg %p119
        $region50: #{tpu_custom_call.1} parent=35 // pred_check_branch
          %287 = sbr.rel (%p285) target = $region52
        $region51: #{tpu_custom_call.1} parent=35 // pred_region
          %288 = dma.done [#allocation8], 512
        $region52: #{tpu_custom_call.1} parent=35 // pred_fallthru
          _
        %289 = sfence
        %p290 = pneg %p46
        %p291 = pneg %p43
        %s292 = sand.u32 %s59, 1
        %s293 = scalar_lea.sflag [#allocation3], %s292
        %s294 = sand.u32 %s59, 1
        %s295 = smul.addr %s294, 32
        %s296 = scalar_lea.vmem [#allocation6], %s295
        %p297 = pneg %p72
        %p298 = pneg %p69
        %s299 = sand.u32 %s30, 1
        %s300 = scalar_lea.sflag [#allocation8], %s299
        %s301 = sand.u32 %s85, 1
        %s302 = smul.addr %s301, 32
        %s303 = scalar_lea.vmem [#allocation7], %s302
        %p304 = pneg %p98
        %p305 = pneg %p95
        %p306 = pneg %p119
        %p307 = pneg %p116
        %p308 = pneg %p145
        %p309 = pneg %p142
        %s310 = sand.u32 %s132, 1
        %s311 = scalar_lea.sflag [#allocation4], %s310
        %s312 = sand.u32 %s132, 1
        %s313 = smul.addr %s312, 32
        %s314 = scalar_lea.vmem [#allocation10], %s313
        %p315 = pneg %p171
        %p316 = pneg %p168
        %s317 = sand.u32 %s158, 1
        %s318 = scalar_lea.sflag [#allocation12], %s317
        %s319 = sand.u32 %s158, 1
        %s320 = smul.addr %s319, 480
        %s321 = scalar_lea.vmem [#allocation11], %s320
        %v322 = vld [vmem:[%s271] sm:$0xff]
        %v323 = vld [vmem:[%s271 + $0x8] sm:$0xff]
        %v324 = vld [vmem:[%s271 + $0x10] sm:$0xff]
        %v325 = vld [vmem:[%s271 + $0x18] sm:$0xff]
        %v326 = vand.u32 2147483647, %v322
        %vm327 = vcmp.le.f32.partialorder %v326, 0.7853982
        %vm328 = vcmp.lt.s32.totalorder %v322, 0
        %v329 = vand.u32 %v322, 2139095040
        %v330 = vshrl.u32 %v329, 23
        %v331 = vsub.s32 %v330, 127
        %v332 = vand.u32 2147483647, %v322
        %v333 = vand.u32 %v332, 8388607
        %v334 = vor.u32 %v333, 8388608
        %v335 = vsub.s32 0, %v334
        %v336 = vadd.s32 %v331, 1
        %vm337 = vcmp.gt.s32.totalorder %v336, 0
        %v338 = vsel %vm337, %v336, 0
        %v339 = vshrl.u32 %v338, 5
        %v340 = vand.u32 %v338, 31
        %v341 = vsub.s32 32, %v340
        %v342 = vshrl.u32 683565275, %v341
        %v343 = vshll.u32 683565275, %v340
        %v344 = vshrl.u32 2475754826, %v341
        %v345 = vor.u32 %v343, %v344
        %v346 = vshll.u32 2475754826, %v340
        %v347 = vshrl.u32 2131351028, %v341
        %v348 = vor.u32 %v346, %v347
        %v349 = vshll.u32 2131351028, %v340
        %v350 = vshrl.u32 2102212464, %v341
        %v351 = vor.u32 %v349, %v350
        %v352 = vshll.u32 2102212464, %v340
        %v353 = vshrl.u32 920167782, %v341
        %v354 = vor.u32 %v352, %v353
        %v355 = vshll.u32 920167782, %v340
        %v356 = vshrl.u32 1326507024, %v341
        %v357 = vor.u32 %v355, %v356
        %vm358 = vcmp.lt.s32.totalorder %v339, 1
        %vm359 = vcmp.lt.s32.totalorder %v339, 2
        %vm360 = vcmp.lt.s32.totalorder %v339, 3
        %vm361 = vcmp.lt.s32.totalorder %v339, 4
        %v362 = vsel %vm358, %v342, %v345
        %v363 = vsel %vm361, %v351, 2102212464
        %v364 = vsel %vm360, %v348, %v363
        %v365 = vsel %vm359, %v362, %v364
        %v366 = vsel %vm358, %v345, %v348
        %v367 = vsel %vm361, %v354, 920167782
        %v368 = vsel %vm360, %v351, %v367
        %v369 = vsel %vm359, %v366, %v368
        %v370 = vsel %vm358, %v348, %v351
        %v371 = vsel %vm361, %v357, 1326507024
        %v372 = vsel %vm360, %v354, %v371
        %v373 = vsel %vm359, %v370, %v372
        %v374 = vshll.u32 %v334, 8
        %v375 = vmul.u32.u64.compose %v374, %v373
        %v376 = vextract.low.u32 %v375
        %v377 = vextract.high.u32 %v375
        %v378 = vmul.u32.u64.compose %v374, %v369
        %v379 = vextract.low.u32 %v378
        %v380 = vextract.high.u32 %v378
        %v381 = vmul.u32 %v374, %v365
        %v382 = vadd.s32 %v377, %v379
        %vm383 = vc.u32 %v377, %v379
        %v384 = vadd.s32 %v380, 1
        %v385 = vsel %vm383, %v384, %v380
        %v386 = vadd.s32 %v381, %v385
        %v387 = vadd.s32 %v386, 536870912
        %v388 = vshrl.u32 %v387, 30
        %v389 = vshll.u32 %v388, 30
        %v390 = vsub.s32 %v386, %v389
        %vm391 = vcmp.lt.s32.totalorder %v390, 0
        %v392 = vsub.s32 0, %v390
        %v393 = vsel %vm391, %v392, %v390
        %v394 = vclz %v393
        %v395 = vsub.s32 %v394, 2
        %vm396 = vcmp.gt.s32.totalorder 0, %v395
        %v397 = vsel %vm396, 0, %v395
        %v398 = vsub.s32 32, %v397
        %v399 = vshll.u32 %v390, %v397
        %v400 = vshrl.u32 %v382, %v398
        %v401 = vor.u32 %v399, %v400
        %v402 = vsub.s32 4294967266, %v397
        %v403 = vadd.s32 %v402, 127
        %v404 = vshll.u32 %v403, 23
        %v405 = vor.u32 4788187, %v404
        %v406 = vand.u32 2147483647, %v405
        %v408 = vcvt.s32.f32 %v401
        %v409 = vmul.f32 %v408, %v406
        %v410 = vxor.u32 %v409, 2147483648
        %v411 = vsel %vm328, %v410, %v409
        %v412 = vsub.s32 4, %v388
        %v413 = vsel %vm328, %v412, %v388
        %v414 = vsel %vm327, %v322, %v411
        %v415 = vsel %vm327, 0, %v413
        %v416 = vcosq.f32.pop %v414
        %v417 = vsinq.f32.pop %v414
        %vm418 = vweird.f32 %v322
        %v419 = vand.u32 %v415, 3
        %vm420 = vcmp.lt.s32.totalorder %v419, 2
        %vm421 = vcmp.eq.s32.totalorder %v419, 0
        %v422 = vxor.u32 %v417, 2147483648
        %v423 = vsel %vm421, %v416, %v422
        %vm424 = vcmp.eq.s32.totalorder %v419, 2
        %v425 = vxor.u32 %v416, 2147483648
        %v426 = vsel %vm424, %v425, %v417
        %v427 = vsel %vm420, %v423, %v426
        %v428 = vsel %vm418, nan, %v427
        %v429 = vand.u32 2147483647, %v323
        %vm430 = vcmp.le.f32.partialorder %v429, 0.7853982
        %vm431 = vcmp.lt.s32.totalorder %v323, 0
        %v432 = vand.u32 %v323, 2139095040
        %v433 = vshrl.u32 %v432, 23
        %v434 = vsub.s32 %v433, 127
        %v435 = vand.u32 2147483647, %v323
        %v436 = vand.u32 %v435, 8388607
        %v437 = vor.u32 %v436, 8388608
        %v438 = vsub.s32 0, %v437
        %v439 = vadd.s32 %v434, 1
        %vm440 = vcmp.gt.s32.totalorder %v439, 0
        %v441 = vsel %vm440, %v439, 0
        %v442 = vshrl.u32 %v441, 5
        %v443 = vand.u32 %v441, 31
        %v444 = vsub.s32 32, %v443
        %v445 = vshrl.u32 683565275, %v444
        %v446 = vshll.u32 683565275, %v443
        %v447 = vshrl.u32 2475754826, %v444
        %v448 = vor.u32 %v446, %v447
        %v449 = vshll.u32 2475754826, %v443
        %v450 = vshrl.u32 2131351028, %v444
        %v451 = vor.u32 %v449, %v450
        %v452 = vshll.u32 2131351028, %v443
        %v453 = vshrl.u32 2102212464, %v444
        %v454 = vor.u32 %v452, %v453
        %v455 = vshll.u32 2102212464, %v443
        %v456 = vshrl.u32 920167782, %v444
        %v457 = vor.u32 %v455, %v456
        %v458 = vshll.u32 920167782, %v443
        %v459 = vshrl.u32 1326507024, %v444
        %v460 = vor.u32 %v458, %v459
        %vm461 = vcmp.lt.s32.totalorder %v442, 1
        %vm462 = vcmp.lt.s32.totalorder %v442, 2
        %vm463 = vcmp.lt.s32.totalorder %v442, 3
        %vm464 = vcmp.lt.s32.totalorder %v442, 4
        %v465 = vsel %vm461, %v445, %v448
        %v466 = vsel %vm464, %v454, 2102212464
        %v467 = vsel %vm463, %v451, %v466
        %v468 = vsel %vm462, %v465, %v467
        %v469 = vsel %vm461, %v448, %v451
        %v470 = vsel %vm464, %v457, 920167782
        %v471 = vsel %vm463, %v454, %v470
        %v472 = vsel %vm462, %v469, %v471
        %v473 = vsel %vm461, %v451, %v454
        %v474 = vsel %vm464, %v460, 1326507024
        %v475 = vsel %vm463, %v457, %v474
        %v476 = vsel %vm462, %v473, %v475
        %v477 = vshll.u32 %v437, 8
        %v478 = vmul.u32.u64.compose %v477, %v476
        %v479 = vextract.low.u32 %v478
        %v480 = vextract.high.u32 %v478
        %v481 = vmul.u32.u64.compose %v477, %v472
        %v482 = vextract.low.u32 %v481
        %v483 = vextract.high.u32 %v481
        %v484 = vmul.u32 %v477, %v468
        %v485 = vadd.s32 %v480, %v482
        %vm486 = vc.u32 %v480, %v482
        %v487 = vadd.s32 %v483, 1
        %v488 = vsel %vm486, %v487, %v483
        %v489 = vadd.s32 %v484, %v488
        %v490 = vadd.s32 %v489, 536870912
        %v491 = vshrl.u32 %v490, 30
        %v492 = vshll.u32 %v491, 30
        %v493 = vsub.s32 %v489, %v492
        %vm494 = vcmp.lt.s32.totalorder %v493, 0
        %v495 = vsub.s32 0, %v493
        %v496 = vsel %vm494, %v495, %v493
        %v497 = vclz %v496
        %v498 = vsub.s32 %v497, 2
        %vm499 = vcmp.gt.s32.totalorder 0, %v498
        %v500 = vsel %vm499, 0, %v498
        %v501 = vsub.s32 32, %v500
        %v502 = vshll.u32 %v493, %v500
        %v503 = vshrl.u32 %v485, %v501
        %v504 = vor.u32 %v502, %v503
        %v505 = vsub.s32 4294967266, %v500
        %v506 = vadd.s32 %v505, 127
        %v507 = vshll.u32 %v506, 23
        %v508 = vor.u32 4788187, %v507
        %v509 = vand.u32 2147483647, %v508
        %v511 = vcvt.s32.f32 %v504
        %v512 = vmul.f32 %v511, %v509
        %v513 = vxor.u32 %v512, 2147483648
        %v514 = vsel %vm431, %v513, %v512
        %v515 = vsub.s32 4, %v491
        %v516 = vsel %vm431, %v515, %v491
        %v517 = vsel %vm430, %v323, %v514
        %v518 = vsel %vm430, 0, %v516
        %v519 = vcosq.f32.pop %v517
        %v520 = vsinq.f32.pop %v517
        %vm521 = vweird.f32 %v323
        %v522 = vand.u32 %v518, 3
        %vm523 = vcmp.lt.s32.totalorder %v522, 2
        %vm524 = vcmp.eq.s32.totalorder %v522, 0
        %v525 = vxor.u32 %v520, 2147483648
        %v526 = vsel %vm524, %v519, %v525
        %vm527 = vcmp.eq.s32.totalorder %v522, 2
        %v528 = vxor.u32 %v519, 2147483648
        %v529 = vsel %vm527, %v528, %v520
        %v530 = vsel %vm523, %v526, %v529
        %v531 = vsel %vm521, nan, %v530
        %v532 = vand.u32 2147483647, %v324
        %vm533 = vcmp.le.f32.partialorder %v532, 0.7853982
        %vm534 = vcmp.lt.s32.totalorder %v324, 0
        %v535 = vand.u32 %v324, 2139095040
        %v536 = vshrl.u32 %v535, 23
        %v537 = vsub.s32 %v536, 127
        %v538 = vand.u32 2147483647, %v324
        %v539 = vand.u32 %v538, 8388607
        %v540 = vor.u32 %v539, 8388608
        %v541 = vsub.s32 0, %v540
        %v542 = vadd.s32 %v537, 1
        %vm543 = vcmp.gt.s32.totalorder %v542, 0
        %v544 = vsel %vm543, %v542, 0
        %v545 = vshrl.u32 %v544, 5
        %v546 = vand.u32 %v544, 31
        %v547 = vsub.s32 32, %v546
        %v548 = vshrl.u32 683565275, %v547
        %v549 = vshll.u32 683565275, %v546
        %v550 = vshrl.u32 2475754826, %v547
        %v551 = vor.u32 %v549, %v550
        %v552 = vshll.u32 2475754826, %v546
        %v553 = vshrl.u32 2131351028, %v547
        %v554 = vor.u32 %v552, %v553
        %v555 = vshll.u32 2131351028, %v546
        %v556 = vshrl.u32 2102212464, %v547
        %v557 = vor.u32 %v555, %v556
        %v558 = vshll.u32 2102212464, %v546
        %v559 = vshrl.u32 920167782, %v547
        %v560 = vor.u32 %v558, %v559
        %v561 = vshll.u32 920167782, %v546
        %v562 = vshrl.u32 1326507024, %v547
        %v563 = vor.u32 %v561, %v562
        %vm564 = vcmp.lt.s32.totalorder %v545, 1
        %vm565 = vcmp.lt.s32.totalorder %v545, 2
        %vm566 = vcmp.lt.s32.totalorder %v545, 3
        %vm567 = vcmp.lt.s32.totalorder %v545, 4
        %v568 = vsel %vm564, %v548, %v551
        %v569 = vsel %vm567, %v557, 2102212464
        %v570 = vsel %vm566, %v554, %v569
        %v571 = vsel %vm565, %v568, %v570
        %v572 = vsel %vm564, %v551, %v554
        %v573 = vsel %vm567, %v560, 920167782
        %v574 = vsel %vm566, %v557, %v573
        %v575 = vsel %vm565, %v572, %v574
        %v576 = vsel %vm564, %v554, %v557
        %v577 = vsel %vm567, %v563, 1326507024
        %v578 = vsel %vm566, %v560, %v577
        %v579 = vsel %vm565, %v576, %v578
        %v580 = vshll.u32 %v540, 8
        %v581 = vmul.u32.u64.compose %v580, %v579
        %v582 = vextract.low.u32 %v581
        %v583 = vextract.high.u32 %v581
        %v584 = vmul.u32.u64.compose %v580, %v575
        %v585 = vextract.low.u32 %v584
        %v586 = vextract.high.u32 %v584
        %v587 = vmul.u32 %v580, %v571
        %v588 = vadd.s32 %v583, %v585
        %vm589 = vc.u32 %v583, %v585
        %v590 = vadd.s32 %v586, 1
        %v591 = vsel %vm589, %v590, %v586
        %v592 = vadd.s32 %v587, %v591
        %v593 = vadd.s32 %v592, 536870912
        %v594 = vshrl.u32 %v593, 30
        %v595 = vshll.u32 %v594, 30
        %v596 = vsub.s32 %v592, %v595
        %vm597 = vcmp.lt.s32.totalorder %v596, 0
        %v598 = vsub.s32 0, %v596
        %v599 = vsel %vm597, %v598, %v596
        %v600 = vclz %v599
        %v601 = vsub.s32 %v600, 2
        %vm602 = vcmp.gt.s32.totalorder 0, %v601
        %v603 = vsel %vm602, 0, %v601
        %v604 = vsub.s32 32, %v603
        %v605 = vshll.u32 %v596, %v603
        %v606 = vshrl.u32 %v588, %v604
        %v607 = vor.u32 %v605, %v606
        %v608 = vsub.s32 4294967266, %v603
        %v609 = vadd.s32 %v608, 127
        %v610 = vshll.u32 %v609, 23
        %v611 = vor.u32 4788187, %v610
        %v612 = vand.u32 2147483647, %v611
        %v614 = vcvt.s32.f32 %v607
        %v615 = vmul.f32 %v614, %v612
        %v616 = vxor.u32 %v615, 2147483648
        %v617 = vsel %vm534, %v616, %v615
        %v618 = vsub.s32 4, %v594
        %v619 = vsel %vm534, %v618, %v594
        %v620 = vsel %vm533, %v324, %v617
        %v621 = vsel %vm533, 0, %v619
        %v622 = vcosq.f32.pop %v620
        %v623 = vsinq.f32.pop %v620
        %vm624 = vweird.f32 %v324
        %v625 = vand.u32 %v621, 3
        %vm626 = vcmp.lt.s32.totalorder %v625, 2
        %vm627 = vcmp.eq.s32.totalorder %v625, 0
        %v628 = vxor.u32 %v623, 2147483648
        %v629 = vsel %vm627, %v622, %v628
        %vm630 = vcmp.eq.s32.totalorder %v625, 2
        %v631 = vxor.u32 %v622, 2147483648
        %v632 = vsel %vm630, %v631, %v623
        %v633 = vsel %vm626, %v629, %v632
        %v634 = vsel %vm624, nan, %v633
        %v635 = vand.u32 2147483647, %v325
        %vm636 = vcmp.le.f32.partialorder %v635, 0.7853982
        %vm637 = vcmp.lt.s32.totalorder %v325, 0
        %v638 = vand.u32 %v325, 2139095040
        %v639 = vshrl.u32 %v638, 23
        %v640 = vsub.s32 %v639, 127
        %v641 = vand.u32 2147483647, %v325
        %v642 = vand.u32 %v641, 8388607
        %v643 = vor.u32 %v642, 8388608
        %v644 = vsub.s32 0, %v643
        %v645 = vadd.s32 %v640, 1
        %vm646 = vcmp.gt.s32.totalorder %v645, 0
        %v647 = vsel %vm646, %v645, 0
        %v648 = vshrl.u32 %v647, 5
        %v649 = vand.u32 %v647, 31
        %v650 = vsub.s32 32, %v649
        %v651 = vshrl.u32 683565275, %v650
        %v652 = vshll.u32 683565275, %v649
        %v653 = vshrl.u32 2475754826, %v650
        %v654 = vor.u32 %v652, %v653
        %v655 = vshll.u32 2475754826, %v649
        %v656 = vshrl.u32 2131351028, %v650
        %v657 = vor.u32 %v655, %v656
        %v658 = vshll.u32 2131351028, %v649
        %v659 = vshrl.u32 2102212464, %v650
        %v660 = vor.u32 %v658, %v659
        %v661 = vshll.u32 2102212464, %v649
        %v662 = vshrl.u32 920167782, %v650
        %v663 = vor.u32 %v661, %v662
        %v664 = vshll.u32 920167782, %v649
        %v665 = vshrl.u32 1326507024, %v650
        %v666 = vor.u32 %v664, %v665
        %vm667 = vcmp.lt.s32.totalorder %v648, 1
        %vm668 = vcmp.lt.s32.totalorder %v648, 2
        %vm669 = vcmp.lt.s32.totalorder %v648, 3
        %vm670 = vcmp.lt.s32.totalorder %v648, 4
        %v671 = vsel %vm667, %v651, %v654
        %v672 = vsel %vm670, %v660, 2102212464
        %v673 = vsel %vm669, %v657, %v672
        %v674 = vsel %vm668, %v671, %v673
        %v675 = vsel %vm667, %v654, %v657
        %v676 = vsel %vm670, %v663, 920167782
        %v677 = vsel %vm669, %v660, %v676
        %v678 = vsel %vm668, %v675, %v677
        %v679 = vsel %vm667, %v657, %v660
        %v680 = vsel %vm670, %v666, 1326507024
        %v681 = vsel %vm669, %v663, %v680
        %v682 = vsel %vm668, %v679, %v681
        %v683 = vshll.u32 %v643, 8
        %v684 = vmul.u32.u64.compose %v683, %v682
        %v685 = vextract.low.u32 %v684
        %v686 = vextract.high.u32 %v684
        %v687 = vmul.u32.u64.compose %v683, %v678
        %v688 = vextract.low.u32 %v687
        %v689 = vextract.high.u32 %v687
        %v690 = vmul.u32 %v683, %v674
        %v691 = vadd.s32 %v686, %v688
        %vm692 = vc.u32 %v686, %v688
        %v693 = vadd.s32 %v689, 1
        %v694 = vsel %vm692, %v693, %v689
        %v695 = vadd.s32 %v690, %v694
        %v696 = vadd.s32 %v695, 536870912
        %v697 = vshrl.u32 %v696, 30
        %v698 = vshll.u32 %v697, 30
        %v699 = vsub.s32 %v695, %v698
        %vm700 = vcmp.lt.s32.totalorder %v699, 0
        %v701 = vsub.s32 0, %v699
        %v702 = vsel %vm700, %v701, %v699
        %v703 = vclz %v702
        %v704 = vsub.s32 %v703, 2
        %vm705 = vcmp.gt.s32.totalorder 0, %v704
        %v706 = vsel %vm705, 0, %v704
        %v707 = vsub.s32 32, %v706
        %v708 = vshll.u32 %v699, %v706
        %v709 = vshrl.u32 %v691, %v707
        %v710 = vor.u32 %v708, %v709
        %v711 = vsub.s32 4294967266, %v706
        %v712 = vadd.s32 %v711, 127
        %v713 = vshll.u32 %v712, 23
        %v714 = vor.u32 4788187, %v713
        %v715 = vand.u32 2147483647, %v714
        %v717 = vcvt.s32.f32 %v710
        %v718 = vmul.f32 %v717, %v715
        %v719 = vxor.u32 %v718, 2147483648
        %v720 = vsel %vm637, %v719, %v718
        %v721 = vsub.s32 4, %v697
        %v722 = vsel %vm637, %v721, %v697
        %v723 = vsel %vm636, %v325, %v720
        %v724 = vsel %vm636, 0, %v722
        %v725 = vcosq.f32.pop %v723
        %v726 = vsinq.f32.pop %v723
        %vm727 = vweird.f32 %v325
        %v728 = vand.u32 %v724, 3
        %vm729 = vcmp.lt.s32.totalorder %v728, 2
        %vm730 = vcmp.eq.s32.totalorder %v728, 0
        %v731 = vxor.u32 %v726, 2147483648
        %v732 = vsel %vm730, %v725, %v731
        %vm733 = vcmp.eq.s32.totalorder %v728, 2
        %v734 = vxor.u32 %v725, 2147483648
        %v735 = vsel %vm733, %v734, %v726
        %v736 = vsel %vm729, %v732, %v735
        %v737 = vsel %vm727, nan, %v736
        %v738 = vand.u32 2147483647, %v322
        %vm739 = vcmp.le.f32.partialorder %v738, 0.7853982
        %vm740 = vcmp.lt.s32.totalorder %v322, 0
        %v741 = vand.u32 %v322, 2139095040
        %v742 = vshrl.u32 %v741, 23
        %v743 = vsub.s32 %v742, 127
        %v744 = vand.u32 2147483647, %v322
        %v745 = vand.u32 %v744, 8388607
        %v746 = vor.u32 %v745, 8388608
        %v747 = vsub.s32 0, %v746
        %v748 = vadd.s32 %v743, 1
        %vm749 = vcmp.gt.s32.totalorder %v748, 0
        %v750 = vsel %vm749, %v748, 0
        %v751 = vshrl.u32 %v750, 5
        %v752 = vand.u32 %v750, 31
        %v753 = vsub.s32 32, %v752
        %v754 = vshrl.u32 683565275, %v753
        %v755 = vshll.u32 683565275, %v752
        %v756 = vshrl.u32 2475754826, %v753
        %v757 = vor.u32 %v755, %v756
        %v758 = vshll.u32 2475754826, %v752
        %v759 = vshrl.u32 2131351028, %v753
        %v760 = vor.u32 %v758, %v759
        %v761 = vshll.u32 2131351028, %v752
        %v762 = vshrl.u32 2102212464, %v753
        %v763 = vor.u32 %v761, %v762
        %v764 = vshll.u32 2102212464, %v752
        %v765 = vshrl.u32 920167782, %v753
        %v766 = vor.u32 %v764, %v765
        %v767 = vshll.u32 920167782, %v752
        %v768 = vshrl.u32 1326507024, %v753
        %v769 = vor.u32 %v767, %v768
        %vm770 = vcmp.lt.s32.totalorder %v751, 1
        %vm771 = vcmp.lt.s32.totalorder %v751, 2
        %vm772 = vcmp.lt.s32.totalorder %v751, 3
        %vm773 = vcmp.lt.s32.totalorder %v751, 4
        %v774 = vsel %vm770, %v754, %v757
        %v775 = vsel %vm773, %v763, 2102212464
        %v776 = vsel %vm772, %v760, %v775
        %v777 = vsel %vm771, %v774, %v776
        %v778 = vsel %vm770, %v757, %v760
        %v779 = vsel %vm773, %v766, 920167782
        %v780 = vsel %vm772, %v763, %v779
        %v781 = vsel %vm771, %v778, %v780
        %v782 = vsel %vm770, %v760, %v763
        %v783 = vsel %vm773, %v769, 1326507024
        %v784 = vsel %vm772, %v766, %v783
        %v785 = vsel %vm771, %v782, %v784
        %v786 = vshll.u32 %v746, 8
        %v787 = vmul.u32.u64.compose %v786, %v785
        %v788 = vextract.low.u32 %v787
        %v789 = vextract.high.u32 %v787
        %v790 = vmul.u32.u64.compose %v786, %v781
        %v791 = vextract.low.u32 %v790
        %v792 = vextract.high.u32 %v790
        %v793 = vmul.u32 %v786, %v777
        %v794 = vadd.s32 %v789, %v791
        %vm795 = vc.u32 %v789, %v791
        %v796 = vadd.s32 %v792, 1
        %v797 = vsel %vm795, %v796, %v792
        %v798 = vadd.s32 %v793, %v797
        %v799 = vadd.s32 %v798, 536870912
        %v800 = vshrl.u32 %v799, 30
        %v801 = vshll.u32 %v800, 30
        %v802 = vsub.s32 %v798, %v801
        %vm803 = vcmp.lt.s32.totalorder %v802, 0
        %v804 = vsub.s32 0, %v802
        %v805 = vsel %vm803, %v804, %v802
        %v806 = vclz %v805
        %v807 = vsub.s32 %v806, 2
        %vm808 = vcmp.gt.s32.totalorder 0, %v807
        %v809 = vsel %vm808, 0, %v807
        %v810 = vsub.s32 32, %v809
        %v811 = vshll.u32 %v802, %v809
        %v812 = vshrl.u32 %v794, %v810
        %v813 = vor.u32 %v811, %v812
        %v814 = vsub.s32 4294967266, %v809
        %v815 = vadd.s32 %v814, 127
        %v816 = vshll.u32 %v815, 23
        %v817 = vor.u32 4788187, %v816
        %v818 = vand.u32 2147483647, %v817
        %v820 = vcvt.s32.f32 %v813
        %v821 = vmul.f32 %v820, %v818
        %v822 = vxor.u32 %v821, 2147483648
        %v823 = vsel %vm740, %v822, %v821
        %v824 = vsub.s32 4, %v800
        %v825 = vsel %vm740, %v824, %v800
        %v826 = vsel %vm739, %v322, %v823
        %v827 = vsel %vm739, 0, %v825
        %v828 = vcosq.f32.pop %v826
        %v829 = vsinq.f32.pop %v826
        %vm830 = vweird.f32 %v322
        %v831 = vadd.s32 %v827, 3
        %v832 = vand.u32 %v831, 3
        %vm833 = vcmp.lt.s32.totalorder %v832, 2
        %vm834 = vcmp.eq.s32.totalorder %v832, 0
        %v835 = vxor.u32 %v829, 2147483648
        %v836 = vsel %vm834, %v828, %v835
        %vm837 = vcmp.eq.s32.totalorder %v832, 2
        %v838 = vxor.u32 %v828, 2147483648
        %v839 = vsel %vm837, %v838, %v829
        %v840 = vsel %vm833, %v836, %v839
        %v841 = vsel %vm830, nan, %v840
        %v842 = vand.u32 2147483647, %v323
        %vm843 = vcmp.le.f32.partialorder %v842, 0.7853982
        %vm844 = vcmp.lt.s32.totalorder %v323, 0
        %v845 = vand.u32 %v323, 2139095040
        %v846 = vshrl.u32 %v845, 23
        %v847 = vsub.s32 %v846, 127
        %v848 = vand.u32 2147483647, %v323
        %v849 = vand.u32 %v848, 8388607
        %v850 = vor.u32 %v849, 8388608
        %v851 = vsub.s32 0, %v850
        %v852 = vadd.s32 %v847, 1
        %vm853 = vcmp.gt.s32.totalorder %v852, 0
        %v854 = vsel %vm853, %v852, 0
        %v855 = vshrl.u32 %v854, 5
        %v856 = vand.u32 %v854, 31
        %v857 = vsub.s32 32, %v856
        %v858 = vshrl.u32 683565275, %v857
        %v859 = vshll.u32 683565275, %v856
        %v860 = vshrl.u32 2475754826, %v857
        %v861 = vor.u32 %v859, %v860
        %v862 = vshll.u32 2475754826, %v856
        %v863 = vshrl.u32 2131351028, %v857
        %v864 = vor.u32 %v862, %v863
        %v865 = vshll.u32 2131351028, %v856
        %v866 = vshrl.u32 2102212464, %v857
        %v867 = vor.u32 %v865, %v866
        %v868 = vshll.u32 2102212464, %v856
        %v869 = vshrl.u32 920167782, %v857
        %v870 = vor.u32 %v868, %v869
        %v871 = vshll.u32 920167782, %v856
        %v872 = vshrl.u32 1326507024, %v857
        %v873 = vor.u32 %v871, %v872
        %vm874 = vcmp.lt.s32.totalorder %v855, 1
        %vm875 = vcmp.lt.s32.totalorder %v855, 2
        %vm876 = vcmp.lt.s32.totalorder %v855, 3
        %vm877 = vcmp.lt.s32.totalorder %v855, 4
        %v878 = vsel %vm874, %v858, %v861
        %v879 = vsel %vm877, %v867, 2102212464
        %v880 = vsel %vm876, %v864, %v879
        %v881 = vsel %vm875, %v878, %v880
        %v882 = vsel %vm874, %v861, %v864
        %v883 = vsel %vm877, %v870, 920167782
        %v884 = vsel %vm876, %v867, %v883
        %v885 = vsel %vm875, %v882, %v884
        %v886 = vsel %vm874, %v864, %v867
        %v887 = vsel %vm877, %v873, 1326507024
        %v888 = vsel %vm876, %v870, %v887
        %v889 = vsel %vm875, %v886, %v888
        %v890 = vshll.u32 %v850, 8
        %v891 = vmul.u32.u64.compose %v890, %v889
        %v892 = vextract.low.u32 %v891
        %v893 = vextract.high.u32 %v891
        %v894 = vmul.u32.u64.compose %v890, %v885
        %v895 = vextract.low.u32 %v894
        %v896 = vextract.high.u32 %v894
        %v897 = vmul.u32 %v890, %v881
        %v898 = vadd.s32 %v893, %v895
        %vm899 = vc.u32 %v893, %v895
        %v900 = vadd.s32 %v896, 1
        %v901 = vsel %vm899, %v900, %v896
        %v902 = vadd.s32 %v897, %v901
        %v903 = vadd.s32 %v902, 536870912
        %v904 = vshrl.u32 %v903, 30
        %v905 = vshll.u32 %v904, 30
        %v906 = vsub.s32 %v902, %v905
        %vm907 = vcmp.lt.s32.totalorder %v906, 0
        %v908 = vsub.s32 0, %v906
        %v909 = vsel %vm907, %v908, %v906
        %v910 = vclz %v909
        %v911 = vsub.s32 %v910, 2
        %vm912 = vcmp.gt.s32.totalorder 0, %v911
        %v913 = vsel %vm912, 0, %v911
        %v914 = vsub.s32 32, %v913
        %v915 = vshll.u32 %v906, %v913
        %v916 = vshrl.u32 %v898, %v914
        %v917 = vor.u32 %v915, %v916
        %v918 = vsub.s32 4294967266, %v913
        %v919 = vadd.s32 %v918, 127
        %v920 = vshll.u32 %v919, 23
        %v921 = vor.u32 4788187, %v920
        %v922 = vand.u32 2147483647, %v921
        %v924 = vcvt.s32.f32 %v917
        %v925 = vmul.f32 %v924, %v922
        %v926 = vxor.u32 %v925, 2147483648
        %v927 = vsel %vm844, %v926, %v925
        %v928 = vsub.s32 4, %v904
        %v929 = vsel %vm844, %v928, %v904
        %v930 = vsel %vm843, %v323, %v927
        %v931 = vsel %vm843, 0, %v929
        %v932 = vcosq.f32.pop %v930
        %v933 = vsinq.f32.pop %v930
        %vm934 = vweird.f32 %v323
        %v935 = vadd.s32 %v931, 3
        %v936 = vand.u32 %v935, 3
        %vm937 = vcmp.lt.s32.totalorder %v936, 2
        %vm938 = vcmp.eq.s32.totalorder %v936, 0
        %v939 = vxor.u32 %v933, 2147483648
        %v940 = vsel %vm938, %v932, %v939
        %vm941 = vcmp.eq.s32.totalorder %v936, 2
        %v942 = vxor.u32 %v932, 2147483648
        %v943 = vsel %vm941, %v942, %v933
        %v944 = vsel %vm937, %v940, %v943
        %v945 = vsel %vm934, nan, %v944
        %v946 = vand.u32 2147483647, %v324
        %vm947 = vcmp.le.f32.partialorder %v946, 0.7853982
        %vm948 = vcmp.lt.s32.totalorder %v324, 0
        %v949 = vand.u32 %v324, 2139095040
        %v950 = vshrl.u32 %v949, 23
        %v951 = vsub.s32 %v950, 127
        %v952 = vand.u32 2147483647, %v324
        %v953 = vand.u32 %v952, 8388607
        %v954 = vor.u32 %v953, 8388608
        %v955 = vsub.s32 0, %v954
        %v956 = vadd.s32 %v951, 1
        %vm957 = vcmp.gt.s32.totalorder %v956, 0
        %v958 = vsel %vm957, %v956, 0
        %v959 = vshrl.u32 %v958, 5
        %v960 = vand.u32 %v958, 31
        %v961 = vsub.s32 32, %v960
        %v962 = vshrl.u32 683565275, %v961
        %v963 = vshll.u32 683565275, %v960
        %v964 = vshrl.u32 2475754826, %v961
        %v965 = vor.u32 %v963, %v964
        %v966 = vshll.u32 2475754826, %v960
        %v967 = vshrl.u32 2131351028, %v961
        %v968 = vor.u32 %v966, %v967
        %v969 = vshll.u32 2131351028, %v960
        %v970 = vshrl.u32 2102212464, %v961
        %v971 = vor.u32 %v969, %v970
        %v972 = vshll.u32 2102212464, %v960
        %v973 = vshrl.u32 920167782, %v961
        %v974 = vor.u32 %v972, %v973
        %v975 = vshll.u32 920167782, %v960
        %v976 = vshrl.u32 1326507024, %v961
        %v977 = vor.u32 %v975, %v976
        %vm978 = vcmp.lt.s32.totalorder %v959, 1
        %vm979 = vcmp.lt.s32.totalorder %v959, 2
        %vm980 = vcmp.lt.s32.totalorder %v959, 3
        %vm981 = vcmp.lt.s32.totalorder %v959, 4
        %v982 = vsel %vm978, %v962, %v965
        %v983 = vsel %vm981, %v971, 2102212464
        %v984 = vsel %vm980, %v968, %v983
        %v985 = vsel %vm979, %v982, %v984
        %v986 = vsel %vm978, %v965, %v968
        %v987 = vsel %vm981, %v974, 920167782
        %v988 = vsel %vm980, %v971, %v987
        %v989 = vsel %vm979, %v986, %v988
        %v990 = vsel %vm978, %v968, %v971
        %v991 = vsel %vm981, %v977, 1326507024
        %v992 = vsel %vm980, %v974, %v991
        %v993 = vsel %vm979, %v990, %v992
        %v994 = vshll.u32 %v954, 8
        %v995 = vmul.u32.u64.compose %v994, %v993
        %v996 = vextract.low.u32 %v995
        %v997 = vextract.high.u32 %v995
        %v998 = vmul.u32.u64.compose %v994, %v989
        %v999 = vextract.low.u32 %v998
        %v1000 = vextract.high.u32 %v998
        %v1001 = vmul.u32 %v994, %v985
        %v1002 = vadd.s32 %v997, %v999
        %vm1003 = vc.u32 %v997, %v999
        %v1004 = vadd.s32 %v1000, 1
        %v1005 = vsel %vm1003, %v1004, %v1000
        %v1006 = vadd.s32 %v1001, %v1005
        %v1007 = vadd.s32 %v1006, 536870912
        %v1008 = vshrl.u32 %v1007, 30
        %v1009 = vshll.u32 %v1008, 30
        %v1010 = vsub.s32 %v1006, %v1009
        %vm1011 = vcmp.lt.s32.totalorder %v1010, 0
        %v1012 = vsub.s32 0, %v1010
        %v1013 = vsel %vm1011, %v1012, %v1010
        %v1014 = vclz %v1013
        %v1015 = vsub.s32 %v1014, 2
        %vm1016 = vcmp.gt.s32.totalorder 0, %v1015
        %v1017 = vsel %vm1016, 0, %v1015
        %v1018 = vsub.s32 32, %v1017
        %v1019 = vshll.u32 %v1010, %v1017
        %v1020 = vshrl.u32 %v1002, %v1018
        %v1021 = vor.u32 %v1019, %v1020
        %v1022 = vsub.s32 4294967266, %v1017
        %v1023 = vadd.s32 %v1022, 127
        %v1024 = vshll.u32 %v1023, 23
        %v1025 = vor.u32 4788187, %v1024
        %v1026 = vand.u32 2147483647, %v1025
        %v1028 = vcvt.s32.f32 %v1021
        %v1029 = vmul.f32 %v1028, %v1026
        %v1030 = vxor.u32 %v1029, 2147483648
        %v1031 = vsel %vm948, %v1030, %v1029
        %v1032 = vsub.s32 4, %v1008
        %v1033 = vsel %vm948, %v1032, %v1008
        %v1034 = vsel %vm947, %v324, %v1031
        %v1035 = vsel %vm947, 0, %v1033
        %v1036 = vcosq.f32.pop %v1034
        %v1037 = vsinq.f32.pop %v1034
        %vm1038 = vweird.f32 %v324
        %v1039 = vadd.s32 %v1035, 3
        %v1040 = vand.u32 %v1039, 3
        %vm1041 = vcmp.lt.s32.totalorder %v1040, 2
        %vm1042 = vcmp.eq.s32.totalorder %v1040, 0
        %v1043 = vxor.u32 %v1037, 2147483648
        %v1044 = vsel %vm1042, %v1036, %v1043
        %vm1045 = vcmp.eq.s32.totalorder %v1040, 2
        %v1046 = vxor.u32 %v1036, 2147483648
        %v1047 = vsel %vm1045, %v1046, %v1037
        %v1048 = vsel %vm1041, %v1044, %v1047
        %v1049 = vsel %vm1038, nan, %v1048
        %v1050 = vand.u32 2147483647, %v325
        %vm1051 = vcmp.le.f32.partialorder %v1050, 0.7853982
        %vm1052 = vcmp.lt.s32.totalorder %v325, 0
        %v1053 = vand.u32 %v325, 2139095040
        %v1054 = vshrl.u32 %v1053, 23
        %v1055 = vsub.s32 %v1054, 127
        %v1056 = vand.u32 2147483647, %v325
        %v1057 = vand.u32 %v1056, 8388607
        %v1058 = vor.u32 %v1057, 8388608
        %v1059 = vsub.s32 0, %v1058
        %v1060 = vadd.s32 %v1055, 1
        %vm1061 = vcmp.gt.s32.totalorder %v1060, 0
        %v1062 = vsel %vm1061, %v1060, 0
        %v1063 = vshrl.u32 %v1062, 5
        %v1064 = vand.u32 %v1062, 31
        %v1065 = vsub.s32 32, %v1064
        %v1066 = vshrl.u32 683565275, %v1065
        %v1067 = vshll.u32 683565275, %v1064
        %v1068 = vshrl.u32 2475754826, %v1065
        %v1069 = vor.u32 %v1067, %v1068
        %v1070 = vshll.u32 2475754826, %v1064
        %v1071 = vshrl.u32 2131351028, %v1065
        %v1072 = vor.u32 %v1070, %v1071
        %v1073 = vshll.u32 2131351028, %v1064
        %v1074 = vshrl.u32 2102212464, %v1065
        %v1075 = vor.u32 %v1073, %v1074
        %v1076 = vshll.u32 2102212464, %v1064
        %v1077 = vshrl.u32 920167782, %v1065
        %v1078 = vor.u32 %v1076, %v1077
        %v1079 = vshll.u32 920167782, %v1064
        %v1080 = vshrl.u32 1326507024, %v1065
        %v1081 = vor.u32 %v1079, %v1080
        %vm1082 = vcmp.lt.s32.totalorder %v1063, 1
        %vm1083 = vcmp.lt.s32.totalorder %v1063, 2
        %vm1084 = vcmp.lt.s32.totalorder %v1063, 3
        %vm1085 = vcmp.lt.s32.totalorder %v1063, 4
        %v1086 = vsel %vm1082, %v1066, %v1069
        %v1087 = vsel %vm1085, %v1075, 2102212464
        %v1088 = vsel %vm1084, %v1072, %v1087
        %v1089 = vsel %vm1083, %v1086, %v1088
        %v1090 = vsel %vm1082, %v1069, %v1072
        %v1091 = vsel %vm1085, %v1078, 920167782
        %v1092 = vsel %vm1084, %v1075, %v1091
        %v1093 = vsel %vm1083, %v1090, %v1092
        %v1094 = vsel %vm1082, %v1072, %v1075
        %v1095 = vsel %vm1085, %v1081, 1326507024
        %v1096 = vsel %vm1084, %v1078, %v1095
        %v1097 = vsel %vm1083, %v1094, %v1096
        %v1098 = vshll.u32 %v1058, 8
        %v1099 = vmul.u32.u64.compose %v1098, %v1097
        %v1100 = vextract.low.u32 %v1099
        %v1101 = vextract.high.u32 %v1099
        %v1102 = vmul.u32.u64.compose %v1098, %v1093
        %v1103 = vextract.low.u32 %v1102
        %v1104 = vextract.high.u32 %v1102
        %v1105 = vmul.u32 %v1098, %v1089
        %v1106 = vadd.s32 %v1101, %v1103
        %vm1107 = vc.u32 %v1101, %v1103
        %v1108 = vadd.s32 %v1104, 1
        %v1109 = vsel %vm1107, %v1108, %v1104
        %v1110 = vadd.s32 %v1105, %v1109
        %v1111 = vadd.s32 %v1110, 536870912
        %v1112 = vshrl.u32 %v1111, 30
        %v1113 = vshll.u32 %v1112, 30
        %v1114 = vsub.s32 %v1110, %v1113
        %vm1115 = vcmp.lt.s32.totalorder %v1114, 0
        %v1116 = vsub.s32 0, %v1114
        %v1117 = vsel %vm1115, %v1116, %v1114
        %v1118 = vclz %v1117
        %v1119 = vsub.s32 %v1118, 2
        %vm1120 = vcmp.gt.s32.totalorder 0, %v1119
        %v1121 = vsel %vm1120, 0, %v1119
        %v1122 = vsub.s32 32, %v1121
        %v1123 = vshll.u32 %v1114, %v1121
        %v1124 = vshrl.u32 %v1106, %v1122
        %v1125 = vor.u32 %v1123, %v1124
        %v1126 = vsub.s32 4294967266, %v1121
        %v1127 = vadd.s32 %v1126, 127
        %v1128 = vshll.u32 %v1127, 23
        %v1129 = vor.u32 4788187, %v1128
        %v1130 = vand.u32 2147483647, %v1129
        %v1132 = vcvt.s32.f32 %v1125
        %v1133 = vmul.f32 %v1132, %v1130
        %v1134 = vxor.u32 %v1133, 2147483648
        %v1135 = vsel %vm1052, %v1134, %v1133
        %v1136 = vsub.s32 4, %v1112
        %v1137 = vsel %vm1052, %v1136, %v1112
        %v1138 = vsel %vm1051, %v325, %v1135
        %v1139 = vsel %vm1051, 0, %v1137
        %v1140 = vcosq.f32.pop %v1138
        %v1141 = vsinq.f32.pop %v1138
        %vm1142 = vweird.f32 %v325
        %v1143 = vadd.s32 %v1139, 3
        %v1144 = vand.u32 %v1143, 3
        %vm1145 = vcmp.lt.s32.totalorder %v1144, 2
        %vm1146 = vcmp.eq.s32.totalorder %v1144, 0
        %v1147 = vxor.u32 %v1141, 2147483648
        %v1148 = vsel %vm1146, %v1140, %v1147
        %vm1149 = vcmp.eq.s32.totalorder %v1144, 2
        %v1150 = vxor.u32 %v1140, 2147483648
        %v1151 = vsel %vm1149, %v1150, %v1141
        %v1152 = vsel %vm1145, %v1148, %v1151
        %v1153 = vsel %vm1142, nan, %v1152
        %v1154 = vld [vmem:[%s280] sm:$0xff]
        %v1155 = vld [vmem:[%s280 + $0x8] sm:$0xff]
        %v1156 = vld [vmem:[%s280 + $0x10] sm:$0xff]
        %v1157 = vld [vmem:[%s280 + $0x18] sm:$0xff]
        %v1158 = vld [vmem:[#allocation9] sm:$0xff]
        %v1159 = vld [vmem:[#allocation9 + $0x8] sm:$0xff]
        %v1160 = vld [vmem:[#allocation9 + $0x10] sm:$0xff]
        %v1161 = vld [vmem:[#allocation9 + $0x18] sm:$0xff]
        %v1162 = vmul.f32 %v1154, %v1158
        %v1163 = vmul.f32 %v1155, %v1159
        %v1164 = vmul.f32 %v1156, %v1160
        %v1165 = vmul.f32 %v1157, %v1161
        %v1168 = vrot.slane %v634, 7
        %v1169 = vrot.slane %v737, 7
        %vm1174 = vcmask 1040384
        %v1175 = vrot.slane %v428, 7
        %v1176 = vrot.slane %v531, 7
        %v1177 = vsel %vm1174, %v1175, %v1168
        %v1178 = vsel %vm1174, %v1176, %v1169
        %v1183 = vsel %vm1174, %v1168, %v1175
        %v1184 = vsel %vm1174, %v1169, %v1176
        %vm1185 = vcmask 1046528
        %v1186 = vrot.slane %v428, 1
        %v1187 = vrot.slane %v634, 1
        %v1188 = vsel %vm1185, %v1186, %v1187
        %v1189 = vrot.slane %v531, 1
        %v1190 = vrot.slane %v737, 1
        %v1191 = vsel %vm1185, %v1189, %v1190
        %v1198 = vsel %vm1185, %v1187, %v1186
        %v1199 = vsel %vm1185, %v1190, %v1189
        %v1202 = vrot.slane %v1049, 7
        %v1203 = vrot.slane %v1153, 7
        %v1208 = vrot.slane %v841, 7
        %v1209 = vrot.slane %v945, 7
        %v1210 = vsel %vm1174, %v1208, %v1202
        %v1211 = vsel %vm1174, %v1209, %v1203
        %v1216 = vsel %vm1174, %v1202, %v1208
        %v1217 = vsel %vm1174, %v1203, %v1209
        %v1218 = vrot.slane %v841, 1
        %v1219 = vrot.slane %v1049, 1
        %v1220 = vsel %vm1185, %v1218, %v1219
        %v1221 = vrot.slane %v945, 1
        %v1222 = vrot.slane %v1153, 1
        %v1223 = vsel %vm1185, %v1221, %v1222
        %v1230 = vsel %vm1185, %v1219, %v1218
        %v1231 = vsel %vm1185, %v1222, %v1221
        %1233 = vrot.lane.b32.xlu0 %v1184, 17
        %v1234 = vpop.permute.xlu0 %1233
        %1235 = vrot.lane.b32.xlu0 %v1178, 17
        %v1236 = vpop.permute.xlu0 %1235
        %1240 = vrot.lane.b32.xlu0 %v1183, 17
        %v1241 = vpop.permute.xlu0 %1240
        %1242 = vrot.lane.b32.xlu0 %v1177, 17
        %v1243 = vpop.permute.xlu0 %1242
        %vm1244 = vcmask 138240
        %v1245 = vsel %vm1244, %v1241, %v1234
        %v1246 = vsel %vm1244, %v1243, %v1236
        %v1251 = vsel %vm1244, %v1234, %v1241
        %v1252 = vsel %vm1244, %v1236, %v1243
        %1254 = vrot.lane.b32.xlu0 %v1217, 17
        %v1255 = vpop.permute.xlu0 %1254
        %1256 = vrot.lane.b32.xlu0 %v1211, 17
        %v1257 = vpop.permute.xlu0 %1256
        %1261 = vrot.lane.b32.xlu0 %v1216, 17
        %v1262 = vpop.permute.xlu0 %1261
        %1263 = vrot.lane.b32.xlu0 %v1210, 17
        %v1264 = vpop.permute.xlu0 %1263
        %v1265 = vsel %vm1244, %v1262, %v1255
        %v1266 = vsel %vm1244, %v1264, %v1257
        %v1271 = vsel %vm1244, %v1255, %v1262
        %v1272 = vsel %vm1244, %v1257, %v1264
        %v1273 = vmul.f32 %v1271, %v428
        %v1274 = vmul.f32 %v1265, %v531
        %v1275 = vmul.f32 %v1272, %v634
        %v1276 = vmul.f32 %v1266, %v737
        %v1277 = vmul.f32 %v1251, %v841
        %v1278 = vmul.f32 %v1245, %v945
        %v1279 = vmul.f32 %v1252, %v1049
        %v1280 = vmul.f32 %v1246, %v1153
        %v1281 = vsub.f32 %v1273, %v1277
        %v1282 = vsub.f32 %v1274, %v1278
        %v1283 = vsub.f32 %v1275, %v1279
        %v1284 = vsub.f32 %v1276, %v1280
        %1285 = vrot.lane.b32.xlu0 %v1184, 16
        %v1286 = vpop.permute.xlu0 %1285
        %1287 = vrot.lane.b32.xlu0 %v1178, 16
        %v1288 = vpop.permute.xlu0 %1287
        %1291 = vrot.lane.b32.xlu0 %v1183, 16
        %v1292 = vpop.permute.xlu0 %1291
        %1293 = vrot.lane.b32.xlu0 %v1177, 16
        %v1294 = vpop.permute.xlu0 %1293
        %vm1295 = vcmask 130048
        %v1296 = vsel %vm1295, %v1292, %v1286
        %v1297 = vsel %vm1295, %v1294, %v1288
        %v1302 = vsel %vm1295, %v1286, %v1292
        %v1303 = vsel %vm1295, %v1288, %v1294
        %1304 = vrot.lane.b32.xlu0 %v1217, 16
        %v1305 = vpop.permute.xlu0 %1304
        %1306 = vrot.lane.b32.xlu0 %v1211, 16
        %v1307 = vpop.permute.xlu0 %1306
        %1310 = vrot.lane.b32.xlu0 %v1216, 16
        %v1311 = vpop.permute.xlu0 %1310
        %1312 = vrot.lane.b32.xlu0 %v1210, 16
        %v1313 = vpop.permute.xlu0 %1312
        %v1314 = vsel %vm1295, %v1311, %v1305
        %v1315 = vsel %vm1295, %v1313, %v1307
        %v1320 = vsel %vm1295, %v1305, %v1311
        %v1321 = vsel %vm1295, %v1307, %v1313
        %v1322 = vmul.f32 %v1320, %v428
        %v1323 = vmul.f32 %v1314, %v531
        %v1324 = vmul.f32 %v1321, %v634
        %v1325 = vmul.f32 %v1315, %v737
        %v1326 = vmul.f32 %v1302, %v841
        %v1327 = vmul.f32 %v1296, %v945
        %v1328 = vmul.f32 %v1303, %v1049
        %v1329 = vmul.f32 %v1297, %v1153
        %v1330 = vsub.f32 %v1322, %v1326
        %v1331 = vsub.f32 %v1323, %v1327
        %v1332 = vsub.f32 %v1324, %v1328
        %v1333 = vsub.f32 %v1325, %v1329
        %1334 = vrot.lane.b32.xlu0 %v1184, 15
        %v1335 = vpop.permute.xlu0 %1334
        %1336 = vrot.lane.b32.xlu0 %v1178, 15
        %v1337 = vpop.permute.xlu0 %1336
        %1340 = vrot.lane.b32.xlu0 %v1183, 15
        %v1341 = vpop.permute.xlu0 %1340
        %1342 = vrot.lane.b32.xlu0 %v1177, 15
        %v1343 = vpop.permute.xlu0 %1342
        %vm1344 = vcmask 121856
        %v1345 = vsel %vm1344, %v1341, %v1335
        %v1346 = vsel %vm1344, %v1343, %v1337
        %v1351 = vsel %vm1344, %v1335, %v1341
        %v1352 = vsel %vm1344, %v1337, %v1343
        %1353 = vrot.lane.b32.xlu0 %v1217, 15
        %v1354 = vpop.permute.xlu0 %1353
        %1355 = vrot.lane.b32.xlu0 %v1211, 15
        %v1356 = vpop.permute.xlu0 %1355
        %1359 = vrot.lane.b32.xlu0 %v1216, 15
        %v1360 = vpop.permute.xlu0 %1359
        %1361 = vrot.lane.b32.xlu0 %v1210, 15
        %v1362 = vpop.permute.xlu0 %1361
        %v1363 = vsel %vm1344, %v1360, %v1354
        %v1364 = vsel %vm1344, %v1362, %v1356
        %v1369 = vsel %vm1344, %v1354, %v1360
        %v1370 = vsel %vm1344, %v1356, %v1362
        %v1371 = vmul.f32 %v1369, %v428
        %v1372 = vmul.f32 %v1363, %v531
        %v1373 = vmul.f32 %v1370, %v634
        %v1374 = vmul.f32 %v1364, %v737
        %v1375 = vmul.f32 %v1351, %v841
        %v1376 = vmul.f32 %v1345, %v945
        %v1377 = vmul.f32 %v1352, %v1049
        %v1378 = vmul.f32 %v1346, %v1153
        %v1379 = vsub.f32 %v1371, %v1375
        %v1380 = vsub.f32 %v1372, %v1376
        %v1381 = vsub.f32 %v1373, %v1377
        %v1382 = vsub.f32 %v1374, %v1378
        %1383 = vrot.lane.b32.xlu0 %v1184, 1
        %v1384 = vpop.permute.xlu0 %1383
        %1385 = vrot.lane.b32.xlu0 %v1178, 1
        %v1386 = vpop.permute.xlu0 %1385
        %1389 = vrot.lane.b32.xlu0 %v1183, 1
        %v1390 = vpop.permute.xlu0 %1389
        %1391 = vrot.lane.b32.xlu0 %v1177, 1
        %v1392 = vpop.permute.xlu0 %1391
        %vm1393 = vcmask 7168
        %v1394 = vsel %vm1393, %v1390, %v1384
        %v1395 = vsel %vm1393, %v1392, %v1386
        %v1400 = vsel %vm1393, %v1384, %v1390
        %v1401 = vsel %vm1393, %v1386, %v1392
        %1402 = vrot.lane.b32.xlu0 %v1217, 1
        %v1403 = vpop.permute.xlu0 %1402
        %1404 = vrot.lane.b32.xlu0 %v1211, 1
        %v1405 = vpop.permute.xlu0 %1404
        %1408 = vrot.lane.b32.xlu0 %v1216, 1
        %v1409 = vpop.permute.xlu0 %1408
        %1410 = vrot.lane.b32.xlu0 %v1210, 1
        %v1411 = vpop.permute.xlu0 %1410
        %v1412 = vsel %vm1393, %v1409, %v1403
        %v1413 = vsel %vm1393, %v1411, %v1405
        %v1418 = vsel %vm1393, %v1403, %v1409
        %v1419 = vsel %vm1393, %v1405, %v1411
        %v1420 = vmul.f32 %v1418, %v428
        %v1421 = vmul.f32 %v1412, %v531
        %v1422 = vmul.f32 %v1419, %v634
        %v1423 = vmul.f32 %v1413, %v737
        %v1424 = vmul.f32 %v1400, %v841
        %v1425 = vmul.f32 %v1394, %v945
        %v1426 = vmul.f32 %v1401, %v1049
        %v1427 = vmul.f32 %v1395, %v1153
        %v1428 = vsub.f32 %v1420, %v1424
        %v1429 = vsub.f32 %v1421, %v1425
        %v1430 = vsub.f32 %v1422, %v1426
        %v1431 = vsub.f32 %v1423, %v1427
        %v1432 = vmul.f32 %v1216, %v428
        %v1433 = vmul.f32 %v1217, %v531
        %v1434 = vmul.f32 %v1210, %v634
        %v1435 = vmul.f32 %v1211, %v737
        %v1436 = vmul.f32 %v1183, %v841
        %v1437 = vmul.f32 %v1184, %v945
        %v1438 = vmul.f32 %v1177, %v1049
        %v1439 = vmul.f32 %v1178, %v1153
        %v1440 = vsub.f32 %v1432, %v1436
        %v1441 = vsub.f32 %v1433, %v1437
        %v1442 = vsub.f32 %v1434, %v1438
        %v1443 = vsub.f32 %v1435, %v1439
        %1444 = vrot.lane.b32.xlu0 %v1183, 127
        %v1445 = vpop.permute.xlu0 %1444
        %1446 = vrot.lane.b32.xlu0 %v1184, 127
        %v1447 = vpop.permute.xlu0 %1446
        %1448 = vrot.lane.b32.xlu0 %v1177, 127
        %v1449 = vpop.permute.xlu0 %1448
        %1450 = vrot.lane.b32.xlu0 %v1178, 127
        %v1451 = vpop.permute.xlu0 %1450
        %vm1452 = vcmask 1039360
        %v1453 = vsel %vm1452, %v1445, %v1447
        %v1454 = vsel %vm1452, %v1449, %v1451
        %v1461 = vsel %vm1452, %v1447, %v1445
        %v1462 = vsel %vm1452, %v1451, %v1449
        %1463 = vrot.lane.b32.xlu0 %v1216, 127
        %v1464 = vpop.permute.xlu0 %1463
        %1465 = vrot.lane.b32.xlu0 %v1217, 127
        %v1466 = vpop.permute.xlu0 %1465
        %1467 = vrot.lane.b32.xlu0 %v1210, 127
        %v1468 = vpop.permute.xlu0 %1467
        %1469 = vrot.lane.b32.xlu0 %v1211, 127
        %v1470 = vpop.permute.xlu0 %1469
        %v1471 = vsel %vm1452, %v1464, %v1466
        %v1472 = vsel %vm1452, %v1468, %v1470
        %v1479 = vsel %vm1452, %v1466, %v1464
        %v1480 = vsel %vm1452, %v1470, %v1468
        %v1481 = vmul.f32 %v1471, %v428
        %v1482 = vmul.f32 %v1479, %v531
        %v1483 = vmul.f32 %v1472, %v634
        %v1484 = vmul.f32 %v1480, %v737
        %v1485 = vmul.f32 %v1453, %v841
        %v1486 = vmul.f32 %v1461, %v945
        %v1487 = vmul.f32 %v1454, %v1049
        %v1488 = vmul.f32 %v1462, %v1153
        %v1489 = vsub.f32 %v1481, %v1485
        %v1490 = vsub.f32 %v1482, %v1486
        %v1491 = vsub.f32 %v1483, %v1487
        %v1492 = vsub.f32 %v1484, %v1488
        %1493 = vrot.lane.b32.xlu0 %v1183, 113
        %v1494 = vpop.permute.xlu0 %1493
        %1495 = vrot.lane.b32.xlu0 %v1184, 113
        %v1496 = vpop.permute.xlu0 %1495
        %1497 = vrot.lane.b32.xlu0 %v1177, 113
        %v1498 = vpop.permute.xlu0 %1497
        %1499 = vrot.lane.b32.xlu0 %v1178, 113
        %v1500 = vpop.permute.xlu0 %1499
        %vm1501 = vcmask 924672
        %v1502 = vsel %vm1501, %v1494, %v1496
        %v1503 = vsel %vm1501, %v1498, %v1500
        %v1510 = vsel %vm1501, %v1496, %v1494
        %v1511 = vsel %vm1501, %v1500, %v1498
        %1512 = vrot.lane.b32.xlu0 %v1216, 113
        %v1513 = vpop.permute.xlu0 %1512
        %1514 = vrot.lane.b32.xlu0 %v1217, 113
        %v1515 = vpop.permute.xlu0 %1514
        %1516 = vrot.lane.b32.xlu0 %v1210, 113
        %v1517 = vpop.permute.xlu0 %1516
        %1518 = vrot.lane.b32.xlu0 %v1211, 113
        %v1519 = vpop.permute.xlu0 %1518
        %v1520 = vsel %vm1501, %v1513, %v1515
        %v1521 = vsel %vm1501, %v1517, %v1519
        %v1528 = vsel %vm1501, %v1515, %v1513
        %v1529 = vsel %vm1501, %v1519, %v1517
        %v1530 = vmul.f32 %v1520, %v428
        %v1531 = vmul.f32 %v1528, %v531
        %v1532 = vmul.f32 %v1521, %v634
        %v1533 = vmul.f32 %v1529, %v737
        %v1534 = vmul.f32 %v1502, %v841
        %v1535 = vmul.f32 %v1510, %v945
        %v1536 = vmul.f32 %v1503, %v1049
        %v1537 = vmul.f32 %v1511, %v1153
        %v1538 = vsub.f32 %v1530, %v1534
        %v1539 = vsub.f32 %v1531, %v1535
        %v1540 = vsub.f32 %v1532, %v1536
        %v1541 = vsub.f32 %v1533, %v1537
        %1542 = vrot.lane.b32.xlu0 %v1183, 112
        %v1543 = vpop.permute.xlu0 %1542
        %1544 = vrot.lane.b32.xlu0 %v1184, 112
        %v1545 = vpop.permute.xlu0 %1544
        %1546 = vrot.lane.b32.xlu0 %v1177, 112
        %v1547 = vpop.permute.xlu0 %1546
        %1548 = vrot.lane.b32.xlu0 %v1178, 112
        %v1549 = vpop.permute.xlu0 %1548
        %vm1550 = vcmask 916480
        %v1551 = vsel %vm1550, %v1543, %v1545
        %v1552 = vsel %vm1550, %v1547, %v1549
        %v1559 = vsel %vm1550, %v1545, %v1543
        %v1560 = vsel %vm1550, %v1549, %v1547
        %1561 = vrot.lane.b32.xlu0 %v1216, 112
        %v1562 = vpop.permute.xlu0 %1561
        %1563 = vrot.lane.b32.xlu0 %v1217, 112
        %v1564 = vpop.permute.xlu0 %1563
        %1565 = vrot.lane.b32.xlu0 %v1210, 112
        %v1566 = vpop.permute.xlu0 %1565
        %1567 = vrot.lane.b32.xlu0 %v1211, 112
        %v1568 = vpop.permute.xlu0 %1567
        %v1569 = vsel %vm1550, %v1562, %v1564
        %v1570 = vsel %vm1550, %v1566, %v1568
        %v1577 = vsel %vm1550, %v1564, %v1562
        %v1578 = vsel %vm1550, %v1568, %v1566
        %v1579 = vmul.f32 %v1569, %v428
        %v1580 = vmul.f32 %v1577, %v531
        %v1581 = vmul.f32 %v1570, %v634
        %v1582 = vmul.f32 %v1578, %v737
        %v1583 = vmul.f32 %v1551, %v841
        %v1584 = vmul.f32 %v1559, %v945
        %v1585 = vmul.f32 %v1552, %v1049
        %v1586 = vmul.f32 %v1560, %v1153
        %v1587 = vsub.f32 %v1579, %v1583
        %v1588 = vsub.f32 %v1580, %v1584
        %v1589 = vsub.f32 %v1581, %v1585
        %v1590 = vsub.f32 %v1582, %v1586
        %1591 = vrot.lane.b32.xlu0 %v1183, 111
        %v1592 = vpop.permute.xlu0 %1591
        %1593 = vrot.lane.b32.xlu0 %v1184, 111
        %v1594 = vpop.permute.xlu0 %1593
        %1595 = vrot.lane.b32.xlu0 %v1177, 111
        %v1596 = vpop.permute.xlu0 %1595
        %1597 = vrot.lane.b32.xlu0 %v1178, 111
        %v1598 = vpop.permute.xlu0 %1597
        %vm1599 = vcmask 908288
        %v1600 = vsel %vm1599, %v1592, %v1594
        %v1601 = vsel %vm1599, %v1596, %v1598
        %v1608 = vsel %vm1599, %v1594, %v1592
        %v1609 = vsel %vm1599, %v1598, %v1596
        %1610 = vrot.lane.b32.xlu0 %v1216, 111
        %v1611 = vpop.permute.xlu0 %1610
        %1612 = vrot.lane.b32.xlu0 %v1217, 111
        %v1613 = vpop.permute.xlu0 %1612
        %1614 = vrot.lane.b32.xlu0 %v1210, 111
        %v1615 = vpop.permute.xlu0 %1614
        %1616 = vrot.lane.b32.xlu0 %v1211, 111
        %v1617 = vpop.permute.xlu0 %1616
        %v1618 = vsel %vm1599, %v1611, %v1613
        %v1619 = vsel %vm1599, %v1615, %v1617
        %v1626 = vsel %vm1599, %v1613, %v1611
        %v1627 = vsel %vm1599, %v1617, %v1615
        %v1628 = vmul.f32 %v1618, %v428
        %v1629 = vmul.f32 %v1626, %v531
        %v1630 = vmul.f32 %v1619, %v634
        %v1631 = vmul.f32 %v1627, %v737
        %v1632 = vmul.f32 %v1600, %v841
        %v1633 = vmul.f32 %v1608, %v945
        %v1634 = vmul.f32 %v1601, %v1049
        %v1635 = vmul.f32 %v1609, %v1153
        %v1636 = vsub.f32 %v1628, %v1632
        %v1637 = vsub.f32 %v1629, %v1633
        %v1638 = vsub.f32 %v1630, %v1634
        %v1639 = vsub.f32 %v1631, %v1635
        %1640 = vrot.lane.b32.xlu0 %v531, 17
        %v1641 = vpop.permute.xlu0 %1640
        %1642 = vrot.lane.b32.xlu0 %v737, 17
        %v1643 = vpop.permute.xlu0 %1642
        %1646 = vrot.lane.b32.xlu0 %v428, 17
        %v1647 = vpop.permute.xlu0 %1646
        %1648 = vrot.lane.b32.xlu0 %v634, 17
        %v1649 = vpop.permute.xlu0 %1648
        %v1650 = vsel %vm1244, %v1647, %v1641
        %v1651 = vsel %vm1244, %v1649, %v1643
        %v1656 = vsel %vm1244, %v1641, %v1647
        %v1657 = vsel %vm1244, %v1643, %v1649
        %1658 = vrot.lane.b32.xlu0 %v945, 17
        %v1659 = vpop.permute.xlu0 %1658
        %1660 = vrot.lane.b32.xlu0 %v1153, 17
        %v1661 = vpop.permute.xlu0 %1660
        %1664 = vrot.lane.b32.xlu0 %v841, 17
        %v1665 = vpop.permute.xlu0 %1664
        %1666 = vrot.lane.b32.xlu0 %v1049, 17
        %v1667 = vpop.permute.xlu0 %1666
        %v1668 = vsel %vm1244, %v1665, %v1659
        %v1669 = vsel %vm1244, %v1667, %v1661
        %v1674 = vsel %vm1244, %v1659, %v1665
        %v1675 = vsel %vm1244, %v1661, %v1667
        %v1676 = vmul.f32 %v1674, %v428
        %v1677 = vmul.f32 %v1668, %v531
        %v1678 = vmul.f32 %v1675, %v634
        %v1679 = vmul.f32 %v1669, %v737
        %v1680 = vmul.f32 %v1656, %v841
        %v1681 = vmul.f32 %v1650, %v945
        %v1682 = vmul.f32 %v1657, %v1049
        %v1683 = vmul.f32 %v1651, %v1153
        %v1684 = vsub.f32 %v1676, %v1680
        %v1685 = vsub.f32 %v1677, %v1681
        %v1686 = vsub.f32 %v1678, %v1682
        %v1687 = vsub.f32 %v1679, %v1683
        %1688 = vrot.lane.b32.xlu0 %v531, 16
        %v1689 = vpop.permute.xlu0 %1688
        %1690 = vrot.lane.b32.xlu0 %v737, 16
        %v1691 = vpop.permute.xlu0 %1690
        %1694 = vrot.lane.b32.xlu0 %v428, 16
        %v1695 = vpop.permute.xlu0 %1694
        %1696 = vrot.lane.b32.xlu0 %v634, 16
        %v1697 = vpop.permute.xlu0 %1696
        %v1698 = vsel %vm1295, %v1695, %v1689
        %v1699 = vsel %vm1295, %v1697, %v1691
        %v1704 = vsel %vm1295, %v1689, %v1695
        %v1705 = vsel %vm1295, %v1691, %v1697
        %1706 = vrot.lane.b32.xlu0 %v945, 16
        %v1707 = vpop.permute.xlu0 %1706
        %1708 = vrot.lane.b32.xlu0 %v1153, 16
        %v1709 = vpop.permute.xlu0 %1708
        %1712 = vrot.lane.b32.xlu0 %v841, 16
        %v1713 = vpop.permute.xlu0 %1712
        %1714 = vrot.lane.b32.xlu0 %v1049, 16
        %v1715 = vpop.permute.xlu0 %1714
        %v1716 = vsel %vm1295, %v1713, %v1707
        %v1717 = vsel %vm1295, %v1715, %v1709
        %v1722 = vsel %vm1295, %v1707, %v1713
        %v1723 = vsel %vm1295, %v1709, %v1715
        %v1724 = vmul.f32 %v1722, %v428
        %v1725 = vmul.f32 %v1716, %v531
        %v1726 = vmul.f32 %v1723, %v634
        %v1727 = vmul.f32 %v1717, %v737
        %v1728 = vmul.f32 %v1704, %v841
        %v1729 = vmul.f32 %v1698, %v945
        %v1730 = vmul.f32 %v1705, %v1049
        %v1731 = vmul.f32 %v1699, %v1153
        %v1732 = vsub.f32 %v1724, %v1728
        %v1733 = vsub.f32 %v1725, %v1729
        %v1734 = vsub.f32 %v1726, %v1730
        %v1735 = vsub.f32 %v1727, %v1731
        %1736 = vrot.lane.b32.xlu0 %v531, 15
        %v1737 = vpop.permute.xlu0 %1736
        %1738 = vrot.lane.b32.xlu0 %v737, 15
        %v1739 = vpop.permute.xlu0 %1738
        %1742 = vrot.lane.b32.xlu0 %v428, 15
        %v1743 = vpop.permute.xlu0 %1742
        %1744 = vrot.lane.b32.xlu0 %v634, 15
        %v1745 = vpop.permute.xlu0 %1744
        %v1746 = vsel %vm1344, %v1743, %v1737
        %v1747 = vsel %vm1344, %v1745, %v1739
        %v1752 = vsel %vm1344, %v1737, %v1743
        %v1753 = vsel %vm1344, %v1739, %v1745
        %1754 = vrot.lane.b32.xlu0 %v945, 15
        %v1755 = vpop.permute.xlu0 %1754
        %1756 = vrot.lane.b32.xlu0 %v1153, 15
        %v1757 = vpop.permute.xlu0 %1756
        %1760 = vrot.lane.b32.xlu0 %v841, 15
        %v1761 = vpop.permute.xlu0 %1760
        %1762 = vrot.lane.b32.xlu0 %v1049, 15
        %v1763 = vpop.permute.xlu0 %1762
        %v1764 = vsel %vm1344, %v1761, %v1755
        %v1765 = vsel %vm1344, %v1763, %v1757
        %v1770 = vsel %vm1344, %v1755, %v1761
        %v1771 = vsel %vm1344, %v1757, %v1763
        %v1772 = vmul.f32 %v1770, %v428
        %v1773 = vmul.f32 %v1764, %v531
        %v1774 = vmul.f32 %v1771, %v634
        %v1775 = vmul.f32 %v1765, %v737
        %v1776 = vmul.f32 %v1752, %v841
        %v1777 = vmul.f32 %v1746, %v945
        %v1778 = vmul.f32 %v1753, %v1049
        %v1779 = vmul.f32 %v1747, %v1153
        %v1780 = vsub.f32 %v1772, %v1776
        %v1781 = vsub.f32 %v1773, %v1777
        %v1782 = vsub.f32 %v1774, %v1778
        %v1783 = vsub.f32 %v1775, %v1779
        %1784 = vrot.lane.b32.xlu0 %v531, 1
        %v1785 = vpop.permute.xlu0 %1784
        %1786 = vrot.lane.b32.xlu0 %v737, 1
        %v1787 = vpop.permute.xlu0 %1786
        %1790 = vrot.lane.b32.xlu0 %v428, 1
        %v1791 = vpop.permute.xlu0 %1790
        %1792 = vrot.lane.b32.xlu0 %v634, 1
        %v1793 = vpop.permute.xlu0 %1792
        %v1794 = vsel %vm1393, %v1791, %v1785
        %v1795 = vsel %vm1393, %v1793, %v1787
        %v1800 = vsel %vm1393, %v1785, %v1791
        %v1801 = vsel %vm1393, %v1787, %v1793
        %1802 = vrot.lane.b32.xlu0 %v945, 1
        %v1803 = vpop.permute.xlu0 %1802
        %1804 = vrot.lane.b32.xlu0 %v1153, 1
        %v1805 = vpop.permute.xlu0 %1804
        %1808 = vrot.lane.b32.xlu0 %v841, 1
        %v1809 = vpop.permute.xlu0 %1808
        %1810 = vrot.lane.b32.xlu0 %v1049, 1
        %v1811 = vpop.permute.xlu0 %1810
        %v1812 = vsel %vm1393, %v1809, %v1803
        %v1813 = vsel %vm1393, %v1811, %v1805
        %v1818 = vsel %vm1393, %v1803, %v1809
        %v1819 = vsel %vm1393, %v1805, %v1811
        %v1820 = vmul.f32 %v1818, %v428
        %v1821 = vmul.f32 %v1812, %v531
        %v1822 = vmul.f32 %v1819, %v634
        %v1823 = vmul.f32 %v1813, %v737
        %v1824 = vmul.f32 %v1800, %v841
        %v1825 = vmul.f32 %v1794, %v945
        %v1826 = vmul.f32 %v1801, %v1049
        %v1827 = vmul.f32 %v1795, %v1153
        %v1828 = vsub.f32 %v1820, %v1824
        %v1829 = vsub.f32 %v1821, %v1825
        %v1830 = vsub.f32 %v1822, %v1826
        %v1831 = vsub.f32 %v1823, %v1827
        %v1832 = vmul.f32 %v841, %v428
        %v1833 = vmul.f32 %v945, %v531
        %v1834 = vmul.f32 %v1049, %v634
        %v1835 = vmul.f32 %v1153, %v737
        %v1836 = vsub.f32 %v1832, %v1832
        %v1837 = vsub.f32 %v1833, %v1833
        %v1838 = vsub.f32 %v1834, %v1834
        %v1839 = vsub.f32 %v1835, %v1835
        %1840 = vrot.lane.b32.xlu0 %v428, 127
        %v1841 = vpop.permute.xlu0 %1840
        %1842 = vrot.lane.b32.xlu0 %v531, 127
        %v1843 = vpop.permute.xlu0 %1842
        %1844 = vrot.lane.b32.xlu0 %v634, 127
        %v1845 = vpop.permute.xlu0 %1844
        %1846 = vrot.lane.b32.xlu0 %v737, 127
        %v1847 = vpop.permute.xlu0 %1846
        %v1848 = vsel %vm1452, %v1841, %v1843
        %v1849 = vsel %vm1452, %v1845, %v1847
        %v1856 = vsel %vm1452, %v1843, %v1841
        %v1857 = vsel %vm1452, %v1847, %v1845
        %1858 = vrot.lane.b32.xlu0 %v841, 127
        %v1859 = vpop.permute.xlu0 %1858
        %1860 = vrot.lane.b32.xlu0 %v945, 127
        %v1861 = vpop.permute.xlu0 %1860
        %1862 = vrot.lane.b32.xlu0 %v1049, 127
        %v1863 = vpop.permute.xlu0 %1862
        %1864 = vrot.lane.b32.xlu0 %v1153, 127
        %v1865 = vpop.permute.xlu0 %1864
        %v1866 = vsel %vm1452, %v1859, %v1861
        %v1867 = vsel %vm1452, %v1863, %v1865
        %v1874 = vsel %vm1452, %v1861, %v1859
        %v1875 = vsel %vm1452, %v1865, %v1863
        %v1876 = vmul.f32 %v1866, %v428
        %v1877 = vmul.f32 %v1874, %v531
        %v1878 = vmul.f32 %v1867, %v634
        %v1879 = vmul.f32 %v1875, %v737
        %v1880 = vmul.f32 %v1848, %v841
        %v1881 = vmul.f32 %v1856, %v945
        %v1882 = vmul.f32 %v1849, %v1049
        %v1883 = vmul.f32 %v1857, %v1153
        %v1884 = vsub.f32 %v1876, %v1880
        %v1885 = vsub.f32 %v1877, %v1881
        %v1886 = vsub.f32 %v1878, %v1882
        %v1887 = vsub.f32 %v1879, %v1883
        %1888 = vrot.lane.b32.xlu0 %v428, 113
        %v1889 = vpop.permute.xlu0 %1888
        %1890 = vrot.lane.b32.xlu0 %v531, 113
        %v1891 = vpop.permute.xlu0 %1890
        %1892 = vrot.lane.b32.xlu0 %v634, 113
        %v1893 = vpop.permute.xlu0 %1892
        %1894 = vrot.lane.b32.xlu0 %v737, 113
        %v1895 = vpop.permute.xlu0 %1894
        %v1896 = vsel %vm1501, %v1889, %v1891
        %v1897 = vsel %vm1501, %v1893, %v1895
        %v1904 = vsel %vm1501, %v1891, %v1889
        %v1905 = vsel %vm1501, %v1895, %v1893
        %1906 = vrot.lane.b32.xlu0 %v841, 113
        %v1907 = vpop.permute.xlu0 %1906
        %1908 = vrot.lane.b32.xlu0 %v945, 113
        %v1909 = vpop.permute.xlu0 %1908
        %1910 = vrot.lane.b32.xlu0 %v1049, 113
        %v1911 = vpop.permute.xlu0 %1910
        %1912 = vrot.lane.b32.xlu0 %v1153, 113
        %v1913 = vpop.permute.xlu0 %1912
        %v1914 = vsel %vm1501, %v1907, %v1909
        %v1915 = vsel %vm1501, %v1911, %v1913
        %v1922 = vsel %vm1501, %v1909, %v1907
        %v1923 = vsel %vm1501, %v1913, %v1911
        %v1924 = vmul.f32 %v1914, %v428
        %v1925 = vmul.f32 %v1922, %v531
        %v1926 = vmul.f32 %v1915, %v634
        %v1927 = vmul.f32 %v1923, %v737
        %v1928 = vmul.f32 %v1896, %v841
        %v1929 = vmul.f32 %v1904, %v945
        %v1930 = vmul.f32 %v1897, %v1049
        %v1931 = vmul.f32 %v1905, %v1153
        %v1932 = vsub.f32 %v1924, %v1928
        %v1933 = vsub.f32 %v1925, %v1929
        %v1934 = vsub.f32 %v1926, %v1930
        %v1935 = vsub.f32 %v1927, %v1931
        %1936 = vrot.lane.b32.xlu0 %v428, 112
        %v1937 = vpop.permute.xlu0 %1936
        %1938 = vrot.lane.b32.xlu0 %v531, 112
        %v1939 = vpop.permute.xlu0 %1938
        %1940 = vrot.lane.b32.xlu0 %v634, 112
        %v1941 = vpop.permute.xlu0 %1940
        %1942 = vrot.lane.b32.xlu0 %v737, 112
        %v1943 = vpop.permute.xlu0 %1942
        %v1944 = vsel %vm1550, %v1937, %v1939
        %v1945 = vsel %vm1550, %v1941, %v1943
        %v1952 = vsel %vm1550, %v1939, %v1937
        %v1953 = vsel %vm1550, %v1943, %v1941
        %1954 = vrot.lane.b32.xlu0 %v841, 112
        %v1955 = vpop.permute.xlu0 %1954
        %1956 = vrot.lane.b32.xlu0 %v945, 112
        %v1957 = vpop.permute.xlu0 %1956
        %1958 = vrot.lane.b32.xlu0 %v1049, 112
        %v1959 = vpop.permute.xlu0 %1958
        %1960 = vrot.lane.b32.xlu0 %v1153, 112
        %v1961 = vpop.permute.xlu0 %1960
        %v1962 = vsel %vm1550, %v1955, %v1957
        %v1963 = vsel %vm1550, %v1959, %v1961
        %v1970 = vsel %vm1550, %v1957, %v1955
        %v1971 = vsel %vm1550, %v1961, %v1959
        %v1972 = vmul.f32 %v1962, %v428
        %v1973 = vmul.f32 %v1970, %v531
        %v1974 = vmul.f32 %v1963, %v634
        %v1975 = vmul.f32 %v1971, %v737
        %v1976 = vmul.f32 %v1944, %v841
        %v1977 = vmul.f32 %v1952, %v945
        %v1978 = vmul.f32 %v1945, %v1049
        %v1979 = vmul.f32 %v1953, %v1153
        %v1980 = vsub.f32 %v1972, %v1976
        %v1981 = vsub.f32 %v1973, %v1977
        %v1982 = vsub.f32 %v1974, %v1978
        %v1983 = vsub.f32 %v1975, %v1979
        %1984 = vrot.lane.b32.xlu0 %v428, 111
        %v1985 = vpop.permute.xlu0 %1984
        %1986 = vrot.lane.b32.xlu0 %v531, 111
        %v1987 = vpop.permute.xlu0 %1986
        %1988 = vrot.lane.b32.xlu0 %v634, 111
        %v1989 = vpop.permute.xlu0 %1988
        %1990 = vrot.lane.b32.xlu0 %v737, 111
        %v1991 = vpop.permute.xlu0 %1990
        %v1992 = vsel %vm1599, %v1985, %v1987
        %v1993 = vsel %vm1599, %v1989, %v1991
        %v2000 = vsel %vm1599, %v1987, %v1985
        %v2001 = vsel %vm1599, %v1991, %v1989
        %2002 = vrot.lane.b32.xlu0 %v841, 111
        %v2003 = vpop.permute.xlu0 %2002
        %2004 = vrot.lane.b32.xlu0 %v945, 111
        %v2005 = vpop.permute.xlu0 %2004
        %2006 = vrot.lane.b32.xlu0 %v1049, 111
        %v2007 = vpop.permute.xlu0 %2006
        %2008 = vrot.lane.b32.xlu0 %v1153, 111
        %v2009 = vpop.permute.xlu0 %2008
        %v2010 = vsel %vm1599, %v2003, %v2005
        %v2011 = vsel %vm1599, %v2007, %v2009
        %v2018 = vsel %vm1599, %v2005, %v2003
        %v2019 = vsel %vm1599, %v2009, %v2007
        %v2020 = vmul.f32 %v2010, %v428
        %v2021 = vmul.f32 %v2018, %v531
        %v2022 = vmul.f32 %v2011, %v634
        %v2023 = vmul.f32 %v2019, %v737
        %v2024 = vmul.f32 %v1992, %v841
        %v2025 = vmul.f32 %v2000, %v945
        %v2026 = vmul.f32 %v1993, %v1049
        %v2027 = vmul.f32 %v2001, %v1153
        %v2028 = vsub.f32 %v2020, %v2024
        %v2029 = vsub.f32 %v2021, %v2025
        %v2030 = vsub.f32 %v2022, %v2026
        %v2031 = vsub.f32 %v2023, %v2027
        %2033 = vrot.lane.b32.xlu0 %v1191, 17
        %v2034 = vpop.permute.xlu0 %2033
        %2035 = vrot.lane.b32.xlu0 %v1199, 17
        %v2036 = vpop.permute.xlu0 %2035
        %2040 = vrot.lane.b32.xlu0 %v1188, 17
        %v2041 = vpop.permute.xlu0 %2040
        %2042 = vrot.lane.b32.xlu0 %v1198, 17
        %v2043 = vpop.permute.xlu0 %2042
        %v2044 = vsel %vm1244, %v2041, %v2034
        %v2045 = vsel %vm1244, %v2043, %v2036
        %v2050 = vsel %vm1244, %v2034, %v2041
        %v2051 = vsel %vm1244, %v2036, %v2043
        %2053 = vrot.lane.b32.xlu0 %v1223, 17
        %v2054 = vpop.permute.xlu0 %2053
        %2055 = vrot.lane.b32.xlu0 %v1231, 17
        %v2056 = vpop.permute.xlu0 %2055
        %2060 = vrot.lane.b32.xlu0 %v1220, 17
        %v2061 = vpop.permute.xlu0 %2060
        %2062 = vrot.lane.b32.xlu0 %v1230, 17
        %v2063 = vpop.permute.xlu0 %2062
        %v2064 = vsel %vm1244, %v2061, %v2054
        %v2065 = vsel %vm1244, %v2063, %v2056
        %v2070 = vsel %vm1244, %v2054, %v2061
        %v2071 = vsel %vm1244, %v2056, %v2063
        %v2072 = vmul.f32 %v2070, %v428
        %v2073 = vmul.f32 %v2064, %v531
        %v2074 = vmul.f32 %v2071, %v634
        %v2075 = vmul.f32 %v2065, %v737
        %v2076 = vmul.f32 %v2050, %v841
        %v2077 = vmul.f32 %v2044, %v945
        %v2078 = vmul.f32 %v2051, %v1049
        %v2079 = vmul.f32 %v2045, %v1153
        %v2080 = vsub.f32 %v2072, %v2076
        %v2081 = vsub.f32 %v2073, %v2077
        %v2082 = vsub.f32 %v2074, %v2078
        %v2083 = vsub.f32 %v2075, %v2079
        %2084 = vrot.lane.b32.xlu0 %v1191, 16
        %v2085 = vpop.permute.xlu0 %2084
        %2086 = vrot.lane.b32.xlu0 %v1199, 16
        %v2087 = vpop.permute.xlu0 %2086
        %2090 = vrot.lane.b32.xlu0 %v1188, 16
        %v2091 = vpop.permute.xlu0 %2090
        %2092 = vrot.lane.b32.xlu0 %v1198, 16
        %v2093 = vpop.permute.xlu0 %2092
        %v2094 = vsel %vm1295, %v2091, %v2085
        %v2095 = vsel %vm1295, %v2093, %v2087
        %v2100 = vsel %vm1295, %v2085, %v2091
        %v2101 = vsel %vm1295, %v2087, %v2093
        %2102 = vrot.lane.b32.xlu0 %v1223, 16
        %v2103 = vpop.permute.xlu0 %2102
        %2104 = vrot.lane.b32.xlu0 %v1231, 16
        %v2105 = vpop.permute.xlu0 %2104
        %2108 = vrot.lane.b32.xlu0 %v1220, 16
        %v2109 = vpop.permute.xlu0 %2108
        %2110 = vrot.lane.b32.xlu0 %v1230, 16
        %v2111 = vpop.permute.xlu0 %2110
        %v2112 = vsel %vm1295, %v2109, %v2103
        %v2113 = vsel %vm1295, %v2111, %v2105
        %v2118 = vsel %vm1295, %v2103, %v2109
        %v2119 = vsel %vm1295, %v2105, %v2111
        %v2120 = vmul.f32 %v2118, %v428
        %v2121 = vmul.f32 %v2112, %v531
        %v2122 = vmul.f32 %v2119, %v634
        %v2123 = vmul.f32 %v2113, %v737
        %v2124 = vmul.f32 %v2100, %v841
        %v2125 = vmul.f32 %v2094, %v945
        %v2126 = vmul.f32 %v2101, %v1049
        %v2127 = vmul.f32 %v2095, %v1153
        %v2128 = vsub.f32 %v2120, %v2124
        %v2129 = vsub.f32 %v2121, %v2125
        %v2130 = vsub.f32 %v2122, %v2126
        %v2131 = vsub.f32 %v2123, %v2127
        %2132 = vrot.lane.b32.xlu0 %v1191, 15
        %v2133 = vpop.permute.xlu0 %2132
        %2134 = vrot.lane.b32.xlu0 %v1199, 15
        %v2135 = vpop.permute.xlu0 %2134
        %2138 = vrot.lane.b32.xlu0 %v1188, 15
        %v2139 = vpop.permute.xlu0 %2138
        %2140 = vrot.lane.b32.xlu0 %v1198, 15
        %v2141 = vpop.permute.xlu0 %2140
        %v2142 = vsel %vm1344, %v2139, %v2133
        %v2143 = vsel %vm1344, %v2141, %v2135
        %v2148 = vsel %vm1344, %v2133, %v2139
        %v2149 = vsel %vm1344, %v2135, %v2141
        %2150 = vrot.lane.b32.xlu0 %v1223, 15
        %v2151 = vpop.permute.xlu0 %2150
        %2152 = vrot.lane.b32.xlu0 %v1231, 15
        %v2153 = vpop.permute.xlu0 %2152
        %2156 = vrot.lane.b32.xlu0 %v1220, 15
        %v2157 = vpop.permute.xlu0 %2156
        %2158 = vrot.lane.b32.xlu0 %v1230, 15
        %v2159 = vpop.permute.xlu0 %2158
        %v2160 = vsel %vm1344, %v2157, %v2151
        %v2161 = vsel %vm1344, %v2159, %v2153
        %v2166 = vsel %vm1344, %v2151, %v2157
        %v2167 = vsel %vm1344, %v2153, %v2159
        %v2168 = vmul.f32 %v2166, %v428
        %v2169 = vmul.f32 %v2160, %v531
        %v2170 = vmul.f32 %v2167, %v634
        %v2171 = vmul.f32 %v2161, %v737
        %v2172 = vmul.f32 %v2148, %v841
        %v2173 = vmul.f32 %v2142, %v945
        %v2174 = vmul.f32 %v2149, %v1049
        %v2175 = vmul.f32 %v2143, %v1153
        %v2176 = vsub.f32 %v2168, %v2172
        %v2177 = vsub.f32 %v2169, %v2173
        %v2178 = vsub.f32 %v2170, %v2174
        %v2179 = vsub.f32 %v2171, %v2175
        %2180 = vrot.lane.b32.xlu0 %v1191, 1
        %v2181 = vpop.permute.xlu0 %2180
        %2182 = vrot.lane.b32.xlu0 %v1199, 1
        %v2183 = vpop.permute.xlu0 %2182
        %2186 = vrot.lane.b32.xlu0 %v1188, 1
        %v2187 = vpop.permute.xlu0 %2186
        %2188 = vrot.lane.b32.xlu0 %v1198, 1
        %v2189 = vpop.permute.xlu0 %2188
        %v2190 = vsel %vm1393, %v2187, %v2181
        %v2191 = vsel %vm1393, %v2189, %v2183
        %v2196 = vsel %vm1393, %v2181, %v2187
        %v2197 = vsel %vm1393, %v2183, %v2189
        %2198 = vrot.lane.b32.xlu0 %v1223, 1
        %v2199 = vpop.permute.xlu0 %2198
        %2200 = vrot.lane.b32.xlu0 %v1231, 1
        %v2201 = vpop.permute.xlu0 %2200
        %2204 = vrot.lane.b32.xlu0 %v1220, 1
        %v2205 = vpop.permute.xlu0 %2204
        %2206 = vrot.lane.b32.xlu0 %v1230, 1
        %v2207 = vpop.permute.xlu0 %2206
        %v2208 = vsel %vm1393, %v2205, %v2199
        %v2209 = vsel %vm1393, %v2207, %v2201
        %v2214 = vsel %vm1393, %v2199, %v2205
        %v2215 = vsel %vm1393, %v2201, %v2207
        %v2216 = vmul.f32 %v2214, %v428
        %v2217 = vmul.f32 %v2208, %v531
        %v2218 = vmul.f32 %v2215, %v634
        %v2219 = vmul.f32 %v2209, %v737
        %v2220 = vmul.f32 %v2196, %v841
        %v2221 = vmul.f32 %v2190, %v945
        %v2222 = vmul.f32 %v2197, %v1049
        %v2223 = vmul.f32 %v2191, %v1153
        %v2224 = vsub.f32 %v2216, %v2220
        %v2225 = vsub.f32 %v2217, %v2221
        %v2226 = vsub.f32 %v2218, %v2222
        %v2227 = vsub.f32 %v2219, %v2223
        %v2228 = vmul.f32 %v1220, %v428
        %v2229 = vmul.f32 %v1223, %v531
        %v2230 = vmul.f32 %v1230, %v634
        %v2231 = vmul.f32 %v1231, %v737
        %v2232 = vmul.f32 %v1188, %v841
        %v2233 = vmul.f32 %v1191, %v945
        %v2234 = vmul.f32 %v1198, %v1049
        %v2235 = vmul.f32 %v1199, %v1153
        %v2236 = vsub.f32 %v2228, %v2232
        %v2237 = vsub.f32 %v2229, %v2233
        %v2238 = vsub.f32 %v2230, %v2234
        %v2239 = vsub.f32 %v2231, %v2235
        %2240 = vrot.lane.b32.xlu0 %v1188, 127
        %v2241 = vpop.permute.xlu0 %2240
        %2242 = vrot.lane.b32.xlu0 %v1191, 127
        %v2243 = vpop.permute.xlu0 %2242
        %2244 = vrot.lane.b32.xlu0 %v1198, 127
        %v2245 = vpop.permute.xlu0 %2244
        %2246 = vrot.lane.b32.xlu0 %v1199, 127
        %v2247 = vpop.permute.xlu0 %2246
        %v2248 = vsel %vm1452, %v2241, %v2243
        %v2249 = vsel %vm1452, %v2245, %v2247
        %v2256 = vsel %vm1452, %v2243, %v2241
        %v2257 = vsel %vm1452, %v2247, %v2245
        %2258 = vrot.lane.b32.xlu0 %v1220, 127
        %v2259 = vpop.permute.xlu0 %2258
        %2260 = vrot.lane.b32.xlu0 %v1223, 127
        %v2261 = vpop.permute.xlu0 %2260
        %2262 = vrot.lane.b32.xlu0 %v1230, 127
        %v2263 = vpop.permute.xlu0 %2262
        %2264 = vrot.lane.b32.xlu0 %v1231, 127
        %v2265 = vpop.permute.xlu0 %2264
        %v2266 = vsel %vm1452, %v2259, %v2261
        %v2267 = vsel %vm1452, %v2263, %v2265
        %v2274 = vsel %vm1452, %v2261, %v2259
        %v2275 = vsel %vm1452, %v2265, %v2263
        %v2276 = vmul.f32 %v2266, %v428
        %v2277 = vmul.f32 %v2274, %v531
        %v2278 = vmul.f32 %v2267, %v634
        %v2279 = vmul.f32 %v2275, %v737
        %v2280 = vmul.f32 %v2248, %v841
        %v2281 = vmul.f32 %v2256, %v945
        %v2282 = vmul.f32 %v2249, %v1049
        %v2283 = vmul.f32 %v2257, %v1153
        %v2284 = vsub.f32 %v2276, %v2280
        %v2285 = vsub.f32 %v2277, %v2281
        %v2286 = vsub.f32 %v2278, %v2282
        %v2287 = vsub.f32 %v2279, %v2283
        %2288 = vrot.lane.b32.xlu0 %v1188, 113
        %v2289 = vpop.permute.xlu0 %2288
        %2290 = vrot.lane.b32.xlu0 %v1191, 113
        %v2291 = vpop.permute.xlu0 %2290
        %2292 = vrot.lane.b32.xlu0 %v1198, 113
        %v2293 = vpop.permute.xlu0 %2292
        %2294 = vrot.lane.b32.xlu0 %v1199, 113
        %v2295 = vpop.permute.xlu0 %2294
        %v2296 = vsel %vm1501, %v2289, %v2291
        %v2297 = vsel %vm1501, %v2293, %v2295
        %v2304 = vsel %vm1501, %v2291, %v2289
        %v2305 = vsel %vm1501, %v2295, %v2293
        %2306 = vrot.lane.b32.xlu0 %v1220, 113
        %v2307 = vpop.permute.xlu0 %2306
        %2308 = vrot.lane.b32.xlu0 %v1223, 113
        %v2309 = vpop.permute.xlu0 %2308
        %2310 = vrot.lane.b32.xlu0 %v1230, 113
        %v2311 = vpop.permute.xlu0 %2310
        %2312 = vrot.lane.b32.xlu0 %v1231, 113
        %v2313 = vpop.permute.xlu0 %2312
        %v2314 = vsel %vm1501, %v2307, %v2309
        %v2315 = vsel %vm1501, %v2311, %v2313
        %v2322 = vsel %vm1501, %v2309, %v2307
        %v2323 = vsel %vm1501, %v2313, %v2311
        %v2324 = vmul.f32 %v2314, %v428
        %v2325 = vmul.f32 %v2322, %v531
        %v2326 = vmul.f32 %v2315, %v634
        %v2327 = vmul.f32 %v2323, %v737
        %v2328 = vmul.f32 %v2296, %v841
        %v2329 = vmul.f32 %v2304, %v945
        %v2330 = vmul.f32 %v2297, %v1049
        %v2331 = vmul.f32 %v2305, %v1153
        %v2332 = vsub.f32 %v2324, %v2328
        %v2333 = vsub.f32 %v2325, %v2329
        %v2334 = vsub.f32 %v2326, %v2330
        %v2335 = vsub.f32 %v2327, %v2331
        %2336 = vrot.lane.b32.xlu0 %v1188, 112
        %v2337 = vpop.permute.xlu0 %2336
        %2338 = vrot.lane.b32.xlu0 %v1191, 112
        %v2339 = vpop.permute.xlu0 %2338
        %2340 = vrot.lane.b32.xlu0 %v1198, 112
        %v2341 = vpop.permute.xlu0 %2340
        %2342 = vrot.lane.b32.xlu0 %v1199, 112
        %v2343 = vpop.permute.xlu0 %2342
        %v2344 = vsel %vm1550, %v2337, %v2339
        %v2345 = vsel %vm1550, %v2341, %v2343
        %v2352 = vsel %vm1550, %v2339, %v2337
        %v2353 = vsel %vm1550, %v2343, %v2341
        %2354 = vrot.lane.b32.xlu0 %v1220, 112
        %v2355 = vpop.permute.xlu0 %2354
        %2356 = vrot.lane.b32.xlu0 %v1223, 112
        %v2357 = vpop.permute.xlu0 %2356
        %2358 = vrot.lane.b32.xlu0 %v1230, 112
        %v2359 = vpop.permute.xlu0 %2358
        %2360 = vrot.lane.b32.xlu0 %v1231, 112
        %v2361 = vpop.permute.xlu0 %2360
        %v2362 = vsel %vm1550, %v2355, %v2357
        %v2363 = vsel %vm1550, %v2359, %v2361
        %v2370 = vsel %vm1550, %v2357, %v2355
        %v2371 = vsel %vm1550, %v2361, %v2359
        %v2372 = vmul.f32 %v2362, %v428
        %v2373 = vmul.f32 %v2370, %v531
        %v2374 = vmul.f32 %v2363, %v634
        %v2375 = vmul.f32 %v2371, %v737
        %v2376 = vmul.f32 %v2344, %v841
        %v2377 = vmul.f32 %v2352, %v945
        %v2378 = vmul.f32 %v2345, %v1049
        %v2379 = vmul.f32 %v2353, %v1153
        %v2380 = vsub.f32 %v2372, %v2376
        %v2381 = vsub.f32 %v2373, %v2377
        %v2382 = vsub.f32 %v2374, %v2378
        %v2383 = vsub.f32 %v2375, %v2379
        %2384 = vrot.lane.b32.xlu0 %v1188, 111
        %v2385 = vpop.permute.xlu0 %2384
        %2386 = vrot.lane.b32.xlu0 %v1191, 111
        %v2387 = vpop.permute.xlu0 %2386
        %2388 = vrot.lane.b32.xlu0 %v1198, 111
        %v2389 = vpop.permute.xlu0 %2388
        %2390 = vrot.lane.b32.xlu0 %v1199, 111
        %v2391 = vpop.permute.xlu0 %2390
        %v2392 = vsel %vm1599, %v2385, %v2387
        %v2393 = vsel %vm1599, %v2389, %v2391
        %v2400 = vsel %vm1599, %v2387, %v2385
        %v2401 = vsel %vm1599, %v2391, %v2389
        %2402 = vrot.lane.b32.xlu0 %v1220, 111
        %v2403 = vpop.permute.xlu0 %2402
        %2404 = vrot.lane.b32.xlu0 %v1223, 111
        %v2405 = vpop.permute.xlu0 %2404
        %2406 = vrot.lane.b32.xlu0 %v1230, 111
        %v2407 = vpop.permute.xlu0 %2406
        %2408 = vrot.lane.b32.xlu0 %v1231, 111
        %v2409 = vpop.permute.xlu0 %2408
        %v2410 = vsel %vm1599, %v2403, %v2405
        %v2411 = vsel %vm1599, %v2407, %v2409
        %v2418 = vsel %vm1599, %v2405, %v2403
        %v2419 = vsel %vm1599, %v2409, %v2407
        %v2420 = vmul.f32 %v2410, %v428
        %v2421 = vmul.f32 %v2418, %v531
        %v2422 = vmul.f32 %v2411, %v634
        %v2423 = vmul.f32 %v2419, %v737
        %v2424 = vmul.f32 %v2392, %v841
        %v2425 = vmul.f32 %v2400, %v945
        %v2426 = vmul.f32 %v2393, %v1049
        %v2427 = vmul.f32 %v2401, %v1153
        %v2428 = vsub.f32 %v2420, %v2424
        %v2429 = vsub.f32 %v2421, %v2425
        %v2430 = vsub.f32 %v2422, %v2426
        %v2431 = vsub.f32 %v2423, %v2427
        %s2432 = sld [smem:[#allocation2]]
        %v2433 = vstv %s2432
        %v2434 = vmul.f32 %v2433, %v1281
        %v2435 = vmul.f32 %v2433, %v1282
        %v2436 = vmul.f32 %v2433, %v1283
        %v2437 = vmul.f32 %v2433, %v1284
        %s2438 = sld [smem:[#allocation2 + $0x1]]
        %v2439 = vstv %s2438
        %v2440 = vmul.f32 %v2439, %v1330
        %v2441 = vmul.f32 %v2439, %v1331
        %v2442 = vmul.f32 %v2439, %v1332
        %v2443 = vmul.f32 %v2439, %v1333
        %v2444 = vadd.f32 %v2434, %v2440
        %v2445 = vadd.f32 %v2435, %v2441
        %v2446 = vadd.f32 %v2436, %v2442
        %v2447 = vadd.f32 %v2437, %v2443
        %s2448 = sld [smem:[#allocation2 + $0x2]]
        %v2449 = vstv %s2448
        %v2450 = vmul.f32 %v2449, %v1379
        %v2451 = vmul.f32 %v2449, %v1380
        %v2452 = vmul.f32 %v2449, %v1381
        %v2453 = vmul.f32 %v2449, %v1382
        %v2454 = vadd.f32 %v2444, %v2450
        %v2455 = vadd.f32 %v2445, %v2451
        %v2456 = vadd.f32 %v2446, %v2452
        %v2457 = vadd.f32 %v2447, %v2453
        %s2458 = sld [smem:[#allocation2 + $0x3]]
        %v2459 = vstv %s2458
        %v2460 = vmul.f32 %v2459, %v1428
        %v2461 = vmul.f32 %v2459, %v1429
        %v2462 = vmul.f32 %v2459, %v1430
        %v2463 = vmul.f32 %v2459, %v1431
        %v2464 = vadd.f32 %v2454, %v2460
        %v2465 = vadd.f32 %v2455, %v2461
        %v2466 = vadd.f32 %v2456, %v2462
        %v2467 = vadd.f32 %v2457, %v2463
        %s2468 = sld [smem:[#allocation2 + $0x4]]
        %v2469 = vstv %s2468
        %v2470 = vmul.f32 %v2469, %v1440
        %v2471 = vmul.f32 %v2469, %v1441
        %v2472 = vmul.f32 %v2469, %v1442
        %v2473 = vmul.f32 %v2469, %v1443
        %v2474 = vadd.f32 %v2464, %v2470
        %v2475 = vadd.f32 %v2465, %v2471
        %v2476 = vadd.f32 %v2466, %v2472
        %v2477 = vadd.f32 %v2467, %v2473
        %s2478 = sld [smem:[#allocation2 + $0x5]]
        %v2479 = vstv %s2478
        %v2480 = vmul.f32 %v2479, %v1489
        %v2481 = vmul.f32 %v2479, %v1490
        %v2482 = vmul.f32 %v2479, %v1491
        %v2483 = vmul.f32 %v2479, %v1492
        %v2484 = vadd.f32 %v2474, %v2480
        %v2485 = vadd.f32 %v2475, %v2481
        %v2486 = vadd.f32 %v2476, %v2482
        %v2487 = vadd.f32 %v2477, %v2483
        %s2488 = sld [smem:[#allocation2 + $0x6]]
        %v2489 = vstv %s2488
        %v2490 = vmul.f32 %v2489, %v1538
        %v2491 = vmul.f32 %v2489, %v1539
        %v2492 = vmul.f32 %v2489, %v1540
        %v2493 = vmul.f32 %v2489, %v1541
        %v2494 = vadd.f32 %v2484, %v2490
        %v2495 = vadd.f32 %v2485, %v2491
        %v2496 = vadd.f32 %v2486, %v2492
        %v2497 = vadd.f32 %v2487, %v2493
        %s2498 = sld [smem:[#allocation2 + $0x7]]
        %v2499 = vstv %s2498
        %v2500 = vmul.f32 %v2499, %v1587
        %v2501 = vmul.f32 %v2499, %v1588
        %v2502 = vmul.f32 %v2499, %v1589
        %v2503 = vmul.f32 %v2499, %v1590
        %v2504 = vadd.f32 %v2494, %v2500
        %v2505 = vadd.f32 %v2495, %v2501
        %v2506 = vadd.f32 %v2496, %v2502
        %v2507 = vadd.f32 %v2497, %v2503
        %s2508 = sld [smem:[#allocation2 + $0x8]]
        %v2509 = vstv %s2508
        %v2510 = vmul.f32 %v2509, %v1636
        %v2511 = vmul.f32 %v2509, %v1637
        %v2512 = vmul.f32 %v2509, %v1638
        %v2513 = vmul.f32 %v2509, %v1639
        %v2514 = vadd.f32 %v2504, %v2510
        %v2515 = vadd.f32 %v2505, %v2511
        %v2516 = vadd.f32 %v2506, %v2512
        %v2517 = vadd.f32 %v2507, %v2513
        %s2518 = sld [smem:[#allocation2 + $0x9]]
        %v2519 = vstv %s2518
        %v2520 = vmul.f32 %v2519, %v1684
        %v2521 = vmul.f32 %v2519, %v1685
        %v2522 = vmul.f32 %v2519, %v1686
        %v2523 = vmul.f32 %v2519, %v1687
        %v2524 = vadd.f32 %v2514, %v2520
        %v2525 = vadd.f32 %v2515, %v2521
        %v2526 = vadd.f32 %v2516, %v2522
        %v2527 = vadd.f32 %v2517, %v2523
        %s2528 = sld [smem:[#allocation2 + $0xa]]
        %v2529 = vstv %s2528
        %v2530 = vmul.f32 %v2529, %v1732
        %v2531 = vmul.f32 %v2529, %v1733
        %v2532 = vmul.f32 %v2529, %v1734
        %v2533 = vmul.f32 %v2529, %v1735
        %v2534 = vadd.f32 %v2524, %v2530
        %v2535 = vadd.f32 %v2525, %v2531
        %v2536 = vadd.f32 %v2526, %v2532
        %v2537 = vadd.f32 %v2527, %v2533
        %s2538 = sld [smem:[#allocation2 + $0xb]]
        %v2539 = vstv %s2538
        %v2540 = vmul.f32 %v2539, %v1780
        %v2541 = vmul.f32 %v2539, %v1781
        %v2542 = vmul.f32 %v2539, %v1782
        %v2543 = vmul.f32 %v2539, %v1783
        %v2544 = vadd.f32 %v2534, %v2540
        %v2545 = vadd.f32 %v2535, %v2541
        %v2546 = vadd.f32 %v2536, %v2542
        %v2547 = vadd.f32 %v2537, %v2543
        %s2548 = sld [smem:[#allocation2 + $0xc]]
        %v2549 = vstv %s2548
        %v2550 = vmul.f32 %v2549, %v1828
        %v2551 = vmul.f32 %v2549, %v1829
        %v2552 = vmul.f32 %v2549, %v1830
        %v2553 = vmul.f32 %v2549, %v1831
        %v2554 = vadd.f32 %v2544, %v2550
        %v2555 = vadd.f32 %v2545, %v2551
        %v2556 = vadd.f32 %v2546, %v2552
        %v2557 = vadd.f32 %v2547, %v2553
        %s2558 = sld [smem:[#allocation2 + $0xd]]
        %v2559 = vstv %s2558
        %v2560 = vmul.f32 %v2559, %v1836
        %v2561 = vmul.f32 %v2559, %v1837
        %v2562 = vmul.f32 %v2559, %v1838
        %v2563 = vmul.f32 %v2559, %v1839
        %v2564 = vadd.f32 %v2554, %v2560
        %v2565 = vadd.f32 %v2555, %v2561
        %v2566 = vadd.f32 %v2556, %v2562
        %v2567 = vadd.f32 %v2557, %v2563
        %s2568 = sld [smem:[#allocation2 + $0xe]]
        %v2569 = vstv %s2568
        %v2570 = vmul.f32 %v2569, %v1884
        %v2571 = vmul.f32 %v2569, %v1885
        %v2572 = vmul.f32 %v2569, %v1886
        %v2573 = vmul.f32 %v2569, %v1887
        %v2574 = vadd.f32 %v2564, %v2570
        %v2575 = vadd.f32 %v2565, %v2571
        %v2576 = vadd.f32 %v2566, %v2572
        %v2577 = vadd.f32 %v2567, %v2573
        %s2578 = sld [smem:[#allocation2 + $0xf]]
        %v2579 = vstv %s2578
        %v2580 = vmul.f32 %v2579, %v1932
        %v2581 = vmul.f32 %v2579, %v1933
        %v2582 = vmul.f32 %v2579, %v1934
        %v2583 = vmul.f32 %v2579, %v1935
        %v2584 = vadd.f32 %v2574, %v2580
        %v2585 = vadd.f32 %v2575, %v2581
        %v2586 = vadd.f32 %v2576, %v2582
        %v2587 = vadd.f32 %v2577, %v2583
        %s2588 = sld [smem:[#allocation2 + $0x10]]
        %v2589 = vstv %s2588
        %v2590 = vmul.f32 %v2589, %v1980
        %v2591 = vmul.f32 %v2589, %v1981
        %v2592 = vmul.f32 %v2589, %v1982
        %v2593 = vmul.f32 %v2589, %v1983
        %v2594 = vadd.f32 %v2584, %v2590
        %v2595 = vadd.f32 %v2585, %v2591
        %v2596 = vadd.f32 %v2586, %v2592
        %v2597 = vadd.f32 %v2587, %v2593
        %s2598 = sld [smem:[#allocation2 + $0x11]]
        %v2599 = vstv %s2598
        %v2600 = vmul.f32 %v2599, %v2028
        %v2601 = vmul.f32 %v2599, %v2029
        %v2602 = vmul.f32 %v2599, %v2030
        %v2603 = vmul.f32 %v2599, %v2031
        %v2604 = vadd.f32 %v2594, %v2600
        %v2605 = vadd.f32 %v2595, %v2601
        %v2606 = vadd.f32 %v2596, %v2602
        %v2607 = vadd.f32 %v2597, %v2603
        %s2608 = sld [smem:[#allocation2 + $0x12]]
        %v2609 = vstv %s2608
        %v2610 = vmul.f32 %v2609, %v2080
        %v2611 = vmul.f32 %v2609, %v2081
        %v2612 = vmul.f32 %v2609, %v2082
        %v2613 = vmul.f32 %v2609, %v2083
        %v2614 = vadd.f32 %v2604, %v2610
        %v2615 = vadd.f32 %v2605, %v2611
        %v2616 = vadd.f32 %v2606, %v2612
        %v2617 = vadd.f32 %v2607, %v2613
        %s2618 = sld [smem:[#allocation2 + $0x13]]
        %v2619 = vstv %s2618
        %v2620 = vmul.f32 %v2619, %v2128
        %v2621 = vmul.f32 %v2619, %v2129
        %v2622 = vmul.f32 %v2619, %v2130
        %v2623 = vmul.f32 %v2619, %v2131
        %v2624 = vadd.f32 %v2614, %v2620
        %v2625 = vadd.f32 %v2615, %v2621
        %v2626 = vadd.f32 %v2616, %v2622
        %v2627 = vadd.f32 %v2617, %v2623
        %s2628 = sld [smem:[#allocation2 + $0x14]]
        %v2629 = vstv %s2628
        %v2630 = vmul.f32 %v2629, %v2176
        %v2631 = vmul.f32 %v2629, %v2177
        %v2632 = vmul.f32 %v2629, %v2178
        %v2633 = vmul.f32 %v2629, %v2179
        %v2634 = vadd.f32 %v2624, %v2630
        %v2635 = vadd.f32 %v2625, %v2631
        %v2636 = vadd.f32 %v2626, %v2632
        %v2637 = vadd.f32 %v2627, %v2633
        %s2638 = sld [smem:[#allocation2 + $0x15]]
        %v2639 = vstv %s2638
        %v2640 = vmul.f32 %v2639, %v2224
        %v2641 = vmul.f32 %v2639, %v2225
        %v2642 = vmul.f32 %v2639, %v2226
        %v2643 = vmul.f32 %v2639, %v2227
        %v2644 = vadd.f32 %v2634, %v2640
        %v2645 = vadd.f32 %v2635, %v2641
        %v2646 = vadd.f32 %v2636, %v2642
        %v2647 = vadd.f32 %v2637, %v2643
        %s2648 = sld [smem:[#allocation2 + $0x16]]
        %v2649 = vstv %s2648
        %v2650 = vmul.f32 %v2649, %v2236
        %v2651 = vmul.f32 %v2649, %v2237
        %v2652 = vmul.f32 %v2649, %v2238
        %v2653 = vmul.f32 %v2649, %v2239
        %v2654 = vadd.f32 %v2644, %v2650
        %v2655 = vadd.f32 %v2645, %v2651
        %v2656 = vadd.f32 %v2646, %v2652
        %v2657 = vadd.f32 %v2647, %v2653
        %s2658 = sld [smem:[#allocation2 + $0x17]]
        %v2659 = vstv %s2658
        %v2660 = vmul.f32 %v2659, %v2284
        %v2661 = vmul.f32 %v2659, %v2285
        %v2662 = vmul.f32 %v2659, %v2286
        %v2663 = vmul.f32 %v2659, %v2287
        %v2664 = vadd.f32 %v2654, %v2660
        %v2665 = vadd.f32 %v2655, %v2661
        %v2666 = vadd.f32 %v2656, %v2662
        %v2667 = vadd.f32 %v2657, %v2663
        %s2668 = sld [smem:[#allocation2 + $0x18]]
        %v2669 = vstv %s2668
        %v2670 = vmul.f32 %v2669, %v2332
        %v2671 = vmul.f32 %v2669, %v2333
        %v2672 = vmul.f32 %v2669, %v2334
        %v2673 = vmul.f32 %v2669, %v2335
        %v2674 = vadd.f32 %v2664, %v2670
        %v2675 = vadd.f32 %v2665, %v2671
        %v2676 = vadd.f32 %v2666, %v2672
        %v2677 = vadd.f32 %v2667, %v2673
        %s2678 = sld [smem:[#allocation2 + $0x19]]
        %v2679 = vstv %s2678
        %v2680 = vmul.f32 %v2679, %v2380
        %v2681 = vmul.f32 %v2679, %v2381
        %v2682 = vmul.f32 %v2679, %v2382
        %v2683 = vmul.f32 %v2679, %v2383
        %v2684 = vadd.f32 %v2674, %v2680
        %v2685 = vadd.f32 %v2675, %v2681
        %v2686 = vadd.f32 %v2676, %v2682
        %v2687 = vadd.f32 %v2677, %v2683
        %s2688 = sld [smem:[#allocation2 + $0x1a]]
        %v2689 = vstv %s2688
        %v2690 = vmul.f32 %v2689, %v2428
        %v2691 = vmul.f32 %v2689, %v2429
        %v2692 = vmul.f32 %v2689, %v2430
        %v2693 = vmul.f32 %v2689, %v2431
        %v2694 = vadd.f32 %v2684, %v2690
        %v2695 = vadd.f32 %v2685, %v2691
        %v2696 = vadd.f32 %v2686, %v2692
        %v2697 = vadd.f32 %v2687, %v2693
        %v2698 = vmul.f32 %v2694, %v1162
        %v2699 = vmul.f32 %v2695, %v1163
        %v2700 = vmul.f32 %v2696, %v1164
        %v2701 = vmul.f32 %v2697, %v1165
        %2702 = vst [vmem:[%s314] sm:$0xff] %v2698
        %2703 = vst [vmem:[%s314 + $0x8] sm:$0xff] %v2699
        %2704 = vst [vmem:[%s314 + $0x10] sm:$0xff] %v2700
        %2705 = vst [vmem:[%s314 + $0x18] sm:$0xff] %v2701
        %s2706 = sld [smem:[#allocation2 + $0x80]]
        %v2707 = vstv %s2706
        %v2708 = vmul.f32 %v2707, %v1281
        %v2709 = vmul.f32 %v2707, %v1282
        %v2710 = vmul.f32 %v2707, %v1283
        %v2711 = vmul.f32 %v2707, %v1284
        %s2712 = sld [smem:[#allocation2 + $0x81]]
        %v2713 = vstv %s2712
        %v2714 = vmul.f32 %v2713, %v1330
        %v2715 = vmul.f32 %v2713, %v1331
        %v2716 = vmul.f32 %v2713, %v1332
        %v2717 = vmul.f32 %v2713, %v1333
        %v2718 = vadd.f32 %v2708, %v2714
        %v2719 = vadd.f32 %v2709, %v2715
        %v2720 = vadd.f32 %v2710, %v2716
        %v2721 = vadd.f32 %v2711, %v2717
        %s2722 = sld [smem:[#allocation2 + $0x82]]
        %v2723 = vstv %s2722
        %v2724 = vmul.f32 %v2723, %v1379
        %v2725 = vmul.f32 %v2723, %v1380
        %v2726 = vmul.f32 %v2723, %v1381
        %v2727 = vmul.f32 %v2723, %v1382
        %v2728 = vadd.f32 %v2718, %v2724
        %v2729 = vadd.f32 %v2719, %v2725
        %v2730 = vadd.f32 %v2720, %v2726
        %v2731 = vadd.f32 %v2721, %v2727
        %s2732 = sld [smem:[#allocation2 + $0x83]]
        %v2733 = vstv %s2732
        %v2734 = vmul.f32 %v2733, %v1428
        %v2735 = vmul.f32 %v2733, %v1429
        %v2736 = vmul.f32 %v2733, %v1430
        %v2737 = vmul.f32 %v2733, %v1431
        %v2738 = vadd.f32 %v2728, %v2734
        %v2739 = vadd.f32 %v2729, %v2735
        %v2740 = vadd.f32 %v2730, %v2736
        %v2741 = vadd.f32 %v2731, %v2737
        %s2742 = sld [smem:[#allocation2 + $0x84]]
        %v2743 = vstv %s2742
        %v2744 = vmul.f32 %v2743, %v1440
        %v2745 = vmul.f32 %v2743, %v1441
        %v2746 = vmul.f32 %v2743, %v1442
        %v2747 = vmul.f32 %v2743, %v1443
        %v2748 = vadd.f32 %v2738, %v2744
        %v2749 = vadd.f32 %v2739, %v2745
        %v2750 = vadd.f32 %v2740, %v2746
        %v2751 = vadd.f32 %v2741, %v2747
        %s2752 = sld [smem:[#allocation2 + $0x85]]
        %v2753 = vstv %s2752
        %v2754 = vmul.f32 %v2753, %v1489
        %v2755 = vmul.f32 %v2753, %v1490
        %v2756 = vmul.f32 %v2753, %v1491
        %v2757 = vmul.f32 %v2753, %v1492
        %v2758 = vadd.f32 %v2748, %v2754
        %v2759 = vadd.f32 %v2749, %v2755
        %v2760 = vadd.f32 %v2750, %v2756
        %v2761 = vadd.f32 %v2751, %v2757
        %s2762 = sld [smem:[#allocation2 + $0x86]]
        %v2763 = vstv %s2762
        %v2764 = vmul.f32 %v2763, %v1538
        %v2765 = vmul.f32 %v2763, %v1539
        %v2766 = vmul.f32 %v2763, %v1540
        %v2767 = vmul.f32 %v2763, %v1541
        %v2768 = vadd.f32 %v2758, %v2764
        %v2769 = vadd.f32 %v2759, %v2765
        %v2770 = vadd.f32 %v2760, %v2766
        %v2771 = vadd.f32 %v2761, %v2767
        %s2772 = sld [smem:[#allocation2 + $0x87]]
        %v2773 = vstv %s2772
        %v2774 = vmul.f32 %v2773, %v1587
        %v2775 = vmul.f32 %v2773, %v1588
        %v2776 = vmul.f32 %v2773, %v1589
        %v2777 = vmul.f32 %v2773, %v1590
        %v2778 = vadd.f32 %v2768, %v2774
        %v2779 = vadd.f32 %v2769, %v2775
        %v2780 = vadd.f32 %v2770, %v2776
        %v2781 = vadd.f32 %v2771, %v2777
        %s2782 = sld [smem:[#allocation2 + $0x88]]
        %v2783 = vstv %s2782
        %v2784 = vmul.f32 %v2783, %v1636
        %v2785 = vmul.f32 %v2783, %v1637
        %v2786 = vmul.f32 %v2783, %v1638
        %v2787 = vmul.f32 %v2783, %v1639
        %v2788 = vadd.f32 %v2778, %v2784
        %v2789 = vadd.f32 %v2779, %v2785
        %v2790 = vadd.f32 %v2780, %v2786
        %v2791 = vadd.f32 %v2781, %v2787
        %s2792 = sld [smem:[#allocation2 + $0x89]]
        %v2793 = vstv %s2792
        %v2794 = vmul.f32 %v2793, %v1684
        %v2795 = vmul.f32 %v2793, %v1685
        %v2796 = vmul.f32 %v2793, %v1686
        %v2797 = vmul.f32 %v2793, %v1687
        %v2798 = vadd.f32 %v2788, %v2794
        %v2799 = vadd.f32 %v2789, %v2795
        %v2800 = vadd.f32 %v2790, %v2796
        %v2801 = vadd.f32 %v2791, %v2797
        %s2802 = sld [smem:[#allocation2 + $0x8a]]
        %v2803 = vstv %s2802
        %v2804 = vmul.f32 %v2803, %v1732
        %v2805 = vmul.f32 %v2803, %v1733
        %v2806 = vmul.f32 %v2803, %v1734
        %v2807 = vmul.f32 %v2803, %v1735
        %v2808 = vadd.f32 %v2798, %v2804
        %v2809 = vadd.f32 %v2799, %v2805
        %v2810 = vadd.f32 %v2800, %v2806
        %v2811 = vadd.f32 %v2801, %v2807
        %s2812 = sld [smem:[#allocation2 + $0x8b]]
        %v2813 = vstv %s2812
        %v2814 = vmul.f32 %v2813, %v1780
        %v2815 = vmul.f32 %v2813, %v1781
        %v2816 = vmul.f32 %v2813, %v1782
        %v2817 = vmul.f32 %v2813, %v1783
        %v2818 = vadd.f32 %v2808, %v2814
        %v2819 = vadd.f32 %v2809, %v2815
        %v2820 = vadd.f32 %v2810, %v2816
        %v2821 = vadd.f32 %v2811, %v2817
        %s2822 = sld [smem:[#allocation2 + $0x8c]]
        %v2823 = vstv %s2822
        %v2824 = vmul.f32 %v2823, %v1828
        %v2825 = vmul.f32 %v2823, %v1829
        %v2826 = vmul.f32 %v2823, %v1830
        %v2827 = vmul.f32 %v2823, %v1831
        %v2828 = vadd.f32 %v2818, %v2824
        %v2829 = vadd.f32 %v2819, %v2825
        %v2830 = vadd.f32 %v2820, %v2826
        %v2831 = vadd.f32 %v2821, %v2827
        %s2832 = sld [smem:[#allocation2 + $0x8d]]
        %v2833 = vstv %s2832
        %v2834 = vmul.f32 %v2833, %v1836
        %v2835 = vmul.f32 %v2833, %v1837
        %v2836 = vmul.f32 %v2833, %v1838
        %v2837 = vmul.f32 %v2833, %v1839
        %v2838 = vadd.f32 %v2828, %v2834
        %v2839 = vadd.f32 %v2829, %v2835
        %v2840 = vadd.f32 %v2830, %v2836
        %v2841 = vadd.f32 %v2831, %v2837
        %s2842 = sld [smem:[#allocation2 + $0x8e]]
        %v2843 = vstv %s2842
        %v2844 = vmul.f32 %v2843, %v1884
        %v2845 = vmul.f32 %v2843, %v1885
        %v2846 = vmul.f32 %v2843, %v1886
        %v2847 = vmul.f32 %v2843, %v1887
        %v2848 = vadd.f32 %v2838, %v2844
        %v2849 = vadd.f32 %v2839, %v2845
        %v2850 = vadd.f32 %v2840, %v2846
        %v2851 = vadd.f32 %v2841, %v2847
        %s2852 = sld [smem:[#allocation2 + $0x8f]]
        %v2853 = vstv %s2852
        %v2854 = vmul.f32 %v2853, %v1932
        %v2855 = vmul.f32 %v2853, %v1933
        %v2856 = vmul.f32 %v2853, %v1934
        %v2857 = vmul.f32 %v2853, %v1935
        %v2858 = vadd.f32 %v2848, %v2854
        %v2859 = vadd.f32 %v2849, %v2855
        %v2860 = vadd.f32 %v2850, %v2856
        %v2861 = vadd.f32 %v2851, %v2857
        %s2862 = sld [smem:[#allocation2 + $0x90]]
        %v2863 = vstv %s2862
        %v2864 = vmul.f32 %v2863, %v1980
        %v2865 = vmul.f32 %v2863, %v1981
        %v2866 = vmul.f32 %v2863, %v1982
        %v2867 = vmul.f32 %v2863, %v1983
        %v2868 = vadd.f32 %v2858, %v2864
        %v2869 = vadd.f32 %v2859, %v2865
        %v2870 = vadd.f32 %v2860, %v2866
        %v2871 = vadd.f32 %v2861, %v2867
        %s2872 = sld [smem:[#allocation2 + $0x91]]
        %v2873 = vstv %s2872
        %v2874 = vmul.f32 %v2873, %v2028
        %v2875 = vmul.f32 %v2873, %v2029
        %v2876 = vmul.f32 %v2873, %v2030
        %v2877 = vmul.f32 %v2873, %v2031
        %v2878 = vadd.f32 %v2868, %v2874
        %v2879 = vadd.f32 %v2869, %v2875
        %v2880 = vadd.f32 %v2870, %v2876
        %v2881 = vadd.f32 %v2871, %v2877
        %s2882 = sld [smem:[#allocation2 + $0x92]]
        %v2883 = vstv %s2882
        %v2884 = vmul.f32 %v2883, %v2080
        %v2885 = vmul.f32 %v2883, %v2081
        %v2886 = vmul.f32 %v2883, %v2082
        %v2887 = vmul.f32 %v2883, %v2083
        %v2888 = vadd.f32 %v2878, %v2884
        %v2889 = vadd.f32 %v2879, %v2885
        %v2890 = vadd.f32 %v2880, %v2886
        %v2891 = vadd.f32 %v2881, %v2887
        %s2892 = sld [smem:[#allocation2 + $0x93]]
        %v2893 = vstv %s2892
        %v2894 = vmul.f32 %v2893, %v2128
        %v2895 = vmul.f32 %v2893, %v2129
        %v2896 = vmul.f32 %v2893, %v2130
        %v2897 = vmul.f32 %v2893, %v2131
        %v2898 = vadd.f32 %v2888, %v2894
        %v2899 = vadd.f32 %v2889, %v2895
        %v2900 = vadd.f32 %v2890, %v2896
        %v2901 = vadd.f32 %v2891, %v2897
        %s2902 = sld [smem:[#allocation2 + $0x94]]
        %v2903 = vstv %s2902
        %v2904 = vmul.f32 %v2903, %v2176
        %v2905 = vmul.f32 %v2903, %v2177
        %v2906 = vmul.f32 %v2903, %v2178
        %v2907 = vmul.f32 %v2903, %v2179
        %v2908 = vadd.f32 %v2898, %v2904
        %v2909 = vadd.f32 %v2899, %v2905
        %v2910 = vadd.f32 %v2900, %v2906
        %v2911 = vadd.f32 %v2901, %v2907
        %s2912 = sld [smem:[#allocation2 + $0x95]]
        %v2913 = vstv %s2912
        %v2914 = vmul.f32 %v2913, %v2224
        %v2915 = vmul.f32 %v2913, %v2225
        %v2916 = vmul.f32 %v2913, %v2226
        %v2917 = vmul.f32 %v2913, %v2227
        %v2918 = vadd.f32 %v2908, %v2914
        %v2919 = vadd.f32 %v2909, %v2915
        %v2920 = vadd.f32 %v2910, %v2916
        %v2921 = vadd.f32 %v2911, %v2917
        %s2922 = sld [smem:[#allocation2 + $0x96]]
        %v2923 = vstv %s2922
        %v2924 = vmul.f32 %v2923, %v2236
        %v2925 = vmul.f32 %v2923, %v2237
        %v2926 = vmul.f32 %v2923, %v2238
        %v2927 = vmul.f32 %v2923, %v2239
        %v2928 = vadd.f32 %v2918, %v2924
        %v2929 = vadd.f32 %v2919, %v2925
        %v2930 = vadd.f32 %v2920, %v2926
        %v2931 = vadd.f32 %v2921, %v2927
        %s2932 = sld [smem:[#allocation2 + $0x97]]
        %v2933 = vstv %s2932
        %v2934 = vmul.f32 %v2933, %v2284
        %v2935 = vmul.f32 %v2933, %v2285
        %v2936 = vmul.f32 %v2933, %v2286
        %v2937 = vmul.f32 %v2933, %v2287
        %v2938 = vadd.f32 %v2928, %v2934
        %v2939 = vadd.f32 %v2929, %v2935
        %v2940 = vadd.f32 %v2930, %v2936
        %v2941 = vadd.f32 %v2931, %v2937
        %s2942 = sld [smem:[#allocation2 + $0x98]]
        %v2943 = vstv %s2942
        %v2944 = vmul.f32 %v2943, %v2332
        %v2945 = vmul.f32 %v2943, %v2333
        %v2946 = vmul.f32 %v2943, %v2334
        %v2947 = vmul.f32 %v2943, %v2335
        %v2948 = vadd.f32 %v2938, %v2944
        %v2949 = vadd.f32 %v2939, %v2945
        %v2950 = vadd.f32 %v2940, %v2946
        %v2951 = vadd.f32 %v2941, %v2947
        %s2952 = sld [smem:[#allocation2 + $0x99]]
        %v2953 = vstv %s2952
        %v2954 = vmul.f32 %v2953, %v2380
        %v2955 = vmul.f32 %v2953, %v2381
        %v2956 = vmul.f32 %v2953, %v2382
        %v2957 = vmul.f32 %v2953, %v2383
        %v2958 = vadd.f32 %v2948, %v2954
        %v2959 = vadd.f32 %v2949, %v2955
        %v2960 = vadd.f32 %v2950, %v2956
        %v2961 = vadd.f32 %v2951, %v2957
        %s2962 = sld [smem:[#allocation2 + $0x9a]]
        %v2963 = vstv %s2962
        %v2964 = vmul.f32 %v2963, %v2428
        %v2965 = vmul.f32 %v2963, %v2429
        %v2966 = vmul.f32 %v2963, %v2430
        %v2967 = vmul.f32 %v2963, %v2431
        %v2968 = vadd.f32 %v2958, %v2964
        %v2969 = vadd.f32 %v2959, %v2965
        %v2970 = vadd.f32 %v2960, %v2966
        %v2971 = vadd.f32 %v2961, %v2967
        %v2972 = vmul.f32 %v2968, %v1162
        %v2973 = vmul.f32 %v2969, %v1163
        %v2974 = vmul.f32 %v2970, %v1164
        %v2975 = vmul.f32 %v2971, %v1165
        %2976 = vst [vmem:[%s321] sm:$0xff] %v2972
        %2977 = vst [vmem:[%s321 + $0x8] sm:$0xff] %v2973
        %2978 = vst [vmem:[%s321 + $0x10] sm:$0xff] %v2974
        %2979 = vst [vmem:[%s321 + $0x18] sm:$0xff] %v2975
        %s2980 = sld [smem:[#allocation2 + $0x100]]
        %v2981 = vstv %s2980
        %v2982 = vmul.f32 %v2981, %v1281
        %v2983 = vmul.f32 %v2981, %v1282
        %v2984 = vmul.f32 %v2981, %v1283
        %v2985 = vmul.f32 %v2981, %v1284
        %s2986 = sld [smem:[#allocation2 + $0x101]]
        %v2987 = vstv %s2986
        %v2988 = vmul.f32 %v2987, %v1330
        %v2989 = vmul.f32 %v2987, %v1331
        %v2990 = vmul.f32 %v2987, %v1332
        %v2991 = vmul.f32 %v2987, %v1333
        %v2992 = vadd.f32 %v2982, %v2988
        %v2993 = vadd.f32 %v2983, %v2989
        %v2994 = vadd.f32 %v2984, %v2990
        %v2995 = vadd.f32 %v2985, %v2991
        %s2996 = sld [smem:[#allocation2 + $0x102]]
        %v2997 = vstv %s2996
        %v2998 = vmul.f32 %v2997, %v1379
        %v2999 = vmul.f32 %v2997, %v1380
        %v3000 = vmul.f32 %v2997, %v1381
        %v3001 = vmul.f32 %v2997, %v1382
        %v3002 = vadd.f32 %v2992, %v2998
        %v3003 = vadd.f32 %v2993, %v2999
        %v3004 = vadd.f32 %v2994, %v3000
        %v3005 = vadd.f32 %v2995, %v3001
        %s3006 = sld [smem:[#allocation2 + $0x103]]
        %v3007 = vstv %s3006
        %v3008 = vmul.f32 %v3007, %v1428
        %v3009 = vmul.f32 %v3007, %v1429
        %v3010 = vmul.f32 %v3007, %v1430
        %v3011 = vmul.f32 %v3007, %v1431
        %v3012 = vadd.f32 %v3002, %v3008
        %v3013 = vadd.f32 %v3003, %v3009
        %v3014 = vadd.f32 %v3004, %v3010
        %v3015 = vadd.f32 %v3005, %v3011
        %s3016 = sld [smem:[#allocation2 + $0x104]]
        %v3017 = vstv %s3016
        %v3018 = vmul.f32 %v3017, %v1440
        %v3019 = vmul.f32 %v3017, %v1441
        %v3020 = vmul.f32 %v3017, %v1442
        %v3021 = vmul.f32 %v3017, %v1443
        %v3022 = vadd.f32 %v3012, %v3018
        %v3023 = vadd.f32 %v3013, %v3019
        %v3024 = vadd.f32 %v3014, %v3020
        %v3025 = vadd.f32 %v3015, %v3021
        %s3026 = sld [smem:[#allocation2 + $0x105]]
        %v3027 = vstv %s3026
        %v3028 = vmul.f32 %v3027, %v1489
        %v3029 = vmul.f32 %v3027, %v1490
        %v3030 = vmul.f32 %v3027, %v1491
        %v3031 = vmul.f32 %v3027, %v1492
        %v3032 = vadd.f32 %v3022, %v3028
        %v3033 = vadd.f32 %v3023, %v3029
        %v3034 = vadd.f32 %v3024, %v3030
        %v3035 = vadd.f32 %v3025, %v3031
        %s3036 = sld [smem:[#allocation2 + $0x106]]
        %v3037 = vstv %s3036
        %v3038 = vmul.f32 %v3037, %v1538
        %v3039 = vmul.f32 %v3037, %v1539
        %v3040 = vmul.f32 %v3037, %v1540
        %v3041 = vmul.f32 %v3037, %v1541
        %v3042 = vadd.f32 %v3032, %v3038
        %v3043 = vadd.f32 %v3033, %v3039
        %v3044 = vadd.f32 %v3034, %v3040
        %v3045 = vadd.f32 %v3035, %v3041
        %s3046 = sld [smem:[#allocation2 + $0x107]]
        %v3047 = vstv %s3046
        %v3048 = vmul.f32 %v3047, %v1587
        %v3049 = vmul.f32 %v3047, %v1588
        %v3050 = vmul.f32 %v3047, %v1589
        %v3051 = vmul.f32 %v3047, %v1590
        %v3052 = vadd.f32 %v3042, %v3048
        %v3053 = vadd.f32 %v3043, %v3049
        %v3054 = vadd.f32 %v3044, %v3050
        %v3055 = vadd.f32 %v3045, %v3051
        %s3056 = sld [smem:[#allocation2 + $0x108]]
        %v3057 = vstv %s3056
        %v3058 = vmul.f32 %v3057, %v1636
        %v3059 = vmul.f32 %v3057, %v1637
        %v3060 = vmul.f32 %v3057, %v1638
        %v3061 = vmul.f32 %v3057, %v1639
        %v3062 = vadd.f32 %v3052, %v3058
        %v3063 = vadd.f32 %v3053, %v3059
        %v3064 = vadd.f32 %v3054, %v3060
        %v3065 = vadd.f32 %v3055, %v3061
        %s3066 = sld [smem:[#allocation2 + $0x109]]
        %v3067 = vstv %s3066
        %v3068 = vmul.f32 %v3067, %v1684
        %v3069 = vmul.f32 %v3067, %v1685
        %v3070 = vmul.f32 %v3067, %v1686
        %v3071 = vmul.f32 %v3067, %v1687
        %v3072 = vadd.f32 %v3062, %v3068
        %v3073 = vadd.f32 %v3063, %v3069
        %v3074 = vadd.f32 %v3064, %v3070
        %v3075 = vadd.f32 %v3065, %v3071
        %s3076 = sld [smem:[#allocation2 + $0x10a]]
        %v3077 = vstv %s3076
        %v3078 = vmul.f32 %v3077, %v1732
        %v3079 = vmul.f32 %v3077, %v1733
        %v3080 = vmul.f32 %v3077, %v1734
        %v3081 = vmul.f32 %v3077, %v1735
        %v3082 = vadd.f32 %v3072, %v3078
        %v3083 = vadd.f32 %v3073, %v3079
        %v3084 = vadd.f32 %v3074, %v3080
        %v3085 = vadd.f32 %v3075, %v3081
        %s3086 = sld [smem:[#allocation2 + $0x10b]]
        %v3087 = vstv %s3086
        %v3088 = vmul.f32 %v3087, %v1780
        %v3089 = vmul.f32 %v3087, %v1781
        %v3090 = vmul.f32 %v3087, %v1782
        %v3091 = vmul.f32 %v3087, %v1783
        %v3092 = vadd.f32 %v3082, %v3088
        %v3093 = vadd.f32 %v3083, %v3089
        %v3094 = vadd.f32 %v3084, %v3090
        %v3095 = vadd.f32 %v3085, %v3091
        %s3096 = sld [smem:[#allocation2 + $0x10c]]
        %v3097 = vstv %s3096
        %v3098 = vmul.f32 %v3097, %v1828
        %v3099 = vmul.f32 %v3097, %v1829
        %v3100 = vmul.f32 %v3097, %v1830
        %v3101 = vmul.f32 %v3097, %v1831
        %v3102 = vadd.f32 %v3092, %v3098
        %v3103 = vadd.f32 %v3093, %v3099
        %v3104 = vadd.f32 %v3094, %v3100
        %v3105 = vadd.f32 %v3095, %v3101
        %s3106 = sld [smem:[#allocation2 + $0x10d]]
        %v3107 = vstv %s3106
        %v3108 = vmul.f32 %v3107, %v1836
        %v3109 = vmul.f32 %v3107, %v1837
        %v3110 = vmul.f32 %v3107, %v1838
        %v3111 = vmul.f32 %v3107, %v1839
        %v3112 = vadd.f32 %v3102, %v3108
        %v3113 = vadd.f32 %v3103, %v3109
        %v3114 = vadd.f32 %v3104, %v3110
        %v3115 = vadd.f32 %v3105, %v3111
        %s3116 = sld [smem:[#allocation2 + $0x10e]]
        %v3117 = vstv %s3116
        %v3118 = vmul.f32 %v3117, %v1884
        %v3119 = vmul.f32 %v3117, %v1885
        %v3120 = vmul.f32 %v3117, %v1886
        %v3121 = vmul.f32 %v3117, %v1887
        %v3122 = vadd.f32 %v3112, %v3118
        %v3123 = vadd.f32 %v3113, %v3119
        %v3124 = vadd.f32 %v3114, %v3120
        %v3125 = vadd.f32 %v3115, %v3121
        %s3126 = sld [smem:[#allocation2 + $0x10f]]
        %v3127 = vstv %s3126
        %v3128 = vmul.f32 %v3127, %v1932
        %v3129 = vmul.f32 %v3127, %v1933
        %v3130 = vmul.f32 %v3127, %v1934
        %v3131 = vmul.f32 %v3127, %v1935
        %v3132 = vadd.f32 %v3122, %v3128
        %v3133 = vadd.f32 %v3123, %v3129
        %v3134 = vadd.f32 %v3124, %v3130
        %v3135 = vadd.f32 %v3125, %v3131
        %s3136 = sld [smem:[#allocation2 + $0x110]]
        %v3137 = vstv %s3136
        %v3138 = vmul.f32 %v3137, %v1980
        %v3139 = vmul.f32 %v3137, %v1981
        %v3140 = vmul.f32 %v3137, %v1982
        %v3141 = vmul.f32 %v3137, %v1983
        %v3142 = vadd.f32 %v3132, %v3138
        %v3143 = vadd.f32 %v3133, %v3139
        %v3144 = vadd.f32 %v3134, %v3140
        %v3145 = vadd.f32 %v3135, %v3141
        %s3146 = sld [smem:[#allocation2 + $0x111]]
        %v3147 = vstv %s3146
        %v3148 = vmul.f32 %v3147, %v2028
        %v3149 = vmul.f32 %v3147, %v2029
        %v3150 = vmul.f32 %v3147, %v2030
        %v3151 = vmul.f32 %v3147, %v2031
        %v3152 = vadd.f32 %v3142, %v3148
        %v3153 = vadd.f32 %v3143, %v3149
        %v3154 = vadd.f32 %v3144, %v3150
        %v3155 = vadd.f32 %v3145, %v3151
        %s3156 = sld [smem:[#allocation2 + $0x112]]
        %v3157 = vstv %s3156
        %v3158 = vmul.f32 %v3157, %v2080
        %v3159 = vmul.f32 %v3157, %v2081
        %v3160 = vmul.f32 %v3157, %v2082
        %v3161 = vmul.f32 %v3157, %v2083
        %v3162 = vadd.f32 %v3152, %v3158
        %v3163 = vadd.f32 %v3153, %v3159
        %v3164 = vadd.f32 %v3154, %v3160
        %v3165 = vadd.f32 %v3155, %v3161
        %s3166 = sld [smem:[#allocation2 + $0x113]]
        %v3167 = vstv %s3166
        %v3168 = vmul.f32 %v3167, %v2128
        %v3169 = vmul.f32 %v3167, %v2129
        %v3170 = vmul.f32 %v3167, %v2130
        %v3171 = vmul.f32 %v3167, %v2131
        %v3172 = vadd.f32 %v3162, %v3168
        %v3173 = vadd.f32 %v3163, %v3169
        %v3174 = vadd.f32 %v3164, %v3170
        %v3175 = vadd.f32 %v3165, %v3171
        %s3176 = sld [smem:[#allocation2 + $0x114]]
        %v3177 = vstv %s3176
        %v3178 = vmul.f32 %v3177, %v2176
        %v3179 = vmul.f32 %v3177, %v2177
        %v3180 = vmul.f32 %v3177, %v2178
        %v3181 = vmul.f32 %v3177, %v2179
        %v3182 = vadd.f32 %v3172, %v3178
        %v3183 = vadd.f32 %v3173, %v3179
        %v3184 = vadd.f32 %v3174, %v3180
        %v3185 = vadd.f32 %v3175, %v3181
        %s3186 = sld [smem:[#allocation2 + $0x115]]
        %v3187 = vstv %s3186
        %v3188 = vmul.f32 %v3187, %v2224
        %v3189 = vmul.f32 %v3187, %v2225
        %v3190 = vmul.f32 %v3187, %v2226
        %v3191 = vmul.f32 %v3187, %v2227
        %v3192 = vadd.f32 %v3182, %v3188
        %v3193 = vadd.f32 %v3183, %v3189
        %v3194 = vadd.f32 %v3184, %v3190
        %v3195 = vadd.f32 %v3185, %v3191
        %s3196 = sld [smem:[#allocation2 + $0x116]]
        %v3197 = vstv %s3196
        %v3198 = vmul.f32 %v3197, %v2236
        %v3199 = vmul.f32 %v3197, %v2237
        %v3200 = vmul.f32 %v3197, %v2238
        %v3201 = vmul.f32 %v3197, %v2239
        %v3202 = vadd.f32 %v3192, %v3198
        %v3203 = vadd.f32 %v3193, %v3199
        %v3204 = vadd.f32 %v3194, %v3200
        %v3205 = vadd.f32 %v3195, %v3201
        %s3206 = sld [smem:[#allocation2 + $0x117]]
        %v3207 = vstv %s3206
        %v3208 = vmul.f32 %v3207, %v2284
        %v3209 = vmul.f32 %v3207, %v2285
        %v3210 = vmul.f32 %v3207, %v2286
        %v3211 = vmul.f32 %v3207, %v2287
        %v3212 = vadd.f32 %v3202, %v3208
        %v3213 = vadd.f32 %v3203, %v3209
        %v3214 = vadd.f32 %v3204, %v3210
        %v3215 = vadd.f32 %v3205, %v3211
        %s3216 = sld [smem:[#allocation2 + $0x118]]
        %v3217 = vstv %s3216
        %v3218 = vmul.f32 %v3217, %v2332
        %v3219 = vmul.f32 %v3217, %v2333
        %v3220 = vmul.f32 %v3217, %v2334
        %v3221 = vmul.f32 %v3217, %v2335
        %v3222 = vadd.f32 %v3212, %v3218
        %v3223 = vadd.f32 %v3213, %v3219
        %v3224 = vadd.f32 %v3214, %v3220
        %v3225 = vadd.f32 %v3215, %v3221
        %s3226 = sld [smem:[#allocation2 + $0x119]]
        %v3227 = vstv %s3226
        %v3228 = vmul.f32 %v3227, %v2380
        %v3229 = vmul.f32 %v3227, %v2381
        %v3230 = vmul.f32 %v3227, %v2382
        %v3231 = vmul.f32 %v3227, %v2383
        %v3232 = vadd.f32 %v3222, %v3228
        %v3233 = vadd.f32 %v3223, %v3229
        %v3234 = vadd.f32 %v3224, %v3230
        %v3235 = vadd.f32 %v3225, %v3231
        %s3236 = sld [smem:[#allocation2 + $0x11a]]
        %v3237 = vstv %s3236
        %v3238 = vmul.f32 %v3237, %v2428
        %v3239 = vmul.f32 %v3237, %v2429
        %v3240 = vmul.f32 %v3237, %v2430
        %v3241 = vmul.f32 %v3237, %v2431
        %v3242 = vadd.f32 %v3232, %v3238
        %v3243 = vadd.f32 %v3233, %v3239
        %v3244 = vadd.f32 %v3234, %v3240
        %v3245 = vadd.f32 %v3235, %v3241
        %v3246 = vmul.f32 %v3242, %v1162
        %v3247 = vmul.f32 %v3243, %v1163
        %v3248 = vmul.f32 %v3244, %v1164
        %v3249 = vmul.f32 %v3245, %v1165
        %s3250 = scalar_lea.vmem %s321, 32 [#allocation11]
        %3251 = vst [vmem:[%s3250] sm:$0xff] %v3246
        %3252 = vst [vmem:[%s3250 + $0x8] sm:$0xff] %v3247
        %3253 = vst [vmem:[%s3250 + $0x10] sm:$0xff] %v3248
        %3254 = vst [vmem:[%s3250 + $0x18] sm:$0xff] %v3249
        %s3255 = sld [smem:[#allocation2 + $0x180]]
        %v3256 = vstv %s3255
        %v3257 = vmul.f32 %v3256, %v1281
        %v3258 = vmul.f32 %v3256, %v1282
        %v3259 = vmul.f32 %v3256, %v1283
        %v3260 = vmul.f32 %v3256, %v1284
        %s3261 = sld [smem:[#allocation2 + $0x181]]
        %v3262 = vstv %s3261
        %v3263 = vmul.f32 %v3262, %v1330
        %v3264 = vmul.f32 %v3262, %v1331
        %v3265 = vmul.f32 %v3262, %v1332
        %v3266 = vmul.f32 %v3262, %v1333
        %v3267 = vadd.f32 %v3257, %v3263
        %v3268 = vadd.f32 %v3258, %v3264
        %v3269 = vadd.f32 %v3259, %v3265
        %v3270 = vadd.f32 %v3260, %v3266
        %s3271 = sld [smem:[#allocation2 + $0x182]]
        %v3272 = vstv %s3271
        %v3273 = vmul.f32 %v3272, %v1379
        %v3274 = vmul.f32 %v3272, %v1380
        %v3275 = vmul.f32 %v3272, %v1381
        %v3276 = vmul.f32 %v3272, %v1382
        %v3277 = vadd.f32 %v3267, %v3273
        %v3278 = vadd.f32 %v3268, %v3274
        %v3279 = vadd.f32 %v3269, %v3275
        %v3280 = vadd.f32 %v3270, %v3276
        %s3281 = sld [smem:[#allocation2 + $0x183]]
        %v3282 = vstv %s3281
        %v3283 = vmul.f32 %v3282, %v1428
        %v3284 = vmul.f32 %v3282, %v1429
        %v3285 = vmul.f32 %v3282, %v1430
        %v3286 = vmul.f32 %v3282, %v1431
        %v3287 = vadd.f32 %v3277, %v3283
        %v3288 = vadd.f32 %v3278, %v3284
        %v3289 = vadd.f32 %v3279, %v3285
        %v3290 = vadd.f32 %v3280, %v3286
        %s3291 = sld [smem:[#allocation2 + $0x184]]
        %v3292 = vstv %s3291
        %v3293 = vmul.f32 %v3292, %v1440
        %v3294 = vmul.f32 %v3292, %v1441
        %v3295 = vmul.f32 %v3292, %v1442
        %v3296 = vmul.f32 %v3292, %v1443
        %v3297 = vadd.f32 %v3287, %v3293
        %v3298 = vadd.f32 %v3288, %v3294
        %v3299 = vadd.f32 %v3289, %v3295
        %v3300 = vadd.f32 %v3290, %v3296
        %s3301 = sld [smem:[#allocation2 + $0x185]]
        %v3302 = vstv %s3301
        %v3303 = vmul.f32 %v3302, %v1489
        %v3304 = vmul.f32 %v3302, %v1490
        %v3305 = vmul.f32 %v3302, %v1491
        %v3306 = vmul.f32 %v3302, %v1492
        %v3307 = vadd.f32 %v3297, %v3303
        %v3308 = vadd.f32 %v3298, %v3304
        %v3309 = vadd.f32 %v3299, %v3305
        %v3310 = vadd.f32 %v3300, %v3306
        %s3311 = sld [smem:[#allocation2 + $0x186]]
        %v3312 = vstv %s3311
        %v3313 = vmul.f32 %v3312, %v1538
        %v3314 = vmul.f32 %v3312, %v1539
        %v3315 = vmul.f32 %v3312, %v1540
        %v3316 = vmul.f32 %v3312, %v1541
        %v3317 = vadd.f32 %v3307, %v3313
        %v3318 = vadd.f32 %v3308, %v3314
        %v3319 = vadd.f32 %v3309, %v3315
        %v3320 = vadd.f32 %v3310, %v3316
        %s3321 = sld [smem:[#allocation2 + $0x187]]
        %v3322 = vstv %s3321
        %v3323 = vmul.f32 %v3322, %v1587
        %v3324 = vmul.f32 %v3322, %v1588
        %v3325 = vmul.f32 %v3322, %v1589
        %v3326 = vmul.f32 %v3322, %v1590
        %v3327 = vadd.f32 %v3317, %v3323
        %v3328 = vadd.f32 %v3318, %v3324
        %v3329 = vadd.f32 %v3319, %v3325
        %v3330 = vadd.f32 %v3320, %v3326
        %s3331 = sld [smem:[#allocation2 + $0x188]]
        %v3332 = vstv %s3331
        %v3333 = vmul.f32 %v3332, %v1636
        %v3334 = vmul.f32 %v3332, %v1637
        %v3335 = vmul.f32 %v3332, %v1638
        %v3336 = vmul.f32 %v3332, %v1639
        %v3337 = vadd.f32 %v3327, %v3333
        %v3338 = vadd.f32 %v3328, %v3334
        %v3339 = vadd.f32 %v3329, %v3335
        %v3340 = vadd.f32 %v3330, %v3336
        %s3341 = sld [smem:[#allocation2 + $0x189]]
        %v3342 = vstv %s3341
        %v3343 = vmul.f32 %v3342, %v1684
        %v3344 = vmul.f32 %v3342, %v1685
        %v3345 = vmul.f32 %v3342, %v1686
        %v3346 = vmul.f32 %v3342, %v1687
        %v3347 = vadd.f32 %v3337, %v3343
        %v3348 = vadd.f32 %v3338, %v3344
        %v3349 = vadd.f32 %v3339, %v3345
        %v3350 = vadd.f32 %v3340, %v3346
        %s3351 = sld [smem:[#allocation2 + $0x18a]]
        %v3352 = vstv %s3351
        %v3353 = vmul.f32 %v3352, %v1732
        %v3354 = vmul.f32 %v3352, %v1733
        %v3355 = vmul.f32 %v3352, %v1734
        %v3356 = vmul.f32 %v3352, %v1735
        %v3357 = vadd.f32 %v3347, %v3353
        %v3358 = vadd.f32 %v3348, %v3354
        %v3359 = vadd.f32 %v3349, %v3355
        %v3360 = vadd.f32 %v3350, %v3356
        %s3361 = sld [smem:[#allocation2 + $0x18b]]
        %v3362 = vstv %s3361
        %v3363 = vmul.f32 %v3362, %v1780
        %v3364 = vmul.f32 %v3362, %v1781
        %v3365 = vmul.f32 %v3362, %v1782
        %v3366 = vmul.f32 %v3362, %v1783
        %v3367 = vadd.f32 %v3357, %v3363
        %v3368 = vadd.f32 %v3358, %v3364
        %v3369 = vadd.f32 %v3359, %v3365
        %v3370 = vadd.f32 %v3360, %v3366
        %s3371 = sld [smem:[#allocation2 + $0x18c]]
        %v3372 = vstv %s3371
        %v3373 = vmul.f32 %v3372, %v1828
        %v3374 = vmul.f32 %v3372, %v1829
        %v3375 = vmul.f32 %v3372, %v1830
        %v3376 = vmul.f32 %v3372, %v1831
        %v3377 = vadd.f32 %v3367, %v3373
        %v3378 = vadd.f32 %v3368, %v3374
        %v3379 = vadd.f32 %v3369, %v3375
        %v3380 = vadd.f32 %v3370, %v3376
        %s3381 = sld [smem:[#allocation2 + $0x18d]]
        %v3382 = vstv %s3381
        %v3383 = vmul.f32 %v3382, %v1836
        %v3384 = vmul.f32 %v3382, %v1837
        %v3385 = vmul.f32 %v3382, %v1838
        %v3386 = vmul.f32 %v3382, %v1839
        %v3387 = vadd.f32 %v3377, %v3383
        %v3388 = vadd.f32 %v3378, %v3384
        %v3389 = vadd.f32 %v3379, %v3385
        %v3390 = vadd.f32 %v3380, %v3386
        %s3391 = sld [smem:[#allocation2 + $0x18e]]
        %v3392 = vstv %s3391
        %v3393 = vmul.f32 %v3392, %v1884
        %v3394 = vmul.f32 %v3392, %v1885
        %v3395 = vmul.f32 %v3392, %v1886
        %v3396 = vmul.f32 %v3392, %v1887
        %v3397 = vadd.f32 %v3387, %v3393
        %v3398 = vadd.f32 %v3388, %v3394
        %v3399 = vadd.f32 %v3389, %v3395
        %v3400 = vadd.f32 %v3390, %v3396
        %s3401 = sld [smem:[#allocation2 + $0x18f]]
        %v3402 = vstv %s3401
        %v3403 = vmul.f32 %v3402, %v1932
        %v3404 = vmul.f32 %v3402, %v1933
        %v3405 = vmul.f32 %v3402, %v1934
        %v3406 = vmul.f32 %v3402, %v1935
        %v3407 = vadd.f32 %v3397, %v3403
        %v3408 = vadd.f32 %v3398, %v3404
        %v3409 = vadd.f32 %v3399, %v3405
        %v3410 = vadd.f32 %v3400, %v3406
        %s3411 = sld [smem:[#allocation2 + $0x190]]
        %v3412 = vstv %s3411
        %v3413 = vmul.f32 %v3412, %v1980
        %v3414 = vmul.f32 %v3412, %v1981
        %v3415 = vmul.f32 %v3412, %v1982
        %v3416 = vmul.f32 %v3412, %v1983
        %v3417 = vadd.f32 %v3407, %v3413
        %v3418 = vadd.f32 %v3408, %v3414
        %v3419 = vadd.f32 %v3409, %v3415
        %v3420 = vadd.f32 %v3410, %v3416
        %s3421 = sld [smem:[#allocation2 + $0x191]]
        %v3422 = vstv %s3421
        %v3423 = vmul.f32 %v3422, %v2028
        %v3424 = vmul.f32 %v3422, %v2029
        %v3425 = vmul.f32 %v3422, %v2030
        %v3426 = vmul.f32 %v3422, %v2031
        %v3427 = vadd.f32 %v3417, %v3423
        %v3428 = vadd.f32 %v3418, %v3424
        %v3429 = vadd.f32 %v3419, %v3425
        %v3430 = vadd.f32 %v3420, %v3426
        %s3431 = sld [smem:[#allocation2 + $0x192]]
        %v3432 = vstv %s3431
        %v3433 = vmul.f32 %v3432, %v2080
        %v3434 = vmul.f32 %v3432, %v2081
        %v3435 = vmul.f32 %v3432, %v2082
        %v3436 = vmul.f32 %v3432, %v2083
        %v3437 = vadd.f32 %v3427, %v3433
        %v3438 = vadd.f32 %v3428, %v3434
        %v3439 = vadd.f32 %v3429, %v3435
        %v3440 = vadd.f32 %v3430, %v3436
        %s3441 = sld [smem:[#allocation2 + $0x193]]
        %v3442 = vstv %s3441
        %v3443 = vmul.f32 %v3442, %v2128
        %v3444 = vmul.f32 %v3442, %v2129
        %v3445 = vmul.f32 %v3442, %v2130
        %v3446 = vmul.f32 %v3442, %v2131
        %v3447 = vadd.f32 %v3437, %v3443
        %v3448 = vadd.f32 %v3438, %v3444
        %v3449 = vadd.f32 %v3439, %v3445
        %v3450 = vadd.f32 %v3440, %v3446
        %s3451 = sld [smem:[#allocation2 + $0x194]]
        %v3452 = vstv %s3451
        %v3453 = vmul.f32 %v3452, %v2176
        %v3454 = vmul.f32 %v3452, %v2177
        %v3455 = vmul.f32 %v3452, %v2178
        %v3456 = vmul.f32 %v3452, %v2179
        %v3457 = vadd.f32 %v3447, %v3453
        %v3458 = vadd.f32 %v3448, %v3454
        %v3459 = vadd.f32 %v3449, %v3455
        %v3460 = vadd.f32 %v3450, %v3456
        %s3461 = sld [smem:[#allocation2 + $0x195]]
        %v3462 = vstv %s3461
        %v3463 = vmul.f32 %v3462, %v2224
        %v3464 = vmul.f32 %v3462, %v2225
        %v3465 = vmul.f32 %v3462, %v2226
        %v3466 = vmul.f32 %v3462, %v2227
        %v3467 = vadd.f32 %v3457, %v3463
        %v3468 = vadd.f32 %v3458, %v3464
        %v3469 = vadd.f32 %v3459, %v3465
        %v3470 = vadd.f32 %v3460, %v3466
        %s3471 = sld [smem:[#allocation2 + $0x196]]
        %v3472 = vstv %s3471
        %v3473 = vmul.f32 %v3472, %v2236
        %v3474 = vmul.f32 %v3472, %v2237
        %v3475 = vmul.f32 %v3472, %v2238
        %v3476 = vmul.f32 %v3472, %v2239
        %v3477 = vadd.f32 %v3467, %v3473
        %v3478 = vadd.f32 %v3468, %v3474
        %v3479 = vadd.f32 %v3469, %v3475
        %v3480 = vadd.f32 %v3470, %v3476
        %s3481 = sld [smem:[#allocation2 + $0x197]]
        %v3482 = vstv %s3481
        %v3483 = vmul.f32 %v3482, %v2284
        %v3484 = vmul.f32 %v3482, %v2285
        %v3485 = vmul.f32 %v3482, %v2286
        %v3486 = vmul.f32 %v3482, %v2287
        %v3487 = vadd.f32 %v3477, %v3483
        %v3488 = vadd.f32 %v3478, %v3484
        %v3489 = vadd.f32 %v3479, %v3485
        %v3490 = vadd.f32 %v3480, %v3486
        %s3491 = sld [smem:[#allocation2 + $0x198]]
        %v3492 = vstv %s3491
        %v3493 = vmul.f32 %v3492, %v2332
        %v3494 = vmul.f32 %v3492, %v2333
        %v3495 = vmul.f32 %v3492, %v2334
        %v3496 = vmul.f32 %v3492, %v2335
        %v3497 = vadd.f32 %v3487, %v3493
        %v3498 = vadd.f32 %v3488, %v3494
        %v3499 = vadd.f32 %v3489, %v3495
        %v3500 = vadd.f32 %v3490, %v3496
        %s3501 = sld [smem:[#allocation2 + $0x199]]
        %v3502 = vstv %s3501
        %v3503 = vmul.f32 %v3502, %v2380
        %v3504 = vmul.f32 %v3502, %v2381
        %v3505 = vmul.f32 %v3502, %v2382
        %v3506 = vmul.f32 %v3502, %v2383
        %v3507 = vadd.f32 %v3497, %v3503
        %v3508 = vadd.f32 %v3498, %v3504
        %v3509 = vadd.f32 %v3499, %v3505
        %v3510 = vadd.f32 %v3500, %v3506
        %s3511 = sld [smem:[#allocation2 + $0x19a]]
        %v3512 = vstv %s3511
        %v3513 = vmul.f32 %v3512, %v2428
        %v3514 = vmul.f32 %v3512, %v2429
        %v3515 = vmul.f32 %v3512, %v2430
        %v3516 = vmul.f32 %v3512, %v2431
        %v3517 = vadd.f32 %v3507, %v3513
        %v3518 = vadd.f32 %v3508, %v3514
        %v3519 = vadd.f32 %v3509, %v3515
        %v3520 = vadd.f32 %v3510, %v3516
        %v3521 = vmul.f32 %v3517, %v1162
        %v3522 = vmul.f32 %v3518, %v1163
        %v3523 = vmul.f32 %v3519, %v1164
        %v3524 = vmul.f32 %v3520, %v1165
        %s3525 = scalar_lea.vmem %s321, 64 [#allocation11]
        %3526 = vst [vmem:[%s3525] sm:$0xff] %v3521
        %3527 = vst [vmem:[%s3525 + $0x8] sm:$0xff] %v3522
        %3528 = vst [vmem:[%s3525 + $0x10] sm:$0xff] %v3523
        %3529 = vst [vmem:[%s3525 + $0x18] sm:$0xff] %v3524
        %s3530 = sld [smem:[#allocation2 + $0x200]]
        %v3531 = vstv %s3530
        %v3532 = vmul.f32 %v3531, %v1281
        %v3533 = vmul.f32 %v3531, %v1282
        %v3534 = vmul.f32 %v3531, %v1283
        %v3535 = vmul.f32 %v3531, %v1284
        %s3536 = sld [smem:[#allocation2 + $0x201]]
        %v3537 = vstv %s3536
        %v3538 = vmul.f32 %v3537, %v1330
        %v3539 = vmul.f32 %v3537, %v1331
        %v3540 = vmul.f32 %v3537, %v1332
        %v3541 = vmul.f32 %v3537, %v1333
        %v3542 = vadd.f32 %v3532, %v3538
        %v3543 = vadd.f32 %v3533, %v3539
        %v3544 = vadd.f32 %v3534, %v3540
        %v3545 = vadd.f32 %v3535, %v3541
        %s3546 = sld [smem:[#allocation2 + $0x202]]
        %v3547 = vstv %s3546
        %v3548 = vmul.f32 %v3547, %v1379
        %v3549 = vmul.f32 %v3547, %v1380
        %v3550 = vmul.f32 %v3547, %v1381
        %v3551 = vmul.f32 %v3547, %v1382
        %v3552 = vadd.f32 %v3542, %v3548
        %v3553 = vadd.f32 %v3543, %v3549
        %v3554 = vadd.f32 %v3544, %v3550
        %v3555 = vadd.f32 %v3545, %v3551
        %s3556 = sld [smem:[#allocation2 + $0x203]]
        %v3557 = vstv %s3556
        %v3558 = vmul.f32 %v3557, %v1428
        %v3559 = vmul.f32 %v3557, %v1429
        %v3560 = vmul.f32 %v3557, %v1430
        %v3561 = vmul.f32 %v3557, %v1431
        %v3562 = vadd.f32 %v3552, %v3558
        %v3563 = vadd.f32 %v3553, %v3559
        %v3564 = vadd.f32 %v3554, %v3560
        %v3565 = vadd.f32 %v3555, %v3561
        %s3566 = sld [smem:[#allocation2 + $0x204]]
        %v3567 = vstv %s3566
        %v3568 = vmul.f32 %v3567, %v1440
        %v3569 = vmul.f32 %v3567, %v1441
        %v3570 = vmul.f32 %v3567, %v1442
        %v3571 = vmul.f32 %v3567, %v1443
        %v3572 = vadd.f32 %v3562, %v3568
        %v3573 = vadd.f32 %v3563, %v3569
        %v3574 = vadd.f32 %v3564, %v3570
        %v3575 = vadd.f32 %v3565, %v3571
        %s3576 = sld [smem:[#allocation2 + $0x205]]
        %v3577 = vstv %s3576
        %v3578 = vmul.f32 %v3577, %v1489
        %v3579 = vmul.f32 %v3577, %v1490
        %v3580 = vmul.f32 %v3577, %v1491
        %v3581 = vmul.f32 %v3577, %v1492
        %v3582 = vadd.f32 %v3572, %v3578
        %v3583 = vadd.f32 %v3573, %v3579
        %v3584 = vadd.f32 %v3574, %v3580
        %v3585 = vadd.f32 %v3575, %v3581
        %s3586 = sld [smem:[#allocation2 + $0x206]]
        %v3587 = vstv %s3586
        %v3588 = vmul.f32 %v3587, %v1538
        %v3589 = vmul.f32 %v3587, %v1539
        %v3590 = vmul.f32 %v3587, %v1540
        %v3591 = vmul.f32 %v3587, %v1541
        %v3592 = vadd.f32 %v3582, %v3588
        %v3593 = vadd.f32 %v3583, %v3589
        %v3594 = vadd.f32 %v3584, %v3590
        %v3595 = vadd.f32 %v3585, %v3591
        %s3596 = sld [smem:[#allocation2 + $0x207]]
        %v3597 = vstv %s3596
        %v3598 = vmul.f32 %v3597, %v1587
        %v3599 = vmul.f32 %v3597, %v1588
        %v3600 = vmul.f32 %v3597, %v1589
        %v3601 = vmul.f32 %v3597, %v1590
        %v3602 = vadd.f32 %v3592, %v3598
        %v3603 = vadd.f32 %v3593, %v3599
        %v3604 = vadd.f32 %v3594, %v3600
        %v3605 = vadd.f32 %v3595, %v3601
        %s3606 = sld [smem:[#allocation2 + $0x208]]
        %v3607 = vstv %s3606
        %v3608 = vmul.f32 %v3607, %v1636
        %v3609 = vmul.f32 %v3607, %v1637
        %v3610 = vmul.f32 %v3607, %v1638
        %v3611 = vmul.f32 %v3607, %v1639
        %v3612 = vadd.f32 %v3602, %v3608
        %v3613 = vadd.f32 %v3603, %v3609
        %v3614 = vadd.f32 %v3604, %v3610
        %v3615 = vadd.f32 %v3605, %v3611
        %s3616 = sld [smem:[#allocation2 + $0x209]]
        %v3617 = vstv %s3616
        %v3618 = vmul.f32 %v3617, %v1684
        %v3619 = vmul.f32 %v3617, %v1685
        %v3620 = vmul.f32 %v3617, %v1686
        %v3621 = vmul.f32 %v3617, %v1687
        %v3622 = vadd.f32 %v3612, %v3618
        %v3623 = vadd.f32 %v3613, %v3619
        %v3624 = vadd.f32 %v3614, %v3620
        %v3625 = vadd.f32 %v3615, %v3621
        %s3626 = sld [smem:[#allocation2 + $0x20a]]
        %v3627 = vstv %s3626
        %v3628 = vmul.f32 %v3627, %v1732
        %v3629 = vmul.f32 %v3627, %v1733
        %v3630 = vmul.f32 %v3627, %v1734
        %v3631 = vmul.f32 %v3627, %v1735
        %v3632 = vadd.f32 %v3622, %v3628
        %v3633 = vadd.f32 %v3623, %v3629
        %v3634 = vadd.f32 %v3624, %v3630
        %v3635 = vadd.f32 %v3625, %v3631
        %s3636 = sld [smem:[#allocation2 + $0x20b]]
        %v3637 = vstv %s3636
        %v3638 = vmul.f32 %v3637, %v1780
        %v3639 = vmul.f32 %v3637, %v1781
        %v3640 = vmul.f32 %v3637, %v1782
        %v3641 = vmul.f32 %v3637, %v1783
        %v3642 = vadd.f32 %v3632, %v3638
        %v3643 = vadd.f32 %v3633, %v3639
        %v3644 = vadd.f32 %v3634, %v3640
        %v3645 = vadd.f32 %v3635, %v3641
        %s3646 = sld [smem:[#allocation2 + $0x20c]]
        %v3647 = vstv %s3646
        %v3648 = vmul.f32 %v3647, %v1828
        %v3649 = vmul.f32 %v3647, %v1829
        %v3650 = vmul.f32 %v3647, %v1830
        %v3651 = vmul.f32 %v3647, %v1831
        %v3652 = vadd.f32 %v3642, %v3648
        %v3653 = vadd.f32 %v3643, %v3649
        %v3654 = vadd.f32 %v3644, %v3650
        %v3655 = vadd.f32 %v3645, %v3651
        %s3656 = sld [smem:[#allocation2 + $0x20d]]
        %v3657 = vstv %s3656
        %v3658 = vmul.f32 %v3657, %v1836
        %v3659 = vmul.f32 %v3657, %v1837
        %v3660 = vmul.f32 %v3657, %v1838
        %v3661 = vmul.f32 %v3657, %v1839
        %v3662 = vadd.f32 %v3652, %v3658
        %v3663 = vadd.f32 %v3653, %v3659
        %v3664 = vadd.f32 %v3654, %v3660
        %v3665 = vadd.f32 %v3655, %v3661
        %s3666 = sld [smem:[#allocation2 + $0x20e]]
        %v3667 = vstv %s3666
        %v3668 = vmul.f32 %v3667, %v1884
        %v3669 = vmul.f32 %v3667, %v1885
        %v3670 = vmul.f32 %v3667, %v1886
        %v3671 = vmul.f32 %v3667, %v1887
        %v3672 = vadd.f32 %v3662, %v3668
        %v3673 = vadd.f32 %v3663, %v3669
        %v3674 = vadd.f32 %v3664, %v3670
        %v3675 = vadd.f32 %v3665, %v3671
        %s3676 = sld [smem:[#allocation2 + $0x20f]]
        %v3677 = vstv %s3676
        %v3678 = vmul.f32 %v3677, %v1932
        %v3679 = vmul.f32 %v3677, %v1933
        %v3680 = vmul.f32 %v3677, %v1934
        %v3681 = vmul.f32 %v3677, %v1935
        %v3682 = vadd.f32 %v3672, %v3678
        %v3683 = vadd.f32 %v3673, %v3679
        %v3684 = vadd.f32 %v3674, %v3680
        %v3685 = vadd.f32 %v3675, %v3681
        %s3686 = sld [smem:[#allocation2 + $0x210]]
        %v3687 = vstv %s3686
        %v3688 = vmul.f32 %v3687, %v1980
        %v3689 = vmul.f32 %v3687, %v1981
        %v3690 = vmul.f32 %v3687, %v1982
        %v3691 = vmul.f32 %v3687, %v1983
        %v3692 = vadd.f32 %v3682, %v3688
        %v3693 = vadd.f32 %v3683, %v3689
        %v3694 = vadd.f32 %v3684, %v3690
        %v3695 = vadd.f32 %v3685, %v3691
        %s3696 = sld [smem:[#allocation2 + $0x211]]
        %v3697 = vstv %s3696
        %v3698 = vmul.f32 %v3697, %v2028
        %v3699 = vmul.f32 %v3697, %v2029
        %v3700 = vmul.f32 %v3697, %v2030
        %v3701 = vmul.f32 %v3697, %v2031
        %v3702 = vadd.f32 %v3692, %v3698
        %v3703 = vadd.f32 %v3693, %v3699
        %v3704 = vadd.f32 %v3694, %v3700
        %v3705 = vadd.f32 %v3695, %v3701
        %s3706 = sld [smem:[#allocation2 + $0x212]]
        %v3707 = vstv %s3706
        %v3708 = vmul.f32 %v3707, %v2080
        %v3709 = vmul.f32 %v3707, %v2081
        %v3710 = vmul.f32 %v3707, %v2082
        %v3711 = vmul.f32 %v3707, %v2083
        %v3712 = vadd.f32 %v3702, %v3708
        %v3713 = vadd.f32 %v3703, %v3709
        %v3714 = vadd.f32 %v3704, %v3710
        %v3715 = vadd.f32 %v3705, %v3711
        %s3716 = sld [smem:[#allocation2 + $0x213]]
        %v3717 = vstv %s3716
        %v3718 = vmul.f32 %v3717, %v2128
        %v3719 = vmul.f32 %v3717, %v2129
        %v3720 = vmul.f32 %v3717, %v2130
        %v3721 = vmul.f32 %v3717, %v2131
        %v3722 = vadd.f32 %v3712, %v3718
        %v3723 = vadd.f32 %v3713, %v3719
        %v3724 = vadd.f32 %v3714, %v3720
        %v3725 = vadd.f32 %v3715, %v3721
        %s3726 = sld [smem:[#allocation2 + $0x214]]
        %v3727 = vstv %s3726
        %v3728 = vmul.f32 %v3727, %v2176
        %v3729 = vmul.f32 %v3727, %v2177
        %v3730 = vmul.f32 %v3727, %v2178
        %v3731 = vmul.f32 %v3727, %v2179
        %v3732 = vadd.f32 %v3722, %v3728
        %v3733 = vadd.f32 %v3723, %v3729
        %v3734 = vadd.f32 %v3724, %v3730
        %v3735 = vadd.f32 %v3725, %v3731
        %s3736 = sld [smem:[#allocation2 + $0x215]]
        %v3737 = vstv %s3736
        %v3738 = vmul.f32 %v3737, %v2224
        %v3739 = vmul.f32 %v3737, %v2225
        %v3740 = vmul.f32 %v3737, %v2226
        %v3741 = vmul.f32 %v3737, %v2227
        %v3742 = vadd.f32 %v3732, %v3738
        %v3743 = vadd.f32 %v3733, %v3739
        %v3744 = vadd.f32 %v3734, %v3740
        %v3745 = vadd.f32 %v3735, %v3741
        %s3746 = sld [smem:[#allocation2 + $0x216]]
        %v3747 = vstv %s3746
        %v3748 = vmul.f32 %v3747, %v2236
        %v3749 = vmul.f32 %v3747, %v2237
        %v3750 = vmul.f32 %v3747, %v2238
        %v3751 = vmul.f32 %v3747, %v2239
        %v3752 = vadd.f32 %v3742, %v3748
        %v3753 = vadd.f32 %v3743, %v3749
        %v3754 = vadd.f32 %v3744, %v3750
        %v3755 = vadd.f32 %v3745, %v3751
        %s3756 = sld [smem:[#allocation2 + $0x217]]
        %v3757 = vstv %s3756
        %v3758 = vmul.f32 %v3757, %v2284
        %v3759 = vmul.f32 %v3757, %v2285
        %v3760 = vmul.f32 %v3757, %v2286
        %v3761 = vmul.f32 %v3757, %v2287
        %v3762 = vadd.f32 %v3752, %v3758
        %v3763 = vadd.f32 %v3753, %v3759
        %v3764 = vadd.f32 %v3754, %v3760
        %v3765 = vadd.f32 %v3755, %v3761
        %s3766 = sld [smem:[#allocation2 + $0x218]]
        %v3767 = vstv %s3766
        %v3768 = vmul.f32 %v3767, %v2332
        %v3769 = vmul.f32 %v3767, %v2333
        %v3770 = vmul.f32 %v3767, %v2334
        %v3771 = vmul.f32 %v3767, %v2335
        %v3772 = vadd.f32 %v3762, %v3768
        %v3773 = vadd.f32 %v3763, %v3769
        %v3774 = vadd.f32 %v3764, %v3770
        %v3775 = vadd.f32 %v3765, %v3771
        %s3776 = sld [smem:[#allocation2 + $0x219]]
        %v3777 = vstv %s3776
        %v3778 = vmul.f32 %v3777, %v2380
        %v3779 = vmul.f32 %v3777, %v2381
        %v3780 = vmul.f32 %v3777, %v2382
        %v3781 = vmul.f32 %v3777, %v2383
        %v3782 = vadd.f32 %v3772, %v3778
        %v3783 = vadd.f32 %v3773, %v3779
        %v3784 = vadd.f32 %v3774, %v3780
        %v3785 = vadd.f32 %v3775, %v3781
        %s3786 = sld [smem:[#allocation2 + $0x21a]]
        %v3787 = vstv %s3786
        %v3788 = vmul.f32 %v3787, %v2428
        %v3789 = vmul.f32 %v3787, %v2429
        %v3790 = vmul.f32 %v3787, %v2430
        %v3791 = vmul.f32 %v3787, %v2431
        %v3792 = vadd.f32 %v3782, %v3788
        %v3793 = vadd.f32 %v3783, %v3789
        %v3794 = vadd.f32 %v3784, %v3790
        %v3795 = vadd.f32 %v3785, %v3791
        %v3796 = vmul.f32 %v3792, %v1162
        %v3797 = vmul.f32 %v3793, %v1163
        %v3798 = vmul.f32 %v3794, %v1164
        %v3799 = vmul.f32 %v3795, %v1165
        %s3800 = scalar_lea.vmem %s321, 96 [#allocation11]
        %3801 = vst [vmem:[%s3800] sm:$0xff] %v3796
        %3802 = vst [vmem:[%s3800 + $0x8] sm:$0xff] %v3797
        %3803 = vst [vmem:[%s3800 + $0x10] sm:$0xff] %v3798
        %3804 = vst [vmem:[%s3800 + $0x18] sm:$0xff] %v3799
        %s3805 = sld [smem:[#allocation2 + $0x280]]
        %v3806 = vstv %s3805
        %v3807 = vmul.f32 %v3806, %v1281
        %v3808 = vmul.f32 %v3806, %v1282
        %v3809 = vmul.f32 %v3806, %v1283
        %v3810 = vmul.f32 %v3806, %v1284
        %s3811 = sld [smem:[#allocation2 + $0x281]]
        %v3812 = vstv %s3811
        %v3813 = vmul.f32 %v3812, %v1330
        %v3814 = vmul.f32 %v3812, %v1331
        %v3815 = vmul.f32 %v3812, %v1332
        %v3816 = vmul.f32 %v3812, %v1333
        %v3817 = vadd.f32 %v3807, %v3813
        %v3818 = vadd.f32 %v3808, %v3814
        %v3819 = vadd.f32 %v3809, %v3815
        %v3820 = vadd.f32 %v3810, %v3816
        %s3821 = sld [smem:[#allocation2 + $0x282]]
        %v3822 = vstv %s3821
        %v3823 = vmul.f32 %v3822, %v1379
        %v3824 = vmul.f32 %v3822, %v1380
        %v3825 = vmul.f32 %v3822, %v1381
        %v3826 = vmul.f32 %v3822, %v1382
        %v3827 = vadd.f32 %v3817, %v3823
        %v3828 = vadd.f32 %v3818, %v3824
        %v3829 = vadd.f32 %v3819, %v3825
        %v3830 = vadd.f32 %v3820, %v3826
        %s3831 = sld [smem:[#allocation2 + $0x283]]
        %v3832 = vstv %s3831
        %v3833 = vmul.f32 %v3832, %v1428
        %v3834 = vmul.f32 %v3832, %v1429
        %v3835 = vmul.f32 %v3832, %v1430
        %v3836 = vmul.f32 %v3832, %v1431
        %v3837 = vadd.f32 %v3827, %v3833
        %v3838 = vadd.f32 %v3828, %v3834
        %v3839 = vadd.f32 %v3829, %v3835
        %v3840 = vadd.f32 %v3830, %v3836
        %s3841 = sld [smem:[#allocation2 + $0x284]]
        %v3842 = vstv %s3841
        %v3843 = vmul.f32 %v3842, %v1440
        %v3844 = vmul.f32 %v3842, %v1441
        %v3845 = vmul.f32 %v3842, %v1442
        %v3846 = vmul.f32 %v3842, %v1443
        %v3847 = vadd.f32 %v3837, %v3843
        %v3848 = vadd.f32 %v3838, %v3844
        %v3849 = vadd.f32 %v3839, %v3845
        %v3850 = vadd.f32 %v3840, %v3846
        %s3851 = sld [smem:[#allocation2 + $0x285]]
        %v3852 = vstv %s3851
        %v3853 = vmul.f32 %v3852, %v1489
        %v3854 = vmul.f32 %v3852, %v1490
        %v3855 = vmul.f32 %v3852, %v1491
        %v3856 = vmul.f32 %v3852, %v1492
        %v3857 = vadd.f32 %v3847, %v3853
        %v3858 = vadd.f32 %v3848, %v3854
        %v3859 = vadd.f32 %v3849, %v3855
        %v3860 = vadd.f32 %v3850, %v3856
        %s3861 = sld [smem:[#allocation2 + $0x286]]
        %v3862 = vstv %s3861
        %v3863 = vmul.f32 %v3862, %v1538
        %v3864 = vmul.f32 %v3862, %v1539
        %v3865 = vmul.f32 %v3862, %v1540
        %v3866 = vmul.f32 %v3862, %v1541
        %v3867 = vadd.f32 %v3857, %v3863
        %v3868 = vadd.f32 %v3858, %v3864
        %v3869 = vadd.f32 %v3859, %v3865
        %v3870 = vadd.f32 %v3860, %v3866
        %s3871 = sld [smem:[#allocation2 + $0x287]]
        %v3872 = vstv %s3871
        %v3873 = vmul.f32 %v3872, %v1587
        %v3874 = vmul.f32 %v3872, %v1588
        %v3875 = vmul.f32 %v3872, %v1589
        %v3876 = vmul.f32 %v3872, %v1590
        %v3877 = vadd.f32 %v3867, %v3873
        %v3878 = vadd.f32 %v3868, %v3874
        %v3879 = vadd.f32 %v3869, %v3875
        %v3880 = vadd.f32 %v3870, %v3876
        %s3881 = sld [smem:[#allocation2 + $0x288]]
        %v3882 = vstv %s3881
        %v3883 = vmul.f32 %v3882, %v1636
        %v3884 = vmul.f32 %v3882, %v1637
        %v3885 = vmul.f32 %v3882, %v1638
        %v3886 = vmul.f32 %v3882, %v1639
        %v3887 = vadd.f32 %v3877, %v3883
        %v3888 = vadd.f32 %v3878, %v3884
        %v3889 = vadd.f32 %v3879, %v3885
        %v3890 = vadd.f32 %v3880, %v3886
        %s3891 = sld [smem:[#allocation2 + $0x289]]
        %v3892 = vstv %s3891
        %v3893 = vmul.f32 %v3892, %v1684
        %v3894 = vmul.f32 %v3892, %v1685
        %v3895 = vmul.f32 %v3892, %v1686
        %v3896 = vmul.f32 %v3892, %v1687
        %v3897 = vadd.f32 %v3887, %v3893
        %v3898 = vadd.f32 %v3888, %v3894
        %v3899 = vadd.f32 %v3889, %v3895
        %v3900 = vadd.f32 %v3890, %v3896
        %s3901 = sld [smem:[#allocation2 + $0x28a]]
        %v3902 = vstv %s3901
        %v3903 = vmul.f32 %v3902, %v1732
        %v3904 = vmul.f32 %v3902, %v1733
        %v3905 = vmul.f32 %v3902, %v1734
        %v3906 = vmul.f32 %v3902, %v1735
        %v3907 = vadd.f32 %v3897, %v3903
        %v3908 = vadd.f32 %v3898, %v3904
        %v3909 = vadd.f32 %v3899, %v3905
        %v3910 = vadd.f32 %v3900, %v3906
        %s3911 = sld [smem:[#allocation2 + $0x28b]]
        %v3912 = vstv %s3911
        %v3913 = vmul.f32 %v3912, %v1780
        %v3914 = vmul.f32 %v3912, %v1781
        %v3915 = vmul.f32 %v3912, %v1782
        %v3916 = vmul.f32 %v3912, %v1783
        %v3917 = vadd.f32 %v3907, %v3913
        %v3918 = vadd.f32 %v3908, %v3914
        %v3919 = vadd.f32 %v3909, %v3915
        %v3920 = vadd.f32 %v3910, %v3916
        %s3921 = sld [smem:[#allocation2 + $0x28c]]
        %v3922 = vstv %s3921
        %v3923 = vmul.f32 %v3922, %v1828
        %v3924 = vmul.f32 %v3922, %v1829
        %v3925 = vmul.f32 %v3922, %v1830
        %v3926 = vmul.f32 %v3922, %v1831
        %v3927 = vadd.f32 %v3917, %v3923
        %v3928 = vadd.f32 %v3918, %v3924
        %v3929 = vadd.f32 %v3919, %v3925
        %v3930 = vadd.f32 %v3920, %v3926
        %s3931 = sld [smem:[#allocation2 + $0x28d]]
        %v3932 = vstv %s3931
        %v3933 = vmul.f32 %v3932, %v1836
        %v3934 = vmul.f32 %v3932, %v1837
        %v3935 = vmul.f32 %v3932, %v1838
        %v3936 = vmul.f32 %v3932, %v1839
        %v3937 = vadd.f32 %v3927, %v3933
        %v3938 = vadd.f32 %v3928, %v3934
        %v3939 = vadd.f32 %v3929, %v3935
        %v3940 = vadd.f32 %v3930, %v3936
        %s3941 = sld [smem:[#allocation2 + $0x28e]]
        %v3942 = vstv %s3941
        %v3943 = vmul.f32 %v3942, %v1884
        %v3944 = vmul.f32 %v3942, %v1885
        %v3945 = vmul.f32 %v3942, %v1886
        %v3946 = vmul.f32 %v3942, %v1887
        %v3947 = vadd.f32 %v3937, %v3943
        %v3948 = vadd.f32 %v3938, %v3944
        %v3949 = vadd.f32 %v3939, %v3945
        %v3950 = vadd.f32 %v3940, %v3946
        %s3951 = sld [smem:[#allocation2 + $0x28f]]
        %v3952 = vstv %s3951
        %v3953 = vmul.f32 %v3952, %v1932
        %v3954 = vmul.f32 %v3952, %v1933
        %v3955 = vmul.f32 %v3952, %v1934
        %v3956 = vmul.f32 %v3952, %v1935
        %v3957 = vadd.f32 %v3947, %v3953
        %v3958 = vadd.f32 %v3948, %v3954
        %v3959 = vadd.f32 %v3949, %v3955
        %v3960 = vadd.f32 %v3950, %v3956
        %s3961 = sld [smem:[#allocation2 + $0x290]]
        %v3962 = vstv %s3961
        %v3963 = vmul.f32 %v3962, %v1980
        %v3964 = vmul.f32 %v3962, %v1981
        %v3965 = vmul.f32 %v3962, %v1982
        %v3966 = vmul.f32 %v3962, %v1983
        %v3967 = vadd.f32 %v3957, %v3963
        %v3968 = vadd.f32 %v3958, %v3964
        %v3969 = vadd.f32 %v3959, %v3965
        %v3970 = vadd.f32 %v3960, %v3966
        %s3971 = sld [smem:[#allocation2 + $0x291]]
        %v3972 = vstv %s3971
        %v3973 = vmul.f32 %v3972, %v2028
        %v3974 = vmul.f32 %v3972, %v2029
        %v3975 = vmul.f32 %v3972, %v2030
        %v3976 = vmul.f32 %v3972, %v2031
        %v3977 = vadd.f32 %v3967, %v3973
        %v3978 = vadd.f32 %v3968, %v3974
        %v3979 = vadd.f32 %v3969, %v3975
        %v3980 = vadd.f32 %v3970, %v3976
        %s3981 = sld [smem:[#allocation2 + $0x292]]
        %v3982 = vstv %s3981
        %v3983 = vmul.f32 %v3982, %v2080
        %v3984 = vmul.f32 %v3982, %v2081
        %v3985 = vmul.f32 %v3982, %v2082
        %v3986 = vmul.f32 %v3982, %v2083
        %v3987 = vadd.f32 %v3977, %v3983
        %v3988 = vadd.f32 %v3978, %v3984
        %v3989 = vadd.f32 %v3979, %v3985
        %v3990 = vadd.f32 %v3980, %v3986
        %s3991 = sld [smem:[#allocation2 + $0x293]]
        %v3992 = vstv %s3991
        %v3993 = vmul.f32 %v3992, %v2128
        %v3994 = vmul.f32 %v3992, %v2129
        %v3995 = vmul.f32 %v3992, %v2130
        %v3996 = vmul.f32 %v3992, %v2131
        %v3997 = vadd.f32 %v3987, %v3993
        %v3998 = vadd.f32 %v3988, %v3994
        %v3999 = vadd.f32 %v3989, %v3995
        %v4000 = vadd.f32 %v3990, %v3996
        %s4001 = sld [smem:[#allocation2 + $0x294]]
        %v4002 = vstv %s4001
        %v4003 = vmul.f32 %v4002, %v2176
        %v4004 = vmul.f32 %v4002, %v2177
        %v4005 = vmul.f32 %v4002, %v2178
        %v4006 = vmul.f32 %v4002, %v2179
        %v4007 = vadd.f32 %v3997, %v4003
        %v4008 = vadd.f32 %v3998, %v4004
        %v4009 = vadd.f32 %v3999, %v4005
        %v4010 = vadd.f32 %v4000, %v4006
        %s4011 = sld [smem:[#allocation2 + $0x295]]
        %v4012 = vstv %s4011
        %v4013 = vmul.f32 %v4012, %v2224
        %v4014 = vmul.f32 %v4012, %v2225
        %v4015 = vmul.f32 %v4012, %v2226
        %v4016 = vmul.f32 %v4012, %v2227
        %v4017 = vadd.f32 %v4007, %v4013
        %v4018 = vadd.f32 %v4008, %v4014
        %v4019 = vadd.f32 %v4009, %v4015
        %v4020 = vadd.f32 %v4010, %v4016
        %s4021 = sld [smem:[#allocation2 + $0x296]]
        %v4022 = vstv %s4021
        %v4023 = vmul.f32 %v4022, %v2236
        %v4024 = vmul.f32 %v4022, %v2237
        %v4025 = vmul.f32 %v4022, %v2238
        %v4026 = vmul.f32 %v4022, %v2239
        %v4027 = vadd.f32 %v4017, %v4023
        %v4028 = vadd.f32 %v4018, %v4024
        %v4029 = vadd.f32 %v4019, %v4025
        %v4030 = vadd.f32 %v4020, %v4026
        %s4031 = sld [smem:[#allocation2 + $0x297]]
        %v4032 = vstv %s4031
        %v4033 = vmul.f32 %v4032, %v2284
        %v4034 = vmul.f32 %v4032, %v2285
        %v4035 = vmul.f32 %v4032, %v2286
        %v4036 = vmul.f32 %v4032, %v2287
        %v4037 = vadd.f32 %v4027, %v4033
        %v4038 = vadd.f32 %v4028, %v4034
        %v4039 = vadd.f32 %v4029, %v4035
        %v4040 = vadd.f32 %v4030, %v4036
        %s4041 = sld [smem:[#allocation2 + $0x298]]
        %v4042 = vstv %s4041
        %v4043 = vmul.f32 %v4042, %v2332
        %v4044 = vmul.f32 %v4042, %v2333
        %v4045 = vmul.f32 %v4042, %v2334
        %v4046 = vmul.f32 %v4042, %v2335
        %v4047 = vadd.f32 %v4037, %v4043
        %v4048 = vadd.f32 %v4038, %v4044
        %v4049 = vadd.f32 %v4039, %v4045
        %v4050 = vadd.f32 %v4040, %v4046
        %s4051 = sld [smem:[#allocation2 + $0x299]]
        %v4052 = vstv %s4051
        %v4053 = vmul.f32 %v4052, %v2380
        %v4054 = vmul.f32 %v4052, %v2381
        %v4055 = vmul.f32 %v4052, %v2382
        %v4056 = vmul.f32 %v4052, %v2383
        %v4057 = vadd.f32 %v4047, %v4053
        %v4058 = vadd.f32 %v4048, %v4054
        %v4059 = vadd.f32 %v4049, %v4055
        %v4060 = vadd.f32 %v4050, %v4056
        %s4061 = sld [smem:[#allocation2 + $0x29a]]
        %v4062 = vstv %s4061
        %v4063 = vmul.f32 %v4062, %v2428
        %v4064 = vmul.f32 %v4062, %v2429
        %v4065 = vmul.f32 %v4062, %v2430
        %v4066 = vmul.f32 %v4062, %v2431
        %v4067 = vadd.f32 %v4057, %v4063
        %v4068 = vadd.f32 %v4058, %v4064
        %v4069 = vadd.f32 %v4059, %v4065
        %v4070 = vadd.f32 %v4060, %v4066
        %v4071 = vmul.f32 %v4067, %v1162
        %v4072 = vmul.f32 %v4068, %v1163
        %v4073 = vmul.f32 %v4069, %v1164
        %v4074 = vmul.f32 %v4070, %v1165
        %s4075 = scalar_lea.vmem %s321, 128 [#allocation11]
        %4076 = vst [vmem:[%s4075] sm:$0xff] %v4071
        %4077 = vst [vmem:[%s4075 + $0x8] sm:$0xff] %v4072
        %4078 = vst [vmem:[%s4075 + $0x10] sm:$0xff] %v4073
        %4079 = vst [vmem:[%s4075 + $0x18] sm:$0xff] %v4074
        %s4080 = sld [smem:[#allocation2 + $0x300]]
        %v4081 = vstv %s4080
        %v4082 = vmul.f32 %v4081, %v1281
        %v4083 = vmul.f32 %v4081, %v1282
        %v4084 = vmul.f32 %v4081, %v1283
        %v4085 = vmul.f32 %v4081, %v1284
        %s4086 = sld [smem:[#allocation2 + $0x301]]
        %v4087 = vstv %s4086
        %v4088 = vmul.f32 %v4087, %v1330
        %v4089 = vmul.f32 %v4087, %v1331
        %v4090 = vmul.f32 %v4087, %v1332
        %v4091 = vmul.f32 %v4087, %v1333
        %v4092 = vadd.f32 %v4082, %v4088
        %v4093 = vadd.f32 %v4083, %v4089
        %v4094 = vadd.f32 %v4084, %v4090
        %v4095 = vadd.f32 %v4085, %v4091
        %s4096 = sld [smem:[#allocation2 + $0x302]]
        %v4097 = vstv %s4096
        %v4098 = vmul.f32 %v4097, %v1379
        %v4099 = vmul.f32 %v4097, %v1380
        %v4100 = vmul.f32 %v4097, %v1381
        %v4101 = vmul.f32 %v4097, %v1382
        %v4102 = vadd.f32 %v4092, %v4098
        %v4103 = vadd.f32 %v4093, %v4099
        %v4104 = vadd.f32 %v4094, %v4100
        %v4105 = vadd.f32 %v4095, %v4101
        %s4106 = sld [smem:[#allocation2 + $0x303]]
        %v4107 = vstv %s4106
        %v4108 = vmul.f32 %v4107, %v1428
        %v4109 = vmul.f32 %v4107, %v1429
        %v4110 = vmul.f32 %v4107, %v1430
        %v4111 = vmul.f32 %v4107, %v1431
        %v4112 = vadd.f32 %v4102, %v4108
        %v4113 = vadd.f32 %v4103, %v4109
        %v4114 = vadd.f32 %v4104, %v4110
        %v4115 = vadd.f32 %v4105, %v4111
        %s4116 = sld [smem:[#allocation2 + $0x304]]
        %v4117 = vstv %s4116
        %v4118 = vmul.f32 %v4117, %v1440
        %v4119 = vmul.f32 %v4117, %v1441
        %v4120 = vmul.f32 %v4117, %v1442
        %v4121 = vmul.f32 %v4117, %v1443
        %v4122 = vadd.f32 %v4112, %v4118
        %v4123 = vadd.f32 %v4113, %v4119
        %v4124 = vadd.f32 %v4114, %v4120
        %v4125 = vadd.f32 %v4115, %v4121
        %s4126 = sld [smem:[#allocation2 + $0x305]]
        %v4127 = vstv %s4126
        %v4128 = vmul.f32 %v4127, %v1489
        %v4129 = vmul.f32 %v4127, %v1490
        %v4130 = vmul.f32 %v4127, %v1491
        %v4131 = vmul.f32 %v4127, %v1492
        %v4132 = vadd.f32 %v4122, %v4128
        %v4133 = vadd.f32 %v4123, %v4129
        %v4134 = vadd.f32 %v4124, %v4130
        %v4135 = vadd.f32 %v4125, %v4131
        %s4136 = sld [smem:[#allocation2 + $0x306]]
        %v4137 = vstv %s4136
        %v4138 = vmul.f32 %v4137, %v1538
        %v4139 = vmul.f32 %v4137, %v1539
        %v4140 = vmul.f32 %v4137, %v1540
        %v4141 = vmul.f32 %v4137, %v1541
        %v4142 = vadd.f32 %v4132, %v4138
        %v4143 = vadd.f32 %v4133, %v4139
        %v4144 = vadd.f32 %v4134, %v4140
        %v4145 = vadd.f32 %v4135, %v4141
        %s4146 = sld [smem:[#allocation2 + $0x307]]
        %v4147 = vstv %s4146
        %v4148 = vmul.f32 %v4147, %v1587
        %v4149 = vmul.f32 %v4147, %v1588
        %v4150 = vmul.f32 %v4147, %v1589
        %v4151 = vmul.f32 %v4147, %v1590
        %v4152 = vadd.f32 %v4142, %v4148
        %v4153 = vadd.f32 %v4143, %v4149
        %v4154 = vadd.f32 %v4144, %v4150
        %v4155 = vadd.f32 %v4145, %v4151
        %s4156 = sld [smem:[#allocation2 + $0x308]]
        %v4157 = vstv %s4156
        %v4158 = vmul.f32 %v4157, %v1636
        %v4159 = vmul.f32 %v4157, %v1637
        %v4160 = vmul.f32 %v4157, %v1638
        %v4161 = vmul.f32 %v4157, %v1639
        %v4162 = vadd.f32 %v4152, %v4158
        %v4163 = vadd.f32 %v4153, %v4159
        %v4164 = vadd.f32 %v4154, %v4160
        %v4165 = vadd.f32 %v4155, %v4161
        %s4166 = sld [smem:[#allocation2 + $0x309]]
        %v4167 = vstv %s4166
        %v4168 = vmul.f32 %v4167, %v1684
        %v4169 = vmul.f32 %v4167, %v1685
        %v4170 = vmul.f32 %v4167, %v1686
        %v4171 = vmul.f32 %v4167, %v1687
        %v4172 = vadd.f32 %v4162, %v4168
        %v4173 = vadd.f32 %v4163, %v4169
        %v4174 = vadd.f32 %v4164, %v4170
        %v4175 = vadd.f32 %v4165, %v4171
        %s4176 = sld [smem:[#allocation2 + $0x30a]]
        %v4177 = vstv %s4176
        %v4178 = vmul.f32 %v4177, %v1732
        %v4179 = vmul.f32 %v4177, %v1733
        %v4180 = vmul.f32 %v4177, %v1734
        %v4181 = vmul.f32 %v4177, %v1735
        %v4182 = vadd.f32 %v4172, %v4178
        %v4183 = vadd.f32 %v4173, %v4179
        %v4184 = vadd.f32 %v4174, %v4180
        %v4185 = vadd.f32 %v4175, %v4181
        %s4186 = sld [smem:[#allocation2 + $0x30b]]
        %v4187 = vstv %s4186
        %v4188 = vmul.f32 %v4187, %v1780
        %v4189 = vmul.f32 %v4187, %v1781
        %v4190 = vmul.f32 %v4187, %v1782
        %v4191 = vmul.f32 %v4187, %v1783
        %v4192 = vadd.f32 %v4182, %v4188
        %v4193 = vadd.f32 %v4183, %v4189
        %v4194 = vadd.f32 %v4184, %v4190
        %v4195 = vadd.f32 %v4185, %v4191
        %s4196 = sld [smem:[#allocation2 + $0x30c]]
        %v4197 = vstv %s4196
        %v4198 = vmul.f32 %v4197, %v1828
        %v4199 = vmul.f32 %v4197, %v1829
        %v4200 = vmul.f32 %v4197, %v1830
        %v4201 = vmul.f32 %v4197, %v1831
        %v4202 = vadd.f32 %v4192, %v4198
        %v4203 = vadd.f32 %v4193, %v4199
        %v4204 = vadd.f32 %v4194, %v4200
        %v4205 = vadd.f32 %v4195, %v4201
        %s4206 = sld [smem:[#allocation2 + $0x30d]]
        %v4207 = vstv %s4206
        %v4208 = vmul.f32 %v4207, %v1836
        %v4209 = vmul.f32 %v4207, %v1837
        %v4210 = vmul.f32 %v4207, %v1838
        %v4211 = vmul.f32 %v4207, %v1839
        %v4212 = vadd.f32 %v4202, %v4208
        %v4213 = vadd.f32 %v4203, %v4209
        %v4214 = vadd.f32 %v4204, %v4210
        %v4215 = vadd.f32 %v4205, %v4211
        %s4216 = sld [smem:[#allocation2 + $0x30e]]
        %v4217 = vstv %s4216
        %v4218 = vmul.f32 %v4217, %v1884
        %v4219 = vmul.f32 %v4217, %v1885
        %v4220 = vmul.f32 %v4217, %v1886
        %v4221 = vmul.f32 %v4217, %v1887
        %v4222 = vadd.f32 %v4212, %v4218
        %v4223 = vadd.f32 %v4213, %v4219
        %v4224 = vadd.f32 %v4214, %v4220
        %v4225 = vadd.f32 %v4215, %v4221
        %s4226 = sld [smem:[#allocation2 + $0x30f]]
        %v4227 = vstv %s4226
        %v4228 = vmul.f32 %v4227, %v1932
        %v4229 = vmul.f32 %v4227, %v1933
        %v4230 = vmul.f32 %v4227, %v1934
        %v4231 = vmul.f32 %v4227, %v1935
        %v4232 = vadd.f32 %v4222, %v4228
        %v4233 = vadd.f32 %v4223, %v4229
        %v4234 = vadd.f32 %v4224, %v4230
        %v4235 = vadd.f32 %v4225, %v4231
        %s4236 = sld [smem:[#allocation2 + $0x310]]
        %v4237 = vstv %s4236
        %v4238 = vmul.f32 %v4237, %v1980
        %v4239 = vmul.f32 %v4237, %v1981
        %v4240 = vmul.f32 %v4237, %v1982
        %v4241 = vmul.f32 %v4237, %v1983
        %v4242 = vadd.f32 %v4232, %v4238
        %v4243 = vadd.f32 %v4233, %v4239
        %v4244 = vadd.f32 %v4234, %v4240
        %v4245 = vadd.f32 %v4235, %v4241
        %s4246 = sld [smem:[#allocation2 + $0x311]]
        %v4247 = vstv %s4246
        %v4248 = vmul.f32 %v4247, %v2028
        %v4249 = vmul.f32 %v4247, %v2029
        %v4250 = vmul.f32 %v4247, %v2030
        %v4251 = vmul.f32 %v4247, %v2031
        %v4252 = vadd.f32 %v4242, %v4248
        %v4253 = vadd.f32 %v4243, %v4249
        %v4254 = vadd.f32 %v4244, %v4250
        %v4255 = vadd.f32 %v4245, %v4251
        %s4256 = sld [smem:[#allocation2 + $0x312]]
        %v4257 = vstv %s4256
        %v4258 = vmul.f32 %v4257, %v2080
        %v4259 = vmul.f32 %v4257, %v2081
        %v4260 = vmul.f32 %v4257, %v2082
        %v4261 = vmul.f32 %v4257, %v2083
        %v4262 = vadd.f32 %v4252, %v4258
        %v4263 = vadd.f32 %v4253, %v4259
        %v4264 = vadd.f32 %v4254, %v4260
        %v4265 = vadd.f32 %v4255, %v4261
        %s4266 = sld [smem:[#allocation2 + $0x313]]
        %v4267 = vstv %s4266
        %v4268 = vmul.f32 %v4267, %v2128
        %v4269 = vmul.f32 %v4267, %v2129
        %v4270 = vmul.f32 %v4267, %v2130
        %v4271 = vmul.f32 %v4267, %v2131
        %v4272 = vadd.f32 %v4262, %v4268
        %v4273 = vadd.f32 %v4263, %v4269
        %v4274 = vadd.f32 %v4264, %v4270
        %v4275 = vadd.f32 %v4265, %v4271
        %s4276 = sld [smem:[#allocation2 + $0x314]]
        %v4277 = vstv %s4276
        %v4278 = vmul.f32 %v4277, %v2176
        %v4279 = vmul.f32 %v4277, %v2177
        %v4280 = vmul.f32 %v4277, %v2178
        %v4281 = vmul.f32 %v4277, %v2179
        %v4282 = vadd.f32 %v4272, %v4278
        %v4283 = vadd.f32 %v4273, %v4279
        %v4284 = vadd.f32 %v4274, %v4280
        %v4285 = vadd.f32 %v4275, %v4281
        %s4286 = sld [smem:[#allocation2 + $0x315]]
        %v4287 = vstv %s4286
        %v4288 = vmul.f32 %v4287, %v2224
        %v4289 = vmul.f32 %v4287, %v2225
        %v4290 = vmul.f32 %v4287, %v2226
        %v4291 = vmul.f32 %v4287, %v2227
        %v4292 = vadd.f32 %v4282, %v4288
        %v4293 = vadd.f32 %v4283, %v4289
        %v4294 = vadd.f32 %v4284, %v4290
        %v4295 = vadd.f32 %v4285, %v4291
        %s4296 = sld [smem:[#allocation2 + $0x316]]
        %v4297 = vstv %s4296
        %v4298 = vmul.f32 %v4297, %v2236
        %v4299 = vmul.f32 %v4297, %v2237
        %v4300 = vmul.f32 %v4297, %v2238
        %v4301 = vmul.f32 %v4297, %v2239
        %v4302 = vadd.f32 %v4292, %v4298
        %v4303 = vadd.f32 %v4293, %v4299
        %v4304 = vadd.f32 %v4294, %v4300
        %v4305 = vadd.f32 %v4295, %v4301
        %s4306 = sld [smem:[#allocation2 + $0x317]]
        %v4307 = vstv %s4306
        %v4308 = vmul.f32 %v4307, %v2284
        %v4309 = vmul.f32 %v4307, %v2285
        %v4310 = vmul.f32 %v4307, %v2286
        %v4311 = vmul.f32 %v4307, %v2287
        %v4312 = vadd.f32 %v4302, %v4308
        %v4313 = vadd.f32 %v4303, %v4309
        %v4314 = vadd.f32 %v4304, %v4310
        %v4315 = vadd.f32 %v4305, %v4311
        %s4316 = sld [smem:[#allocation2 + $0x318]]
        %v4317 = vstv %s4316
        %v4318 = vmul.f32 %v4317, %v2332
        %v4319 = vmul.f32 %v4317, %v2333
        %v4320 = vmul.f32 %v4317, %v2334
        %v4321 = vmul.f32 %v4317, %v2335
        %v4322 = vadd.f32 %v4312, %v4318
        %v4323 = vadd.f32 %v4313, %v4319
        %v4324 = vadd.f32 %v4314, %v4320
        %v4325 = vadd.f32 %v4315, %v4321
        %s4326 = sld [smem:[#allocation2 + $0x319]]
        %v4327 = vstv %s4326
        %v4328 = vmul.f32 %v4327, %v2380
        %v4329 = vmul.f32 %v4327, %v2381
        %v4330 = vmul.f32 %v4327, %v2382
        %v4331 = vmul.f32 %v4327, %v2383
        %v4332 = vadd.f32 %v4322, %v4328
        %v4333 = vadd.f32 %v4323, %v4329
        %v4334 = vadd.f32 %v4324, %v4330
        %v4335 = vadd.f32 %v4325, %v4331
        %s4336 = sld [smem:[#allocation2 + $0x31a]]
        %v4337 = vstv %s4336
        %v4338 = vmul.f32 %v4337, %v2428
        %v4339 = vmul.f32 %v4337, %v2429
        %v4340 = vmul.f32 %v4337, %v2430
        %v4341 = vmul.f32 %v4337, %v2431
        %v4342 = vadd.f32 %v4332, %v4338
        %v4343 = vadd.f32 %v4333, %v4339
        %v4344 = vadd.f32 %v4334, %v4340
        %v4345 = vadd.f32 %v4335, %v4341
        %v4346 = vmul.f32 %v4342, %v1162
        %v4347 = vmul.f32 %v4343, %v1163
        %v4348 = vmul.f32 %v4344, %v1164
        %v4349 = vmul.f32 %v4345, %v1165
        %s4350 = scalar_lea.vmem %s321, 160 [#allocation11]
        %4351 = vst [vmem:[%s4350] sm:$0xff] %v4346
        %4352 = vst [vmem:[%s4350 + $0x8] sm:$0xff] %v4347
        %4353 = vst [vmem:[%s4350 + $0x10] sm:$0xff] %v4348
        %4354 = vst [vmem:[%s4350 + $0x18] sm:$0xff] %v4349
        %s4355 = sld [smem:[#allocation2 + $0x380]]
        %v4356 = vstv %s4355
        %v4357 = vmul.f32 %v4356, %v1281
        %v4358 = vmul.f32 %v4356, %v1282
        %v4359 = vmul.f32 %v4356, %v1283
        %v4360 = vmul.f32 %v4356, %v1284
        %s4361 = sld [smem:[#allocation2 + $0x381]]
        %v4362 = vstv %s4361
        %v4363 = vmul.f32 %v4362, %v1330
        %v4364 = vmul.f32 %v4362, %v1331
        %v4365 = vmul.f32 %v4362, %v1332
        %v4366 = vmul.f32 %v4362, %v1333
        %v4367 = vadd.f32 %v4357, %v4363
        %v4368 = vadd.f32 %v4358, %v4364
        %v4369 = vadd.f32 %v4359, %v4365
        %v4370 = vadd.f32 %v4360, %v4366
        %s4371 = sld [smem:[#allocation2 + $0x382]]
        %v4372 = vstv %s4371
        %v4373 = vmul.f32 %v4372, %v1379
        %v4374 = vmul.f32 %v4372, %v1380
        %v4375 = vmul.f32 %v4372, %v1381
        %v4376 = vmul.f32 %v4372, %v1382
        %v4377 = vadd.f32 %v4367, %v4373
        %v4378 = vadd.f32 %v4368, %v4374
        %v4379 = vadd.f32 %v4369, %v4375
        %v4380 = vadd.f32 %v4370, %v4376
        %s4381 = sld [smem:[#allocation2 + $0x383]]
        %v4382 = vstv %s4381
        %v4383 = vmul.f32 %v4382, %v1428
        %v4384 = vmul.f32 %v4382, %v1429
        %v4385 = vmul.f32 %v4382, %v1430
        %v4386 = vmul.f32 %v4382, %v1431
        %v4387 = vadd.f32 %v4377, %v4383
        %v4388 = vadd.f32 %v4378, %v4384
        %v4389 = vadd.f32 %v4379, %v4385
        %v4390 = vadd.f32 %v4380, %v4386
        %s4391 = sld [smem:[#allocation2 + $0x384]]
        %v4392 = vstv %s4391
        %v4393 = vmul.f32 %v4392, %v1440
        %v4394 = vmul.f32 %v4392, %v1441
        %v4395 = vmul.f32 %v4392, %v1442
        %v4396 = vmul.f32 %v4392, %v1443
        %v4397 = vadd.f32 %v4387, %v4393
        %v4398 = vadd.f32 %v4388, %v4394
        %v4399 = vadd.f32 %v4389, %v4395
        %v4400 = vadd.f32 %v4390, %v4396
        %s4401 = sld [smem:[#allocation2 + $0x385]]
        %v4402 = vstv %s4401
        %v4403 = vmul.f32 %v4402, %v1489
        %v4404 = vmul.f32 %v4402, %v1490
        %v4405 = vmul.f32 %v4402, %v1491
        %v4406 = vmul.f32 %v4402, %v1492
        %v4407 = vadd.f32 %v4397, %v4403
        %v4408 = vadd.f32 %v4398, %v4404
        %v4409 = vadd.f32 %v4399, %v4405
        %v4410 = vadd.f32 %v4400, %v4406
        %s4411 = sld [smem:[#allocation2 + $0x386]]
        %v4412 = vstv %s4411
        %v4413 = vmul.f32 %v4412, %v1538
        %v4414 = vmul.f32 %v4412, %v1539
        %v4415 = vmul.f32 %v4412, %v1540
        %v4416 = vmul.f32 %v4412, %v1541
        %v4417 = vadd.f32 %v4407, %v4413
        %v4418 = vadd.f32 %v4408, %v4414
        %v4419 = vadd.f32 %v4409, %v4415
        %v4420 = vadd.f32 %v4410, %v4416
        %s4421 = sld [smem:[#allocation2 + $0x387]]
        %v4422 = vstv %s4421
        %v4423 = vmul.f32 %v4422, %v1587
        %v4424 = vmul.f32 %v4422, %v1588
        %v4425 = vmul.f32 %v4422, %v1589
        %v4426 = vmul.f32 %v4422, %v1590
        %v4427 = vadd.f32 %v4417, %v4423
        %v4428 = vadd.f32 %v4418, %v4424
        %v4429 = vadd.f32 %v4419, %v4425
        %v4430 = vadd.f32 %v4420, %v4426
        %s4431 = sld [smem:[#allocation2 + $0x388]]
        %v4432 = vstv %s4431
        %v4433 = vmul.f32 %v4432, %v1636
        %v4434 = vmul.f32 %v4432, %v1637
        %v4435 = vmul.f32 %v4432, %v1638
        %v4436 = vmul.f32 %v4432, %v1639
        %v4437 = vadd.f32 %v4427, %v4433
        %v4438 = vadd.f32 %v4428, %v4434
        %v4439 = vadd.f32 %v4429, %v4435
        %v4440 = vadd.f32 %v4430, %v4436
        %s4441 = sld [smem:[#allocation2 + $0x389]]
        %v4442 = vstv %s4441
        %v4443 = vmul.f32 %v4442, %v1684
        %v4444 = vmul.f32 %v4442, %v1685
        %v4445 = vmul.f32 %v4442, %v1686
        %v4446 = vmul.f32 %v4442, %v1687
        %v4447 = vadd.f32 %v4437, %v4443
        %v4448 = vadd.f32 %v4438, %v4444
        %v4449 = vadd.f32 %v4439, %v4445
        %v4450 = vadd.f32 %v4440, %v4446
        %s4451 = sld [smem:[#allocation2 + $0x38a]]
        %v4452 = vstv %s4451
        %v4453 = vmul.f32 %v4452, %v1732
        %v4454 = vmul.f32 %v4452, %v1733
        %v4455 = vmul.f32 %v4452, %v1734
        %v4456 = vmul.f32 %v4452, %v1735
        %v4457 = vadd.f32 %v4447, %v4453
        %v4458 = vadd.f32 %v4448, %v4454
        %v4459 = vadd.f32 %v4449, %v4455
        %v4460 = vadd.f32 %v4450, %v4456
        %s4461 = sld [smem:[#allocation2 + $0x38b]]
        %v4462 = vstv %s4461
        %v4463 = vmul.f32 %v4462, %v1780
        %v4464 = vmul.f32 %v4462, %v1781
        %v4465 = vmul.f32 %v4462, %v1782
        %v4466 = vmul.f32 %v4462, %v1783
        %v4467 = vadd.f32 %v4457, %v4463
        %v4468 = vadd.f32 %v4458, %v4464
        %v4469 = vadd.f32 %v4459, %v4465
        %v4470 = vadd.f32 %v4460, %v4466
        %s4471 = sld [smem:[#allocation2 + $0x38c]]
        %v4472 = vstv %s4471
        %v4473 = vmul.f32 %v4472, %v1828
        %v4474 = vmul.f32 %v4472, %v1829
        %v4475 = vmul.f32 %v4472, %v1830
        %v4476 = vmul.f32 %v4472, %v1831
        %v4477 = vadd.f32 %v4467, %v4473
        %v4478 = vadd.f32 %v4468, %v4474
        %v4479 = vadd.f32 %v4469, %v4475
        %v4480 = vadd.f32 %v4470, %v4476
        %s4481 = sld [smem:[#allocation2 + $0x38d]]
        %v4482 = vstv %s4481
        %v4483 = vmul.f32 %v4482, %v1836
        %v4484 = vmul.f32 %v4482, %v1837
        %v4485 = vmul.f32 %v4482, %v1838
        %v4486 = vmul.f32 %v4482, %v1839
        %v4487 = vadd.f32 %v4477, %v4483
        %v4488 = vadd.f32 %v4478, %v4484
        %v4489 = vadd.f32 %v4479, %v4485
        %v4490 = vadd.f32 %v4480, %v4486
        %s4491 = sld [smem:[#allocation2 + $0x38e]]
        %v4492 = vstv %s4491
        %v4493 = vmul.f32 %v4492, %v1884
        %v4494 = vmul.f32 %v4492, %v1885
        %v4495 = vmul.f32 %v4492, %v1886
        %v4496 = vmul.f32 %v4492, %v1887
        %v4497 = vadd.f32 %v4487, %v4493
        %v4498 = vadd.f32 %v4488, %v4494
        %v4499 = vadd.f32 %v4489, %v4495
        %v4500 = vadd.f32 %v4490, %v4496
        %s4501 = sld [smem:[#allocation2 + $0x38f]]
        %v4502 = vstv %s4501
        %v4503 = vmul.f32 %v4502, %v1932
        %v4504 = vmul.f32 %v4502, %v1933
        %v4505 = vmul.f32 %v4502, %v1934
        %v4506 = vmul.f32 %v4502, %v1935
        %v4507 = vadd.f32 %v4497, %v4503
        %v4508 = vadd.f32 %v4498, %v4504
        %v4509 = vadd.f32 %v4499, %v4505
        %v4510 = vadd.f32 %v4500, %v4506
        %s4511 = sld [smem:[#allocation2 + $0x390]]
        %v4512 = vstv %s4511
        %v4513 = vmul.f32 %v4512, %v1980
        %v4514 = vmul.f32 %v4512, %v1981
        %v4515 = vmul.f32 %v4512, %v1982
        %v4516 = vmul.f32 %v4512, %v1983
        %v4517 = vadd.f32 %v4507, %v4513
        %v4518 = vadd.f32 %v4508, %v4514
        %v4519 = vadd.f32 %v4509, %v4515
        %v4520 = vadd.f32 %v4510, %v4516
        %s4521 = sld [smem:[#allocation2 + $0x391]]
        %v4522 = vstv %s4521
        %v4523 = vmul.f32 %v4522, %v2028
        %v4524 = vmul.f32 %v4522, %v2029
        %v4525 = vmul.f32 %v4522, %v2030
        %v4526 = vmul.f32 %v4522, %v2031
        %v4527 = vadd.f32 %v4517, %v4523
        %v4528 = vadd.f32 %v4518, %v4524
        %v4529 = vadd.f32 %v4519, %v4525
        %v4530 = vadd.f32 %v4520, %v4526
        %s4531 = sld [smem:[#allocation2 + $0x392]]
        %v4532 = vstv %s4531
        %v4533 = vmul.f32 %v4532, %v2080
        %v4534 = vmul.f32 %v4532, %v2081
        %v4535 = vmul.f32 %v4532, %v2082
        %v4536 = vmul.f32 %v4532, %v2083
        %v4537 = vadd.f32 %v4527, %v4533
        %v4538 = vadd.f32 %v4528, %v4534
        %v4539 = vadd.f32 %v4529, %v4535
        %v4540 = vadd.f32 %v4530, %v4536
        %s4541 = sld [smem:[#allocation2 + $0x393]]
        %v4542 = vstv %s4541
        %v4543 = vmul.f32 %v4542, %v2128
        %v4544 = vmul.f32 %v4542, %v2129
        %v4545 = vmul.f32 %v4542, %v2130
        %v4546 = vmul.f32 %v4542, %v2131
        %v4547 = vadd.f32 %v4537, %v4543
        %v4548 = vadd.f32 %v4538, %v4544
        %v4549 = vadd.f32 %v4539, %v4545
        %v4550 = vadd.f32 %v4540, %v4546
        %s4551 = sld [smem:[#allocation2 + $0x394]]
        %v4552 = vstv %s4551
        %v4553 = vmul.f32 %v4552, %v2176
        %v4554 = vmul.f32 %v4552, %v2177
        %v4555 = vmul.f32 %v4552, %v2178
        %v4556 = vmul.f32 %v4552, %v2179
        %v4557 = vadd.f32 %v4547, %v4553
        %v4558 = vadd.f32 %v4548, %v4554
        %v4559 = vadd.f32 %v4549, %v4555
        %v4560 = vadd.f32 %v4550, %v4556
        %s4561 = sld [smem:[#allocation2 + $0x395]]
        %v4562 = vstv %s4561
        %v4563 = vmul.f32 %v4562, %v2224
        %v4564 = vmul.f32 %v4562, %v2225
        %v4565 = vmul.f32 %v4562, %v2226
        %v4566 = vmul.f32 %v4562, %v2227
        %v4567 = vadd.f32 %v4557, %v4563
        %v4568 = vadd.f32 %v4558, %v4564
        %v4569 = vadd.f32 %v4559, %v4565
        %v4570 = vadd.f32 %v4560, %v4566
        %s4571 = sld [smem:[#allocation2 + $0x396]]
        %v4572 = vstv %s4571
        %v4573 = vmul.f32 %v4572, %v2236
        %v4574 = vmul.f32 %v4572, %v2237
        %v4575 = vmul.f32 %v4572, %v2238
        %v4576 = vmul.f32 %v4572, %v2239
        %v4577 = vadd.f32 %v4567, %v4573
        %v4578 = vadd.f32 %v4568, %v4574
        %v4579 = vadd.f32 %v4569, %v4575
        %v4580 = vadd.f32 %v4570, %v4576
        %s4581 = sld [smem:[#allocation2 + $0x397]]
        %v4582 = vstv %s4581
        %v4583 = vmul.f32 %v4582, %v2284
        %v4584 = vmul.f32 %v4582, %v2285
        %v4585 = vmul.f32 %v4582, %v2286
        %v4586 = vmul.f32 %v4582, %v2287
        %v4587 = vadd.f32 %v4577, %v4583
        %v4588 = vadd.f32 %v4578, %v4584
        %v4589 = vadd.f32 %v4579, %v4585
        %v4590 = vadd.f32 %v4580, %v4586
        %s4591 = sld [smem:[#allocation2 + $0x398]]
        %v4592 = vstv %s4591
        %v4593 = vmul.f32 %v4592, %v2332
        %v4594 = vmul.f32 %v4592, %v2333
        %v4595 = vmul.f32 %v4592, %v2334
        %v4596 = vmul.f32 %v4592, %v2335
        %v4597 = vadd.f32 %v4587, %v4593
        %v4598 = vadd.f32 %v4588, %v4594
        %v4599 = vadd.f32 %v4589, %v4595
        %v4600 = vadd.f32 %v4590, %v4596
        %s4601 = sld [smem:[#allocation2 + $0x399]]
        %v4602 = vstv %s4601
        %v4603 = vmul.f32 %v4602, %v2380
        %v4604 = vmul.f32 %v4602, %v2381
        %v4605 = vmul.f32 %v4602, %v2382
        %v4606 = vmul.f32 %v4602, %v2383
        %v4607 = vadd.f32 %v4597, %v4603
        %v4608 = vadd.f32 %v4598, %v4604
        %v4609 = vadd.f32 %v4599, %v4605
        %v4610 = vadd.f32 %v4600, %v4606
        %s4611 = sld [smem:[#allocation2 + $0x39a]]
        %v4612 = vstv %s4611
        %v4613 = vmul.f32 %v4612, %v2428
        %v4614 = vmul.f32 %v4612, %v2429
        %v4615 = vmul.f32 %v4612, %v2430
        %v4616 = vmul.f32 %v4612, %v2431
        %v4617 = vadd.f32 %v4607, %v4613
        %v4618 = vadd.f32 %v4608, %v4614
        %v4619 = vadd.f32 %v4609, %v4615
        %v4620 = vadd.f32 %v4610, %v4616
        %v4621 = vmul.f32 %v4617, %v1162
        %v4622 = vmul.f32 %v4618, %v1163
        %v4623 = vmul.f32 %v4619, %v1164
        %v4624 = vmul.f32 %v4620, %v1165
        %s4625 = scalar_lea.vmem %s321, 192 [#allocation11]
        %4626 = vst [vmem:[%s4625] sm:$0xff] %v4621
        %4627 = vst [vmem:[%s4625 + $0x8] sm:$0xff] %v4622
        %4628 = vst [vmem:[%s4625 + $0x10] sm:$0xff] %v4623
        %4629 = vst [vmem:[%s4625 + $0x18] sm:$0xff] %v4624
        %s4630 = sld [smem:[#allocation2 + $0x400]]
        %v4631 = vstv %s4630
        %v4632 = vmul.f32 %v4631, %v1281
        %v4633 = vmul.f32 %v4631, %v1282
        %v4634 = vmul.f32 %v4631, %v1283
        %v4635 = vmul.f32 %v4631, %v1284
        %s4636 = sld [smem:[#allocation2 + $0x401]]
        %v4637 = vstv %s4636
        %v4638 = vmul.f32 %v4637, %v1330
        %v4639 = vmul.f32 %v4637, %v1331
        %v4640 = vmul.f32 %v4637, %v1332
        %v4641 = vmul.f32 %v4637, %v1333
        %v4642 = vadd.f32 %v4632, %v4638
        %v4643 = vadd.f32 %v4633, %v4639
        %v4644 = vadd.f32 %v4634, %v4640
        %v4645 = vadd.f32 %v4635, %v4641
        %s4646 = sld [smem:[#allocation2 + $0x402]]
        %v4647 = vstv %s4646
        %v4648 = vmul.f32 %v4647, %v1379
        %v4649 = vmul.f32 %v4647, %v1380
        %v4650 = vmul.f32 %v4647, %v1381
        %v4651 = vmul.f32 %v4647, %v1382
        %v4652 = vadd.f32 %v4642, %v4648
        %v4653 = vadd.f32 %v4643, %v4649
        %v4654 = vadd.f32 %v4644, %v4650
        %v4655 = vadd.f32 %v4645, %v4651
        %s4656 = sld [smem:[#allocation2 + $0x403]]
        %v4657 = vstv %s4656
        %v4658 = vmul.f32 %v4657, %v1428
        %v4659 = vmul.f32 %v4657, %v1429
        %v4660 = vmul.f32 %v4657, %v1430
        %v4661 = vmul.f32 %v4657, %v1431
        %v4662 = vadd.f32 %v4652, %v4658
        %v4663 = vadd.f32 %v4653, %v4659
        %v4664 = vadd.f32 %v4654, %v4660
        %v4665 = vadd.f32 %v4655, %v4661
        %s4666 = sld [smem:[#allocation2 + $0x404]]
        %v4667 = vstv %s4666
        %v4668 = vmul.f32 %v4667, %v1440
        %v4669 = vmul.f32 %v4667, %v1441
        %v4670 = vmul.f32 %v4667, %v1442
        %v4671 = vmul.f32 %v4667, %v1443
        %v4672 = vadd.f32 %v4662, %v4668
        %v4673 = vadd.f32 %v4663, %v4669
        %v4674 = vadd.f32 %v4664, %v4670
        %v4675 = vadd.f32 %v4665, %v4671
        %s4676 = sld [smem:[#allocation2 + $0x405]]
        %v4677 = vstv %s4676
        %v4678 = vmul.f32 %v4677, %v1489
        %v4679 = vmul.f32 %v4677, %v1490
        %v4680 = vmul.f32 %v4677, %v1491
        %v4681 = vmul.f32 %v4677, %v1492
        %v4682 = vadd.f32 %v4672, %v4678
        %v4683 = vadd.f32 %v4673, %v4679
        %v4684 = vadd.f32 %v4674, %v4680
        %v4685 = vadd.f32 %v4675, %v4681
        %s4686 = sld [smem:[#allocation2 + $0x406]]
        %v4687 = vstv %s4686
        %v4688 = vmul.f32 %v4687, %v1538
        %v4689 = vmul.f32 %v4687, %v1539
        %v4690 = vmul.f32 %v4687, %v1540
        %v4691 = vmul.f32 %v4687, %v1541
        %v4692 = vadd.f32 %v4682, %v4688
        %v4693 = vadd.f32 %v4683, %v4689
        %v4694 = vadd.f32 %v4684, %v4690
        %v4695 = vadd.f32 %v4685, %v4691
        %s4696 = sld [smem:[#allocation2 + $0x407]]
        %v4697 = vstv %s4696
        %v4698 = vmul.f32 %v4697, %v1587
        %v4699 = vmul.f32 %v4697, %v1588
        %v4700 = vmul.f32 %v4697, %v1589
        %v4701 = vmul.f32 %v4697, %v1590
        %v4702 = vadd.f32 %v4692, %v4698
        %v4703 = vadd.f32 %v4693, %v4699
        %v4704 = vadd.f32 %v4694, %v4700
        %v4705 = vadd.f32 %v4695, %v4701
        %s4706 = sld [smem:[#allocation2 + $0x408]]
        %v4707 = vstv %s4706
        %v4708 = vmul.f32 %v4707, %v1636
        %v4709 = vmul.f32 %v4707, %v1637
        %v4710 = vmul.f32 %v4707, %v1638
        %v4711 = vmul.f32 %v4707, %v1639
        %v4712 = vadd.f32 %v4702, %v4708
        %v4713 = vadd.f32 %v4703, %v4709
        %v4714 = vadd.f32 %v4704, %v4710
        %v4715 = vadd.f32 %v4705, %v4711
        %s4716 = sld [smem:[#allocation2 + $0x409]]
        %v4717 = vstv %s4716
        %v4718 = vmul.f32 %v4717, %v1684
        %v4719 = vmul.f32 %v4717, %v1685
        %v4720 = vmul.f32 %v4717, %v1686
        %v4721 = vmul.f32 %v4717, %v1687
        %v4722 = vadd.f32 %v4712, %v4718
        %v4723 = vadd.f32 %v4713, %v4719
        %v4724 = vadd.f32 %v4714, %v4720
        %v4725 = vadd.f32 %v4715, %v4721
        %s4726 = sld [smem:[#allocation2 + $0x40a]]
        %v4727 = vstv %s4726
        %v4728 = vmul.f32 %v4727, %v1732
        %v4729 = vmul.f32 %v4727, %v1733
        %v4730 = vmul.f32 %v4727, %v1734
        %v4731 = vmul.f32 %v4727, %v1735
        %v4732 = vadd.f32 %v4722, %v4728
        %v4733 = vadd.f32 %v4723, %v4729
        %v4734 = vadd.f32 %v4724, %v4730
        %v4735 = vadd.f32 %v4725, %v4731
        %s4736 = sld [smem:[#allocation2 + $0x40b]]
        %v4737 = vstv %s4736
        %v4738 = vmul.f32 %v4737, %v1780
        %v4739 = vmul.f32 %v4737, %v1781
        %v4740 = vmul.f32 %v4737, %v1782
        %v4741 = vmul.f32 %v4737, %v1783
        %v4742 = vadd.f32 %v4732, %v4738
        %v4743 = vadd.f32 %v4733, %v4739
        %v4744 = vadd.f32 %v4734, %v4740
        %v4745 = vadd.f32 %v4735, %v4741
        %s4746 = sld [smem:[#allocation2 + $0x40c]]
        %v4747 = vstv %s4746
        %v4748 = vmul.f32 %v4747, %v1828
        %v4749 = vmul.f32 %v4747, %v1829
        %v4750 = vmul.f32 %v4747, %v1830
        %v4751 = vmul.f32 %v4747, %v1831
        %v4752 = vadd.f32 %v4742, %v4748
        %v4753 = vadd.f32 %v4743, %v4749
        %v4754 = vadd.f32 %v4744, %v4750
        %v4755 = vadd.f32 %v4745, %v4751
        %s4756 = sld [smem:[#allocation2 + $0x40d]]
        %v4757 = vstv %s4756
        %v4758 = vmul.f32 %v4757, %v1836
        %v4759 = vmul.f32 %v4757, %v1837
        %v4760 = vmul.f32 %v4757, %v1838
        %v4761 = vmul.f32 %v4757, %v1839
        %v4762 = vadd.f32 %v4752, %v4758
        %v4763 = vadd.f32 %v4753, %v4759
        %v4764 = vadd.f32 %v4754, %v4760
        %v4765 = vadd.f32 %v4755, %v4761
        %s4766 = sld [smem:[#allocation2 + $0x40e]]
        %v4767 = vstv %s4766
        %v4768 = vmul.f32 %v4767, %v1884
        %v4769 = vmul.f32 %v4767, %v1885
        %v4770 = vmul.f32 %v4767, %v1886
        %v4771 = vmul.f32 %v4767, %v1887
        %v4772 = vadd.f32 %v4762, %v4768
        %v4773 = vadd.f32 %v4763, %v4769
        %v4774 = vadd.f32 %v4764, %v4770
        %v4775 = vadd.f32 %v4765, %v4771
        %s4776 = sld [smem:[#allocation2 + $0x40f]]
        %v4777 = vstv %s4776
        %v4778 = vmul.f32 %v4777, %v1932
        %v4779 = vmul.f32 %v4777, %v1933
        %v4780 = vmul.f32 %v4777, %v1934
        %v4781 = vmul.f32 %v4777, %v1935
        %v4782 = vadd.f32 %v4772, %v4778
        %v4783 = vadd.f32 %v4773, %v4779
        %v4784 = vadd.f32 %v4774, %v4780
        %v4785 = vadd.f32 %v4775, %v4781
        %s4786 = sld [smem:[#allocation2 + $0x410]]
        %v4787 = vstv %s4786
        %v4788 = vmul.f32 %v4787, %v1980
        %v4789 = vmul.f32 %v4787, %v1981
        %v4790 = vmul.f32 %v4787, %v1982
        %v4791 = vmul.f32 %v4787, %v1983
        %v4792 = vadd.f32 %v4782, %v4788
        %v4793 = vadd.f32 %v4783, %v4789
        %v4794 = vadd.f32 %v4784, %v4790
        %v4795 = vadd.f32 %v4785, %v4791
        %s4796 = sld [smem:[#allocation2 + $0x411]]
        %v4797 = vstv %s4796
        %v4798 = vmul.f32 %v4797, %v2028
        %v4799 = vmul.f32 %v4797, %v2029
        %v4800 = vmul.f32 %v4797, %v2030
        %v4801 = vmul.f32 %v4797, %v2031
        %v4802 = vadd.f32 %v4792, %v4798
        %v4803 = vadd.f32 %v4793, %v4799
        %v4804 = vadd.f32 %v4794, %v4800
        %v4805 = vadd.f32 %v4795, %v4801
        %s4806 = sld [smem:[#allocation2 + $0x412]]
        %v4807 = vstv %s4806
        %v4808 = vmul.f32 %v4807, %v2080
        %v4809 = vmul.f32 %v4807, %v2081
        %v4810 = vmul.f32 %v4807, %v2082
        %v4811 = vmul.f32 %v4807, %v2083
        %v4812 = vadd.f32 %v4802, %v4808
        %v4813 = vadd.f32 %v4803, %v4809
        %v4814 = vadd.f32 %v4804, %v4810
        %v4815 = vadd.f32 %v4805, %v4811
        %s4816 = sld [smem:[#allocation2 + $0x413]]
        %v4817 = vstv %s4816
        %v4818 = vmul.f32 %v4817, %v2128
        %v4819 = vmul.f32 %v4817, %v2129
        %v4820 = vmul.f32 %v4817, %v2130
        %v4821 = vmul.f32 %v4817, %v2131
        %v4822 = vadd.f32 %v4812, %v4818
        %v4823 = vadd.f32 %v4813, %v4819
        %v4824 = vadd.f32 %v4814, %v4820
        %v4825 = vadd.f32 %v4815, %v4821
        %s4826 = sld [smem:[#allocation2 + $0x414]]
        %v4827 = vstv %s4826
        %v4828 = vmul.f32 %v4827, %v2176
        %v4829 = vmul.f32 %v4827, %v2177
        %v4830 = vmul.f32 %v4827, %v2178
        %v4831 = vmul.f32 %v4827, %v2179
        %v4832 = vadd.f32 %v4822, %v4828
        %v4833 = vadd.f32 %v4823, %v4829
        %v4834 = vadd.f32 %v4824, %v4830
        %v4835 = vadd.f32 %v4825, %v4831
        %s4836 = sld [smem:[#allocation2 + $0x415]]
        %v4837 = vstv %s4836
        %v4838 = vmul.f32 %v4837, %v2224
        %v4839 = vmul.f32 %v4837, %v2225
        %v4840 = vmul.f32 %v4837, %v2226
        %v4841 = vmul.f32 %v4837, %v2227
        %v4842 = vadd.f32 %v4832, %v4838
        %v4843 = vadd.f32 %v4833, %v4839
        %v4844 = vadd.f32 %v4834, %v4840
        %v4845 = vadd.f32 %v4835, %v4841
        %s4846 = sld [smem:[#allocation2 + $0x416]]
        %v4847 = vstv %s4846
        %v4848 = vmul.f32 %v4847, %v2236
        %v4849 = vmul.f32 %v4847, %v2237
        %v4850 = vmul.f32 %v4847, %v2238
        %v4851 = vmul.f32 %v4847, %v2239
        %v4852 = vadd.f32 %v4842, %v4848
        %v4853 = vadd.f32 %v4843, %v4849
        %v4854 = vadd.f32 %v4844, %v4850
        %v4855 = vadd.f32 %v4845, %v4851
        %s4856 = sld [smem:[#allocation2 + $0x417]]
        %v4857 = vstv %s4856
        %v4858 = vmul.f32 %v4857, %v2284
        %v4859 = vmul.f32 %v4857, %v2285
        %v4860 = vmul.f32 %v4857, %v2286
        %v4861 = vmul.f32 %v4857, %v2287
        %v4862 = vadd.f32 %v4852, %v4858
        %v4863 = vadd.f32 %v4853, %v4859
        %v4864 = vadd.f32 %v4854, %v4860
        %v4865 = vadd.f32 %v4855, %v4861
        %s4866 = sld [smem:[#allocation2 + $0x418]]
        %v4867 = vstv %s4866
        %v4868 = vmul.f32 %v4867, %v2332
        %v4869 = vmul.f32 %v4867, %v2333
        %v4870 = vmul.f32 %v4867, %v2334
        %v4871 = vmul.f32 %v4867, %v2335
        %v4872 = vadd.f32 %v4862, %v4868
        %v4873 = vadd.f32 %v4863, %v4869
        %v4874 = vadd.f32 %v4864, %v4870
        %v4875 = vadd.f32 %v4865, %v4871
        %s4876 = sld [smem:[#allocation2 + $0x419]]
        %v4877 = vstv %s4876
        %v4878 = vmul.f32 %v4877, %v2380
        %v4879 = vmul.f32 %v4877, %v2381
        %v4880 = vmul.f32 %v4877, %v2382
        %v4881 = vmul.f32 %v4877, %v2383
        %v4882 = vadd.f32 %v4872, %v4878
        %v4883 = vadd.f32 %v4873, %v4879
        %v4884 = vadd.f32 %v4874, %v4880
        %v4885 = vadd.f32 %v4875, %v4881
        %s4886 = sld [smem:[#allocation2 + $0x41a]]
        %v4887 = vstv %s4886
        %v4888 = vmul.f32 %v4887, %v2428
        %v4889 = vmul.f32 %v4887, %v2429
        %v4890 = vmul.f32 %v4887, %v2430
        %v4891 = vmul.f32 %v4887, %v2431
        %v4892 = vadd.f32 %v4882, %v4888
        %v4893 = vadd.f32 %v4883, %v4889
        %v4894 = vadd.f32 %v4884, %v4890
        %v4895 = vadd.f32 %v4885, %v4891
        %v4896 = vmul.f32 %v4892, %v1162
        %v4897 = vmul.f32 %v4893, %v1163
        %v4898 = vmul.f32 %v4894, %v1164
        %v4899 = vmul.f32 %v4895, %v1165
        %s4900 = scalar_lea.vmem %s321, 224 [#allocation11]
        %4901 = vst [vmem:[%s4900] sm:$0xff] %v4896
        %4902 = vst [vmem:[%s4900 + $0x8] sm:$0xff] %v4897
        %4903 = vst [vmem:[%s4900 + $0x10] sm:$0xff] %v4898
        %4904 = vst [vmem:[%s4900 + $0x18] sm:$0xff] %v4899
        %s4905 = sld [smem:[#allocation2 + $0x480]]
        %v4906 = vstv %s4905
        %v4907 = vmul.f32 %v4906, %v1281
        %v4908 = vmul.f32 %v4906, %v1282
        %v4909 = vmul.f32 %v4906, %v1283
        %v4910 = vmul.f32 %v4906, %v1284
        %s4911 = sld [smem:[#allocation2 + $0x481]]
        %v4912 = vstv %s4911
        %v4913 = vmul.f32 %v4912, %v1330
        %v4914 = vmul.f32 %v4912, %v1331
        %v4915 = vmul.f32 %v4912, %v1332
        %v4916 = vmul.f32 %v4912, %v1333
        %v4917 = vadd.f32 %v4907, %v4913
        %v4918 = vadd.f32 %v4908, %v4914
        %v4919 = vadd.f32 %v4909, %v4915
        %v4920 = vadd.f32 %v4910, %v4916
        %s4921 = sld [smem:[#allocation2 + $0x482]]
        %v4922 = vstv %s4921
        %v4923 = vmul.f32 %v4922, %v1379
        %v4924 = vmul.f32 %v4922, %v1380
        %v4925 = vmul.f32 %v4922, %v1381
        %v4926 = vmul.f32 %v4922, %v1382
        %v4927 = vadd.f32 %v4917, %v4923
        %v4928 = vadd.f32 %v4918, %v4924
        %v4929 = vadd.f32 %v4919, %v4925
        %v4930 = vadd.f32 %v4920, %v4926
        %s4931 = sld [smem:[#allocation2 + $0x483]]
        %v4932 = vstv %s4931
        %v4933 = vmul.f32 %v4932, %v1428
        %v4934 = vmul.f32 %v4932, %v1429
        %v4935 = vmul.f32 %v4932, %v1430
        %v4936 = vmul.f32 %v4932, %v1431
        %v4937 = vadd.f32 %v4927, %v4933
        %v4938 = vadd.f32 %v4928, %v4934
        %v4939 = vadd.f32 %v4929, %v4935
        %v4940 = vadd.f32 %v4930, %v4936
        %s4941 = sld [smem:[#allocation2 + $0x484]]
        %v4942 = vstv %s4941
        %v4943 = vmul.f32 %v4942, %v1440
        %v4944 = vmul.f32 %v4942, %v1441
        %v4945 = vmul.f32 %v4942, %v1442
        %v4946 = vmul.f32 %v4942, %v1443
        %v4947 = vadd.f32 %v4937, %v4943
        %v4948 = vadd.f32 %v4938, %v4944
        %v4949 = vadd.f32 %v4939, %v4945
        %v4950 = vadd.f32 %v4940, %v4946
        %s4951 = sld [smem:[#allocation2 + $0x485]]
        %v4952 = vstv %s4951
        %v4953 = vmul.f32 %v4952, %v1489
        %v4954 = vmul.f32 %v4952, %v1490
        %v4955 = vmul.f32 %v4952, %v1491
        %v4956 = vmul.f32 %v4952, %v1492
        %v4957 = vadd.f32 %v4947, %v4953
        %v4958 = vadd.f32 %v4948, %v4954
        %v4959 = vadd.f32 %v4949, %v4955
        %v4960 = vadd.f32 %v4950, %v4956
        %s4961 = sld [smem:[#allocation2 + $0x486]]
        %v4962 = vstv %s4961
        %v4963 = vmul.f32 %v4962, %v1538
        %v4964 = vmul.f32 %v4962, %v1539
        %v4965 = vmul.f32 %v4962, %v1540
        %v4966 = vmul.f32 %v4962, %v1541
        %v4967 = vadd.f32 %v4957, %v4963
        %v4968 = vadd.f32 %v4958, %v4964
        %v4969 = vadd.f32 %v4959, %v4965
        %v4970 = vadd.f32 %v4960, %v4966
        %s4971 = sld [smem:[#allocation2 + $0x487]]
        %v4972 = vstv %s4971
        %v4973 = vmul.f32 %v4972, %v1587
        %v4974 = vmul.f32 %v4972, %v1588
        %v4975 = vmul.f32 %v4972, %v1589
        %v4976 = vmul.f32 %v4972, %v1590
        %v4977 = vadd.f32 %v4967, %v4973
        %v4978 = vadd.f32 %v4968, %v4974
        %v4979 = vadd.f32 %v4969, %v4975
        %v4980 = vadd.f32 %v4970, %v4976
        %s4981 = sld [smem:[#allocation2 + $0x488]]
        %v4982 = vstv %s4981
        %v4983 = vmul.f32 %v4982, %v1636
        %v4984 = vmul.f32 %v4982, %v1637
        %v4985 = vmul.f32 %v4982, %v1638
        %v4986 = vmul.f32 %v4982, %v1639
        %v4987 = vadd.f32 %v4977, %v4983
        %v4988 = vadd.f32 %v4978, %v4984
        %v4989 = vadd.f32 %v4979, %v4985
        %v4990 = vadd.f32 %v4980, %v4986
        %s4991 = sld [smem:[#allocation2 + $0x489]]
        %v4992 = vstv %s4991
        %v4993 = vmul.f32 %v4992, %v1684
        %v4994 = vmul.f32 %v4992, %v1685
        %v4995 = vmul.f32 %v4992, %v1686
        %v4996 = vmul.f32 %v4992, %v1687
        %v4997 = vadd.f32 %v4987, %v4993
        %v4998 = vadd.f32 %v4988, %v4994
        %v4999 = vadd.f32 %v4989, %v4995
        %v5000 = vadd.f32 %v4990, %v4996
        %s5001 = sld [smem:[#allocation2 + $0x48a]]
        %v5002 = vstv %s5001
        %v5003 = vmul.f32 %v5002, %v1732
        %v5004 = vmul.f32 %v5002, %v1733
        %v5005 = vmul.f32 %v5002, %v1734
        %v5006 = vmul.f32 %v5002, %v1735
        %v5007 = vadd.f32 %v4997, %v5003
        %v5008 = vadd.f32 %v4998, %v5004
        %v5009 = vadd.f32 %v4999, %v5005
        %v5010 = vadd.f32 %v5000, %v5006
        %s5011 = sld [smem:[#allocation2 + $0x48b]]
        %v5012 = vstv %s5011
        %v5013 = vmul.f32 %v5012, %v1780
        %v5014 = vmul.f32 %v5012, %v1781
        %v5015 = vmul.f32 %v5012, %v1782
        %v5016 = vmul.f32 %v5012, %v1783
        %v5017 = vadd.f32 %v5007, %v5013
        %v5018 = vadd.f32 %v5008, %v5014
        %v5019 = vadd.f32 %v5009, %v5015
        %v5020 = vadd.f32 %v5010, %v5016
        %s5021 = sld [smem:[#allocation2 + $0x48c]]
        %v5022 = vstv %s5021
        %v5023 = vmul.f32 %v5022, %v1828
        %v5024 = vmul.f32 %v5022, %v1829
        %v5025 = vmul.f32 %v5022, %v1830
        %v5026 = vmul.f32 %v5022, %v1831
        %v5027 = vadd.f32 %v5017, %v5023
        %v5028 = vadd.f32 %v5018, %v5024
        %v5029 = vadd.f32 %v5019, %v5025
        %v5030 = vadd.f32 %v5020, %v5026
        %s5031 = sld [smem:[#allocation2 + $0x48d]]
        %v5032 = vstv %s5031
        %v5033 = vmul.f32 %v5032, %v1836
        %v5034 = vmul.f32 %v5032, %v1837
        %v5035 = vmul.f32 %v5032, %v1838
        %v5036 = vmul.f32 %v5032, %v1839
        %v5037 = vadd.f32 %v5027, %v5033
        %v5038 = vadd.f32 %v5028, %v5034
        %v5039 = vadd.f32 %v5029, %v5035
        %v5040 = vadd.f32 %v5030, %v5036
        %s5041 = sld [smem:[#allocation2 + $0x48e]]
        %v5042 = vstv %s5041
        %v5043 = vmul.f32 %v5042, %v1884
        %v5044 = vmul.f32 %v5042, %v1885
        %v5045 = vmul.f32 %v5042, %v1886
        %v5046 = vmul.f32 %v5042, %v1887
        %v5047 = vadd.f32 %v5037, %v5043
        %v5048 = vadd.f32 %v5038, %v5044
        %v5049 = vadd.f32 %v5039, %v5045
        %v5050 = vadd.f32 %v5040, %v5046
        %s5051 = sld [smem:[#allocation2 + $0x48f]]
        %v5052 = vstv %s5051
        %v5053 = vmul.f32 %v5052, %v1932
        %v5054 = vmul.f32 %v5052, %v1933
        %v5055 = vmul.f32 %v5052, %v1934
        %v5056 = vmul.f32 %v5052, %v1935
        %v5057 = vadd.f32 %v5047, %v5053
        %v5058 = vadd.f32 %v5048, %v5054
        %v5059 = vadd.f32 %v5049, %v5055
        %v5060 = vadd.f32 %v5050, %v5056
        %s5061 = sld [smem:[#allocation2 + $0x490]]
        %v5062 = vstv %s5061
        %v5063 = vmul.f32 %v5062, %v1980
        %v5064 = vmul.f32 %v5062, %v1981
        %v5065 = vmul.f32 %v5062, %v1982
        %v5066 = vmul.f32 %v5062, %v1983
        %v5067 = vadd.f32 %v5057, %v5063
        %v5068 = vadd.f32 %v5058, %v5064
        %v5069 = vadd.f32 %v5059, %v5065
        %v5070 = vadd.f32 %v5060, %v5066
        %s5071 = sld [smem:[#allocation2 + $0x491]]
        %v5072 = vstv %s5071
        %v5073 = vmul.f32 %v5072, %v2028
        %v5074 = vmul.f32 %v5072, %v2029
        %v5075 = vmul.f32 %v5072, %v2030
        %v5076 = vmul.f32 %v5072, %v2031
        %v5077 = vadd.f32 %v5067, %v5073
        %v5078 = vadd.f32 %v5068, %v5074
        %v5079 = vadd.f32 %v5069, %v5075
        %v5080 = vadd.f32 %v5070, %v5076
        %s5081 = sld [smem:[#allocation2 + $0x492]]
        %v5082 = vstv %s5081
        %v5083 = vmul.f32 %v5082, %v2080
        %v5084 = vmul.f32 %v5082, %v2081
        %v5085 = vmul.f32 %v5082, %v2082
        %v5086 = vmul.f32 %v5082, %v2083
        %v5087 = vadd.f32 %v5077, %v5083
        %v5088 = vadd.f32 %v5078, %v5084
        %v5089 = vadd.f32 %v5079, %v5085
        %v5090 = vadd.f32 %v5080, %v5086
        %s5091 = sld [smem:[#allocation2 + $0x493]]
        %v5092 = vstv %s5091
        %v5093 = vmul.f32 %v5092, %v2128
        %v5094 = vmul.f32 %v5092, %v2129
        %v5095 = vmul.f32 %v5092, %v2130
        %v5096 = vmul.f32 %v5092, %v2131
        %v5097 = vadd.f32 %v5087, %v5093
        %v5098 = vadd.f32 %v5088, %v5094
        %v5099 = vadd.f32 %v5089, %v5095
        %v5100 = vadd.f32 %v5090, %v5096
        %s5101 = sld [smem:[#allocation2 + $0x494]]
        %v5102 = vstv %s5101
        %v5103 = vmul.f32 %v5102, %v2176
        %v5104 = vmul.f32 %v5102, %v2177
        %v5105 = vmul.f32 %v5102, %v2178
        %v5106 = vmul.f32 %v5102, %v2179
        %v5107 = vadd.f32 %v5097, %v5103
        %v5108 = vadd.f32 %v5098, %v5104
        %v5109 = vadd.f32 %v5099, %v5105
        %v5110 = vadd.f32 %v5100, %v5106
        %s5111 = sld [smem:[#allocation2 + $0x495]]
        %v5112 = vstv %s5111
        %v5113 = vmul.f32 %v5112, %v2224
        %v5114 = vmul.f32 %v5112, %v2225
        %v5115 = vmul.f32 %v5112, %v2226
        %v5116 = vmul.f32 %v5112, %v2227
        %v5117 = vadd.f32 %v5107, %v5113
        %v5118 = vadd.f32 %v5108, %v5114
        %v5119 = vadd.f32 %v5109, %v5115
        %v5120 = vadd.f32 %v5110, %v5116
        %s5121 = sld [smem:[#allocation2 + $0x496]]
        %v5122 = vstv %s5121
        %v5123 = vmul.f32 %v5122, %v2236
        %v5124 = vmul.f32 %v5122, %v2237
        %v5125 = vmul.f32 %v5122, %v2238
        %v5126 = vmul.f32 %v5122, %v2239
        %v5127 = vadd.f32 %v5117, %v5123
        %v5128 = vadd.f32 %v5118, %v5124
        %v5129 = vadd.f32 %v5119, %v5125
        %v5130 = vadd.f32 %v5120, %v5126
        %s5131 = sld [smem:[#allocation2 + $0x497]]
        %v5132 = vstv %s5131
        %v5133 = vmul.f32 %v5132, %v2284
        %v5134 = vmul.f32 %v5132, %v2285
        %v5135 = vmul.f32 %v5132, %v2286
        %v5136 = vmul.f32 %v5132, %v2287
        %v5137 = vadd.f32 %v5127, %v5133
        %v5138 = vadd.f32 %v5128, %v5134
        %v5139 = vadd.f32 %v5129, %v5135
        %v5140 = vadd.f32 %v5130, %v5136
        %s5141 = sld [smem:[#allocation2 + $0x498]]
        %v5142 = vstv %s5141
        %v5143 = vmul.f32 %v5142, %v2332
        %v5144 = vmul.f32 %v5142, %v2333
        %v5145 = vmul.f32 %v5142, %v2334
        %v5146 = vmul.f32 %v5142, %v2335
        %v5147 = vadd.f32 %v5137, %v5143
        %v5148 = vadd.f32 %v5138, %v5144
        %v5149 = vadd.f32 %v5139, %v5145
        %v5150 = vadd.f32 %v5140, %v5146
        %s5151 = sld [smem:[#allocation2 + $0x499]]
        %v5152 = vstv %s5151
        %v5153 = vmul.f32 %v5152, %v2380
        %v5154 = vmul.f32 %v5152, %v2381
        %v5155 = vmul.f32 %v5152, %v2382
        %v5156 = vmul.f32 %v5152, %v2383
        %v5157 = vadd.f32 %v5147, %v5153
        %v5158 = vadd.f32 %v5148, %v5154
        %v5159 = vadd.f32 %v5149, %v5155
        %v5160 = vadd.f32 %v5150, %v5156
        %s5161 = sld [smem:[#allocation2 + $0x49a]]
        %v5162 = vstv %s5161
        %v5163 = vmul.f32 %v5162, %v2428
        %v5164 = vmul.f32 %v5162, %v2429
        %v5165 = vmul.f32 %v5162, %v2430
        %v5166 = vmul.f32 %v5162, %v2431
        %v5167 = vadd.f32 %v5157, %v5163
        %v5168 = vadd.f32 %v5158, %v5164
        %v5169 = vadd.f32 %v5159, %v5165
        %v5170 = vadd.f32 %v5160, %v5166
        %v5171 = vmul.f32 %v5167, %v1162
        %v5172 = vmul.f32 %v5168, %v1163
        %v5173 = vmul.f32 %v5169, %v1164
        %v5174 = vmul.f32 %v5170, %v1165
        %s5175 = scalar_lea.vmem %s321, 256 [#allocation11]
        %5176 = vst [vmem:[%s5175] sm:$0xff] %v5171
        %5177 = vst [vmem:[%s5175 + $0x8] sm:$0xff] %v5172
        %5178 = vst [vmem:[%s5175 + $0x10] sm:$0xff] %v5173
        %5179 = vst [vmem:[%s5175 + $0x18] sm:$0xff] %v5174
        %s5180 = sld [smem:[#allocation2 + $0x500]]
        %v5181 = vstv %s5180
        %v5182 = vmul.f32 %v5181, %v1281
        %v5183 = vmul.f32 %v5181, %v1282
        %v5184 = vmul.f32 %v5181, %v1283
        %v5185 = vmul.f32 %v5181, %v1284
        %s5186 = sld [smem:[#allocation2 + $0x501]]
        %v5187 = vstv %s5186
        %v5188 = vmul.f32 %v5187, %v1330
        %v5189 = vmul.f32 %v5187, %v1331
        %v5190 = vmul.f32 %v5187, %v1332
        %v5191 = vmul.f32 %v5187, %v1333
        %v5192 = vadd.f32 %v5182, %v5188
        %v5193 = vadd.f32 %v5183, %v5189
        %v5194 = vadd.f32 %v5184, %v5190
        %v5195 = vadd.f32 %v5185, %v5191
        %s5196 = sld [smem:[#allocation2 + $0x502]]
        %v5197 = vstv %s5196
        %v5198 = vmul.f32 %v5197, %v1379
        %v5199 = vmul.f32 %v5197, %v1380
        %v5200 = vmul.f32 %v5197, %v1381
        %v5201 = vmul.f32 %v5197, %v1382
        %v5202 = vadd.f32 %v5192, %v5198
        %v5203 = vadd.f32 %v5193, %v5199
        %v5204 = vadd.f32 %v5194, %v5200
        %v5205 = vadd.f32 %v5195, %v5201
        %s5206 = sld [smem:[#allocation2 + $0x503]]
        %v5207 = vstv %s5206
        %v5208 = vmul.f32 %v5207, %v1428
        %v5209 = vmul.f32 %v5207, %v1429
        %v5210 = vmul.f32 %v5207, %v1430
        %v5211 = vmul.f32 %v5207, %v1431
        %v5212 = vadd.f32 %v5202, %v5208
        %v5213 = vadd.f32 %v5203, %v5209
        %v5214 = vadd.f32 %v5204, %v5210
        %v5215 = vadd.f32 %v5205, %v5211
        %s5216 = sld [smem:[#allocation2 + $0x504]]
        %v5217 = vstv %s5216
        %v5218 = vmul.f32 %v5217, %v1440
        %v5219 = vmul.f32 %v5217, %v1441
        %v5220 = vmul.f32 %v5217, %v1442
        %v5221 = vmul.f32 %v5217, %v1443
        %v5222 = vadd.f32 %v5212, %v5218
        %v5223 = vadd.f32 %v5213, %v5219
        %v5224 = vadd.f32 %v5214, %v5220
        %v5225 = vadd.f32 %v5215, %v5221
        %s5226 = sld [smem:[#allocation2 + $0x505]]
        %v5227 = vstv %s5226
        %v5228 = vmul.f32 %v5227, %v1489
        %v5229 = vmul.f32 %v5227, %v1490
        %v5230 = vmul.f32 %v5227, %v1491
        %v5231 = vmul.f32 %v5227, %v1492
        %v5232 = vadd.f32 %v5222, %v5228
        %v5233 = vadd.f32 %v5223, %v5229
        %v5234 = vadd.f32 %v5224, %v5230
        %v5235 = vadd.f32 %v5225, %v5231
        %s5236 = sld [smem:[#allocation2 + $0x506]]
        %v5237 = vstv %s5236
        %v5238 = vmul.f32 %v5237, %v1538
        %v5239 = vmul.f32 %v5237, %v1539
        %v5240 = vmul.f32 %v5237, %v1540
        %v5241 = vmul.f32 %v5237, %v1541
        %v5242 = vadd.f32 %v5232, %v5238
        %v5243 = vadd.f32 %v5233, %v5239
        %v5244 = vadd.f32 %v5234, %v5240
        %v5245 = vadd.f32 %v5235, %v5241
        %s5246 = sld [smem:[#allocation2 + $0x507]]
        %v5247 = vstv %s5246
        %v5248 = vmul.f32 %v5247, %v1587
        %v5249 = vmul.f32 %v5247, %v1588
        %v5250 = vmul.f32 %v5247, %v1589
        %v5251 = vmul.f32 %v5247, %v1590
        %v5252 = vadd.f32 %v5242, %v5248
        %v5253 = vadd.f32 %v5243, %v5249
        %v5254 = vadd.f32 %v5244, %v5250
        %v5255 = vadd.f32 %v5245, %v5251
        %s5256 = sld [smem:[#allocation2 + $0x508]]
        %v5257 = vstv %s5256
        %v5258 = vmul.f32 %v5257, %v1636
        %v5259 = vmul.f32 %v5257, %v1637
        %v5260 = vmul.f32 %v5257, %v1638
        %v5261 = vmul.f32 %v5257, %v1639
        %v5262 = vadd.f32 %v5252, %v5258
        %v5263 = vadd.f32 %v5253, %v5259
        %v5264 = vadd.f32 %v5254, %v5260
        %v5265 = vadd.f32 %v5255, %v5261
        %s5266 = sld [smem:[#allocation2 + $0x509]]
        %v5267 = vstv %s5266
        %v5268 = vmul.f32 %v5267, %v1684
        %v5269 = vmul.f32 %v5267, %v1685
        %v5270 = vmul.f32 %v5267, %v1686
        %v5271 = vmul.f32 %v5267, %v1687
        %v5272 = vadd.f32 %v5262, %v5268
        %v5273 = vadd.f32 %v5263, %v5269
        %v5274 = vadd.f32 %v5264, %v5270
        %v5275 = vadd.f32 %v5265, %v5271
        %s5276 = sld [smem:[#allocation2 + $0x50a]]
        %v5277 = vstv %s5276
        %v5278 = vmul.f32 %v5277, %v1732
        %v5279 = vmul.f32 %v5277, %v1733
        %v5280 = vmul.f32 %v5277, %v1734
        %v5281 = vmul.f32 %v5277, %v1735
        %v5282 = vadd.f32 %v5272, %v5278
        %v5283 = vadd.f32 %v5273, %v5279
        %v5284 = vadd.f32 %v5274, %v5280
        %v5285 = vadd.f32 %v5275, %v5281
        %s5286 = sld [smem:[#allocation2 + $0x50b]]
        %v5287 = vstv %s5286
        %v5288 = vmul.f32 %v5287, %v1780
        %v5289 = vmul.f32 %v5287, %v1781
        %v5290 = vmul.f32 %v5287, %v1782
        %v5291 = vmul.f32 %v5287, %v1783
        %v5292 = vadd.f32 %v5282, %v5288
        %v5293 = vadd.f32 %v5283, %v5289
        %v5294 = vadd.f32 %v5284, %v5290
        %v5295 = vadd.f32 %v5285, %v5291
        %s5296 = sld [smem:[#allocation2 + $0x50c]]
        %v5297 = vstv %s5296
        %v5298 = vmul.f32 %v5297, %v1828
        %v5299 = vmul.f32 %v5297, %v1829
        %v5300 = vmul.f32 %v5297, %v1830
        %v5301 = vmul.f32 %v5297, %v1831
        %v5302 = vadd.f32 %v5292, %v5298
        %v5303 = vadd.f32 %v5293, %v5299
        %v5304 = vadd.f32 %v5294, %v5300
        %v5305 = vadd.f32 %v5295, %v5301
        %s5306 = sld [smem:[#allocation2 + $0x50d]]
        %v5307 = vstv %s5306
        %v5308 = vmul.f32 %v5307, %v1836
        %v5309 = vmul.f32 %v5307, %v1837
        %v5310 = vmul.f32 %v5307, %v1838
        %v5311 = vmul.f32 %v5307, %v1839
        %v5312 = vadd.f32 %v5302, %v5308
        %v5313 = vadd.f32 %v5303, %v5309
        %v5314 = vadd.f32 %v5304, %v5310
        %v5315 = vadd.f32 %v5305, %v5311
        %s5316 = sld [smem:[#allocation2 + $0x50e]]
        %v5317 = vstv %s5316
        %v5318 = vmul.f32 %v5317, %v1884
        %v5319 = vmul.f32 %v5317, %v1885
        %v5320 = vmul.f32 %v5317, %v1886
        %v5321 = vmul.f32 %v5317, %v1887
        %v5322 = vadd.f32 %v5312, %v5318
        %v5323 = vadd.f32 %v5313, %v5319
        %v5324 = vadd.f32 %v5314, %v5320
        %v5325 = vadd.f32 %v5315, %v5321
        %s5326 = sld [smem:[#allocation2 + $0x50f]]
        %v5327 = vstv %s5326
        %v5328 = vmul.f32 %v5327, %v1932
        %v5329 = vmul.f32 %v5327, %v1933
        %v5330 = vmul.f32 %v5327, %v1934
        %v5331 = vmul.f32 %v5327, %v1935
        %v5332 = vadd.f32 %v5322, %v5328
        %v5333 = vadd.f32 %v5323, %v5329
        %v5334 = vadd.f32 %v5324, %v5330
        %v5335 = vadd.f32 %v5325, %v5331
        %s5336 = sld [smem:[#allocation2 + $0x510]]
        %v5337 = vstv %s5336
        %v5338 = vmul.f32 %v5337, %v1980
        %v5339 = vmul.f32 %v5337, %v1981
        %v5340 = vmul.f32 %v5337, %v1982
        %v5341 = vmul.f32 %v5337, %v1983
        %v5342 = vadd.f32 %v5332, %v5338
        %v5343 = vadd.f32 %v5333, %v5339
        %v5344 = vadd.f32 %v5334, %v5340
        %v5345 = vadd.f32 %v5335, %v5341
        %s5346 = sld [smem:[#allocation2 + $0x511]]
        %v5347 = vstv %s5346
        %v5348 = vmul.f32 %v5347, %v2028
        %v5349 = vmul.f32 %v5347, %v2029
        %v5350 = vmul.f32 %v5347, %v2030
        %v5351 = vmul.f32 %v5347, %v2031
        %v5352 = vadd.f32 %v5342, %v5348
        %v5353 = vadd.f32 %v5343, %v5349
        %v5354 = vadd.f32 %v5344, %v5350
        %v5355 = vadd.f32 %v5345, %v5351
        %s5356 = sld [smem:[#allocation2 + $0x512]]
        %v5357 = vstv %s5356
        %v5358 = vmul.f32 %v5357, %v2080
        %v5359 = vmul.f32 %v5357, %v2081
        %v5360 = vmul.f32 %v5357, %v2082
        %v5361 = vmul.f32 %v5357, %v2083
        %v5362 = vadd.f32 %v5352, %v5358
        %v5363 = vadd.f32 %v5353, %v5359
        %v5364 = vadd.f32 %v5354, %v5360
        %v5365 = vadd.f32 %v5355, %v5361
        %s5366 = sld [smem:[#allocation2 + $0x513]]
        %v5367 = vstv %s5366
        %v5368 = vmul.f32 %v5367, %v2128
        %v5369 = vmul.f32 %v5367, %v2129
        %v5370 = vmul.f32 %v5367, %v2130
        %v5371 = vmul.f32 %v5367, %v2131
        %v5372 = vadd.f32 %v5362, %v5368
        %v5373 = vadd.f32 %v5363, %v5369
        %v5374 = vadd.f32 %v5364, %v5370
        %v5375 = vadd.f32 %v5365, %v5371
        %s5376 = sld [smem:[#allocation2 + $0x514]]
        %v5377 = vstv %s5376
        %v5378 = vmul.f32 %v5377, %v2176
        %v5379 = vmul.f32 %v5377, %v2177
        %v5380 = vmul.f32 %v5377, %v2178
        %v5381 = vmul.f32 %v5377, %v2179
        %v5382 = vadd.f32 %v5372, %v5378
        %v5383 = vadd.f32 %v5373, %v5379
        %v5384 = vadd.f32 %v5374, %v5380
        %v5385 = vadd.f32 %v5375, %v5381
        %s5386 = sld [smem:[#allocation2 + $0x515]]
        %v5387 = vstv %s5386
        %v5388 = vmul.f32 %v5387, %v2224
        %v5389 = vmul.f32 %v5387, %v2225
        %v5390 = vmul.f32 %v5387, %v2226
        %v5391 = vmul.f32 %v5387, %v2227
        %v5392 = vadd.f32 %v5382, %v5388
        %v5393 = vadd.f32 %v5383, %v5389
        %v5394 = vadd.f32 %v5384, %v5390
        %v5395 = vadd.f32 %v5385, %v5391
        %s5396 = sld [smem:[#allocation2 + $0x516]]
        %v5397 = vstv %s5396
        %v5398 = vmul.f32 %v5397, %v2236
        %v5399 = vmul.f32 %v5397, %v2237
        %v5400 = vmul.f32 %v5397, %v2238
        %v5401 = vmul.f32 %v5397, %v2239
        %v5402 = vadd.f32 %v5392, %v5398
        %v5403 = vadd.f32 %v5393, %v5399
        %v5404 = vadd.f32 %v5394, %v5400
        %v5405 = vadd.f32 %v5395, %v5401
        %s5406 = sld [smem:[#allocation2 + $0x517]]
        %v5407 = vstv %s5406
        %v5408 = vmul.f32 %v5407, %v2284
        %v5409 = vmul.f32 %v5407, %v2285
        %v5410 = vmul.f32 %v5407, %v2286
        %v5411 = vmul.f32 %v5407, %v2287
        %v5412 = vadd.f32 %v5402, %v5408
        %v5413 = vadd.f32 %v5403, %v5409
        %v5414 = vadd.f32 %v5404, %v5410
        %v5415 = vadd.f32 %v5405, %v5411
        %s5416 = sld [smem:[#allocation2 + $0x518]]
        %v5417 = vstv %s5416
        %v5418 = vmul.f32 %v5417, %v2332
        %v5419 = vmul.f32 %v5417, %v2333
        %v5420 = vmul.f32 %v5417, %v2334
        %v5421 = vmul.f32 %v5417, %v2335
        %v5422 = vadd.f32 %v5412, %v5418
        %v5423 = vadd.f32 %v5413, %v5419
        %v5424 = vadd.f32 %v5414, %v5420
        %v5425 = vadd.f32 %v5415, %v5421
        %s5426 = sld [smem:[#allocation2 + $0x519]]
        %v5427 = vstv %s5426
        %v5428 = vmul.f32 %v5427, %v2380
        %v5429 = vmul.f32 %v5427, %v2381
        %v5430 = vmul.f32 %v5427, %v2382
        %v5431 = vmul.f32 %v5427, %v2383
        %v5432 = vadd.f32 %v5422, %v5428
        %v5433 = vadd.f32 %v5423, %v5429
        %v5434 = vadd.f32 %v5424, %v5430
        %v5435 = vadd.f32 %v5425, %v5431
        %s5436 = sld [smem:[#allocation2 + $0x51a]]
        %v5437 = vstv %s5436
        %v5438 = vmul.f32 %v5437, %v2428
        %v5439 = vmul.f32 %v5437, %v2429
        %v5440 = vmul.f32 %v5437, %v2430
        %v5441 = vmul.f32 %v5437, %v2431
        %v5442 = vadd.f32 %v5432, %v5438
        %v5443 = vadd.f32 %v5433, %v5439
        %v5444 = vadd.f32 %v5434, %v5440
        %v5445 = vadd.f32 %v5435, %v5441
        %v5446 = vmul.f32 %v5442, %v1162
        %v5447 = vmul.f32 %v5443, %v1163
        %v5448 = vmul.f32 %v5444, %v1164
        %v5449 = vmul.f32 %v5445, %v1165
        %s5450 = scalar_lea.vmem %s321, 288 [#allocation11]
        %5451 = vst [vmem:[%s5450] sm:$0xff] %v5446
        %5452 = vst [vmem:[%s5450 + $0x8] sm:$0xff] %v5447
        %5453 = vst [vmem:[%s5450 + $0x10] sm:$0xff] %v5448
        %5454 = vst [vmem:[%s5450 + $0x18] sm:$0xff] %v5449
        %s5455 = sld [smem:[#allocation2 + $0x580]]
        %v5456 = vstv %s5455
        %v5457 = vmul.f32 %v5456, %v1281
        %v5458 = vmul.f32 %v5456, %v1282
        %v5459 = vmul.f32 %v5456, %v1283
        %v5460 = vmul.f32 %v5456, %v1284
        %s5461 = sld [smem:[#allocation2 + $0x581]]
        %v5462 = vstv %s5461
        %v5463 = vmul.f32 %v5462, %v1330
        %v5464 = vmul.f32 %v5462, %v1331
        %v5465 = vmul.f32 %v5462, %v1332
        %v5466 = vmul.f32 %v5462, %v1333
        %v5467 = vadd.f32 %v5457, %v5463
        %v5468 = vadd.f32 %v5458, %v5464
        %v5469 = vadd.f32 %v5459, %v5465
        %v5470 = vadd.f32 %v5460, %v5466
        %s5471 = sld [smem:[#allocation2 + $0x582]]
        %v5472 = vstv %s5471
        %v5473 = vmul.f32 %v5472, %v1379
        %v5474 = vmul.f32 %v5472, %v1380
        %v5475 = vmul.f32 %v5472, %v1381
        %v5476 = vmul.f32 %v5472, %v1382
        %v5477 = vadd.f32 %v5467, %v5473
        %v5478 = vadd.f32 %v5468, %v5474
        %v5479 = vadd.f32 %v5469, %v5475
        %v5480 = vadd.f32 %v5470, %v5476
        %s5481 = sld [smem:[#allocation2 + $0x583]]
        %v5482 = vstv %s5481
        %v5483 = vmul.f32 %v5482, %v1428
        %v5484 = vmul.f32 %v5482, %v1429
        %v5485 = vmul.f32 %v5482, %v1430
        %v5486 = vmul.f32 %v5482, %v1431
        %v5487 = vadd.f32 %v5477, %v5483
        %v5488 = vadd.f32 %v5478, %v5484
        %v5489 = vadd.f32 %v5479, %v5485
        %v5490 = vadd.f32 %v5480, %v5486
        %s5491 = sld [smem:[#allocation2 + $0x584]]
        %v5492 = vstv %s5491
        %v5493 = vmul.f32 %v5492, %v1440
        %v5494 = vmul.f32 %v5492, %v1441
        %v5495 = vmul.f32 %v5492, %v1442
        %v5496 = vmul.f32 %v5492, %v1443
        %v5497 = vadd.f32 %v5487, %v5493
        %v5498 = vadd.f32 %v5488, %v5494
        %v5499 = vadd.f32 %v5489, %v5495
        %v5500 = vadd.f32 %v5490, %v5496
        %s5501 = sld [smem:[#allocation2 + $0x585]]
        %v5502 = vstv %s5501
        %v5503 = vmul.f32 %v5502, %v1489
        %v5504 = vmul.f32 %v5502, %v1490
        %v5505 = vmul.f32 %v5502, %v1491
        %v5506 = vmul.f32 %v5502, %v1492
        %v5507 = vadd.f32 %v5497, %v5503
        %v5508 = vadd.f32 %v5498, %v5504
        %v5509 = vadd.f32 %v5499, %v5505
        %v5510 = vadd.f32 %v5500, %v5506
        %s5511 = sld [smem:[#allocation2 + $0x586]]
        %v5512 = vstv %s5511
        %v5513 = vmul.f32 %v5512, %v1538
        %v5514 = vmul.f32 %v5512, %v1539
        %v5515 = vmul.f32 %v5512, %v1540
        %v5516 = vmul.f32 %v5512, %v1541
        %v5517 = vadd.f32 %v5507, %v5513
        %v5518 = vadd.f32 %v5508, %v5514
        %v5519 = vadd.f32 %v5509, %v5515
        %v5520 = vadd.f32 %v5510, %v5516
        %s5521 = sld [smem:[#allocation2 + $0x587]]
        %v5522 = vstv %s5521
        %v5523 = vmul.f32 %v5522, %v1587
        %v5524 = vmul.f32 %v5522, %v1588
        %v5525 = vmul.f32 %v5522, %v1589
        %v5526 = vmul.f32 %v5522, %v1590
        %v5527 = vadd.f32 %v5517, %v5523
        %v5528 = vadd.f32 %v5518, %v5524
        %v5529 = vadd.f32 %v5519, %v5525
        %v5530 = vadd.f32 %v5520, %v5526
        %s5531 = sld [smem:[#allocation2 + $0x588]]
        %v5532 = vstv %s5531
        %v5533 = vmul.f32 %v5532, %v1636
        %v5534 = vmul.f32 %v5532, %v1637
        %v5535 = vmul.f32 %v5532, %v1638
        %v5536 = vmul.f32 %v5532, %v1639
        %v5537 = vadd.f32 %v5527, %v5533
        %v5538 = vadd.f32 %v5528, %v5534
        %v5539 = vadd.f32 %v5529, %v5535
        %v5540 = vadd.f32 %v5530, %v5536
        %s5541 = sld [smem:[#allocation2 + $0x589]]
        %v5542 = vstv %s5541
        %v5543 = vmul.f32 %v5542, %v1684
        %v5544 = vmul.f32 %v5542, %v1685
        %v5545 = vmul.f32 %v5542, %v1686
        %v5546 = vmul.f32 %v5542, %v1687
        %v5547 = vadd.f32 %v5537, %v5543
        %v5548 = vadd.f32 %v5538, %v5544
        %v5549 = vadd.f32 %v5539, %v5545
        %v5550 = vadd.f32 %v5540, %v5546
        %s5551 = sld [smem:[#allocation2 + $0x58a]]
        %v5552 = vstv %s5551
        %v5553 = vmul.f32 %v5552, %v1732
        %v5554 = vmul.f32 %v5552, %v1733
        %v5555 = vmul.f32 %v5552, %v1734
        %v5556 = vmul.f32 %v5552, %v1735
        %v5557 = vadd.f32 %v5547, %v5553
        %v5558 = vadd.f32 %v5548, %v5554
        %v5559 = vadd.f32 %v5549, %v5555
        %v5560 = vadd.f32 %v5550, %v5556
        %s5561 = sld [smem:[#allocation2 + $0x58b]]
        %v5562 = vstv %s5561
        %v5563 = vmul.f32 %v5562, %v1780
        %v5564 = vmul.f32 %v5562, %v1781
        %v5565 = vmul.f32 %v5562, %v1782
        %v5566 = vmul.f32 %v5562, %v1783
        %v5567 = vadd.f32 %v5557, %v5563
        %v5568 = vadd.f32 %v5558, %v5564
        %v5569 = vadd.f32 %v5559, %v5565
        %v5570 = vadd.f32 %v5560, %v5566
        %s5571 = sld [smem:[#allocation2 + $0x58c]]
        %v5572 = vstv %s5571
        %v5573 = vmul.f32 %v5572, %v1828
        %v5574 = vmul.f32 %v5572, %v1829
        %v5575 = vmul.f32 %v5572, %v1830
        %v5576 = vmul.f32 %v5572, %v1831
        %v5577 = vadd.f32 %v5567, %v5573
        %v5578 = vadd.f32 %v5568, %v5574
        %v5579 = vadd.f32 %v5569, %v5575
        %v5580 = vadd.f32 %v5570, %v5576
        %s5581 = sld [smem:[#allocation2 + $0x58d]]
        %v5582 = vstv %s5581
        %v5583 = vmul.f32 %v5582, %v1836
        %v5584 = vmul.f32 %v5582, %v1837
        %v5585 = vmul.f32 %v5582, %v1838
        %v5586 = vmul.f32 %v5582, %v1839
        %v5587 = vadd.f32 %v5577, %v5583
        %v5588 = vadd.f32 %v5578, %v5584
        %v5589 = vadd.f32 %v5579, %v5585
        %v5590 = vadd.f32 %v5580, %v5586
        %s5591 = sld [smem:[#allocation2 + $0x58e]]
        %v5592 = vstv %s5591
        %v5593 = vmul.f32 %v5592, %v1884
        %v5594 = vmul.f32 %v5592, %v1885
        %v5595 = vmul.f32 %v5592, %v1886
        %v5596 = vmul.f32 %v5592, %v1887
        %v5597 = vadd.f32 %v5587, %v5593
        %v5598 = vadd.f32 %v5588, %v5594
        %v5599 = vadd.f32 %v5589, %v5595
        %v5600 = vadd.f32 %v5590, %v5596
        %s5601 = sld [smem:[#allocation2 + $0x58f]]
        %v5602 = vstv %s5601
        %v5603 = vmul.f32 %v5602, %v1932
        %v5604 = vmul.f32 %v5602, %v1933
        %v5605 = vmul.f32 %v5602, %v1934
        %v5606 = vmul.f32 %v5602, %v1935
        %v5607 = vadd.f32 %v5597, %v5603
        %v5608 = vadd.f32 %v5598, %v5604
        %v5609 = vadd.f32 %v5599, %v5605
        %v5610 = vadd.f32 %v5600, %v5606
        %s5611 = sld [smem:[#allocation2 + $0x590]]
        %v5612 = vstv %s5611
        %v5613 = vmul.f32 %v5612, %v1980
        %v5614 = vmul.f32 %v5612, %v1981
        %v5615 = vmul.f32 %v5612, %v1982
        %v5616 = vmul.f32 %v5612, %v1983
        %v5617 = vadd.f32 %v5607, %v5613
        %v5618 = vadd.f32 %v5608, %v5614
        %v5619 = vadd.f32 %v5609, %v5615
        %v5620 = vadd.f32 %v5610, %v5616
        %s5621 = sld [smem:[#allocation2 + $0x591]]
        %v5622 = vstv %s5621
        %v5623 = vmul.f32 %v5622, %v2028
        %v5624 = vmul.f32 %v5622, %v2029
        %v5625 = vmul.f32 %v5622, %v2030
        %v5626 = vmul.f32 %v5622, %v2031
        %v5627 = vadd.f32 %v5617, %v5623
        %v5628 = vadd.f32 %v5618, %v5624
        %v5629 = vadd.f32 %v5619, %v5625
        %v5630 = vadd.f32 %v5620, %v5626
        %s5631 = sld [smem:[#allocation2 + $0x592]]
        %v5632 = vstv %s5631
        %v5633 = vmul.f32 %v5632, %v2080
        %v5634 = vmul.f32 %v5632, %v2081
        %v5635 = vmul.f32 %v5632, %v2082
        %v5636 = vmul.f32 %v5632, %v2083
        %v5637 = vadd.f32 %v5627, %v5633
        %v5638 = vadd.f32 %v5628, %v5634
        %v5639 = vadd.f32 %v5629, %v5635
        %v5640 = vadd.f32 %v5630, %v5636
        %s5641 = sld [smem:[#allocation2 + $0x593]]
        %v5642 = vstv %s5641
        %v5643 = vmul.f32 %v5642, %v2128
        %v5644 = vmul.f32 %v5642, %v2129
        %v5645 = vmul.f32 %v5642, %v2130
        %v5646 = vmul.f32 %v5642, %v2131
        %v5647 = vadd.f32 %v5637, %v5643
        %v5648 = vadd.f32 %v5638, %v5644
        %v5649 = vadd.f32 %v5639, %v5645
        %v5650 = vadd.f32 %v5640, %v5646
        %s5651 = sld [smem:[#allocation2 + $0x594]]
        %v5652 = vstv %s5651
        %v5653 = vmul.f32 %v5652, %v2176
        %v5654 = vmul.f32 %v5652, %v2177
        %v5655 = vmul.f32 %v5652, %v2178
        %v5656 = vmul.f32 %v5652, %v2179
        %v5657 = vadd.f32 %v5647, %v5653
        %v5658 = vadd.f32 %v5648, %v5654
        %v5659 = vadd.f32 %v5649, %v5655
        %v5660 = vadd.f32 %v5650, %v5656
        %s5661 = sld [smem:[#allocation2 + $0x595]]
        %v5662 = vstv %s5661
        %v5663 = vmul.f32 %v5662, %v2224
        %v5664 = vmul.f32 %v5662, %v2225
        %v5665 = vmul.f32 %v5662, %v2226
        %v5666 = vmul.f32 %v5662, %v2227
        %v5667 = vadd.f32 %v5657, %v5663
        %v5668 = vadd.f32 %v5658, %v5664
        %v5669 = vadd.f32 %v5659, %v5665
        %v5670 = vadd.f32 %v5660, %v5666
        %s5671 = sld [smem:[#allocation2 + $0x596]]
        %v5672 = vstv %s5671
        %v5673 = vmul.f32 %v5672, %v2236
        %v5674 = vmul.f32 %v5672, %v2237
        %v5675 = vmul.f32 %v5672, %v2238
        %v5676 = vmul.f32 %v5672, %v2239
        %v5677 = vadd.f32 %v5667, %v5673
        %v5678 = vadd.f32 %v5668, %v5674
        %v5679 = vadd.f32 %v5669, %v5675
        %v5680 = vadd.f32 %v5670, %v5676
        %s5681 = sld [smem:[#allocation2 + $0x597]]
        %v5682 = vstv %s5681
        %v5683 = vmul.f32 %v5682, %v2284
        %v5684 = vmul.f32 %v5682, %v2285
        %v5685 = vmul.f32 %v5682, %v2286
        %v5686 = vmul.f32 %v5682, %v2287
        %v5687 = vadd.f32 %v5677, %v5683
        %v5688 = vadd.f32 %v5678, %v5684
        %v5689 = vadd.f32 %v5679, %v5685
        %v5690 = vadd.f32 %v5680, %v5686
        %s5691 = sld [smem:[#allocation2 + $0x598]]
        %v5692 = vstv %s5691
        %v5693 = vmul.f32 %v5692, %v2332
        %v5694 = vmul.f32 %v5692, %v2333
        %v5695 = vmul.f32 %v5692, %v2334
        %v5696 = vmul.f32 %v5692, %v2335
        %v5697 = vadd.f32 %v5687, %v5693
        %v5698 = vadd.f32 %v5688, %v5694
        %v5699 = vadd.f32 %v5689, %v5695
        %v5700 = vadd.f32 %v5690, %v5696
        %s5701 = sld [smem:[#allocation2 + $0x599]]
        %v5702 = vstv %s5701
        %v5703 = vmul.f32 %v5702, %v2380
        %v5704 = vmul.f32 %v5702, %v2381
        %v5705 = vmul.f32 %v5702, %v2382
        %v5706 = vmul.f32 %v5702, %v2383
        %v5707 = vadd.f32 %v5697, %v5703
        %v5708 = vadd.f32 %v5698, %v5704
        %v5709 = vadd.f32 %v5699, %v5705
        %v5710 = vadd.f32 %v5700, %v5706
        %s5711 = sld [smem:[#allocation2 + $0x59a]]
        %v5712 = vstv %s5711
        %v5713 = vmul.f32 %v5712, %v2428
        %v5714 = vmul.f32 %v5712, %v2429
        %v5715 = vmul.f32 %v5712, %v2430
        %v5716 = vmul.f32 %v5712, %v2431
        %v5717 = vadd.f32 %v5707, %v5713
        %v5718 = vadd.f32 %v5708, %v5714
        %v5719 = vadd.f32 %v5709, %v5715
        %v5720 = vadd.f32 %v5710, %v5716
        %v5721 = vmul.f32 %v5717, %v1162
        %v5722 = vmul.f32 %v5718, %v1163
        %v5723 = vmul.f32 %v5719, %v1164
        %v5724 = vmul.f32 %v5720, %v1165
        %s5725 = scalar_lea.vmem %s321, 320 [#allocation11]
        %5726 = vst [vmem:[%s5725] sm:$0xff] %v5721
        %5727 = vst [vmem:[%s5725 + $0x8] sm:$0xff] %v5722
        %5728 = vst [vmem:[%s5725 + $0x10] sm:$0xff] %v5723
        %5729 = vst [vmem:[%s5725 + $0x18] sm:$0xff] %v5724
        %s5730 = sld [smem:[#allocation2 + $0x600]]
        %v5731 = vstv %s5730
        %v5732 = vmul.f32 %v5731, %v1281
        %v5733 = vmul.f32 %v5731, %v1282
        %v5734 = vmul.f32 %v5731, %v1283
        %v5735 = vmul.f32 %v5731, %v1284
        %s5736 = sld [smem:[#allocation2 + $0x601]]
        %v5737 = vstv %s5736
        %v5738 = vmul.f32 %v5737, %v1330
        %v5739 = vmul.f32 %v5737, %v1331
        %v5740 = vmul.f32 %v5737, %v1332
        %v5741 = vmul.f32 %v5737, %v1333
        %v5742 = vadd.f32 %v5732, %v5738
        %v5743 = vadd.f32 %v5733, %v5739
        %v5744 = vadd.f32 %v5734, %v5740
        %v5745 = vadd.f32 %v5735, %v5741
        %s5746 = sld [smem:[#allocation2 + $0x602]]
        %v5747 = vstv %s5746
        %v5748 = vmul.f32 %v5747, %v1379
        %v5749 = vmul.f32 %v5747, %v1380
        %v5750 = vmul.f32 %v5747, %v1381
        %v5751 = vmul.f32 %v5747, %v1382
        %v5752 = vadd.f32 %v5742, %v5748
        %v5753 = vadd.f32 %v5743, %v5749
        %v5754 = vadd.f32 %v5744, %v5750
        %v5755 = vadd.f32 %v5745, %v5751
        %s5756 = sld [smem:[#allocation2 + $0x603]]
        %v5757 = vstv %s5756
        %v5758 = vmul.f32 %v5757, %v1428
        %v5759 = vmul.f32 %v5757, %v1429
        %v5760 = vmul.f32 %v5757, %v1430
        %v5761 = vmul.f32 %v5757, %v1431
        %v5762 = vadd.f32 %v5752, %v5758
        %v5763 = vadd.f32 %v5753, %v5759
        %v5764 = vadd.f32 %v5754, %v5760
        %v5765 = vadd.f32 %v5755, %v5761
        %s5766 = sld [smem:[#allocation2 + $0x604]]
        %v5767 = vstv %s5766
        %v5768 = vmul.f32 %v5767, %v1440
        %v5769 = vmul.f32 %v5767, %v1441
        %v5770 = vmul.f32 %v5767, %v1442
        %v5771 = vmul.f32 %v5767, %v1443
        %v5772 = vadd.f32 %v5762, %v5768
        %v5773 = vadd.f32 %v5763, %v5769
        %v5774 = vadd.f32 %v5764, %v5770
        %v5775 = vadd.f32 %v5765, %v5771
        %s5776 = sld [smem:[#allocation2 + $0x605]]
        %v5777 = vstv %s5776
        %v5778 = vmul.f32 %v5777, %v1489
        %v5779 = vmul.f32 %v5777, %v1490
        %v5780 = vmul.f32 %v5777, %v1491
        %v5781 = vmul.f32 %v5777, %v1492
        %v5782 = vadd.f32 %v5772, %v5778
        %v5783 = vadd.f32 %v5773, %v5779
        %v5784 = vadd.f32 %v5774, %v5780
        %v5785 = vadd.f32 %v5775, %v5781
        %s5786 = sld [smem:[#allocation2 + $0x606]]
        %v5787 = vstv %s5786
        %v5788 = vmul.f32 %v5787, %v1538
        %v5789 = vmul.f32 %v5787, %v1539
        %v5790 = vmul.f32 %v5787, %v1540
        %v5791 = vmul.f32 %v5787, %v1541
        %v5792 = vadd.f32 %v5782, %v5788
        %v5793 = vadd.f32 %v5783, %v5789
        %v5794 = vadd.f32 %v5784, %v5790
        %v5795 = vadd.f32 %v5785, %v5791
        %s5796 = sld [smem:[#allocation2 + $0x607]]
        %v5797 = vstv %s5796
        %v5798 = vmul.f32 %v5797, %v1587
        %v5799 = vmul.f32 %v5797, %v1588
        %v5800 = vmul.f32 %v5797, %v1589
        %v5801 = vmul.f32 %v5797, %v1590
        %v5802 = vadd.f32 %v5792, %v5798
        %v5803 = vadd.f32 %v5793, %v5799
        %v5804 = vadd.f32 %v5794, %v5800
        %v5805 = vadd.f32 %v5795, %v5801
        %s5806 = sld [smem:[#allocation2 + $0x608]]
        %v5807 = vstv %s5806
        %v5808 = vmul.f32 %v5807, %v1636
        %v5809 = vmul.f32 %v5807, %v1637
        %v5810 = vmul.f32 %v5807, %v1638
        %v5811 = vmul.f32 %v5807, %v1639
        %v5812 = vadd.f32 %v5802, %v5808
        %v5813 = vadd.f32 %v5803, %v5809
        %v5814 = vadd.f32 %v5804, %v5810
        %v5815 = vadd.f32 %v5805, %v5811
        %s5816 = sld [smem:[#allocation2 + $0x609]]
        %v5817 = vstv %s5816
        %v5818 = vmul.f32 %v5817, %v1684
        %v5819 = vmul.f32 %v5817, %v1685
        %v5820 = vmul.f32 %v5817, %v1686
        %v5821 = vmul.f32 %v5817, %v1687
        %v5822 = vadd.f32 %v5812, %v5818
        %v5823 = vadd.f32 %v5813, %v5819
        %v5824 = vadd.f32 %v5814, %v5820
        %v5825 = vadd.f32 %v5815, %v5821
        %s5826 = sld [smem:[#allocation2 + $0x60a]]
        %v5827 = vstv %s5826
        %v5828 = vmul.f32 %v5827, %v1732
        %v5829 = vmul.f32 %v5827, %v1733
        %v5830 = vmul.f32 %v5827, %v1734
        %v5831 = vmul.f32 %v5827, %v1735
        %v5832 = vadd.f32 %v5822, %v5828
        %v5833 = vadd.f32 %v5823, %v5829
        %v5834 = vadd.f32 %v5824, %v5830
        %v5835 = vadd.f32 %v5825, %v5831
        %s5836 = sld [smem:[#allocation2 + $0x60b]]
        %v5837 = vstv %s5836
        %v5838 = vmul.f32 %v5837, %v1780
        %v5839 = vmul.f32 %v5837, %v1781
        %v5840 = vmul.f32 %v5837, %v1782
        %v5841 = vmul.f32 %v5837, %v1783
        %v5842 = vadd.f32 %v5832, %v5838
        %v5843 = vadd.f32 %v5833, %v5839
        %v5844 = vadd.f32 %v5834, %v5840
        %v5845 = vadd.f32 %v5835, %v5841
        %s5846 = sld [smem:[#allocation2 + $0x60c]]
        %v5847 = vstv %s5846
        %v5848 = vmul.f32 %v5847, %v1828
        %v5849 = vmul.f32 %v5847, %v1829
        %v5850 = vmul.f32 %v5847, %v1830
        %v5851 = vmul.f32 %v5847, %v1831
        %v5852 = vadd.f32 %v5842, %v5848
        %v5853 = vadd.f32 %v5843, %v5849
        %v5854 = vadd.f32 %v5844, %v5850
        %v5855 = vadd.f32 %v5845, %v5851
        %s5856 = sld [smem:[#allocation2 + $0x60d]]
        %v5857 = vstv %s5856
        %v5858 = vmul.f32 %v5857, %v1836
        %v5859 = vmul.f32 %v5857, %v1837
        %v5860 = vmul.f32 %v5857, %v1838
        %v5861 = vmul.f32 %v5857, %v1839
        %v5862 = vadd.f32 %v5852, %v5858
        %v5863 = vadd.f32 %v5853, %v5859
        %v5864 = vadd.f32 %v5854, %v5860
        %v5865 = vadd.f32 %v5855, %v5861
        %s5866 = sld [smem:[#allocation2 + $0x60e]]
        %v5867 = vstv %s5866
        %v5868 = vmul.f32 %v5867, %v1884
        %v5869 = vmul.f32 %v5867, %v1885
        %v5870 = vmul.f32 %v5867, %v1886
        %v5871 = vmul.f32 %v5867, %v1887
        %v5872 = vadd.f32 %v5862, %v5868
        %v5873 = vadd.f32 %v5863, %v5869
        %v5874 = vadd.f32 %v5864, %v5870
        %v5875 = vadd.f32 %v5865, %v5871
        %s5876 = sld [smem:[#allocation2 + $0x60f]]
        %v5877 = vstv %s5876
        %v5878 = vmul.f32 %v5877, %v1932
        %v5879 = vmul.f32 %v5877, %v1933
        %v5880 = vmul.f32 %v5877, %v1934
        %v5881 = vmul.f32 %v5877, %v1935
        %v5882 = vadd.f32 %v5872, %v5878
        %v5883 = vadd.f32 %v5873, %v5879
        %v5884 = vadd.f32 %v5874, %v5880
        %v5885 = vadd.f32 %v5875, %v5881
        %s5886 = sld [smem:[#allocation2 + $0x610]]
        %v5887 = vstv %s5886
        %v5888 = vmul.f32 %v5887, %v1980
        %v5889 = vmul.f32 %v5887, %v1981
        %v5890 = vmul.f32 %v5887, %v1982
        %v5891 = vmul.f32 %v5887, %v1983
        %v5892 = vadd.f32 %v5882, %v5888
        %v5893 = vadd.f32 %v5883, %v5889
        %v5894 = vadd.f32 %v5884, %v5890
        %v5895 = vadd.f32 %v5885, %v5891
        %s5896 = sld [smem:[#allocation2 + $0x611]]
        %v5897 = vstv %s5896
        %v5898 = vmul.f32 %v5897, %v2028
        %v5899 = vmul.f32 %v5897, %v2029
        %v5900 = vmul.f32 %v5897, %v2030
        %v5901 = vmul.f32 %v5897, %v2031
        %v5902 = vadd.f32 %v5892, %v5898
        %v5903 = vadd.f32 %v5893, %v5899
        %v5904 = vadd.f32 %v5894, %v5900
        %v5905 = vadd.f32 %v5895, %v5901
        %s5906 = sld [smem:[#allocation2 + $0x612]]
        %v5907 = vstv %s5906
        %v5908 = vmul.f32 %v5907, %v2080
        %v5909 = vmul.f32 %v5907, %v2081
        %v5910 = vmul.f32 %v5907, %v2082
        %v5911 = vmul.f32 %v5907, %v2083
        %v5912 = vadd.f32 %v5902, %v5908
        %v5913 = vadd.f32 %v5903, %v5909
        %v5914 = vadd.f32 %v5904, %v5910
        %v5915 = vadd.f32 %v5905, %v5911
        %s5916 = sld [smem:[#allocation2 + $0x613]]
        %v5917 = vstv %s5916
        %v5918 = vmul.f32 %v5917, %v2128
        %v5919 = vmul.f32 %v5917, %v2129
        %v5920 = vmul.f32 %v5917, %v2130
        %v5921 = vmul.f32 %v5917, %v2131
        %v5922 = vadd.f32 %v5912, %v5918
        %v5923 = vadd.f32 %v5913, %v5919
        %v5924 = vadd.f32 %v5914, %v5920
        %v5925 = vadd.f32 %v5915, %v5921
        %s5926 = sld [smem:[#allocation2 + $0x614]]
        %v5927 = vstv %s5926
        %v5928 = vmul.f32 %v5927, %v2176
        %v5929 = vmul.f32 %v5927, %v2177
        %v5930 = vmul.f32 %v5927, %v2178
        %v5931 = vmul.f32 %v5927, %v2179
        %v5932 = vadd.f32 %v5922, %v5928
        %v5933 = vadd.f32 %v5923, %v5929
        %v5934 = vadd.f32 %v5924, %v5930
        %v5935 = vadd.f32 %v5925, %v5931
        %s5936 = sld [smem:[#allocation2 + $0x615]]
        %v5937 = vstv %s5936
        %v5938 = vmul.f32 %v5937, %v2224
        %v5939 = vmul.f32 %v5937, %v2225
        %v5940 = vmul.f32 %v5937, %v2226
        %v5941 = vmul.f32 %v5937, %v2227
        %v5942 = vadd.f32 %v5932, %v5938
        %v5943 = vadd.f32 %v5933, %v5939
        %v5944 = vadd.f32 %v5934, %v5940
        %v5945 = vadd.f32 %v5935, %v5941
        %s5946 = sld [smem:[#allocation2 + $0x616]]
        %v5947 = vstv %s5946
        %v5948 = vmul.f32 %v5947, %v2236
        %v5949 = vmul.f32 %v5947, %v2237
        %v5950 = vmul.f32 %v5947, %v2238
        %v5951 = vmul.f32 %v5947, %v2239
        %v5952 = vadd.f32 %v5942, %v5948
        %v5953 = vadd.f32 %v5943, %v5949
        %v5954 = vadd.f32 %v5944, %v5950
        %v5955 = vadd.f32 %v5945, %v5951
        %s5956 = sld [smem:[#allocation2 + $0x617]]
        %v5957 = vstv %s5956
        %v5958 = vmul.f32 %v5957, %v2284
        %v5959 = vmul.f32 %v5957, %v2285
        %v5960 = vmul.f32 %v5957, %v2286
        %v5961 = vmul.f32 %v5957, %v2287
        %v5962 = vadd.f32 %v5952, %v5958
        %v5963 = vadd.f32 %v5953, %v5959
        %v5964 = vadd.f32 %v5954, %v5960
        %v5965 = vadd.f32 %v5955, %v5961
        %s5966 = sld [smem:[#allocation2 + $0x618]]
        %v5967 = vstv %s5966
        %v5968 = vmul.f32 %v5967, %v2332
        %v5969 = vmul.f32 %v5967, %v2333
        %v5970 = vmul.f32 %v5967, %v2334
        %v5971 = vmul.f32 %v5967, %v2335
        %v5972 = vadd.f32 %v5962, %v5968
        %v5973 = vadd.f32 %v5963, %v5969
        %v5974 = vadd.f32 %v5964, %v5970
        %v5975 = vadd.f32 %v5965, %v5971
        %s5976 = sld [smem:[#allocation2 + $0x619]]
        %v5977 = vstv %s5976
        %v5978 = vmul.f32 %v5977, %v2380
        %v5979 = vmul.f32 %v5977, %v2381
        %v5980 = vmul.f32 %v5977, %v2382
        %v5981 = vmul.f32 %v5977, %v2383
        %v5982 = vadd.f32 %v5972, %v5978
        %v5983 = vadd.f32 %v5973, %v5979
        %v5984 = vadd.f32 %v5974, %v5980
        %v5985 = vadd.f32 %v5975, %v5981
        %s5986 = sld [smem:[#allocation2 + $0x61a]]
        %v5987 = vstv %s5986
        %v5988 = vmul.f32 %v5987, %v2428
        %v5989 = vmul.f32 %v5987, %v2429
        %v5990 = vmul.f32 %v5987, %v2430
        %v5991 = vmul.f32 %v5987, %v2431
        %v5992 = vadd.f32 %v5982, %v5988
        %v5993 = vadd.f32 %v5983, %v5989
        %v5994 = vadd.f32 %v5984, %v5990
        %v5995 = vadd.f32 %v5985, %v5991
        %v5996 = vmul.f32 %v5992, %v1162
        %v5997 = vmul.f32 %v5993, %v1163
        %v5998 = vmul.f32 %v5994, %v1164
        %v5999 = vmul.f32 %v5995, %v1165
        %s6000 = scalar_lea.vmem %s321, 352 [#allocation11]
        %6001 = vst [vmem:[%s6000] sm:$0xff] %v5996
        %6002 = vst [vmem:[%s6000 + $0x8] sm:$0xff] %v5997
        %6003 = vst [vmem:[%s6000 + $0x10] sm:$0xff] %v5998
        %6004 = vst [vmem:[%s6000 + $0x18] sm:$0xff] %v5999
        %s6005 = sld [smem:[#allocation2 + $0x680]]
        %v6006 = vstv %s6005
        %v6007 = vmul.f32 %v6006, %v1281
        %v6008 = vmul.f32 %v6006, %v1282
        %v6009 = vmul.f32 %v6006, %v1283
        %v6010 = vmul.f32 %v6006, %v1284
        %s6011 = sld [smem:[#allocation2 + $0x681]]
        %v6012 = vstv %s6011
        %v6013 = vmul.f32 %v6012, %v1330
        %v6014 = vmul.f32 %v6012, %v1331
        %v6015 = vmul.f32 %v6012, %v1332
        %v6016 = vmul.f32 %v6012, %v1333
        %v6017 = vadd.f32 %v6007, %v6013
        %v6018 = vadd.f32 %v6008, %v6014
        %v6019 = vadd.f32 %v6009, %v6015
        %v6020 = vadd.f32 %v6010, %v6016
        %s6021 = sld [smem:[#allocation2 + $0x682]]
        %v6022 = vstv %s6021
        %v6023 = vmul.f32 %v6022, %v1379
        %v6024 = vmul.f32 %v6022, %v1380
        %v6025 = vmul.f32 %v6022, %v1381
        %v6026 = vmul.f32 %v6022, %v1382
        %v6027 = vadd.f32 %v6017, %v6023
        %v6028 = vadd.f32 %v6018, %v6024
        %v6029 = vadd.f32 %v6019, %v6025
        %v6030 = vadd.f32 %v6020, %v6026
        %s6031 = sld [smem:[#allocation2 + $0x683]]
        %v6032 = vstv %s6031
        %v6033 = vmul.f32 %v6032, %v1428
        %v6034 = vmul.f32 %v6032, %v1429
        %v6035 = vmul.f32 %v6032, %v1430
        %v6036 = vmul.f32 %v6032, %v1431
        %v6037 = vadd.f32 %v6027, %v6033
        %v6038 = vadd.f32 %v6028, %v6034
        %v6039 = vadd.f32 %v6029, %v6035
        %v6040 = vadd.f32 %v6030, %v6036
        %s6041 = sld [smem:[#allocation2 + $0x684]]
        %v6042 = vstv %s6041
        %v6043 = vmul.f32 %v6042, %v1440
        %v6044 = vmul.f32 %v6042, %v1441
        %v6045 = vmul.f32 %v6042, %v1442
        %v6046 = vmul.f32 %v6042, %v1443
        %v6047 = vadd.f32 %v6037, %v6043
        %v6048 = vadd.f32 %v6038, %v6044
        %v6049 = vadd.f32 %v6039, %v6045
        %v6050 = vadd.f32 %v6040, %v6046
        %s6051 = sld [smem:[#allocation2 + $0x685]]
        %v6052 = vstv %s6051
        %v6053 = vmul.f32 %v6052, %v1489
        %v6054 = vmul.f32 %v6052, %v1490
        %v6055 = vmul.f32 %v6052, %v1491
        %v6056 = vmul.f32 %v6052, %v1492
        %v6057 = vadd.f32 %v6047, %v6053
        %v6058 = vadd.f32 %v6048, %v6054
        %v6059 = vadd.f32 %v6049, %v6055
        %v6060 = vadd.f32 %v6050, %v6056
        %s6061 = sld [smem:[#allocation2 + $0x686]]
        %v6062 = vstv %s6061
        %v6063 = vmul.f32 %v6062, %v1538
        %v6064 = vmul.f32 %v6062, %v1539
        %v6065 = vmul.f32 %v6062, %v1540
        %v6066 = vmul.f32 %v6062, %v1541
        %v6067 = vadd.f32 %v6057, %v6063
        %v6068 = vadd.f32 %v6058, %v6064
        %v6069 = vadd.f32 %v6059, %v6065
        %v6070 = vadd.f32 %v6060, %v6066
        %s6071 = sld [smem:[#allocation2 + $0x687]]
        %v6072 = vstv %s6071
        %v6073 = vmul.f32 %v6072, %v1587
        %v6074 = vmul.f32 %v6072, %v1588
        %v6075 = vmul.f32 %v6072, %v1589
        %v6076 = vmul.f32 %v6072, %v1590
        %v6077 = vadd.f32 %v6067, %v6073
        %v6078 = vadd.f32 %v6068, %v6074
        %v6079 = vadd.f32 %v6069, %v6075
        %v6080 = vadd.f32 %v6070, %v6076
        %s6081 = sld [smem:[#allocation2 + $0x688]]
        %v6082 = vstv %s6081
        %v6083 = vmul.f32 %v6082, %v1636
        %v6084 = vmul.f32 %v6082, %v1637
        %v6085 = vmul.f32 %v6082, %v1638
        %v6086 = vmul.f32 %v6082, %v1639
        %v6087 = vadd.f32 %v6077, %v6083
        %v6088 = vadd.f32 %v6078, %v6084
        %v6089 = vadd.f32 %v6079, %v6085
        %v6090 = vadd.f32 %v6080, %v6086
        %s6091 = sld [smem:[#allocation2 + $0x689]]
        %v6092 = vstv %s6091
        %v6093 = vmul.f32 %v6092, %v1684
        %v6094 = vmul.f32 %v6092, %v1685
        %v6095 = vmul.f32 %v6092, %v1686
        %v6096 = vmul.f32 %v6092, %v1687
        %v6097 = vadd.f32 %v6087, %v6093
        %v6098 = vadd.f32 %v6088, %v6094
        %v6099 = vadd.f32 %v6089, %v6095
        %v6100 = vadd.f32 %v6090, %v6096
        %s6101 = sld [smem:[#allocation2 + $0x68a]]
        %v6102 = vstv %s6101
        %v6103 = vmul.f32 %v6102, %v1732
        %v6104 = vmul.f32 %v6102, %v1733
        %v6105 = vmul.f32 %v6102, %v1734
        %v6106 = vmul.f32 %v6102, %v1735
        %v6107 = vadd.f32 %v6097, %v6103
        %v6108 = vadd.f32 %v6098, %v6104
        %v6109 = vadd.f32 %v6099, %v6105
        %v6110 = vadd.f32 %v6100, %v6106
        %s6111 = sld [smem:[#allocation2 + $0x68b]]
        %v6112 = vstv %s6111
        %v6113 = vmul.f32 %v6112, %v1780
        %v6114 = vmul.f32 %v6112, %v1781
        %v6115 = vmul.f32 %v6112, %v1782
        %v6116 = vmul.f32 %v6112, %v1783
        %v6117 = vadd.f32 %v6107, %v6113
        %v6118 = vadd.f32 %v6108, %v6114
        %v6119 = vadd.f32 %v6109, %v6115
        %v6120 = vadd.f32 %v6110, %v6116
        %s6121 = sld [smem:[#allocation2 + $0x68c]]
        %v6122 = vstv %s6121
        %v6123 = vmul.f32 %v6122, %v1828
        %v6124 = vmul.f32 %v6122, %v1829
        %v6125 = vmul.f32 %v6122, %v1830
        %v6126 = vmul.f32 %v6122, %v1831
        %v6127 = vadd.f32 %v6117, %v6123
        %v6128 = vadd.f32 %v6118, %v6124
        %v6129 = vadd.f32 %v6119, %v6125
        %v6130 = vadd.f32 %v6120, %v6126
        %s6131 = sld [smem:[#allocation2 + $0x68d]]
        %v6132 = vstv %s6131
        %v6133 = vmul.f32 %v6132, %v1836
        %v6134 = vmul.f32 %v6132, %v1837
        %v6135 = vmul.f32 %v6132, %v1838
        %v6136 = vmul.f32 %v6132, %v1839
        %v6137 = vadd.f32 %v6127, %v6133
        %v6138 = vadd.f32 %v6128, %v6134
        %v6139 = vadd.f32 %v6129, %v6135
        %v6140 = vadd.f32 %v6130, %v6136
        %s6141 = sld [smem:[#allocation2 + $0x68e]]
        %v6142 = vstv %s6141
        %v6143 = vmul.f32 %v6142, %v1884
        %v6144 = vmul.f32 %v6142, %v1885
        %v6145 = vmul.f32 %v6142, %v1886
        %v6146 = vmul.f32 %v6142, %v1887
        %v6147 = vadd.f32 %v6137, %v6143
        %v6148 = vadd.f32 %v6138, %v6144
        %v6149 = vadd.f32 %v6139, %v6145
        %v6150 = vadd.f32 %v6140, %v6146
        %s6151 = sld [smem:[#allocation2 + $0x68f]]
        %v6152 = vstv %s6151
        %v6153 = vmul.f32 %v6152, %v1932
        %v6154 = vmul.f32 %v6152, %v1933
        %v6155 = vmul.f32 %v6152, %v1934
        %v6156 = vmul.f32 %v6152, %v1935
        %v6157 = vadd.f32 %v6147, %v6153
        %v6158 = vadd.f32 %v6148, %v6154
        %v6159 = vadd.f32 %v6149, %v6155
        %v6160 = vadd.f32 %v6150, %v6156
        %s6161 = sld [smem:[#allocation2 + $0x690]]
        %v6162 = vstv %s6161
        %v6163 = vmul.f32 %v6162, %v1980
        %v6164 = vmul.f32 %v6162, %v1981
        %v6165 = vmul.f32 %v6162, %v1982
        %v6166 = vmul.f32 %v6162, %v1983
        %v6167 = vadd.f32 %v6157, %v6163
        %v6168 = vadd.f32 %v6158, %v6164
        %v6169 = vadd.f32 %v6159, %v6165
        %v6170 = vadd.f32 %v6160, %v6166
        %s6171 = sld [smem:[#allocation2 + $0x691]]
        %v6172 = vstv %s6171
        %v6173 = vmul.f32 %v6172, %v2028
        %v6174 = vmul.f32 %v6172, %v2029
        %v6175 = vmul.f32 %v6172, %v2030
        %v6176 = vmul.f32 %v6172, %v2031
        %v6177 = vadd.f32 %v6167, %v6173
        %v6178 = vadd.f32 %v6168, %v6174
        %v6179 = vadd.f32 %v6169, %v6175
        %v6180 = vadd.f32 %v6170, %v6176
        %s6181 = sld [smem:[#allocation2 + $0x692]]
        %v6182 = vstv %s6181
        %v6183 = vmul.f32 %v6182, %v2080
        %v6184 = vmul.f32 %v6182, %v2081
        %v6185 = vmul.f32 %v6182, %v2082
        %v6186 = vmul.f32 %v6182, %v2083
        %v6187 = vadd.f32 %v6177, %v6183
        %v6188 = vadd.f32 %v6178, %v6184
        %v6189 = vadd.f32 %v6179, %v6185
        %v6190 = vadd.f32 %v6180, %v6186
        %s6191 = sld [smem:[#allocation2 + $0x693]]
        %v6192 = vstv %s6191
        %v6193 = vmul.f32 %v6192, %v2128
        %v6194 = vmul.f32 %v6192, %v2129
        %v6195 = vmul.f32 %v6192, %v2130
        %v6196 = vmul.f32 %v6192, %v2131
        %v6197 = vadd.f32 %v6187, %v6193
        %v6198 = vadd.f32 %v6188, %v6194
        %v6199 = vadd.f32 %v6189, %v6195
        %v6200 = vadd.f32 %v6190, %v6196
        %s6201 = sld [smem:[#allocation2 + $0x694]]
        %v6202 = vstv %s6201
        %v6203 = vmul.f32 %v6202, %v2176
        %v6204 = vmul.f32 %v6202, %v2177
        %v6205 = vmul.f32 %v6202, %v2178
        %v6206 = vmul.f32 %v6202, %v2179
        %v6207 = vadd.f32 %v6197, %v6203
        %v6208 = vadd.f32 %v6198, %v6204
        %v6209 = vadd.f32 %v6199, %v6205
        %v6210 = vadd.f32 %v6200, %v6206
        %s6211 = sld [smem:[#allocation2 + $0x695]]
        %v6212 = vstv %s6211
        %v6213 = vmul.f32 %v6212, %v2224
        %v6214 = vmul.f32 %v6212, %v2225
        %v6215 = vmul.f32 %v6212, %v2226
        %v6216 = vmul.f32 %v6212, %v2227
        %v6217 = vadd.f32 %v6207, %v6213
        %v6218 = vadd.f32 %v6208, %v6214
        %v6219 = vadd.f32 %v6209, %v6215
        %v6220 = vadd.f32 %v6210, %v6216
        %s6221 = sld [smem:[#allocation2 + $0x696]]
        %v6222 = vstv %s6221
        %v6223 = vmul.f32 %v6222, %v2236
        %v6224 = vmul.f32 %v6222, %v2237
        %v6225 = vmul.f32 %v6222, %v2238
        %v6226 = vmul.f32 %v6222, %v2239
        %v6227 = vadd.f32 %v6217, %v6223
        %v6228 = vadd.f32 %v6218, %v6224
        %v6229 = vadd.f32 %v6219, %v6225
        %v6230 = vadd.f32 %v6220, %v6226
        %s6231 = sld [smem:[#allocation2 + $0x697]]
        %v6232 = vstv %s6231
        %v6233 = vmul.f32 %v6232, %v2284
        %v6234 = vmul.f32 %v6232, %v2285
        %v6235 = vmul.f32 %v6232, %v2286
        %v6236 = vmul.f32 %v6232, %v2287
        %v6237 = vadd.f32 %v6227, %v6233
        %v6238 = vadd.f32 %v6228, %v6234
        %v6239 = vadd.f32 %v6229, %v6235
        %v6240 = vadd.f32 %v6230, %v6236
        %s6241 = sld [smem:[#allocation2 + $0x698]]
        %v6242 = vstv %s6241
        %v6243 = vmul.f32 %v6242, %v2332
        %v6244 = vmul.f32 %v6242, %v2333
        %v6245 = vmul.f32 %v6242, %v2334
        %v6246 = vmul.f32 %v6242, %v2335
        %v6247 = vadd.f32 %v6237, %v6243
        %v6248 = vadd.f32 %v6238, %v6244
        %v6249 = vadd.f32 %v6239, %v6245
        %v6250 = vadd.f32 %v6240, %v6246
        %s6251 = sld [smem:[#allocation2 + $0x699]]
        %v6252 = vstv %s6251
        %v6253 = vmul.f32 %v6252, %v2380
        %v6254 = vmul.f32 %v6252, %v2381
        %v6255 = vmul.f32 %v6252, %v2382
        %v6256 = vmul.f32 %v6252, %v2383
        %v6257 = vadd.f32 %v6247, %v6253
        %v6258 = vadd.f32 %v6248, %v6254
        %v6259 = vadd.f32 %v6249, %v6255
        %v6260 = vadd.f32 %v6250, %v6256
        %s6261 = sld [smem:[#allocation2 + $0x69a]]
        %v6262 = vstv %s6261
        %v6263 = vmul.f32 %v6262, %v2428
        %v6264 = vmul.f32 %v6262, %v2429
        %v6265 = vmul.f32 %v6262, %v2430
        %v6266 = vmul.f32 %v6262, %v2431
        %v6267 = vadd.f32 %v6257, %v6263
        %v6268 = vadd.f32 %v6258, %v6264
        %v6269 = vadd.f32 %v6259, %v6265
        %v6270 = vadd.f32 %v6260, %v6266
        %v6271 = vmul.f32 %v6267, %v1162
        %v6272 = vmul.f32 %v6268, %v1163
        %v6273 = vmul.f32 %v6269, %v1164
        %v6274 = vmul.f32 %v6270, %v1165
        %s6275 = scalar_lea.vmem %s321, 384 [#allocation11]
        %6276 = vst [vmem:[%s6275] sm:$0xff] %v6271
        %6277 = vst [vmem:[%s6275 + $0x8] sm:$0xff] %v6272
        %6278 = vst [vmem:[%s6275 + $0x10] sm:$0xff] %v6273
        %6279 = vst [vmem:[%s6275 + $0x18] sm:$0xff] %v6274
        %s6280 = sld [smem:[#allocation2 + $0x700]]
        %v6281 = vstv %s6280
        %v6282 = vmul.f32 %v6281, %v1281
        %v6283 = vmul.f32 %v6281, %v1282
        %v6284 = vmul.f32 %v6281, %v1283
        %v6285 = vmul.f32 %v6281, %v1284
        %s6286 = sld [smem:[#allocation2 + $0x701]]
        %v6287 = vstv %s6286
        %v6288 = vmul.f32 %v6287, %v1330
        %v6289 = vmul.f32 %v6287, %v1331
        %v6290 = vmul.f32 %v6287, %v1332
        %v6291 = vmul.f32 %v6287, %v1333
        %v6292 = vadd.f32 %v6282, %v6288
        %v6293 = vadd.f32 %v6283, %v6289
        %v6294 = vadd.f32 %v6284, %v6290
        %v6295 = vadd.f32 %v6285, %v6291
        %s6296 = sld [smem:[#allocation2 + $0x702]]
        %v6297 = vstv %s6296
        %v6298 = vmul.f32 %v6297, %v1379
        %v6299 = vmul.f32 %v6297, %v1380
        %v6300 = vmul.f32 %v6297, %v1381
        %v6301 = vmul.f32 %v6297, %v1382
        %v6302 = vadd.f32 %v6292, %v6298
        %v6303 = vadd.f32 %v6293, %v6299
        %v6304 = vadd.f32 %v6294, %v6300
        %v6305 = vadd.f32 %v6295, %v6301
        %s6306 = sld [smem:[#allocation2 + $0x703]]
        %v6307 = vstv %s6306
        %v6308 = vmul.f32 %v6307, %v1428
        %v6309 = vmul.f32 %v6307, %v1429
        %v6310 = vmul.f32 %v6307, %v1430
        %v6311 = vmul.f32 %v6307, %v1431
        %v6312 = vadd.f32 %v6302, %v6308
        %v6313 = vadd.f32 %v6303, %v6309
        %v6314 = vadd.f32 %v6304, %v6310
        %v6315 = vadd.f32 %v6305, %v6311
        %s6316 = sld [smem:[#allocation2 + $0x704]]
        %v6317 = vstv %s6316
        %v6318 = vmul.f32 %v6317, %v1440
        %v6319 = vmul.f32 %v6317, %v1441
        %v6320 = vmul.f32 %v6317, %v1442
        %v6321 = vmul.f32 %v6317, %v1443
        %v6322 = vadd.f32 %v6312, %v6318
        %v6323 = vadd.f32 %v6313, %v6319
        %v6324 = vadd.f32 %v6314, %v6320
        %v6325 = vadd.f32 %v6315, %v6321
        %s6326 = sld [smem:[#allocation2 + $0x705]]
        %v6327 = vstv %s6326
        %v6328 = vmul.f32 %v6327, %v1489
        %v6329 = vmul.f32 %v6327, %v1490
        %v6330 = vmul.f32 %v6327, %v1491
        %v6331 = vmul.f32 %v6327, %v1492
        %v6332 = vadd.f32 %v6322, %v6328
        %v6333 = vadd.f32 %v6323, %v6329
        %v6334 = vadd.f32 %v6324, %v6330
        %v6335 = vadd.f32 %v6325, %v6331
        %s6336 = sld [smem:[#allocation2 + $0x706]]
        %v6337 = vstv %s6336
        %v6338 = vmul.f32 %v6337, %v1538
        %v6339 = vmul.f32 %v6337, %v1539
        %v6340 = vmul.f32 %v6337, %v1540
        %v6341 = vmul.f32 %v6337, %v1541
        %v6342 = vadd.f32 %v6332, %v6338
        %v6343 = vadd.f32 %v6333, %v6339
        %v6344 = vadd.f32 %v6334, %v6340
        %v6345 = vadd.f32 %v6335, %v6341
        %s6346 = sld [smem:[#allocation2 + $0x707]]
        %v6347 = vstv %s6346
        %v6348 = vmul.f32 %v6347, %v1587
        %v6349 = vmul.f32 %v6347, %v1588
        %v6350 = vmul.f32 %v6347, %v1589
        %v6351 = vmul.f32 %v6347, %v1590
        %v6352 = vadd.f32 %v6342, %v6348
        %v6353 = vadd.f32 %v6343, %v6349
        %v6354 = vadd.f32 %v6344, %v6350
        %v6355 = vadd.f32 %v6345, %v6351
        %s6356 = sld [smem:[#allocation2 + $0x708]]
        %v6357 = vstv %s6356
        %v6358 = vmul.f32 %v6357, %v1636
        %v6359 = vmul.f32 %v6357, %v1637
        %v6360 = vmul.f32 %v6357, %v1638
        %v6361 = vmul.f32 %v6357, %v1639
        %v6362 = vadd.f32 %v6352, %v6358
        %v6363 = vadd.f32 %v6353, %v6359
        %v6364 = vadd.f32 %v6354, %v6360
        %v6365 = vadd.f32 %v6355, %v6361
        %s6366 = sld [smem:[#allocation2 + $0x709]]
        %v6367 = vstv %s6366
        %v6368 = vmul.f32 %v6367, %v1684
        %v6369 = vmul.f32 %v6367, %v1685
        %v6370 = vmul.f32 %v6367, %v1686
        %v6371 = vmul.f32 %v6367, %v1687
        %v6372 = vadd.f32 %v6362, %v6368
        %v6373 = vadd.f32 %v6363, %v6369
        %v6374 = vadd.f32 %v6364, %v6370
        %v6375 = vadd.f32 %v6365, %v6371
        %s6376 = sld [smem:[#allocation2 + $0x70a]]
        %v6377 = vstv %s6376
        %v6378 = vmul.f32 %v6377, %v1732
        %v6379 = vmul.f32 %v6377, %v1733
        %v6380 = vmul.f32 %v6377, %v1734
        %v6381 = vmul.f32 %v6377, %v1735
        %v6382 = vadd.f32 %v6372, %v6378
        %v6383 = vadd.f32 %v6373, %v6379
        %v6384 = vadd.f32 %v6374, %v6380
        %v6385 = vadd.f32 %v6375, %v6381
        %s6386 = sld [smem:[#allocation2 + $0x70b]]
        %v6387 = vstv %s6386
        %v6388 = vmul.f32 %v6387, %v1780
        %v6389 = vmul.f32 %v6387, %v1781
        %v6390 = vmul.f32 %v6387, %v1782
        %v6391 = vmul.f32 %v6387, %v1783
        %v6392 = vadd.f32 %v6382, %v6388
        %v6393 = vadd.f32 %v6383, %v6389
        %v6394 = vadd.f32 %v6384, %v6390
        %v6395 = vadd.f32 %v6385, %v6391
        %s6396 = sld [smem:[#allocation2 + $0x70c]]
        %v6397 = vstv %s6396
        %v6398 = vmul.f32 %v6397, %v1828
        %v6399 = vmul.f32 %v6397, %v1829
        %v6400 = vmul.f32 %v6397, %v1830
        %v6401 = vmul.f32 %v6397, %v1831
        %v6402 = vadd.f32 %v6392, %v6398
        %v6403 = vadd.f32 %v6393, %v6399
        %v6404 = vadd.f32 %v6394, %v6400
        %v6405 = vadd.f32 %v6395, %v6401
        %s6406 = sld [smem:[#allocation2 + $0x70d]]
        %v6407 = vstv %s6406
        %v6408 = vmul.f32 %v6407, %v1836
        %v6409 = vmul.f32 %v6407, %v1837
        %v6410 = vmul.f32 %v6407, %v1838
        %v6411 = vmul.f32 %v6407, %v1839
        %v6412 = vadd.f32 %v6402, %v6408
        %v6413 = vadd.f32 %v6403, %v6409
        %v6414 = vadd.f32 %v6404, %v6410
        %v6415 = vadd.f32 %v6405, %v6411
        %s6416 = sld [smem:[#allocation2 + $0x70e]]
        %v6417 = vstv %s6416
        %v6418 = vmul.f32 %v6417, %v1884
        %v6419 = vmul.f32 %v6417, %v1885
        %v6420 = vmul.f32 %v6417, %v1886
        %v6421 = vmul.f32 %v6417, %v1887
        %v6422 = vadd.f32 %v6412, %v6418
        %v6423 = vadd.f32 %v6413, %v6419
        %v6424 = vadd.f32 %v6414, %v6420
        %v6425 = vadd.f32 %v6415, %v6421
        %s6426 = sld [smem:[#allocation2 + $0x70f]]
        %v6427 = vstv %s6426
        %v6428 = vmul.f32 %v6427, %v1932
        %v6429 = vmul.f32 %v6427, %v1933
        %v6430 = vmul.f32 %v6427, %v1934
        %v6431 = vmul.f32 %v6427, %v1935
        %v6432 = vadd.f32 %v6422, %v6428
        %v6433 = vadd.f32 %v6423, %v6429
        %v6434 = vadd.f32 %v6424, %v6430
        %v6435 = vadd.f32 %v6425, %v6431
        %s6436 = sld [smem:[#allocation2 + $0x710]]
        %v6437 = vstv %s6436
        %v6438 = vmul.f32 %v6437, %v1980
        %v6439 = vmul.f32 %v6437, %v1981
        %v6440 = vmul.f32 %v6437, %v1982
        %v6441 = vmul.f32 %v6437, %v1983
        %v6442 = vadd.f32 %v6432, %v6438
        %v6443 = vadd.f32 %v6433, %v6439
        %v6444 = vadd.f32 %v6434, %v6440
        %v6445 = vadd.f32 %v6435, %v6441
        %s6446 = sld [smem:[#allocation2 + $0x711]]
        %v6447 = vstv %s6446
        %v6448 = vmul.f32 %v6447, %v2028
        %v6449 = vmul.f32 %v6447, %v2029
        %v6450 = vmul.f32 %v6447, %v2030
        %v6451 = vmul.f32 %v6447, %v2031
        %v6452 = vadd.f32 %v6442, %v6448
        %v6453 = vadd.f32 %v6443, %v6449
        %v6454 = vadd.f32 %v6444, %v6450
        %v6455 = vadd.f32 %v6445, %v6451
        %s6456 = sld [smem:[#allocation2 + $0x712]]
        %v6457 = vstv %s6456
        %v6458 = vmul.f32 %v6457, %v2080
        %v6459 = vmul.f32 %v6457, %v2081
        %v6460 = vmul.f32 %v6457, %v2082
        %v6461 = vmul.f32 %v6457, %v2083
        %v6462 = vadd.f32 %v6452, %v6458
        %v6463 = vadd.f32 %v6453, %v6459
        %v6464 = vadd.f32 %v6454, %v6460
        %v6465 = vadd.f32 %v6455, %v6461
        %s6466 = sld [smem:[#allocation2 + $0x713]]
        %v6467 = vstv %s6466
        %v6468 = vmul.f32 %v6467, %v2128
        %v6469 = vmul.f32 %v6467, %v2129
        %v6470 = vmul.f32 %v6467, %v2130
        %v6471 = vmul.f32 %v6467, %v2131
        %v6472 = vadd.f32 %v6462, %v6468
        %v6473 = vadd.f32 %v6463, %v6469
        %v6474 = vadd.f32 %v6464, %v6470
        %v6475 = vadd.f32 %v6465, %v6471
        %s6476 = sld [smem:[#allocation2 + $0x714]]
        %v6477 = vstv %s6476
        %v6478 = vmul.f32 %v6477, %v2176
        %v6479 = vmul.f32 %v6477, %v2177
        %v6480 = vmul.f32 %v6477, %v2178
        %v6481 = vmul.f32 %v6477, %v2179
        %v6482 = vadd.f32 %v6472, %v6478
        %v6483 = vadd.f32 %v6473, %v6479
        %v6484 = vadd.f32 %v6474, %v6480
        %v6485 = vadd.f32 %v6475, %v6481
        %s6486 = sld [smem:[#allocation2 + $0x715]]
        %v6487 = vstv %s6486
        %v6488 = vmul.f32 %v6487, %v2224
        %v6489 = vmul.f32 %v6487, %v2225
        %v6490 = vmul.f32 %v6487, %v2226
        %v6491 = vmul.f32 %v6487, %v2227
        %v6492 = vadd.f32 %v6482, %v6488
        %v6493 = vadd.f32 %v6483, %v6489
        %v6494 = vadd.f32 %v6484, %v6490
        %v6495 = vadd.f32 %v6485, %v6491
        %s6496 = sld [smem:[#allocation2 + $0x716]]
        %v6497 = vstv %s6496
        %v6498 = vmul.f32 %v6497, %v2236
        %v6499 = vmul.f32 %v6497, %v2237
        %v6500 = vmul.f32 %v6497, %v2238
        %v6501 = vmul.f32 %v6497, %v2239
        %v6502 = vadd.f32 %v6492, %v6498
        %v6503 = vadd.f32 %v6493, %v6499
        %v6504 = vadd.f32 %v6494, %v6500
        %v6505 = vadd.f32 %v6495, %v6501
        %s6506 = sld [smem:[#allocation2 + $0x717]]
        %v6507 = vstv %s6506
        %v6508 = vmul.f32 %v6507, %v2284
        %v6509 = vmul.f32 %v6507, %v2285
        %v6510 = vmul.f32 %v6507, %v2286
        %v6511 = vmul.f32 %v6507, %v2287
        %v6512 = vadd.f32 %v6502, %v6508
        %v6513 = vadd.f32 %v6503, %v6509
        %v6514 = vadd.f32 %v6504, %v6510
        %v6515 = vadd.f32 %v6505, %v6511
        %s6516 = sld [smem:[#allocation2 + $0x718]]
        %v6517 = vstv %s6516
        %v6518 = vmul.f32 %v6517, %v2332
        %v6519 = vmul.f32 %v6517, %v2333
        %v6520 = vmul.f32 %v6517, %v2334
        %v6521 = vmul.f32 %v6517, %v2335
        %v6522 = vadd.f32 %v6512, %v6518
        %v6523 = vadd.f32 %v6513, %v6519
        %v6524 = vadd.f32 %v6514, %v6520
        %v6525 = vadd.f32 %v6515, %v6521
        %s6526 = sld [smem:[#allocation2 + $0x719]]
        %v6527 = vstv %s6526
        %v6528 = vmul.f32 %v6527, %v2380
        %v6529 = vmul.f32 %v6527, %v2381
        %v6530 = vmul.f32 %v6527, %v2382
        %v6531 = vmul.f32 %v6527, %v2383
        %v6532 = vadd.f32 %v6522, %v6528
        %v6533 = vadd.f32 %v6523, %v6529
        %v6534 = vadd.f32 %v6524, %v6530
        %v6535 = vadd.f32 %v6525, %v6531
        %s6536 = sld [smem:[#allocation2 + $0x71a]]
        %v6537 = vstv %s6536
        %v6538 = vmul.f32 %v6537, %v2428
        %v6539 = vmul.f32 %v6537, %v2429
        %v6540 = vmul.f32 %v6537, %v2430
        %v6541 = vmul.f32 %v6537, %v2431
        %v6542 = vadd.f32 %v6532, %v6538
        %v6543 = vadd.f32 %v6533, %v6539
        %v6544 = vadd.f32 %v6534, %v6540
        %v6545 = vadd.f32 %v6535, %v6541
        %v6546 = vmul.f32 %v6542, %v1162
        %v6547 = vmul.f32 %v6543, %v1163
        %v6548 = vmul.f32 %v6544, %v1164
        %v6549 = vmul.f32 %v6545, %v1165
        %s6550 = scalar_lea.vmem %s321, 416 [#allocation11]
        %6551 = vst [vmem:[%s6550] sm:$0xff] %v6546
        %6552 = vst [vmem:[%s6550 + $0x8] sm:$0xff] %v6547
        %6553 = vst [vmem:[%s6550 + $0x10] sm:$0xff] %v6548
        %6554 = vst [vmem:[%s6550 + $0x18] sm:$0xff] %v6549
        %s6555 = sld [smem:[#allocation2 + $0x780]]
        %v6556 = vstv %s6555
        %v6557 = vmul.f32 %v6556, %v1281
        %v6558 = vmul.f32 %v6556, %v1282
        %v6559 = vmul.f32 %v6556, %v1283
        %v6560 = vmul.f32 %v6556, %v1284
        %s6561 = sld [smem:[#allocation2 + $0x781]]
        %v6562 = vstv %s6561
        %v6563 = vmul.f32 %v6562, %v1330
        %v6564 = vmul.f32 %v6562, %v1331
        %v6565 = vmul.f32 %v6562, %v1332
        %v6566 = vmul.f32 %v6562, %v1333
        %v6567 = vadd.f32 %v6557, %v6563
        %v6568 = vadd.f32 %v6558, %v6564
        %v6569 = vadd.f32 %v6559, %v6565
        %v6570 = vadd.f32 %v6560, %v6566
        %s6571 = sld [smem:[#allocation2 + $0x782]]
        %v6572 = vstv %s6571
        %v6573 = vmul.f32 %v6572, %v1379
        %v6574 = vmul.f32 %v6572, %v1380
        %v6575 = vmul.f32 %v6572, %v1381
        %v6576 = vmul.f32 %v6572, %v1382
        %v6577 = vadd.f32 %v6567, %v6573
        %v6578 = vadd.f32 %v6568, %v6574
        %v6579 = vadd.f32 %v6569, %v6575
        %v6580 = vadd.f32 %v6570, %v6576
        %s6581 = sld [smem:[#allocation2 + $0x783]]
        %v6582 = vstv %s6581
        %v6583 = vmul.f32 %v6582, %v1428
        %v6584 = vmul.f32 %v6582, %v1429
        %v6585 = vmul.f32 %v6582, %v1430
        %v6586 = vmul.f32 %v6582, %v1431
        %v6587 = vadd.f32 %v6577, %v6583
        %v6588 = vadd.f32 %v6578, %v6584
        %v6589 = vadd.f32 %v6579, %v6585
        %v6590 = vadd.f32 %v6580, %v6586
        %s6591 = sld [smem:[#allocation2 + $0x784]]
        %v6592 = vstv %s6591
        %v6593 = vmul.f32 %v6592, %v1440
        %v6594 = vmul.f32 %v6592, %v1441
        %v6595 = vmul.f32 %v6592, %v1442
        %v6596 = vmul.f32 %v6592, %v1443
        %v6597 = vadd.f32 %v6587, %v6593
        %v6598 = vadd.f32 %v6588, %v6594
        %v6599 = vadd.f32 %v6589, %v6595
        %v6600 = vadd.f32 %v6590, %v6596
        %s6601 = sld [smem:[#allocation2 + $0x785]]
        %v6602 = vstv %s6601
        %v6603 = vmul.f32 %v6602, %v1489
        %v6604 = vmul.f32 %v6602, %v1490
        %v6605 = vmul.f32 %v6602, %v1491
        %v6606 = vmul.f32 %v6602, %v1492
        %v6607 = vadd.f32 %v6597, %v6603
        %v6608 = vadd.f32 %v6598, %v6604
        %v6609 = vadd.f32 %v6599, %v6605
        %v6610 = vadd.f32 %v6600, %v6606
        %s6611 = sld [smem:[#allocation2 + $0x786]]
        %v6612 = vstv %s6611
        %v6613 = vmul.f32 %v6612, %v1538
        %v6614 = vmul.f32 %v6612, %v1539
        %v6615 = vmul.f32 %v6612, %v1540
        %v6616 = vmul.f32 %v6612, %v1541
        %v6617 = vadd.f32 %v6607, %v6613
        %v6618 = vadd.f32 %v6608, %v6614
        %v6619 = vadd.f32 %v6609, %v6615
        %v6620 = vadd.f32 %v6610, %v6616
        %s6621 = sld [smem:[#allocation2 + $0x787]]
        %v6622 = vstv %s6621
        %v6623 = vmul.f32 %v6622, %v1587
        %v6624 = vmul.f32 %v6622, %v1588
        %v6625 = vmul.f32 %v6622, %v1589
        %v6626 = vmul.f32 %v6622, %v1590
        %v6627 = vadd.f32 %v6617, %v6623
        %v6628 = vadd.f32 %v6618, %v6624
        %v6629 = vadd.f32 %v6619, %v6625
        %v6630 = vadd.f32 %v6620, %v6626
        %s6631 = sld [smem:[#allocation2 + $0x788]]
        %v6632 = vstv %s6631
        %v6633 = vmul.f32 %v6632, %v1636
        %v6634 = vmul.f32 %v6632, %v1637
        %v6635 = vmul.f32 %v6632, %v1638
        %v6636 = vmul.f32 %v6632, %v1639
        %v6637 = vadd.f32 %v6627, %v6633
        %v6638 = vadd.f32 %v6628, %v6634
        %v6639 = vadd.f32 %v6629, %v6635
        %v6640 = vadd.f32 %v6630, %v6636
        %s6641 = sld [smem:[#allocation2 + $0x789]]
        %v6642 = vstv %s6641
        %v6643 = vmul.f32 %v6642, %v1684
        %v6644 = vmul.f32 %v6642, %v1685
        %v6645 = vmul.f32 %v6642, %v1686
        %v6646 = vmul.f32 %v6642, %v1687
        %v6647 = vadd.f32 %v6637, %v6643
        %v6648 = vadd.f32 %v6638, %v6644
        %v6649 = vadd.f32 %v6639, %v6645
        %v6650 = vadd.f32 %v6640, %v6646
        %s6651 = sld [smem:[#allocation2 + $0x78a]]
        %v6652 = vstv %s6651
        %v6653 = vmul.f32 %v6652, %v1732
        %v6654 = vmul.f32 %v6652, %v1733
        %v6655 = vmul.f32 %v6652, %v1734
        %v6656 = vmul.f32 %v6652, %v1735
        %v6657 = vadd.f32 %v6647, %v6653
        %v6658 = vadd.f32 %v6648, %v6654
        %v6659 = vadd.f32 %v6649, %v6655
        %v6660 = vadd.f32 %v6650, %v6656
        %s6661 = sld [smem:[#allocation2 + $0x78b]]
        %v6662 = vstv %s6661
        %v6663 = vmul.f32 %v6662, %v1780
        %v6664 = vmul.f32 %v6662, %v1781
        %v6665 = vmul.f32 %v6662, %v1782
        %v6666 = vmul.f32 %v6662, %v1783
        %v6667 = vadd.f32 %v6657, %v6663
        %v6668 = vadd.f32 %v6658, %v6664
        %v6669 = vadd.f32 %v6659, %v6665
        %v6670 = vadd.f32 %v6660, %v6666
        %s6671 = sld [smem:[#allocation2 + $0x78c]]
        %v6672 = vstv %s6671
        %v6673 = vmul.f32 %v6672, %v1828
        %v6674 = vmul.f32 %v6672, %v1829
        %v6675 = vmul.f32 %v6672, %v1830
        %v6676 = vmul.f32 %v6672, %v1831
        %v6677 = vadd.f32 %v6667, %v6673
        %v6678 = vadd.f32 %v6668, %v6674
        %v6679 = vadd.f32 %v6669, %v6675
        %v6680 = vadd.f32 %v6670, %v6676
        %s6681 = sld [smem:[#allocation2 + $0x78d]]
        %v6682 = vstv %s6681
        %v6683 = vmul.f32 %v6682, %v1836
        %v6684 = vmul.f32 %v6682, %v1837
        %v6685 = vmul.f32 %v6682, %v1838
        %v6686 = vmul.f32 %v6682, %v1839
        %v6687 = vadd.f32 %v6677, %v6683
        %v6688 = vadd.f32 %v6678, %v6684
        %v6689 = vadd.f32 %v6679, %v6685
        %v6690 = vadd.f32 %v6680, %v6686
        %s6691 = sld [smem:[#allocation2 + $0x78e]]
        %v6692 = vstv %s6691
        %v6693 = vmul.f32 %v6692, %v1884
        %v6694 = vmul.f32 %v6692, %v1885
        %v6695 = vmul.f32 %v6692, %v1886
        %v6696 = vmul.f32 %v6692, %v1887
        %v6697 = vadd.f32 %v6687, %v6693
        %v6698 = vadd.f32 %v6688, %v6694
        %v6699 = vadd.f32 %v6689, %v6695
        %v6700 = vadd.f32 %v6690, %v6696
        %s6701 = sld [smem:[#allocation2 + $0x78f]]
        %v6702 = vstv %s6701
        %v6703 = vmul.f32 %v6702, %v1932
        %v6704 = vmul.f32 %v6702, %v1933
        %v6705 = vmul.f32 %v6702, %v1934
        %v6706 = vmul.f32 %v6702, %v1935
        %v6707 = vadd.f32 %v6697, %v6703
        %v6708 = vadd.f32 %v6698, %v6704
        %v6709 = vadd.f32 %v6699, %v6705
        %v6710 = vadd.f32 %v6700, %v6706
        %s6711 = sld [smem:[#allocation2 + $0x790]]
        %v6712 = vstv %s6711
        %v6713 = vmul.f32 %v6712, %v1980
        %v6714 = vmul.f32 %v6712, %v1981
        %v6715 = vmul.f32 %v6712, %v1982
        %v6716 = vmul.f32 %v6712, %v1983
        %v6717 = vadd.f32 %v6707, %v6713
        %v6718 = vadd.f32 %v6708, %v6714
        %v6719 = vadd.f32 %v6709, %v6715
        %v6720 = vadd.f32 %v6710, %v6716
        %s6721 = sld [smem:[#allocation2 + $0x791]]
        %v6722 = vstv %s6721
        %v6723 = vmul.f32 %v6722, %v2028
        %v6724 = vmul.f32 %v6722, %v2029
        %v6725 = vmul.f32 %v6722, %v2030
        %v6726 = vmul.f32 %v6722, %v2031
        %v6727 = vadd.f32 %v6717, %v6723
        %v6728 = vadd.f32 %v6718, %v6724
        %v6729 = vadd.f32 %v6719, %v6725
        %v6730 = vadd.f32 %v6720, %v6726
        %s6731 = sld [smem:[#allocation2 + $0x792]]
        %v6732 = vstv %s6731
        %v6733 = vmul.f32 %v6732, %v2080
        %v6734 = vmul.f32 %v6732, %v2081
        %v6735 = vmul.f32 %v6732, %v2082
        %v6736 = vmul.f32 %v6732, %v2083
        %v6737 = vadd.f32 %v6727, %v6733
        %v6738 = vadd.f32 %v6728, %v6734
        %v6739 = vadd.f32 %v6729, %v6735
        %v6740 = vadd.f32 %v6730, %v6736
        %s6741 = sld [smem:[#allocation2 + $0x793]]
        %v6742 = vstv %s6741
        %v6743 = vmul.f32 %v6742, %v2128
        %v6744 = vmul.f32 %v6742, %v2129
        %v6745 = vmul.f32 %v6742, %v2130
        %v6746 = vmul.f32 %v6742, %v2131
        %v6747 = vadd.f32 %v6737, %v6743
        %v6748 = vadd.f32 %v6738, %v6744
        %v6749 = vadd.f32 %v6739, %v6745
        %v6750 = vadd.f32 %v6740, %v6746
        %s6751 = sld [smem:[#allocation2 + $0x794]]
        %v6752 = vstv %s6751
        %v6753 = vmul.f32 %v6752, %v2176
        %v6754 = vmul.f32 %v6752, %v2177
        %v6755 = vmul.f32 %v6752, %v2178
        %v6756 = vmul.f32 %v6752, %v2179
        %v6757 = vadd.f32 %v6747, %v6753
        %v6758 = vadd.f32 %v6748, %v6754
        %v6759 = vadd.f32 %v6749, %v6755
        %v6760 = vadd.f32 %v6750, %v6756
        %s6761 = sld [smem:[#allocation2 + $0x795]]
        %v6762 = vstv %s6761
        %v6763 = vmul.f32 %v6762, %v2224
        %v6764 = vmul.f32 %v6762, %v2225
        %v6765 = vmul.f32 %v6762, %v2226
        %v6766 = vmul.f32 %v6762, %v2227
        %v6767 = vadd.f32 %v6757, %v6763
        %v6768 = vadd.f32 %v6758, %v6764
        %v6769 = vadd.f32 %v6759, %v6765
        %v6770 = vadd.f32 %v6760, %v6766
        %s6771 = sld [smem:[#allocation2 + $0x796]]
        %v6772 = vstv %s6771
        %v6773 = vmul.f32 %v6772, %v2236
        %v6774 = vmul.f32 %v6772, %v2237
        %v6775 = vmul.f32 %v6772, %v2238
        %v6776 = vmul.f32 %v6772, %v2239
        %v6777 = vadd.f32 %v6767, %v6773
        %v6778 = vadd.f32 %v6768, %v6774
        %v6779 = vadd.f32 %v6769, %v6775
        %v6780 = vadd.f32 %v6770, %v6776
        %s6781 = sld [smem:[#allocation2 + $0x797]]
        %v6782 = vstv %s6781
        %v6783 = vmul.f32 %v6782, %v2284
        %v6784 = vmul.f32 %v6782, %v2285
        %v6785 = vmul.f32 %v6782, %v2286
        %v6786 = vmul.f32 %v6782, %v2287
        %v6787 = vadd.f32 %v6777, %v6783
        %v6788 = vadd.f32 %v6778, %v6784
        %v6789 = vadd.f32 %v6779, %v6785
        %v6790 = vadd.f32 %v6780, %v6786
        %s6791 = sld [smem:[#allocation2 + $0x798]]
        %v6792 = vstv %s6791
        %v6793 = vmul.f32 %v6792, %v2332
        %v6794 = vmul.f32 %v6792, %v2333
        %v6795 = vmul.f32 %v6792, %v2334
        %v6796 = vmul.f32 %v6792, %v2335
        %v6797 = vadd.f32 %v6787, %v6793
        %v6798 = vadd.f32 %v6788, %v6794
        %v6799 = vadd.f32 %v6789, %v6795
        %v6800 = vadd.f32 %v6790, %v6796
        %s6801 = sld [smem:[#allocation2 + $0x799]]
        %v6802 = vstv %s6801
        %v6803 = vmul.f32 %v6802, %v2380
        %v6804 = vmul.f32 %v6802, %v2381
        %v6805 = vmul.f32 %v6802, %v2382
        %v6806 = vmul.f32 %v6802, %v2383
        %v6807 = vadd.f32 %v6797, %v6803
        %v6808 = vadd.f32 %v6798, %v6804
        %v6809 = vadd.f32 %v6799, %v6805
        %v6810 = vadd.f32 %v6800, %v6806
        %s6811 = sld [smem:[#allocation2 + $0x79a]]
        %v6812 = vstv %s6811
        %v6813 = vmul.f32 %v6812, %v2428
        %v6814 = vmul.f32 %v6812, %v2429
        %v6815 = vmul.f32 %v6812, %v2430
        %v6816 = vmul.f32 %v6812, %v2431
        %v6817 = vadd.f32 %v6807, %v6813
        %v6818 = vadd.f32 %v6808, %v6814
        %v6819 = vadd.f32 %v6809, %v6815
        %v6820 = vadd.f32 %v6810, %v6816
        %v6821 = vmul.f32 %v6817, %v1162
        %v6822 = vmul.f32 %v6818, %v1163
        %v6823 = vmul.f32 %v6819, %v1164
        %v6824 = vmul.f32 %v6820, %v1165
        %s6825 = scalar_lea.vmem %s321, 448 [#allocation11]
        %6826 = vst [vmem:[%s6825] sm:$0xff] %v6821
        %6827 = vst [vmem:[%s6825 + $0x8] sm:$0xff] %v6822
        %6828 = vst [vmem:[%s6825 + $0x10] sm:$0xff] %v6823
        %6829 = vst [vmem:[%s6825 + $0x18] sm:$0xff] %v6824
        %s6830 = sand.u32 %s132, 1
        %s6831 = scalar_lea.sflag [#allocation4], %s6830
        %s6832 = sand.u32 %s132, 1
        %s6833 = smul.addr %s6832, 32
        %s6834 = scalar_lea.vmem [#allocation10], %s6833
        %s6835 = sand.u32 %s158, 1
        %s6836 = scalar_lea.sflag [#allocation12], %s6835
        %s6837 = sand.u32 %s158, 1
        %s6838 = smul.addr %s6837, 480
        %s6839 = scalar_lea.vmem [#allocation11], %s6838
        // Predicated region
        $region53: #{tpu_custom_call.1} parent=35 // pred_check
          %p6840 = pneg %p142
        $region54: #{tpu_custom_call.1} parent=35 // pred_check_branch
          %6842 = sbr.rel (%p6840) target = $region56
        $region55: #{tpu_custom_call.1} parent=35 // pred_region
          %s6844 = ssub.s32 512, 512
          %6845 = vsyncadd %s6831, %s6844
          %s6846 = smul.addr %s30, 4
          %s6847 = smul.addr %s6846, 128
          %s6848 = scalar_lea.hbm %s4, %s6847
          %s6849 = sshll.u32 %s6834, 4
          %s6850 = int_to_ptr.vmem [resolvable:$true] %s6849
          %6855 = dma.vmem_to_hbm [thread:$0]  %s6850, 512, %s6848, %s6831, 256, 256, 16
        $region56: #{tpu_custom_call.1} parent=35 // pred_fallthru
          _
        // Predicated region
        $region57: #{tpu_custom_call.1} parent=35 // pred_check
          %p6856 = pneg %p168
        $region58: #{tpu_custom_call.1} parent=35 // pred_check_branch
          %6858 = sbr.rel (%p6856) target = $region60
        $region59: #{tpu_custom_call.1} parent=35 // pred_region
          %s6860 = ssub.s32 7680, 7680
          %6861 = vsyncadd %s6836, %s6860
          %s6862 = smul.addr %s30, 60
          %s6863 = smul.addr %s6862, 128
          %s6864 = scalar_lea.hbm %s5, %s6863
          %s6865 = sshll.u32 %s6839, 4
          %s6866 = int_to_ptr.vmem [resolvable:$true] %s6865
          %6871 = dma.vmem_to_hbm [thread:$0]  %s6866, 7680, %s6864, %s6836, 256, 256, 16
        $region60: #{tpu_custom_call.1} parent=35 // pred_fallthru
          _
      $region36: #{tpu_custom_call.1} parent=5 // pred_fallthru
        _
      %p6872 = scmp.le.s32.totalorder 2, %s25
      // Predicated region
      $region61: #{tpu_custom_call.1} parent=5 // pred_check
        %p6873 = pneg %p6872
      $region62: #{tpu_custom_call.1} parent=5 // pred_check_branch
        %6875 = sbr.rel (%p6873) target = $region64
      $region63: #{tpu_custom_call.1} parent=5 // pred_region
        %s6876 = ssub.s32 %s25, 2
        // Predicated region
        $region65: #{tpu_custom_call.1} parent=63 // pred_check
          %p6877 = pneg %p148
        $region66: #{tpu_custom_call.1} parent=63 // pred_check_branch
          %6879 = sbr.rel (%p6877) target = $region68
        $region67: #{tpu_custom_call.1} parent=63 // pred_region
          %s6880 = sand.u32 %s133, 1
          %s6881 = scalar_lea.sflag [#allocation4], %s6880
          %s6882 = sand.u32 %s133, 1
          %s6883 = smul.addr %s6882, 32
          %s6884 = scalar_lea.vmem [#allocation10], %s6883
          %6885 = dma.done %s6881, 512
        $region68: #{tpu_custom_call.1} parent=63 // pred_fallthru
          _
        // Predicated region
        $region69: #{tpu_custom_call.1} parent=63 // pred_check
          %p6886 = pneg %p174
        $region70: #{tpu_custom_call.1} parent=63 // pred_check_branch
          %6888 = sbr.rel (%p6886) target = $region72
        $region71: #{tpu_custom_call.1} parent=63 // pred_region
          %s6889 = sand.u32 %s159, 1
          %s6890 = scalar_lea.sflag [#allocation12], %s6889
          %s6891 = sand.u32 %s159, 1
          %s6892 = smul.addr %s6891, 480
          %s6893 = scalar_lea.vmem [#allocation11], %s6892
          %6894 = dma.done %s6890, 7680
        $region72: #{tpu_custom_call.1} parent=63 // pred_fallthru
          _
      $region64: #{tpu_custom_call.1} parent=5 // pred_fallthru
        _
    $region6: #{tpu_custom_call.1} parent=1 // loop_footer
      %s29 = sadd.s32 1, %s25
    $region7: #{tpu_custom_call.1} parent=1 // loop_footer_branch
      %24 = sbr.rel target = $region3
    $region8: #{tpu_custom_call.1} parent=1 // loop_exit
      _
    %6895 = vsyncpa [#allocation3], 1
    %s6896 = scalar_lea.sflag [#allocation3], 1
    %6897 = vsyncpa %s6896, 1
    %6898 = vsyncpa [#allocation8], 1
    %s6899 = scalar_lea.sflag [#allocation8], 1
    %6900 = vsyncpa %s6899, 1
    %6901 = vsyncpa [#allocation4], 1
    %s6902 = scalar_lea.sflag [#allocation4], 1
    %6903 = vsyncpa %s6902, 1
    %6904 = vsyncpa [#allocation12], 1
    %s6905 = scalar_lea.sflag [#allocation12], 1
    %6906 = vsyncpa %s6905, 1
    %6907 = vsyncpa [#allocation5], 1
    %s6908 = scalar_lea.sflag [#allocation5], 1
    %6909 = vsyncpa %s6908, 1

</llo_original>
